<compile_context>
chip_gen: v6e
topology: v6e:2x2x1
jax: 0.10.0
libtpu: 0.0.40
codegen_flags: <defaults>
</compile_context>

<pallas_src>
import functools

import numpy as np

import jax
import jax.numpy as jnp
from jax.experimental import pallas as pl
from jax.experimental.pallas import tpu as pltpu


# ----------------------------- layout constants ------------------------------
CIN_P = 4           # per-pixel input lanes: 3 channels + one constant-1.0 lane
C1P = 8             # per-pixel lane stride after conv1 (6 real + 2 pad)
C2P = 16            # per-pixel lane stride after conv2 (16 real)
NS = 256            # per-pixel-shift output width of each conv stage (padded)
K1 = 5 * 128        # conv1 fused K  (5 kernel rows x 128 input lanes)
K2 = 5 * NS         # conv2 fused K  (5 kernel rows x 256 stage-1 lanes)
KF = 5 * NS         # fc1   fused K  (5 pooled rows  x 256 stage-2 lanes)


# ------------------------------- Pallas kernel -------------------------------
def _lenet_kernel(x_ref, t1_ref, b2_ref, t2_ref, u_ref, fb1_ref,
                  fc2w_ref, fb2_ref, fc3w_ref, fb3_ref, o_ref):
    """Forward pass for a block of B images.  Rows are ordered h*B + b."""
    f32 = jnp.float32
    B = o_ref.shape[0]
    cdt = t1_ref.dtype                     # matmul input dtype (bf16 or f32)

    x = x_ref[0]                           # (32*B, 128); row = h*B + b

    # ---- stage 1: conv1(5x5, 3->6) + folded bias + ReLU + 2x2 max-pool ------
    # K-concat of the 5 kernel-row windows -> one (28*B, 640) LHS; t1 holds
    # both pool pixel shifts (256 lanes each, garbage/pad columns zeroed).
    lhs1 = jnp.concatenate([x[i * B:(i + 28) * B] for i in range(5)], axis=-1)
    c1 = jnp.dot(lhs1, t1_ref[...], preferred_element_type=f32)    # (28B, 512)
    r1 = jnp.maximum(jnp.maximum(c1[:, :NS], c1[:, NS:]), 0.0)     # ReLU+w-max
    m1 = jnp.maximum(r1[:27 * B], r1[B:28 * B]).astype(cdt)        # h-max

    # ---- stage 2: conv2(5x5, 6->16) + bias + ReLU + 2x2 max-pool ------------
    # Pooled stage-1 row p / pixel q live at row-block 2p / lane-group 2q of
    # m1 (decimated grid); offsets baked into the packed t2.
    lhs2 = jnp.concatenate(
        [m1[2 * i * B:(2 * i + 19) * B] for i in range(5)], axis=-1)
    c2 = jnp.dot(lhs2, t2_ref[...], preferred_element_type=f32)    # (19B, 512)
    r2 = jnp.maximum(jnp.maximum(c2[:, :NS], c2[:, NS:]) + b2_ref[...], 0.0)
    m2 = jnp.maximum(r2[:17 * B], r2[2 * B:19 * B]).astype(cdt)    # (17B, 256)

    # ---- fc1 (400 -> 120): single (B, 1280) x (1280, 128) matmul ------------
    lhs3 = jnp.concatenate(
        [m2[4 * qh * B:(4 * qh + 1) * B] for qh in range(5)], axis=-1)
    h1 = jnp.maximum(
        jnp.dot(lhs3, u_ref[...], preferred_element_type=f32) + fb1_ref[...],
        0.0)

    # ---- fc2 (120 -> 84) + ReLU, fc3 (84 -> out) ----------------------------
    h2 = jnp.maximum(
        jnp.dot(h1.astype(cdt), fc2w_ref[...], preferred_element_type=f32)
        + fb2_ref[...], 0.0)
    y = (jnp.dot(h2.astype(cdt), fc3w_ref[...], preferred_element_type=f32)
         + fb3_ref[...])
    o_ref[...] = y.astype(o_ref.dtype)     # lane-dense (B, 128)


# ------------------------------ forward wrapper -------------------------------
@functools.partial(jax.jit, static_argnames=("out_size", "block_b", "interpret"))
def neuralnet_forward(x_flat, packed, *, out_size, block_b=16, interpret=False):
    """Equivalent of NeuralNet.forward: (N, 3*32*32) -> (N, out_size)."""
    assert block_b % 8 == 0
    n = x_flat.shape[0]
    cdt = packed["t1"].dtype
    n_pad = ((n + block_b - 1) // block_b) * block_b
    g = n_pad // block_b

    # Layout prep (one fused pass over the input): rows = h*B + b, lanes =
    # w*4 + c, with the 4th channel lane a constant 1.0 that carries the
    # folded conv1 bias through the Toeplitz matmul.
    # TODO(synk): for large deployments pre-store inputs in this (G, 32B, 128)
    # layout so the per-call transpose pass disappears entirely.
    x = x_flat.astype(jnp.float32)
    if n_pad != n:
        x = jnp.pad(x, ((0, n_pad - n), (0, 0)))
    x = x.reshape(g, block_b, 3, 32, 32).transpose(0, 3, 1, 4, 2)  # (G,H,B,W,C)
    x = jnp.pad(x, ((0, 0),) * 4 + ((0, 1),), constant_values=1.0)
    x = x.reshape(g, 32 * block_b, 128).astype(cdt)

    def wspec(a):
        nd = a.ndim
        return pl.BlockSpec(a.shape, lambda i, nd=nd: (0,) * nd)

    kwargs = {}
    if not interpret:
        kwargs["compiler_params"] = pltpu.CompilerParams(
            dimension_semantics=("parallel",),      # batch blocks across TCs
            vmem_limit_bytes=40 * 1024 * 1024)

    out = pl.pallas_call(
        _lenet_kernel,
        out_shape=jax.ShapeDtypeStruct((n_pad, 128), jnp.float32),
        grid=(g,),
        in_specs=[
            pl.BlockSpec((1, 32 * block_b, 128), lambda i: (i, 0, 0)),  # x
            wspec(packed["t1"]),   # conv1 fused Toeplitz (640, 512)
            wspec(packed["b2"]),   # conv2 bias row (1, 256)
            wspec(packed["t2"]),   # conv2 fused Toeplitz (1280, 512)
            wspec(packed["u"]),    # fc1 folded weights (1280, 128)
            wspec(packed["fb1"]),  # fc1 bias (1, 128)
            wspec(packed["fc2w"]), wspec(packed["fb2"]),
            wspec(packed["fc3w"]), wspec(packed["fb3"]),
        ],
        out_specs=pl.BlockSpec((block_b, 128), lambda i: (i, 0)),
        interpret=interpret,
        **kwargs,
    )(x, packed["t1"], packed["b2"], packed["t2"], packed["u"],
      packed["fb1"], packed["fc2w"], packed["fb2"], packed["fc3w"],
      packed["fb3"])
    return out[:n, :out_size]


# --------------------------- one-time weight repack ---------------------------
def prepare_params(params, out_size, dtype=jnp.bfloat16):
    """Repack PyTorch-layout weights once at init into the kernel's layout."""
    w1 = np.asarray(params["c1_w"], np.float32)    # (6, 3, 5, 5)
    b1 = np.asarray(params["c1_b"], np.float32)
    w2 = np.asarray(params["c2_w"], np.float32)    # (16, 6, 5, 5)
    b2 = np.asarray(params["c2_b"], np.float32)
    f1w = np.asarray(params["fc1_w"], np.float32)  # (120, 400)
    f1b = np.asarray(params["fc1_b"], np.float32)
    f2w = np.asarray(params["fc2_w"], np.float32)  # (84, 120)
    f2b = np.asarray(params["fc2_b"], np.float32)
    f3w = np.asarray(params["fc3_w"], np.float32)  # (out, 84)
    f3b = np.asarray(params["fc3_b"], np.float32)

    # conv1: fused (K-concat over kernel rows, N-concat over the two pool
    # pixel shifts padded to 256 lanes each).  Columns of nonexistent output
    # pixels (shift 1, group 27) are left exactly zero.
    t1 = np.zeros((K1, 2 * NS), np.float32)
    for s in range(2):
        for gg in range(28):
            p = gg + s                       # conv1 output pixel
            if p >= 28:
                continue
            for i in range(5):
                for j in range(5):
                    w = p + j                # input pixel column
                    t1[i * 128 + w * CIN_P:i * 128 + w * CIN_P + 3,
                       s * NS + gg * C1P:s * NS + gg * C1P + 6] = w1[:, :, i, j].T
            # Fold the conv1 bias: the input's pad-channel lane (pixel p,
            # lane 3) is a constant 1.0; route it through the i=0 block once.
            t1[p * CIN_P + 3, s * NS + gg * C1P:s * NS + gg * C1P + 6] = b1

    # conv2: pooled stage-1 pixel q sits at lane group 2q of m1.
    t2 = np.zeros((K2, 2 * NS), np.float32)
    for s in range(2):
        for gg in range(10):
            p = gg + s                       # conv2 output pixel
            if p >= 10:
                continue
            for i in range(5):
                for j in range(5):
                    q = p + j                # pooled stage-1 pixel (0..13)
                    t2[i * NS + 2 * q * C1P:i * NS + 2 * q * C1P + 6,
                       s * NS + gg * C2P:s * NS + gg * C2P + 16] = w2[:, :, i, j].T

    b2row = np.zeros((1, NS), np.float32)
    for gg in range(10):
        b2row[0, gg * C2P:gg * C2P + 16] = b2

    # fc1 folded into one (1280, 128) matrix; K-block qh holds pooled row qh,
    # pooled pixel qw at lane group 2*qw.  NCHW flatten: k = co*25 + qh*5 + qw.
    u = np.zeros((KF, 128), np.float32)
    for qh in range(5):
        for qw in range(5):
            for co in range(16):
                u[qh * NS + 2 * qw * C2P + co, :120] = \
                    f1w[:, co * 25 + qh * 5 + qw]

    fb1 = np.zeros((1, 128), np.float32); fb1[0, :120] = f1b
    fc2w = np.zeros((128, 128), np.float32); fc2w[:120, :84] = f2w.T
    fb2 = np.zeros((1, 128), np.float32); fb2[0, :84] = f2b
    fc3w = np.zeros((128, 128), np.float32); fc3w[:84, :out_size] = f3w.T
    fb3 = np.zeros((1, 128), np.float32); fb3[0, :out_size] = f3b

    return {
        "t1": jnp.asarray(t1, dtype), "t2": jnp.asarray(t2, dtype),
        "b2": jnp.asarray(b2row), "u": jnp.asarray(u, dtype),
        "fb1": jnp.asarray(fb1), "fc2w": jnp.asarray(fc2w, dtype),
        "fb2": jnp.asarray(fb2), "fc3w": jnp.asarray(fc3w, dtype),
        "fb3": jnp.asarray(fb3),
    }


# ------------------------------ parameter init --------------------------------
def init_params(key, out_size):
    """Deterministic synthetic params matching the PyTorch layer shapes."""
    ks = jax.random.split(key, 10)

    def u(k, shape, fan_in):
        bound = 1.0 / float(fan_in) ** 0.5
        return jax.random.uniform(k, shape, jnp.float32, -bound, bound)

    return {
        "c1_w": u(ks[0], (6, 3, 5, 5), 3 * 5 * 5),
        "c1_b": u(ks[1], (6,), 3 * 5 * 5),
        "c2_w": u(ks[2], (16, 6, 5, 5), 6 * 5 * 5),
        "c2_b": u(ks[3], (16,), 6 * 5 * 5),
        "fc1_w": u(ks[4], (120, 16 * 25), 16 * 25),
        "fc1_b": u(ks[5], (120,), 16 * 25),
        "fc2_w": u(ks[6], (84, 120), 120),
        "fc2_b": u(ks[7], (84,), 120),
        "fc3_w": u(ks[8], (out_size, 84), 84),
        "fc3_b": u(ks[9], (out_size,), 84),
    }


# ------------------------------ plain-JAX reference ---------------------------
def _reference_forward(x_flat, params):
    n = x_flat.shape[0]
    x = x_flat.reshape(n, 3, 32, 32)

    def conv(x, w, b):
        y = jax.lax.conv_general_dilated(
            x, w, window_strides=(1, 1), padding="VALID",
            dimension_numbers=("NCHW", "OIHW", "NCHW"))
        return jax.nn.relu(y + b[None, :, None, None])

    def pool(x):
        return jax.lax.reduce_window(x, -jnp.inf, jax.lax.max,
                                     (1, 1, 2, 2), (1, 1, 2, 2), "VALID")

    x = pool(conv(x, params["c1_w"], params["c1_b"]))
    x = pool(conv(x, params["c2_w"], params["c2_b"]))
    x = x.reshape(n, 16 * 5 * 5)
    x = jax.nn.relu(x @ params["fc1_w"].T + params["fc1_b"])
    x = jax.nn.relu(x @ params["fc2_w"].T + params["fc2_b"])
    return x @ params["fc3_w"].T + params["fc3_b"]


# TODO(synk): the optimizer (Adam) / loss_fn / step() training path is a
# host-side training concern and is intentionally not implemented as a kernel.

if __name__ == "__main__":
    key = jax.random.PRNGKey(0)
    k_param, k_x = jax.random.split(key)

    batch = 20                      # non-multiple of the block -> tests padding
    in_size = 3 * 32 * 32
    out_size = 10

    params = init_params(k_param, out_size)
    x = jax.random.normal(k_x, (batch, in_size), dtype=jnp.float32)

    # Production path: bf16 packed weights, compiled TPU kernel.
    packed = prepare_params(params, out_size)
    y = neuralnet_forward(x, packed, out_size=out_size)
    y = jax.block_until_ready(y)
    assert y.shape == (batch, out_size)
    assert bool(jnp.all(jnp.isfinite(y)))

    y_ref = _reference_forward(x, params)
    rel = float(jnp.linalg.norm(y - y_ref) / (jnp.linalg.norm(y_ref) + 1e-6))
    assert rel < 0.15, f"bf16 kernel mismatch vs reference: relative L2 {rel}"

    # Tight packing/indexing check: f32 packed weights, interpret mode,
    # per-element tolerance (addresses the review's correctness concern).
    packed_f32 = prepare_params(params, out_size, dtype=jnp.float32)
    with jax.default_matmul_precision("float32"):
        y_f32 = neuralnet_forward(x, packed_f32, out_size=out_size,
                                  interpret=True)
        y_ref_hi = _reference_forward(x, params)
    np.testing.assert_allclose(np.asarray(y_f32), np.asarray(y_ref_hi),
                               rtol=2e-2, atol=2e-3)

    print("KERNEL_OK")
</pallas_src>

<mosaic_0001>
module attributes {stable_mosaic.version = 11 : i64} {
  func.func @_lenet_kernel(%arg0: i32, %arg1: memref<1x512x128xbf16, #tpu.memory_space<vmem>>, %arg2: memref<640x512xbf16, #tpu.memory_space<vmem>>, %arg3: memref<1x256xf32, #tpu.memory_space<vmem>>, %arg4: memref<1280x512xbf16, #tpu.memory_space<vmem>>, %arg5: memref<1280x128xbf16, #tpu.memory_space<vmem>>, %arg6: memref<1x128xf32, #tpu.memory_space<vmem>>, %arg7: memref<128x128xbf16, #tpu.memory_space<vmem>>, %arg8: memref<1x128xf32, #tpu.memory_space<vmem>>, %arg9: memref<128x128xbf16, #tpu.memory_space<vmem>>, %arg10: memref<1x128xf32, #tpu.memory_space<vmem>>, %arg11: memref<16x128xf32, #tpu.memory_space<vmem>>) attributes {dimension_semantics = [#tpu.dimension_semantics<parallel>], iteration_bounds = array<i64: 2>, scalar_prefetch = 0 : i64, scratch_operands = 0 : i64, tpu.core_type = #tpu.core_type<tc>, window_params = [{transform_indices = @transform_0, window_bounds = array<i64: 1, 512, 128>}, {pipeline_mode = #tpu.pipeline_mode<synchronous>, transform_indices = @transform_1, window_bounds = array<i64: 640, 512>}, {pipeline_mode = #tpu.pipeline_mode<synchronous>, transform_indices = @transform_2, window_bounds = array<i64: 1, 256>}, {pipeline_mode = #tpu.pipeline_mode<synchronous>, transform_indices = @transform_3, window_bounds = array<i64: 1280, 512>}, {pipeline_mode = #tpu.pipeline_mode<synchronous>, transform_indices = @transform_4, window_bounds = array<i64: 1280, 128>}, {pipeline_mode = #tpu.pipeline_mode<synchronous>, transform_indices = @transform_5, window_bounds = array<i64: 1, 128>}, {pipeline_mode = #tpu.pipeline_mode<synchronous>, transform_indices = @transform_6, window_bounds = array<i64: 128, 128>}, {pipeline_mode = #tpu.pipeline_mode<synchronous>, transform_indices = @transform_7, window_bounds = array<i64: 1, 128>}, {pipeline_mode = #tpu.pipeline_mode<synchronous>, transform_indices = @transform_8, window_bounds = array<i64: 128, 128>}, {pipeline_mode = #tpu.pipeline_mode<synchronous>, transform_indices = @transform_9, window_bounds = array<i64: 1, 128>}, {transform_indices = @transform_10, window_bounds = array<i64: 16, 128>}]} {
    %c0 = arith.constant 0 : index
    %c0_0 = arith.constant 0 : index
    %c0_1 = arith.constant 0 : index
    %0 = vector.load %arg1[%c0, %c0_0, %c0_1] : memref<1x512x128xbf16, #tpu.memory_space<vmem>>, vector<1x512x128xbf16>
    %1 = vector.shape_cast %0 : vector<1x512x128xbf16> to vector<512x128xbf16>
    %2 = vector.extract_strided_slice %1 {offsets = [0, 0], sizes = [448, 128], strides = [1, 1]} : vector<512x128xbf16> to vector<448x128xbf16>
    %3 = vector.extract_strided_slice %1 {offsets = [16, 0], sizes = [448, 128], strides = [1, 1]} : vector<512x128xbf16> to vector<448x128xbf16>
    %4 = vector.extract_strided_slice %1 {offsets = [32, 0], sizes = [448, 128], strides = [1, 1]} : vector<512x128xbf16> to vector<448x128xbf16>
    %5 = vector.extract_strided_slice %1 {offsets = [48, 0], sizes = [448, 128], strides = [1, 1]} : vector<512x128xbf16> to vector<448x128xbf16>
    %6 = vector.extract_strided_slice %1 {offsets = [64, 0], sizes = [448, 128], strides = [1, 1]} : vector<512x128xbf16> to vector<448x128xbf16>
    %7 = tpu.concatenate %2, %3, %4, %5, %6 in 1 : vector<448x128xbf16>, vector<448x128xbf16>, vector<448x128xbf16>, vector<448x128xbf16>, vector<448x128xbf16> -> vector<448x640xbf16>
    %c0_2 = arith.constant 0 : index
    %c0_3 = arith.constant 0 : index
    %8 = vector.load %arg2[%c0_2, %c0_3] : memref<640x512xbf16, #tpu.memory_space<vmem>>, vector<640x512xbf16>
    %cst = arith.constant dense<0.000000e+00> : vector<448x512xf32>
    %9 = tpu.matmul %7, %8, %cst {dimension_numbers = #tpu.dot_dimension_numbers<[1], [0], [0], [1], [0, 0, 1, 1], [], []>} : vector<448x640xbf16>, vector<640x512xbf16>, vector<448x512xf32> -> vector<448x512xf32>
    %10 = vector.extract_strided_slice %9 {offsets = [0, 0], sizes = [448, 256], strides = [1, 1]} : vector<448x512xf32> to vector<448x256xf32>
    %11 = vector.extract_strided_slice %9 {offsets = [0, 256], sizes = [448, 256], strides = [1, 1]} : vector<448x512xf32> to vector<448x256xf32>
    %12 = arith.maximumf %10, %11 : vector<448x256xf32>
    %cst_4 = arith.constant 0.000000e+00 : f32
    %13 = vector.broadcast %cst_4 : f32 to vector<448x256xf32>
    %14 = arith.maximumf %12, %13 : vector<448x256xf32>
    %15 = vector.extract_strided_slice %14 {offsets = [0, 0], sizes = [432, 256], strides = [1, 1]} : vector<448x256xf32> to vector<432x256xf32>
    %16 = vector.extract_strided_slice %14 {offsets = [16, 0], sizes = [432, 256], strides = [1, 1]} : vector<448x256xf32> to vector<432x256xf32>
    %17 = arith.maximumf %15, %16 : vector<432x256xf32>
    %18 = arith.truncf %17 : vector<432x256xf32> to vector<432x256xbf16>
    %19 = vector.extract_strided_slice %18 {offsets = [0, 0], sizes = [304, 256], strides = [1, 1]} : vector<432x256xbf16> to vector<304x256xbf16>
    %20 = vector.extract_strided_slice %18 {offsets = [32, 0], sizes = [304, 256], strides = [1, 1]} : vector<432x256xbf16> to vector<304x256xbf16>
    %21 = vector.extract_strided_slice %18 {offsets = [64, 0], sizes = [304, 256], strides = [1, 1]} : vector<432x256xbf16> to vector<304x256xbf16>
    %22 = vector.extract_strided_slice %18 {offsets = [96, 0], sizes = [304, 256], strides = [1, 1]} : vector<432x256xbf16> to vector<304x256xbf16>
    %23 = vector.extract_strided_slice %18 {offsets = [128, 0], sizes = [304, 256], strides = [1, 1]} : vector<432x256xbf16> to vector<304x256xbf16>
    %24 = tpu.concatenate %19, %20, %21, %22, %23 in 1 : vector<304x256xbf16>, vector<304x256xbf16>, vector<304x256xbf16>, vector<304x256xbf16>, vector<304x256xbf16> -> vector<304x1280xbf16>
    %c0_5 = arith.constant 0 : index
    %c0_6 = arith.constant 0 : index
    %25 = vector.load %arg4[%c0_5, %c0_6] : memref<1280x512xbf16, #tpu.memory_space<vmem>>, vector<1280x512xbf16>
    %cst_7 = arith.constant dense<0.000000e+00> : vector<304x512xf32>
    %26 = tpu.matmul %24, %25, %cst_7 {dimension_numbers = #tpu.dot_dimension_numbers<[1], [0], [0], [1], [0, 0, 1, 1], [], []>} : vector<304x1280xbf16>, vector<1280x512xbf16>, vector<304x512xf32> -> vector<304x512xf32>
    %27 = vector.extract_strided_slice %26 {offsets = [0, 0], sizes = [304, 256], strides = [1, 1]} : vector<304x512xf32> to vector<304x256xf32>
    %28 = vector.extract_strided_slice %26 {offsets = [0, 256], sizes = [304, 256], strides = [1, 1]} : vector<304x512xf32> to vector<304x256xf32>
    %29 = arith.maximumf %27, %28 : vector<304x256xf32>
    %c0_8 = arith.constant 0 : index
    %c0_9 = arith.constant 0 : index
    %30 = vector.load %arg3[%c0_8, %c0_9] : memref<1x256xf32, #tpu.memory_space<vmem>>, vector<1x256xf32>
    %31 = vector.broadcast %30 : vector<1x256xf32> to vector<304x256xf32>
    %32 = arith.addf %29, %31 : vector<304x256xf32>
    %cst_10 = arith.constant 0.000000e+00 : f32
    %33 = vector.broadcast %cst_10 : f32 to vector<304x256xf32>
    %34 = arith.maximumf %32, %33 : vector<304x256xf32>
    %35 = vector.extract_strided_slice %34 {offsets = [0, 0], sizes = [272, 256], strides = [1, 1]} : vector<304x256xf32> to vector<272x256xf32>
    %36 = vector.extract_strided_slice %34 {offsets = [32, 0], sizes = [272, 256], strides = [1, 1]} : vector<304x256xf32> to vector<272x256xf32>
    %37 = arith.maximumf %35, %36 : vector<272x256xf32>
    %38 = arith.truncf %37 : vector<272x256xf32> to vector<272x256xbf16>
    %39 = vector.extract_strided_slice %38 {offsets = [0, 0], sizes = [16, 256], strides = [1, 1]} : vector<272x256xbf16> to vector<16x256xbf16>
    %40 = vector.extract_strided_slice %38 {offsets = [64, 0], sizes = [16, 256], strides = [1, 1]} : vector<272x256xbf16> to vector<16x256xbf16>
    %41 = vector.extract_strided_slice %38 {offsets = [128, 0], sizes = [16, 256], strides = [1, 1]} : vector<272x256xbf16> to vector<16x256xbf16>
    %42 = vector.extract_strided_slice %38 {offsets = [192, 0], sizes = [16, 256], strides = [1, 1]} : vector<272x256xbf16> to vector<16x256xbf16>
    %43 = vector.extract_strided_slice %38 {offsets = [256, 0], sizes = [16, 256], strides = [1, 1]} : vector<272x256xbf16> to vector<16x256xbf16>
    %44 = tpu.concatenate %39, %40, %41, %42, %43 in 1 : vector<16x256xbf16>, vector<16x256xbf16>, vector<16x256xbf16>, vector<16x256xbf16>, vector<16x256xbf16> -> vector<16x1280xbf16>
    %c0_11 = arith.constant 0 : index
    %c0_12 = arith.constant 0 : index
    %45 = vector.load %arg5[%c0_11, %c0_12] : memref<1280x128xbf16, #tpu.memory_space<vmem>>, vector<1280x128xbf16>
    %cst_13 = arith.constant dense<0.000000e+00> : vector<16x128xf32>
    %46 = tpu.matmul %44, %45, %cst_13 {dimension_numbers = #tpu.dot_dimension_numbers<[1], [0], [0], [1], [0, 0, 1, 1], [], []>} : vector<16x1280xbf16>, vector<1280x128xbf16>, vector<16x128xf32> -> vector<16x128xf32>
    %c0_14 = arith.constant 0 : index
    %c0_15 = arith.constant 0 : index
    %47 = vector.load %arg6[%c0_14, %c0_15] : memref<1x128xf32, #tpu.memory_space<vmem>>, vector<1x128xf32>
    %48 = vector.broadcast %47 : vector<1x128xf32> to vector<16x128xf32>
    %49 = arith.addf %46, %48 : vector<16x128xf32>
    %cst_16 = arith.constant 0.000000e+00 : f32
    %50 = vector.broadcast %cst_16 : f32 to vector<16x128xf32>
    %51 = arith.maximumf %49, %50 : vector<16x128xf32>
    %52 = arith.truncf %51 : vector<16x128xf32> to vector<16x128xbf16>
    %c0_17 = arith.constant 0 : index
    %c0_18 = arith.constant 0 : index
    %53 = vector.load %arg7[%c0_17, %c0_18] : memref<128x128xbf16, #tpu.memory_space<vmem>>, vector<128x128xbf16>
    %cst_19 = arith.constant dense<0.000000e+00> : vector<16x128xf32>
    %54 = tpu.matmul %52, %53, %cst_19 {dimension_numbers = #tpu.dot_dimension_numbers<[1], [0], [0], [1], [0, 0, 1, 1], [], []>} : vector<16x128xbf16>, vector<128x128xbf16>, vector<16x128xf32> -> vector<16x128xf32>
    %c0_20 = arith.constant 0 : index
    %c0_21 = arith.constant 0 : index
    %55 = vector.load %arg8[%c0_20, %c0_21] : memref<1x128xf32, #tpu.memory_space<vmem>>, vector<1x128xf32>
    %56 = vector.broadcast %55 : vector<1x128xf32> to vector<16x128xf32>
    %57 = arith.addf %54, %56 : vector<16x128xf32>
    %cst_22 = arith.constant 0.000000e+00 : f32
    %58 = vector.broadcast %cst_22 : f32 to vector<16x128xf32>
    %59 = arith.maximumf %57, %58 : vector<16x128xf32>
    %60 = arith.truncf %59 : vector<16x128xf32> to vector<16x128xbf16>
    %c0_23 = arith.constant 0 : index
    %c0_24 = arith.constant 0 : index
    %61 = vector.load %arg9[%c0_23, %c0_24] : memref<128x128xbf16, #tpu.memory_space<vmem>>, vector<128x128xbf16>
    %cst_25 = arith.constant dense<0.000000e+00> : vector<16x128xf32>
    %62 = tpu.matmul %60, %61, %cst_25 {dimension_numbers = #tpu.dot_dimension_numbers<[1], [0], [0], [1], [0, 0, 1, 1], [], []>} : vector<16x128xbf16>, vector<128x128xbf16>, vector<16x128xf32> -> vector<16x128xf32>
    %c0_26 = arith.constant 0 : index
    %c0_27 = arith.constant 0 : index
    %63 = vector.load %arg10[%c0_26, %c0_27] : memref<1x128xf32, #tpu.memory_space<vmem>>, vector<1x128xf32>
    %64 = vector.broadcast %63 : vector<1x128xf32> to vector<16x128xf32>
    %65 = arith.addf %62, %64 : vector<16x128xf32>
    %c0_28 = arith.constant 0 : index
    %c0_29 = arith.constant 0 : index
    %66 = vector.load %arg11[%c0_28, %c0_29] : memref<16x128xf32, #tpu.memory_space<vmem>>, vector<16x128xf32>
    tpu.vector_store %arg11[%c0_28, %c0_29], %65 {strides = array<i32>} : memref<16x128xf32, #tpu.memory_space<vmem>>, vector<16x128xf32>,
    return
  }
  func.func @transform_0(%arg0: i32) -> (i32, i32, i32) {
    %c0_i32 = arith.constant 0 : i32
    %c0_i32_0 = arith.constant 0 : i32
    %c0_i32_1 = arith.constant 0 : i32
    return %arg0, %c0_i32, %c0_i32_0 : i32, i32, i32
  }
  func.func @transform_1(%arg0: i32) -> (i32, i32) {
    %c0_i32 = arith.constant 0 : i32
    %c0_i32_0 = arith.constant 0 : i32
    %c0_i32_1 = arith.constant 0 : i32
    return %c0_i32, %c0_i32_0 : i32, i32
  }
  func.func @transform_2(%arg0: i32) -> (i32, i32) {
    %c0_i32 = arith.constant 0 : i32
    %c0_i32_0 = arith.constant 0 : i32
    %c0_i32_1 = arith.constant 0 : i32
    return %c0_i32, %c0_i32_0 : i32, i32
  }
  func.func @transform_3(%arg0: i32) -> (i32, i32) {
    %c0_i32 = arith.constant 0 : i32
    %c0_i32_0 = arith.constant 0 : i32
    %c0_i32_1 = arith.constant 0 : i32
    return %c0_i32, %c0_i32_0 : i32, i32
  }
  func.func @transform_4(%arg0: i32) -> (i32, i32) {
    %c0_i32 = arith.constant 0 : i32
    %c0_i32_0 = arith.constant 0 : i32
    %c0_i32_1 = arith.constant 0 : i32
    return %c0_i32, %c0_i32_0 : i32, i32
  }
  func.func @transform_5(%arg0: i32) -> (i32, i32) {
    %c0_i32 = arith.constant 0 : i32
    %c0_i32_0 = arith.constant 0 : i32
    %c0_i32_1 = arith.constant 0 : i32
    return %c0_i32, %c0_i32_0 : i32, i32
  }
  func.func @transform_6(%arg0: i32) -> (i32, i32) {
    %c0_i32 = arith.constant 0 : i32
    %c0_i32_0 = arith.constant 0 : i32
    %c0_i32_1 = arith.constant 0 : i32
    return %c0_i32, %c0_i32_0 : i32, i32
  }
  func.func @transform_7(%arg0: i32) -> (i32, i32) {
    %c0_i32 = arith.constant 0 : i32
    %c0_i32_0 = arith.constant 0 : i32
    %c0_i32_1 = arith.constant 0 : i32
    return %c0_i32, %c0_i32_0 : i32, i32
  }
  func.func @transform_8(%arg0: i32) -> (i32, i32) {
    %c0_i32 = arith.constant 0 : i32
    %c0_i32_0 = arith.constant 0 : i32
    %c0_i32_1 = arith.constant 0 : i32
    return %c0_i32, %c0_i32_0 : i32, i32
  }
  func.func @transform_9(%arg0: i32) -> (i32, i32) {
    %c0_i32 = arith.constant 0 : i32
    %c0_i32_0 = arith.constant 0 : i32
    %c0_i32_1 = arith.constant 0 : i32
    return %c0_i32, %c0_i32_0 : i32, i32
  }
  func.func @transform_10(%arg0: i32) -> (i32, i32) {
    %c0_i32 = arith.constant 0 : i32
    %c0_i32_0 = arith.constant 0 : i32
    return %arg0, %c0_i32 : i32, i32
  }
}

</mosaic_0001>

<llo_original>
// kernel: neuralnet_forward.1
$region0: #{neuralnet_forward.1}
  #allocation0 [shape = 'u32[]', space=smem, size = 0x4, offset = 0x4, fixed_abs, tag = 'smem constant byte address 0x4 - core index']
  #allocation1 [shape = 'u32[144,128]{1,0:T(1,128)}', space=vmem, size = 0x12000, scoped, tag = 'internal scratch']
  %s0 = inlined_call_operand.vmem [shape: bf16[2,512,128], index: 0, kind: input, shape index: {}]
  %s1 = inlined_call_operand.vmem [shape: bf16[640,512], index: 1, kind: input, shape index: {}]
  %s2 = inlined_call_operand.vmem [shape: f32[1,256], index: 2, kind: input, shape index: {}]
  %s3 = inlined_call_operand.vmem [shape: bf16[1280,512], index: 3, kind: input, shape index: {}]
  %s4 = inlined_call_operand.vmem [shape: bf16[1280,128], index: 4, kind: input, shape index: {}]
  %s5 = inlined_call_operand.vmem [shape: f32[1,128], index: 5, kind: input, shape index: {}]
  %s6 = inlined_call_operand.vmem [shape: bf16[128,128], index: 6, kind: input, shape index: {}]
  %s7 = inlined_call_operand.vmem [shape: f32[1,128], index: 7, kind: input, shape index: {}]
  %s8 = inlined_call_operand.vmem [shape: bf16[128,128], index: 8, kind: input, shape index: {}]
  %s9 = inlined_call_operand.vmem [shape: f32[1,128], index: 9, kind: input, shape index: {}]
  %s10 = inlined_call_operand.vmem [shape: f32[32,128], index: 10, kind: output, shape index: {}]
  %s11 = sld [smem:[#allocation0]]
  $region73: #{neuralnet_forward.1} parent=0
    _
  %s13 = ssub.s32 1, %s11
  %s14 = scalar_select 0, %s13, %s11
  loop: start=0, step=1, limit=4
  $region2: #{neuralnet_forward.1} parent=0 // loop_pre_header
    _
  $region3: #{neuralnet_forward.1} parent=0 // loop_header
    %s16 = sphi 0, %s20
    %p17 = scmp.ge.s32.totalorder %s16, 4
    %s26 = sphi 0, %s28
    %s29 = sphi 0, %s26
    %s30 = sphi 0, %s29
    %s46 = sphi 0, %s30
    %s50 = sphi 0, %s50
    %s52 = sphi 0, %s50
    %s53 = sphi 0, %s52
    %s67 = sphi 0, %s53
    %s71 = sphi 0, %s71
    %s73 = sphi 0, %s71
    %s74 = sphi 0, %s73
    %s88 = sphi 0, %s74
    %s92 = sphi 0, %s92
    %s94 = sphi 0, %s92
    %s95 = sphi 0, %s94
    %s109 = sphi 0, %s95
    %s113 = sphi 0, %s113
    %s115 = sphi 0, %s113
    %s116 = sphi 0, %s115
    %s130 = sphi 0, %s116
    %s134 = sphi 0, %s134
    %s136 = sphi 0, %s134
    %s137 = sphi 0, %s136
    %s151 = sphi 0, %s137
    %s155 = sphi 0, %s155
    %s157 = sphi 0, %s155
    %s158 = sphi 0, %s157
    %s172 = sphi 0, %s158
    %s176 = sphi 0, %s176
    %s178 = sphi 0, %s176
    %s179 = sphi 0, %s178
    %s193 = sphi 0, %s179
    %s197 = sphi 0, %s197
    %s199 = sphi 0, %s197
    %s200 = sphi 0, %s199
    %s214 = sphi 0, %s200
    %s218 = sphi 0, %s218
    %s220 = sphi 0, %s218
    %s221 = sphi 0, %s220
    %s235 = sphi 0, %s221
    %s241 = sphi 0, %s243
    %s244 = sphi 0, %s241
    %s245 = sphi 0, %s244
    %s261 = sphi 0, %s245
  $region4: #{neuralnet_forward.1} parent=0 // loop_header_branch
    %19 = sbr.rel (%p17) target = $region8
  $region5: #{neuralnet_forward.1} parent=0 // loop_body
    %s21 = ssub.s32 %s16, 1
    %s22 = ssub.s32 %s16, 2
    %s23 = sadd.s32 %s16, 1
    %s24 = ssub.s32 %s16, %s23
    %p25 = scmp.eq.s32.totalorder %s24, 0
    %s27 = sadd.s32 %s26, 1
    %s28 = scalar_select %p25, %s26, %s27
    %p31 = pneg %p25
    %p32 = scmp.eq.s32.totalorder %s16, 1
    %p33 = por %p31, %p32
    %p34 = scmp.ne.s32.totalorder %s26, %s29
    %p35 = scmp.eq.s32.totalorder %s16, 0
    %p36 = por %p34, %p35
    %p37 = scmp.ne.s32.totalorder %s26, %s29
    %p38 = scmp.eq.s32.totalorder %s21, 1
    %p39 = por %p37, %p38
    %p40 = scmp.ne.s32.totalorder %s29, %s30
    %p41 = scmp.eq.s32.totalorder %s21, 0
    %p42 = por %p40, %p41
    %p43 = scmp.ne.s32.totalorder %s29, %s30
    %p44 = scmp.eq.s32.totalorder %s22, 1
    %p45 = por %p43, %p44
    %p47 = scmp.ne.s32.totalorder %s30, %s46
    %p48 = scmp.eq.s32.totalorder %s22, 0
    %p49 = por %p47, %p48
    %s51 = sadd.s32 %s50, 1
    %p54 = scmp.eq.s32.totalorder %s16, 1
    %p55 = scmp.ne.s32.totalorder %s50, %s52
    %p56 = scmp.eq.s32.totalorder %s16, 0
    %p57 = por %p55, %p56
    %p58 = scmp.ne.s32.totalorder %s50, %s52
    %p59 = scmp.eq.s32.totalorder %s21, 1
    %p60 = por %p58, %p59
    %p61 = scmp.ne.s32.totalorder %s52, %s53
    %p62 = scmp.eq.s32.totalorder %s21, 0
    %p63 = por %p61, %p62
    %p64 = scmp.ne.s32.totalorder %s52, %s53
    %p65 = scmp.eq.s32.totalorder %s22, 1
    %p66 = por %p64, %p65
    %p68 = scmp.ne.s32.totalorder %s53, %s67
    %p69 = scmp.eq.s32.totalorder %s22, 0
    %p70 = por %p68, %p69
    %s72 = sadd.s32 %s71, 1
    %p75 = scmp.eq.s32.totalorder %s16, 1
    %p76 = scmp.ne.s32.totalorder %s71, %s73
    %p77 = scmp.eq.s32.totalorder %s16, 0
    %p78 = por %p76, %p77
    %p79 = scmp.ne.s32.totalorder %s71, %s73
    %p80 = scmp.eq.s32.totalorder %s21, 1
    %p81 = por %p79, %p80
    %p82 = scmp.ne.s32.totalorder %s73, %s74
    %p83 = scmp.eq.s32.totalorder %s21, 0
    %p84 = por %p82, %p83
    %p85 = scmp.ne.s32.totalorder %s73, %s74
    %p86 = scmp.eq.s32.totalorder %s22, 1
    %p87 = por %p85, %p86
    %p89 = scmp.ne.s32.totalorder %s74, %s88
    %p90 = scmp.eq.s32.totalorder %s22, 0
    %p91 = por %p89, %p90
    %s93 = sadd.s32 %s92, 1
    %p96 = scmp.eq.s32.totalorder %s16, 1
    %p97 = scmp.ne.s32.totalorder %s92, %s94
    %p98 = scmp.eq.s32.totalorder %s16, 0
    %p99 = por %p97, %p98
    %p100 = scmp.ne.s32.totalorder %s92, %s94
    %p101 = scmp.eq.s32.totalorder %s21, 1
    %p102 = por %p100, %p101
    %p103 = scmp.ne.s32.totalorder %s94, %s95
    %p104 = scmp.eq.s32.totalorder %s21, 0
    %p105 = por %p103, %p104
    %p106 = scmp.ne.s32.totalorder %s94, %s95
    %p107 = scmp.eq.s32.totalorder %s22, 1
    %p108 = por %p106, %p107
    %p110 = scmp.ne.s32.totalorder %s95, %s109
    %p111 = scmp.eq.s32.totalorder %s22, 0
    %p112 = por %p110, %p111
    %s114 = sadd.s32 %s113, 1
    %p117 = scmp.eq.s32.totalorder %s16, 1
    %p118 = scmp.ne.s32.totalorder %s113, %s115
    %p119 = scmp.eq.s32.totalorder %s16, 0
    %p120 = por %p118, %p119
    %p121 = scmp.ne.s32.totalorder %s113, %s115
    %p122 = scmp.eq.s32.totalorder %s21, 1
    %p123 = por %p121, %p122
    %p124 = scmp.ne.s32.totalorder %s115, %s116
    %p125 = scmp.eq.s32.totalorder %s21, 0
    %p126 = por %p124, %p125
    %p127 = scmp.ne.s32.totalorder %s115, %s116
    %p128 = scmp.eq.s32.totalorder %s22, 1
    %p129 = por %p127, %p128
    %p131 = scmp.ne.s32.totalorder %s116, %s130
    %p132 = scmp.eq.s32.totalorder %s22, 0
    %p133 = por %p131, %p132
    %s135 = sadd.s32 %s134, 1
    %p138 = scmp.eq.s32.totalorder %s16, 1
    %p139 = scmp.ne.s32.totalorder %s134, %s136
    %p140 = scmp.eq.s32.totalorder %s16, 0
    %p141 = por %p139, %p140
    %p142 = scmp.ne.s32.totalorder %s134, %s136
    %p143 = scmp.eq.s32.totalorder %s21, 1
    %p144 = por %p142, %p143
    %p145 = scmp.ne.s32.totalorder %s136, %s137
    %p146 = scmp.eq.s32.totalorder %s21, 0
    %p147 = por %p145, %p146
    %p148 = scmp.ne.s32.totalorder %s136, %s137
    %p149 = scmp.eq.s32.totalorder %s22, 1
    %p150 = por %p148, %p149
    %p152 = scmp.ne.s32.totalorder %s137, %s151
    %p153 = scmp.eq.s32.totalorder %s22, 0
    %p154 = por %p152, %p153
    %s156 = sadd.s32 %s155, 1
    %p159 = scmp.eq.s32.totalorder %s16, 1
    %p160 = scmp.ne.s32.totalorder %s155, %s157
    %p161 = scmp.eq.s32.totalorder %s16, 0
    %p162 = por %p160, %p161
    %p163 = scmp.ne.s32.totalorder %s155, %s157
    %p164 = scmp.eq.s32.totalorder %s21, 1
    %p165 = por %p163, %p164
    %p166 = scmp.ne.s32.totalorder %s157, %s158
    %p167 = scmp.eq.s32.totalorder %s21, 0
    %p168 = por %p166, %p167
    %p169 = scmp.ne.s32.totalorder %s157, %s158
    %p170 = scmp.eq.s32.totalorder %s22, 1
    %p171 = por %p169, %p170
    %p173 = scmp.ne.s32.totalorder %s158, %s172
    %p174 = scmp.eq.s32.totalorder %s22, 0
    %p175 = por %p173, %p174
    %s177 = sadd.s32 %s176, 1
    %p180 = scmp.eq.s32.totalorder %s16, 1
    %p181 = scmp.ne.s32.totalorder %s176, %s178
    %p182 = scmp.eq.s32.totalorder %s16, 0
    %p183 = por %p181, %p182
    %p184 = scmp.ne.s32.totalorder %s176, %s178
    %p185 = scmp.eq.s32.totalorder %s21, 1
    %p186 = por %p184, %p185
    %p187 = scmp.ne.s32.totalorder %s178, %s179
    %p188 = scmp.eq.s32.totalorder %s21, 0
    %p189 = por %p187, %p188
    %p190 = scmp.ne.s32.totalorder %s178, %s179
    %p191 = scmp.eq.s32.totalorder %s22, 1
    %p192 = por %p190, %p191
    %p194 = scmp.ne.s32.totalorder %s179, %s193
    %p195 = scmp.eq.s32.totalorder %s22, 0
    %p196 = por %p194, %p195
    %s198 = sadd.s32 %s197, 1
    %p201 = scmp.eq.s32.totalorder %s16, 1
    %p202 = scmp.ne.s32.totalorder %s197, %s199
    %p203 = scmp.eq.s32.totalorder %s16, 0
    %p204 = por %p202, %p203
    %p205 = scmp.ne.s32.totalorder %s197, %s199
    %p206 = scmp.eq.s32.totalorder %s21, 1
    %p207 = por %p205, %p206
    %p208 = scmp.ne.s32.totalorder %s199, %s200
    %p209 = scmp.eq.s32.totalorder %s21, 0
    %p210 = por %p208, %p209
    %p211 = scmp.ne.s32.totalorder %s199, %s200
    %p212 = scmp.eq.s32.totalorder %s22, 1
    %p213 = por %p211, %p212
    %p215 = scmp.ne.s32.totalorder %s200, %s214
    %p216 = scmp.eq.s32.totalorder %s22, 0
    %p217 = por %p215, %p216
    %s219 = sadd.s32 %s218, 1
    %p222 = scmp.eq.s32.totalorder %s16, 1
    %p223 = scmp.ne.s32.totalorder %s218, %s220
    %p224 = scmp.eq.s32.totalorder %s16, 0
    %p225 = por %p223, %p224
    %p226 = scmp.ne.s32.totalorder %s218, %s220
    %p227 = scmp.eq.s32.totalorder %s21, 1
    %p228 = por %p226, %p227
    %p229 = scmp.ne.s32.totalorder %s220, %s221
    %p230 = scmp.eq.s32.totalorder %s21, 0
    %p231 = por %p229, %p230
    %p232 = scmp.ne.s32.totalorder %s220, %s221
    %p233 = scmp.eq.s32.totalorder %s22, 1
    %p234 = por %p232, %p233
    %p236 = scmp.ne.s32.totalorder %s221, %s235
    %p237 = scmp.eq.s32.totalorder %s22, 0
    %p238 = por %p236, %p237
    %s239 = ssub.s32 %s16, %s23
    %p240 = scmp.eq.s32.totalorder %s239, 0
    %s242 = sadd.s32 %s241, 1
    %s243 = scalar_select %p240, %s241, %s242
    %p246 = pneg %p240
    %p247 = scmp.eq.s32.totalorder %s16, 1
    %p248 = por %p246, %p247
    %p249 = scmp.ne.s32.totalorder %s241, %s244
    %p250 = scmp.eq.s32.totalorder %s16, 0
    %p251 = por %p249, %p250
    %p252 = scmp.ne.s32.totalorder %s241, %s244
    %p253 = scmp.eq.s32.totalorder %s21, 1
    %p254 = por %p252, %p253
    %p255 = scmp.ne.s32.totalorder %s244, %s245
    %p256 = scmp.eq.s32.totalorder %s21, 0
    %p257 = por %p255, %p256
    %p258 = scmp.ne.s32.totalorder %s244, %s245
    %p259 = scmp.eq.s32.totalorder %s22, 1
    %p260 = por %p258, %p259
    %p262 = scmp.ne.s32.totalorder %s245, %s261
    %p263 = scmp.eq.s32.totalorder %s22, 0
    %p264 = por %p262, %p263
    %p265 = scmp.le.s32.totalorder 1, %s16
    %p266 = scmp.lt.s32.totalorder %s16, 3
    %p267 = pnand %p265, %p266
    %p268 = pneg %p267
    // Predicated region
    $region9: #{neuralnet_forward.1} parent=5 // pred_check
      _
    $region10: #{neuralnet_forward.1} parent=5 // pred_check_branch
      %270 = sbr.rel (%p267) target = $region12
    $region11: #{neuralnet_forward.1} parent=5 // pred_region
      %s271 = ssub.s32 %s16, 1
      // Predicated region
      $region13: #{neuralnet_forward.1} parent=11 // pred_check
        %p272 = pneg %p63
      $region14: #{neuralnet_forward.1} parent=11 // pred_check_branch
        %274 = sbr.rel (%p272) target = $region16
      $region15: #{neuralnet_forward.1} parent=11 // pred_region
        _
      $region16: #{neuralnet_forward.1} parent=11 // pred_fallthru
        _
      // Predicated region
      $region17: #{neuralnet_forward.1} parent=11 // pred_check
        %p275 = pneg %p84
      $region18: #{neuralnet_forward.1} parent=11 // pred_check_branch
        %277 = sbr.rel (%p275) target = $region20
      $region19: #{neuralnet_forward.1} parent=11 // pred_region
        _
      $region20: #{neuralnet_forward.1} parent=11 // pred_fallthru
        _
      // Predicated region
      $region21: #{neuralnet_forward.1} parent=11 // pred_check
        %p278 = pneg %p105
      $region22: #{neuralnet_forward.1} parent=11 // pred_check_branch
        %280 = sbr.rel (%p278) target = $region24
      $region23: #{neuralnet_forward.1} parent=11 // pred_region
        _
      $region24: #{neuralnet_forward.1} parent=11 // pred_fallthru
        _
      // Predicated region
      $region25: #{neuralnet_forward.1} parent=11 // pred_check
        %p281 = pneg %p126
      $region26: #{neuralnet_forward.1} parent=11 // pred_check_branch
        %283 = sbr.rel (%p281) target = $region28
      $region27: #{neuralnet_forward.1} parent=11 // pred_region
        _
      $region28: #{neuralnet_forward.1} parent=11 // pred_fallthru
        _
      // Predicated region
      $region29: #{neuralnet_forward.1} parent=11 // pred_check
        %p284 = pneg %p147
      $region30: #{neuralnet_forward.1} parent=11 // pred_check_branch
        %286 = sbr.rel (%p284) target = $region32
      $region31: #{neuralnet_forward.1} parent=11 // pred_region
        _
      $region32: #{neuralnet_forward.1} parent=11 // pred_fallthru
        _
      // Predicated region
      $region33: #{neuralnet_forward.1} parent=11 // pred_check
        %p287 = pneg %p168
      $region34: #{neuralnet_forward.1} parent=11 // pred_check_branch
        %289 = sbr.rel (%p287) target = $region36
      $region35: #{neuralnet_forward.1} parent=11 // pred_region
        _
      $region36: #{neuralnet_forward.1} parent=11 // pred_fallthru
        _
      // Predicated region
      $region37: #{neuralnet_forward.1} parent=11 // pred_check
        %p290 = pneg %p189
      $region38: #{neuralnet_forward.1} parent=11 // pred_check_branch
        %292 = sbr.rel (%p290) target = $region40
      $region39: #{neuralnet_forward.1} parent=11 // pred_region
        _
      $region40: #{neuralnet_forward.1} parent=11 // pred_fallthru
        _
      // Predicated region
      $region41: #{neuralnet_forward.1} parent=11 // pred_check
        %p293 = pneg %p210
      $region42: #{neuralnet_forward.1} parent=11 // pred_check_branch
        %295 = sbr.rel (%p293) target = $region44
      $region43: #{neuralnet_forward.1} parent=11 // pred_region
        _
      $region44: #{neuralnet_forward.1} parent=11 // pred_fallthru
        _
      // Predicated region
      $region45: #{neuralnet_forward.1} parent=11 // pred_check
        %p296 = pneg %p231
      $region46: #{neuralnet_forward.1} parent=11 // pred_check_branch
        %298 = sbr.rel (%p296) target = $region48
      $region47: #{neuralnet_forward.1} parent=11 // pred_region
        _
      $region48: #{neuralnet_forward.1} parent=11 // pred_fallthru
        _
    $region12: #{neuralnet_forward.1} parent=5 // pred_fallthru
      _
    %p299 = scmp.lt.s32.totalorder %s16, 2
    // Predicated region
    $region49: #{neuralnet_forward.1} parent=5 // pred_check
      %p300 = pneg %p299
    $region50: #{neuralnet_forward.1} parent=5 // pred_check_branch
      %302 = sbr.rel (%p300) target = $region52
    $region51: #{neuralnet_forward.1} parent=5 // pred_region
      // Predicated region
      $region53: #{neuralnet_forward.1} parent=51 // pred_check
        %p303 = pneg %p36
      $region54: #{neuralnet_forward.1} parent=51 // pred_check_branch
        %305 = sbr.rel (%p303) target = $region56
      $region55: #{neuralnet_forward.1} parent=51 // pred_region
        %p306 = scmp.lt.s32.totalorder %s16, 1
        %s307 = scalar_select %p306, %s16, 1
        %s308 = smul.addr %s307, 64
        %s309 = smul.addr %s308, 4
        %s310 = scalar_lea.vmem %s0, %s309
      $region56: #{neuralnet_forward.1} parent=51 // pred_fallthru
        _
    $region52: #{neuralnet_forward.1} parent=5 // pred_fallthru
      _
    %p311 = scmp.le.s32.totalorder 1, %s16
    %p312 = scmp.lt.s32.totalorder %s16, 3
    %p313 = pnand %p311, %p312
    %p314 = pneg %p313
    // Predicated region
    $region57: #{neuralnet_forward.1} parent=5 // pred_check
      _
    $region58: #{neuralnet_forward.1} parent=5 // pred_check_branch
      %316 = sbr.rel (%p313) target = $region60
    $region59: #{neuralnet_forward.1} parent=5 // pred_region
      %s317 = ssub.s32 %s16, 1
      %p318 = scmp.lt.s32.totalorder %s21, 1
      %s319 = scalar_select %p318, %s21, 1
      %s320 = smul.addr %s319, 64
      %s321 = smul.addr %s320, 4
      %s322 = scalar_lea.vmem %s0, %s321
      %p323 = pneg %p42
      %p324 = pneg %p39
      %p325 = pneg %p63
      %p326 = pneg %p60
      %p327 = pneg %p84
      %p328 = pneg %p81
      %p329 = pneg %p105
      %p330 = pneg %p102
      %p331 = pneg %p126
      %p332 = pneg %p123
      %p333 = pneg %p147
      %p334 = pneg %p144
      %p335 = pneg %p168
      %p336 = pneg %p165
      %p337 = pneg %p189
      %p338 = pneg %p186
      %p339 = pneg %p210
      %p340 = pneg %p207
      %p341 = pneg %p231
      %p342 = pneg %p228
      %p343 = pneg %p257
      %p344 = pneg %p254
      %s345 = smul.u32 2, %s21
      %p346 = scmp.lt.s32.totalorder %s345, 3
      %s347 = scalar_select %p346, %s345, 3
      %s348 = smul.addr %s347, 8
      %s349 = scalar_lea.vmem %s10, %s348
      %p350 = scmp.lt.s32.totalorder %s21, 1
      %s351 = scalar_select %p350, %s21, 1
      %s352 = smul.addr %s351, 64
      %s353 = smul.addr %s352, 4
      %s354 = scalar_lea.vmem %s0, %s353
      %s355 = smul.u32 2, %s21
      %p356 = scmp.lt.s32.totalorder %s355, 3
      %s357 = scalar_select %p356, %s355, 3
      %s358 = smul.addr %s357, 8
      %s359 = scalar_lea.vmem %s10, %s358
      %s360 = smul.u32 2, %s21
      %v362 = vld [vmem:[%s354] sm:$0xf]
      %v363 = vld [vmem:[%s354 + $0x4] sm:$0xf]
      %v364 = vld [vmem:[%s354 + $0x8] sm:$0xf]
      %v365 = vld [vmem:[%s354 + $0xc] sm:$0xf]
      %v366 = vld [vmem:[%s354 + $0x10] sm:$0xf]
      %v367 = vld [vmem:[%s354 + $0x14] sm:$0xf]
      %v368 = vld [vmem:[%s354 + $0x18] sm:$0xf]
      %v369 = vld [vmem:[%s354 + $0x1c] sm:$0xf]
      %v370 = vld [vmem:[%s354 + $0x20] sm:$0xf]
      %v371 = vld [vmem:[%s354 + $0x24] sm:$0xf]
      %v372 = vld [vmem:[%s354 + $0x28] sm:$0xf]
      %v373 = vld [vmem:[%s354 + $0x2c] sm:$0xf]
      %v374 = vld [vmem:[%s354 + $0x30] sm:$0xf]
      %v375 = vld [vmem:[%s354 + $0x34] sm:$0xf]
      %v376 = vld [vmem:[%s354 + $0x38] sm:$0xf]
      %v377 = vld [vmem:[%s354 + $0x3c] sm:$0xf]
      %v378 = vld [vmem:[%s354 + $0x40] sm:$0xf]
      %v379 = vld [vmem:[%s354 + $0x44] sm:$0xf]
      %v380 = vld [vmem:[%s354 + $0x48] sm:$0xf]
      %v381 = vld [vmem:[%s354 + $0x4c] sm:$0xf]
      %v382 = vld [vmem:[%s354 + $0x50] sm:$0xf]
      %v383 = vld [vmem:[%s354 + $0x54] sm:$0xf]
      %v384 = vld [vmem:[%s354 + $0x58] sm:$0xf]
      %v385 = vld [vmem:[%s354 + $0x5c] sm:$0xf]
      %v386 = vld [vmem:[%s354 + $0x60] sm:$0xf]
      %v387 = vld [vmem:[%s354 + $0x64] sm:$0xf]
      %v388 = vld [vmem:[%s354 + $0x68] sm:$0xf]
      %v389 = vld [vmem:[%s354 + $0x6c] sm:$0xf]
      %v390 = vld [vmem:[%s354 + $0x70] sm:$0xf]
      %v391 = vld [vmem:[%s354 + $0x74] sm:$0xf]
      %v392 = vld [vmem:[%s354 + $0x78] sm:$0xf]
      %v393 = vld [vmem:[%s354 + $0x7c] sm:$0xf]
      %v394 = vld [vmem:[%s354 + $0x80] sm:$0xf]
      %v395 = vld [vmem:[%s354 + $0x84] sm:$0xf]
      %v396 = vld [vmem:[%s354 + $0x88] sm:$0xf]
      %v397 = vld [vmem:[%s354 + $0x8c] sm:$0xf]
      %v398 = vld [vmem:[%s354 + $0x90] sm:$0xf]
      %v399 = vld [vmem:[%s354 + $0x94] sm:$0xf]
      %v400 = vld [vmem:[%s354 + $0x98] sm:$0xf]
      %v401 = vld [vmem:[%s354 + $0x9c] sm:$0xf]
      %v402 = vld [vmem:[%s354 + $0xa0] sm:$0xf]
      %v403 = vld [vmem:[%s354 + $0xa4] sm:$0xf]
      %v404 = vld [vmem:[%s354 + $0xa8] sm:$0xf]
      %v405 = vld [vmem:[%s354 + $0xac] sm:$0xf]
      %v406 = vld [vmem:[%s354 + $0xb0] sm:$0xf]
      %v407 = vld [vmem:[%s354 + $0xb4] sm:$0xf]
      %v408 = vld [vmem:[%s354 + $0xb8] sm:$0xf]
      %v409 = vld [vmem:[%s354 + $0xbc] sm:$0xf]
      %v410 = vld [vmem:[%s354 + $0xc0] sm:$0xf]
      %v411 = vld [vmem:[%s354 + $0xc4] sm:$0xf]
      %v412 = vld [vmem:[%s354 + $0xc8] sm:$0xf]
      %v413 = vld [vmem:[%s354 + $0xcc] sm:$0xf]
      %v414 = vld [vmem:[%s354 + $0xd0] sm:$0xf]
      %v415 = vld [vmem:[%s354 + $0xd4] sm:$0xf]
      %v416 = vld [vmem:[%s354 + $0xd8] sm:$0xf]
      %v417 = vld [vmem:[%s354 + $0xdc] sm:$0xf]
      %v418 = vld [vmem:[%s354 + $0xe0] sm:$0xf]
      %v419 = vld [vmem:[%s354 + $0xe4] sm:$0xf]
      %v420 = vld [vmem:[%s354 + $0xe8] sm:$0xf]
      %v421 = vld [vmem:[%s354 + $0xec] sm:$0xf]
      %v422 = vld [vmem:[%s354 + $0xf0] sm:$0xf]
      %v423 = vld [vmem:[%s354 + $0xf4] sm:$0xf]
      %v424 = vld [vmem:[%s354 + $0xf8] sm:$0xf]
      %v425 = vld [vmem:[%s354 + $0xfc] sm:$0xf]
      %v482 = vunpack.c.l.b16 %v362
      %v483 = vunpack.c.l.b16 %v363
      %v484 = vunpack.c.l.b16 %v364
      %v485 = vunpack.c.l.b16 %v365
      %v486 = vunpack.c.l.b16 %v366
      %v487 = vunpack.c.l.b16 %v367
      %v488 = vunpack.c.l.b16 %v368
      %v489 = vunpack.c.l.b16 %v369
      %v490 = vunpack.c.l.b16 %v370
      %v491 = vunpack.c.l.b16 %v371
      %v492 = vunpack.c.l.b16 %v372
      %v493 = vunpack.c.l.b16 %v373
      %v494 = vunpack.c.l.b16 %v374
      %v495 = vunpack.c.l.b16 %v375
      %v496 = vunpack.c.l.b16 %v376
      %v497 = vunpack.c.l.b16 %v377
      %v498 = vunpack.c.l.b16 %v378
      %v499 = vunpack.c.l.b16 %v379
      %v500 = vunpack.c.l.b16 %v380
      %v501 = vunpack.c.l.b16 %v381
      %v502 = vunpack.c.l.b16 %v382
      %v503 = vunpack.c.l.b16 %v383
      %v504 = vunpack.c.l.b16 %v384
      %v505 = vunpack.c.l.b16 %v385
      %v506 = vunpack.c.l.b16 %v386
      %v507 = vunpack.c.l.b16 %v387
      %v508 = vunpack.c.l.b16 %v388
      %v509 = vunpack.c.l.b16 %v389
      %v510 = vunpack.c.l.b16 %v390
      %v511 = vunpack.c.l.b16 %v391
      %v512 = vunpack.c.l.b16 %v392
      %v513 = vunpack.c.l.b16 %v393
      %v514 = vunpack.c.l.b16 %v394
      %v515 = vunpack.c.l.b16 %v395
      %v516 = vunpack.c.l.b16 %v396
      %v517 = vunpack.c.l.b16 %v397
      %v518 = vunpack.c.l.b16 %v398
      %v519 = vunpack.c.l.b16 %v399
      %v520 = vunpack.c.l.b16 %v400
      %v521 = vunpack.c.l.b16 %v401
      %v522 = vunpack.c.l.b16 %v402
      %v523 = vunpack.c.l.b16 %v403
      %v524 = vunpack.c.l.b16 %v404
      %v525 = vunpack.c.l.b16 %v405
      %v526 = vunpack.c.l.b16 %v406
      %v527 = vunpack.c.l.b16 %v407
      %v528 = vunpack.c.l.b16 %v408
      %v529 = vunpack.c.l.b16 %v409
      %v530 = vunpack.c.l.b16 %v410
      %v531 = vunpack.c.l.b16 %v411
      %v532 = vunpack.c.l.b16 %v412
      %v533 = vunpack.c.l.b16 %v413
      %v534 = vunpack.c.l.b16 %v414
      %v535 = vunpack.c.l.b16 %v415
      %v536 = vunpack.c.l.b16 %v416
      %v537 = vunpack.c.l.b16 %v417
      %v538 = vpack.c.b16 %v483, %v482
      %v539 = vpack.c.b16 %v485, %v484
      %v540 = vpack.c.b16 %v487, %v486
      %v541 = vpack.c.b16 %v489, %v488
      %v542 = vpack.c.b16 %v491, %v490
      %v543 = vpack.c.b16 %v493, %v492
      %v544 = vpack.c.b16 %v495, %v494
      %v545 = vpack.c.b16 %v497, %v496
      %v546 = vpack.c.b16 %v499, %v498
      %v547 = vpack.c.b16 %v501, %v500
      %v548 = vpack.c.b16 %v503, %v502
      %v549 = vpack.c.b16 %v505, %v504
      %v550 = vpack.c.b16 %v507, %v506
      %v551 = vpack.c.b16 %v509, %v508
      %v552 = vpack.c.b16 %v511, %v510
      %v553 = vpack.c.b16 %v513, %v512
      %v554 = vpack.c.b16 %v515, %v514
      %v555 = vpack.c.b16 %v517, %v516
      %v556 = vpack.c.b16 %v519, %v518
      %v557 = vpack.c.b16 %v521, %v520
      %v558 = vpack.c.b16 %v523, %v522
      %v559 = vpack.c.b16 %v525, %v524
      %v560 = vpack.c.b16 %v527, %v526
      %v561 = vpack.c.b16 %v529, %v528
      %v562 = vpack.c.b16 %v531, %v530
      %v563 = vpack.c.b16 %v533, %v532
      %v564 = vpack.c.b16 %v535, %v534
      %v565 = vpack.c.b16 %v537, %v536
      %v596 = vunpack.c.l.b16 %v418
      %v597 = vunpack.c.l.b16 %v419
      %v598 = vpack.c.b16 %v597, %v596
      %v602 = vunpack.c.l.b16 %v420
      %v603 = vunpack.c.l.b16 %v421
      %v604 = vpack.c.b16 %v603, %v602
      %v608 = vunpack.c.l.b16 %v422
      %v609 = vunpack.c.l.b16 %v423
      %v610 = vpack.c.b16 %v609, %v608
      %v614 = vunpack.c.l.b16 %v424
      %v615 = vunpack.c.l.b16 %v425
      %v616 = vpack.c.b16 %v615, %v614
      %v618 = vld [vmem:[%s1] sm:$0xff]
      %v619 = vld [vmem:[%s1 + $0x8] sm:$0xff]
      %v620 = vld [vmem:[%s1 + $0x10] sm:$0xff]
      %v621 = vld [vmem:[%s1 + $0x18] sm:$0xff]
      %v622 = vld [vmem:[%s1 + $0x20] sm:$0xff]
      %v623 = vld [vmem:[%s1 + $0x28] sm:$0xff]
      %v624 = vld [vmem:[%s1 + $0x30] sm:$0xff]
      %v625 = vld [vmem:[%s1 + $0x38] sm:$0xff]
      %v626 = vld [vmem:[%s1 + $0x40] sm:$0xff]
      %v627 = vld [vmem:[%s1 + $0x48] sm:$0xff]
      %v628 = vld [vmem:[%s1 + $0x50] sm:$0xff]
      %v629 = vld [vmem:[%s1 + $0x58] sm:$0xff]
      %v630 = vld [vmem:[%s1 + $0x60] sm:$0xff]
      %v631 = vld [vmem:[%s1 + $0x68] sm:$0xff]
      %v632 = vld [vmem:[%s1 + $0x70] sm:$0xff]
      %v633 = vld [vmem:[%s1 + $0x78] sm:$0xff]
      %v634 = vld [vmem:[%s1 + $0x80] sm:$0xff]
      %v635 = vld [vmem:[%s1 + $0x88] sm:$0xff]
      %v636 = vld [vmem:[%s1 + $0x90] sm:$0xff]
      %v637 = vld [vmem:[%s1 + $0x98] sm:$0xff]
      %v638 = vld [vmem:[%s1 + $0xa0] sm:$0xff]
      %v639 = vld [vmem:[%s1 + $0xa8] sm:$0xff]
      %v640 = vld [vmem:[%s1 + $0xb0] sm:$0xff]
      %v641 = vld [vmem:[%s1 + $0xb8] sm:$0xff]
      %v642 = vld [vmem:[%s1 + $0xc0] sm:$0xff]
      %v643 = vld [vmem:[%s1 + $0xc8] sm:$0xff]
      %v644 = vld [vmem:[%s1 + $0xd0] sm:$0xff]
      %v645 = vld [vmem:[%s1 + $0xd8] sm:$0xff]
      %v646 = vld [vmem:[%s1 + $0xe0] sm:$0xff]
      %v647 = vld [vmem:[%s1 + $0xe8] sm:$0xff]
      %v648 = vld [vmem:[%s1 + $0xf0] sm:$0xff]
      %v649 = vld [vmem:[%s1 + $0xf8] sm:$0xff]
      %v650 = vld [vmem:[%s1 + $0x100] sm:$0xff]
      %v651 = vld [vmem:[%s1 + $0x108] sm:$0xff]
      %v652 = vld [vmem:[%s1 + $0x110] sm:$0xff]
      %v653 = vld [vmem:[%s1 + $0x118] sm:$0xff]
      %v654 = vld [vmem:[%s1 + $0x120] sm:$0xff]
      %v655 = vld [vmem:[%s1 + $0x128] sm:$0xff]
      %v656 = vld [vmem:[%s1 + $0x130] sm:$0xff]
      %v657 = vld [vmem:[%s1 + $0x138] sm:$0xff]
      %v658 = vld [vmem:[%s1 + $0x140] sm:$0xff]
      %v659 = vld [vmem:[%s1 + $0x148] sm:$0xff]
      %v660 = vld [vmem:[%s1 + $0x150] sm:$0xff]
      %v661 = vld [vmem:[%s1 + $0x158] sm:$0xff]
      %v662 = vld [vmem:[%s1 + $0x160] sm:$0xff]
      %v663 = vld [vmem:[%s1 + $0x168] sm:$0xff]
      %v664 = vld [vmem:[%s1 + $0x170] sm:$0xff]
      %v665 = vld [vmem:[%s1 + $0x178] sm:$0xff]
      %v666 = vld [vmem:[%s1 + $0x180] sm:$0xff]
      %v667 = vld [vmem:[%s1 + $0x188] sm:$0xff]
      %v668 = vld [vmem:[%s1 + $0x190] sm:$0xff]
      %v669 = vld [vmem:[%s1 + $0x198] sm:$0xff]
      %v670 = vld [vmem:[%s1 + $0x1a0] sm:$0xff]
      %v671 = vld [vmem:[%s1 + $0x1a8] sm:$0xff]
      %v672 = vld [vmem:[%s1 + $0x1b0] sm:$0xff]
      %v673 = vld [vmem:[%s1 + $0x1b8] sm:$0xff]
      %v674 = vld [vmem:[%s1 + $0x1c0] sm:$0xff]
      %v675 = vld [vmem:[%s1 + $0x1c8] sm:$0xff]
      %v676 = vld [vmem:[%s1 + $0x1d0] sm:$0xff]
      %v677 = vld [vmem:[%s1 + $0x1d8] sm:$0xff]
      %v678 = vld [vmem:[%s1 + $0x1e0] sm:$0xff]
      %v679 = vld [vmem:[%s1 + $0x1e8] sm:$0xff]
      %v680 = vld [vmem:[%s1 + $0x1f0] sm:$0xff]
      %v681 = vld [vmem:[%s1 + $0x1f8] sm:$0xff]
      %v682 = vld [vmem:[%s1 + $0x200] sm:$0xff]
      %v683 = vld [vmem:[%s1 + $0x208] sm:$0xff]
      %v684 = vld [vmem:[%s1 + $0x210] sm:$0xff]
      %v685 = vld [vmem:[%s1 + $0x218] sm:$0xff]
      %v686 = vld [vmem:[%s1 + $0x220] sm:$0xff]
      %v687 = vld [vmem:[%s1 + $0x228] sm:$0xff]
      %v688 = vld [vmem:[%s1 + $0x230] sm:$0xff]
      %v689 = vld [vmem:[%s1 + $0x238] sm:$0xff]
      %v690 = vld [vmem:[%s1 + $0x240] sm:$0xff]
      %v691 = vld [vmem:[%s1 + $0x248] sm:$0xff]
      %v692 = vld [vmem:[%s1 + $0x250] sm:$0xff]
      %v693 = vld [vmem:[%s1 + $0x258] sm:$0xff]
      %v694 = vld [vmem:[%s1 + $0x260] sm:$0xff]
      %v695 = vld [vmem:[%s1 + $0x268] sm:$0xff]
      %v696 = vld [vmem:[%s1 + $0x270] sm:$0xff]
      %v697 = vld [vmem:[%s1 + $0x278] sm:$0xff]
      %v698 = vld [vmem:[%s1 + $0x280] sm:$0xff]
      %v699 = vld [vmem:[%s1 + $0x288] sm:$0xff]
      %v700 = vld [vmem:[%s1 + $0x290] sm:$0xff]
      %v701 = vld [vmem:[%s1 + $0x298] sm:$0xff]
      %v702 = vld [vmem:[%s1 + $0x2a0] sm:$0xff]
      %v703 = vld [vmem:[%s1 + $0x2a8] sm:$0xff]
      %v704 = vld [vmem:[%s1 + $0x2b0] sm:$0xff]
      %v705 = vld [vmem:[%s1 + $0x2b8] sm:$0xff]
      %v706 = vld [vmem:[%s1 + $0x2c0] sm:$0xff]
      %v707 = vld [vmem:[%s1 + $0x2c8] sm:$0xff]
      %v708 = vld [vmem:[%s1 + $0x2d0] sm:$0xff]
      %v709 = vld [vmem:[%s1 + $0x2d8] sm:$0xff]
      %v710 = vld [vmem:[%s1 + $0x2e0] sm:$0xff]
      %v711 = vld [vmem:[%s1 + $0x2e8] sm:$0xff]
      %v712 = vld [vmem:[%s1 + $0x2f0] sm:$0xff]
      %v713 = vld [vmem:[%s1 + $0x2f8] sm:$0xff]
      %v714 = vld [vmem:[%s1 + $0x300] sm:$0xff]
      %v715 = vld [vmem:[%s1 + $0x308] sm:$0xff]
      %v716 = vld [vmem:[%s1 + $0x310] sm:$0xff]
      %v717 = vld [vmem:[%s1 + $0x318] sm:$0xff]
      %v718 = vld [vmem:[%s1 + $0x320] sm:$0xff]
      %v719 = vld [vmem:[%s1 + $0x328] sm:$0xff]
      %v720 = vld [vmem:[%s1 + $0x330] sm:$0xff]
      %v721 = vld [vmem:[%s1 + $0x338] sm:$0xff]
      %v722 = vld [vmem:[%s1 + $0x340] sm:$0xff]
      %v723 = vld [vmem:[%s1 + $0x348] sm:$0xff]
      %v724 = vld [vmem:[%s1 + $0x350] sm:$0xff]
      %v725 = vld [vmem:[%s1 + $0x358] sm:$0xff]
      %v726 = vld [vmem:[%s1 + $0x360] sm:$0xff]
      %v727 = vld [vmem:[%s1 + $0x368] sm:$0xff]
      %v728 = vld [vmem:[%s1 + $0x370] sm:$0xff]
      %v729 = vld [vmem:[%s1 + $0x378] sm:$0xff]
      %v730 = vld [vmem:[%s1 + $0x380] sm:$0xff]
      %v731 = vld [vmem:[%s1 + $0x388] sm:$0xff]
      %v732 = vld [vmem:[%s1 + $0x390] sm:$0xff]
      %v733 = vld [vmem:[%s1 + $0x398] sm:$0xff]
      %v734 = vld [vmem:[%s1 + $0x3a0] sm:$0xff]
      %v735 = vld [vmem:[%s1 + $0x3a8] sm:$0xff]
      %v736 = vld [vmem:[%s1 + $0x3b0] sm:$0xff]
      %v737 = vld [vmem:[%s1 + $0x3b8] sm:$0xff]
      %v738 = vld [vmem:[%s1 + $0x3c0] sm:$0xff]
      %v739 = vld [vmem:[%s1 + $0x3c8] sm:$0xff]
      %v740 = vld [vmem:[%s1 + $0x3d0] sm:$0xff]
      %v741 = vld [vmem:[%s1 + $0x3d8] sm:$0xff]
      %v742 = vld [vmem:[%s1 + $0x3e0] sm:$0xff]
      %v743 = vld [vmem:[%s1 + $0x3e8] sm:$0xff]
      %v744 = vld [vmem:[%s1 + $0x3f0] sm:$0xff]
      %v745 = vld [vmem:[%s1 + $0x3f8] sm:$0xff]
      %v746 = vld [vmem:[%s1 + $0x400] sm:$0xff]
      %v747 = vld [vmem:[%s1 + $0x408] sm:$0xff]
      %v748 = vld [vmem:[%s1 + $0x410] sm:$0xff]
      %v749 = vld [vmem:[%s1 + $0x418] sm:$0xff]
      %v750 = vld [vmem:[%s1 + $0x420] sm:$0xff]
      %v751 = vld [vmem:[%s1 + $0x428] sm:$0xff]
      %v752 = vld [vmem:[%s1 + $0x430] sm:$0xff]
      %v753 = vld [vmem:[%s1 + $0x438] sm:$0xff]
      %v754 = vld [vmem:[%s1 + $0x440] sm:$0xff]
      %v755 = vld [vmem:[%s1 + $0x448] sm:$0xff]
      %v756 = vld [vmem:[%s1 + $0x450] sm:$0xff]
      %v757 = vld [vmem:[%s1 + $0x458] sm:$0xff]
      %v758 = vld [vmem:[%s1 + $0x460] sm:$0xff]
      %v759 = vld [vmem:[%s1 + $0x468] sm:$0xff]
      %v760 = vld [vmem:[%s1 + $0x470] sm:$0xff]
      %v761 = vld [vmem:[%s1 + $0x478] sm:$0xff]
      %v762 = vld [vmem:[%s1 + $0x480] sm:$0xff]
      %v763 = vld [vmem:[%s1 + $0x488] sm:$0xff]
      %v764 = vld [vmem:[%s1 + $0x490] sm:$0xff]
      %v765 = vld [vmem:[%s1 + $0x498] sm:$0xff]
      %v766 = vld [vmem:[%s1 + $0x4a0] sm:$0xff]
      %v767 = vld [vmem:[%s1 + $0x4a8] sm:$0xff]
      %v768 = vld [vmem:[%s1 + $0x4b0] sm:$0xff]
      %v769 = vld [vmem:[%s1 + $0x4b8] sm:$0xff]
      %v770 = vld [vmem:[%s1 + $0x4c0] sm:$0xff]
      %v771 = vld [vmem:[%s1 + $0x4c8] sm:$0xff]
      %v772 = vld [vmem:[%s1 + $0x4d0] sm:$0xff]
      %v773 = vld [vmem:[%s1 + $0x4d8] sm:$0xff]
      %v774 = vld [vmem:[%s1 + $0x4e0] sm:$0xff]
      %v775 = vld [vmem:[%s1 + $0x4e8] sm:$0xff]
      %v776 = vld [vmem:[%s1 + $0x4f0] sm:$0xff]
      %v777 = vld [vmem:[%s1 + $0x4f8] sm:$0xff]
      %v938 = vunpack.c.l.b16 %v618
      %v939 = vunpack.c.h.b16 %v618
      %v940 = vunpack.c.l.b16 %v619
      %v941 = vunpack.c.h.b16 %v619
      %v942 = vunpack.c.l.b16 %v620
      %v943 = vunpack.c.h.b16 %v620
      %v944 = vunpack.c.l.b16 %v621
      %v945 = vunpack.c.h.b16 %v621
      %v946 = vunpack.c.l.b16 %v622
      %v947 = vunpack.c.h.b16 %v622
      %v948 = vunpack.c.l.b16 %v623
      %v949 = vunpack.c.h.b16 %v623
      %v950 = vunpack.c.l.b16 %v624
      %v951 = vunpack.c.h.b16 %v624
      %v952 = vunpack.c.l.b16 %v625
      %v953 = vunpack.c.h.b16 %v625
      %v954 = vunpack.c.l.b16 %v626
      %v955 = vunpack.c.h.b16 %v626
      %v956 = vunpack.c.l.b16 %v627
      %v957 = vunpack.c.h.b16 %v627
      %v958 = vunpack.c.l.b16 %v628
      %v959 = vunpack.c.h.b16 %v628
      %v960 = vunpack.c.l.b16 %v629
      %v961 = vunpack.c.h.b16 %v629
      %v962 = vunpack.c.l.b16 %v630
      %v963 = vunpack.c.h.b16 %v630
      %v964 = vunpack.c.l.b16 %v631
      %v965 = vunpack.c.h.b16 %v631
      %v966 = vunpack.c.l.b16 %v632
      %v967 = vunpack.c.h.b16 %v632
      %v968 = vunpack.c.l.b16 %v633
      %v969 = vunpack.c.h.b16 %v633
      %v970 = vunpack.c.l.b16 %v634
      %v971 = vunpack.c.h.b16 %v634
      %v972 = vunpack.c.l.b16 %v635
      %v973 = vunpack.c.h.b16 %v635
      %v974 = vunpack.c.l.b16 %v636
      %v975 = vunpack.c.h.b16 %v636
      %v976 = vunpack.c.l.b16 %v637
      %v977 = vunpack.c.h.b16 %v637
      %v978 = vunpack.c.l.b16 %v638
      %v979 = vunpack.c.h.b16 %v638
      %v980 = vunpack.c.l.b16 %v639
      %v981 = vunpack.c.h.b16 %v639
      %v982 = vunpack.c.l.b16 %v640
      %v983 = vunpack.c.h.b16 %v640
      %v984 = vunpack.c.l.b16 %v641
      %v985 = vunpack.c.h.b16 %v641
      %v986 = vunpack.c.l.b16 %v642
      %v987 = vunpack.c.h.b16 %v642
      %v988 = vunpack.c.l.b16 %v643
      %v989 = vunpack.c.h.b16 %v643
      %v990 = vunpack.c.l.b16 %v644
      %v991 = vunpack.c.h.b16 %v644
      %v992 = vunpack.c.l.b16 %v645
      %v993 = vunpack.c.h.b16 %v645
      %v994 = vunpack.c.l.b16 %v646
      %v995 = vunpack.c.h.b16 %v646
      %v996 = vunpack.c.l.b16 %v647
      %v997 = vunpack.c.h.b16 %v647
      %v998 = vunpack.c.l.b16 %v648
      %v999 = vunpack.c.h.b16 %v648
      %v1000 = vunpack.c.l.b16 %v649
      %v1001 = vunpack.c.h.b16 %v649
      %v1002 = vunpack.c.l.b16 %v650
      %v1003 = vunpack.c.h.b16 %v650
      %v1004 = vunpack.c.l.b16 %v651
      %v1005 = vunpack.c.h.b16 %v651
      %v1006 = vunpack.c.l.b16 %v652
      %v1007 = vunpack.c.h.b16 %v652
      %v1008 = vunpack.c.l.b16 %v653
      %v1009 = vunpack.c.h.b16 %v653
      %v1010 = vunpack.c.l.b16 %v654
      %v1011 = vunpack.c.h.b16 %v654
      %v1012 = vunpack.c.l.b16 %v655
      %v1013 = vunpack.c.h.b16 %v655
      %v1014 = vunpack.c.l.b16 %v656
      %v1015 = vunpack.c.h.b16 %v656
      %v1016 = vunpack.c.l.b16 %v657
      %v1017 = vunpack.c.h.b16 %v657
      %v1018 = vunpack.c.l.b16 %v658
      %v1019 = vunpack.c.h.b16 %v658
      %v1020 = vunpack.c.l.b16 %v659
      %v1021 = vunpack.c.h.b16 %v659
      %v1022 = vunpack.c.l.b16 %v660
      %v1023 = vunpack.c.h.b16 %v660
      %v1024 = vunpack.c.l.b16 %v661
      %v1025 = vunpack.c.h.b16 %v661
      %v1026 = vunpack.c.l.b16 %v662
      %v1027 = vunpack.c.h.b16 %v662
      %v1028 = vunpack.c.l.b16 %v663
      %v1029 = vunpack.c.h.b16 %v663
      %v1030 = vunpack.c.l.b16 %v664
      %v1031 = vunpack.c.h.b16 %v664
      %v1032 = vunpack.c.l.b16 %v665
      %v1033 = vunpack.c.h.b16 %v665
      %v1034 = vunpack.c.l.b16 %v666
      %v1035 = vunpack.c.h.b16 %v666
      %v1036 = vunpack.c.l.b16 %v667
      %v1037 = vunpack.c.h.b16 %v667
      %v1038 = vunpack.c.l.b16 %v668
      %v1039 = vunpack.c.h.b16 %v668
      %v1040 = vunpack.c.l.b16 %v669
      %v1041 = vunpack.c.h.b16 %v669
      %v1042 = vunpack.c.l.b16 %v670
      %v1043 = vunpack.c.h.b16 %v670
      %v1044 = vunpack.c.l.b16 %v671
      %v1045 = vunpack.c.h.b16 %v671
      %v1046 = vunpack.c.l.b16 %v672
      %v1047 = vunpack.c.h.b16 %v672
      %v1048 = vunpack.c.l.b16 %v673
      %v1049 = vunpack.c.h.b16 %v673
      %v1050 = vunpack.c.l.b16 %v674
      %v1051 = vunpack.c.h.b16 %v674
      %v1052 = vunpack.c.l.b16 %v675
      %v1053 = vunpack.c.h.b16 %v675
      %v1054 = vunpack.c.l.b16 %v676
      %v1055 = vunpack.c.h.b16 %v676
      %v1056 = vunpack.c.l.b16 %v677
      %v1057 = vunpack.c.h.b16 %v677
      %v1058 = vunpack.c.l.b16 %v678
      %v1059 = vunpack.c.h.b16 %v678
      %v1060 = vunpack.c.l.b16 %v679
      %v1061 = vunpack.c.h.b16 %v679
      %v1062 = vunpack.c.l.b16 %v680
      %v1063 = vunpack.c.h.b16 %v680
      %v1064 = vunpack.c.l.b16 %v681
      %v1065 = vunpack.c.h.b16 %v681
      %v1066 = vunpack.c.l.b16 %v682
      %v1067 = vunpack.c.h.b16 %v682
      %v1068 = vunpack.c.l.b16 %v683
      %v1069 = vunpack.c.h.b16 %v683
      %v1070 = vunpack.c.l.b16 %v684
      %v1071 = vunpack.c.h.b16 %v684
      %v1072 = vunpack.c.l.b16 %v685
      %v1073 = vunpack.c.h.b16 %v685
      %v1074 = vunpack.c.l.b16 %v686
      %v1075 = vunpack.c.h.b16 %v686
      %v1076 = vunpack.c.l.b16 %v687
      %v1077 = vunpack.c.h.b16 %v687
      %v1078 = vunpack.c.l.b16 %v688
      %v1079 = vunpack.c.h.b16 %v688
      %v1080 = vunpack.c.l.b16 %v689
      %v1081 = vunpack.c.h.b16 %v689
      %v1082 = vunpack.c.l.b16 %v690
      %v1083 = vunpack.c.h.b16 %v690
      %v1084 = vunpack.c.l.b16 %v691
      %v1085 = vunpack.c.h.b16 %v691
      %v1086 = vunpack.c.l.b16 %v692
      %v1087 = vunpack.c.h.b16 %v692
      %v1088 = vunpack.c.l.b16 %v693
      %v1089 = vunpack.c.h.b16 %v693
      %v1090 = vunpack.c.l.b16 %v694
      %v1091 = vunpack.c.h.b16 %v694
      %v1092 = vunpack.c.l.b16 %v695
      %v1093 = vunpack.c.h.b16 %v695
      %v1094 = vunpack.c.l.b16 %v696
      %v1095 = vunpack.c.h.b16 %v696
      %v1096 = vunpack.c.l.b16 %v697
      %v1097 = vunpack.c.h.b16 %v697
      %v1098 = vunpack.c.l.b16 %v698
      %v1099 = vunpack.c.h.b16 %v698
      %v1100 = vunpack.c.l.b16 %v699
      %v1101 = vunpack.c.h.b16 %v699
      %v1102 = vunpack.c.l.b16 %v700
      %v1103 = vunpack.c.h.b16 %v700
      %v1104 = vunpack.c.l.b16 %v701
      %v1105 = vunpack.c.h.b16 %v701
      %v1106 = vunpack.c.l.b16 %v702
      %v1107 = vunpack.c.h.b16 %v702
      %v1108 = vunpack.c.l.b16 %v703
      %v1109 = vunpack.c.h.b16 %v703
      %v1110 = vunpack.c.l.b16 %v704
      %v1111 = vunpack.c.h.b16 %v704
      %v1112 = vunpack.c.l.b16 %v705
      %v1113 = vunpack.c.h.b16 %v705
      %v1114 = vunpack.c.l.b16 %v706
      %v1115 = vunpack.c.h.b16 %v706
      %v1116 = vunpack.c.l.b16 %v707
      %v1117 = vunpack.c.h.b16 %v707
      %v1118 = vunpack.c.l.b16 %v708
      %v1119 = vunpack.c.h.b16 %v708
      %v1120 = vunpack.c.l.b16 %v709
      %v1121 = vunpack.c.h.b16 %v709
      %v1122 = vunpack.c.l.b16 %v710
      %v1123 = vunpack.c.h.b16 %v710
      %v1124 = vunpack.c.l.b16 %v711
      %v1125 = vunpack.c.h.b16 %v711
      %v1126 = vunpack.c.l.b16 %v712
      %v1127 = vunpack.c.h.b16 %v712
      %v1128 = vunpack.c.l.b16 %v713
      %v1129 = vunpack.c.h.b16 %v713
      %v1130 = vunpack.c.l.b16 %v714
      %v1131 = vunpack.c.h.b16 %v714
      %v1132 = vunpack.c.l.b16 %v715
      %v1133 = vunpack.c.h.b16 %v715
      %v1134 = vunpack.c.l.b16 %v716
      %v1135 = vunpack.c.h.b16 %v716
      %v1136 = vunpack.c.l.b16 %v717
      %v1137 = vunpack.c.h.b16 %v717
      %v1138 = vunpack.c.l.b16 %v718
      %v1139 = vunpack.c.h.b16 %v718
      %v1140 = vunpack.c.l.b16 %v719
      %v1141 = vunpack.c.h.b16 %v719
      %v1142 = vunpack.c.l.b16 %v720
      %v1143 = vunpack.c.h.b16 %v720
      %v1144 = vunpack.c.l.b16 %v721
      %v1145 = vunpack.c.h.b16 %v721
      %v1146 = vunpack.c.l.b16 %v722
      %v1147 = vunpack.c.h.b16 %v722
      %v1148 = vunpack.c.l.b16 %v723
      %v1149 = vunpack.c.h.b16 %v723
      %v1150 = vunpack.c.l.b16 %v724
      %v1151 = vunpack.c.h.b16 %v724
      %v1152 = vunpack.c.l.b16 %v725
      %v1153 = vunpack.c.h.b16 %v725
      %v1154 = vunpack.c.l.b16 %v726
      %v1155 = vunpack.c.h.b16 %v726
      %v1156 = vunpack.c.l.b16 %v727
      %v1157 = vunpack.c.h.b16 %v727
      %v1158 = vunpack.c.l.b16 %v728
      %v1159 = vunpack.c.h.b16 %v728
      %v1160 = vunpack.c.l.b16 %v729
      %v1161 = vunpack.c.h.b16 %v729
      %v1162 = vunpack.c.l.b16 %v730
      %v1163 = vunpack.c.h.b16 %v730
      %v1164 = vunpack.c.l.b16 %v731
      %v1165 = vunpack.c.h.b16 %v731
      %v1166 = vunpack.c.l.b16 %v732
      %v1167 = vunpack.c.h.b16 %v732
      %v1168 = vunpack.c.l.b16 %v733
      %v1169 = vunpack.c.h.b16 %v733
      %v1170 = vunpack.c.l.b16 %v734
      %v1171 = vunpack.c.h.b16 %v734
      %v1172 = vunpack.c.l.b16 %v735
      %v1173 = vunpack.c.h.b16 %v735
      %v1174 = vunpack.c.l.b16 %v736
      %v1175 = vunpack.c.h.b16 %v736
      %v1176 = vunpack.c.l.b16 %v737
      %v1177 = vunpack.c.h.b16 %v737
      %v1178 = vunpack.c.l.b16 %v738
      %v1179 = vunpack.c.h.b16 %v738
      %v1180 = vunpack.c.l.b16 %v739
      %v1181 = vunpack.c.h.b16 %v739
      %v1182 = vunpack.c.l.b16 %v740
      %v1183 = vunpack.c.h.b16 %v740
      %v1184 = vunpack.c.l.b16 %v741
      %v1185 = vunpack.c.h.b16 %v741
      %v1186 = vunpack.c.l.b16 %v742
      %v1187 = vunpack.c.h.b16 %v742
      %v1188 = vunpack.c.l.b16 %v743
      %v1189 = vunpack.c.h.b16 %v743
      %v1190 = vunpack.c.l.b16 %v744
      %v1191 = vunpack.c.h.b16 %v744
      %v1192 = vunpack.c.l.b16 %v745
      %v1193 = vunpack.c.h.b16 %v745
      %v1194 = vunpack.c.l.b16 %v746
      %v1195 = vunpack.c.h.b16 %v746
      %v1196 = vunpack.c.l.b16 %v747
      %v1197 = vunpack.c.h.b16 %v747
      %v1198 = vunpack.c.l.b16 %v748
      %v1199 = vunpack.c.h.b16 %v748
      %v1200 = vunpack.c.l.b16 %v749
      %v1201 = vunpack.c.h.b16 %v749
      %v1202 = vunpack.c.l.b16 %v750
      %v1203 = vunpack.c.h.b16 %v750
      %v1204 = vunpack.c.l.b16 %v751
      %v1205 = vunpack.c.h.b16 %v751
      %v1206 = vunpack.c.l.b16 %v752
      %v1207 = vunpack.c.h.b16 %v752
      %v1208 = vunpack.c.l.b16 %v753
      %v1209 = vunpack.c.h.b16 %v753
      %v1210 = vunpack.c.l.b16 %v754
      %v1211 = vunpack.c.h.b16 %v754
      %v1212 = vunpack.c.l.b16 %v755
      %v1213 = vunpack.c.h.b16 %v755
      %v1214 = vunpack.c.l.b16 %v756
      %v1215 = vunpack.c.h.b16 %v756
      %v1216 = vunpack.c.l.b16 %v757
      %v1217 = vunpack.c.h.b16 %v757
      %v1218 = vunpack.c.l.b16 %v758
      %v1219 = vunpack.c.h.b16 %v758
      %v1220 = vunpack.c.l.b16 %v759
      %v1221 = vunpack.c.h.b16 %v759
      %v1222 = vunpack.c.l.b16 %v760
      %v1223 = vunpack.c.h.b16 %v760
      %v1224 = vunpack.c.l.b16 %v761
      %v1225 = vunpack.c.h.b16 %v761
      %v1226 = vunpack.c.l.b16 %v762
      %v1227 = vunpack.c.h.b16 %v762
      %v1228 = vunpack.c.l.b16 %v763
      %v1229 = vunpack.c.h.b16 %v763
      %v1230 = vunpack.c.l.b16 %v764
      %v1231 = vunpack.c.h.b16 %v764
      %v1232 = vunpack.c.l.b16 %v765
      %v1233 = vunpack.c.h.b16 %v765
      %v1234 = vunpack.c.l.b16 %v766
      %v1235 = vunpack.c.h.b16 %v766
      %v1236 = vunpack.c.l.b16 %v767
      %v1237 = vunpack.c.h.b16 %v767
      %v1238 = vunpack.c.l.b16 %v768
      %v1239 = vunpack.c.h.b16 %v768
      %v1240 = vunpack.c.l.b16 %v769
      %v1241 = vunpack.c.h.b16 %v769
      %v1242 = vunpack.c.l.b16 %v770
      %v1243 = vunpack.c.h.b16 %v770
      %v1244 = vunpack.c.l.b16 %v771
      %v1245 = vunpack.c.h.b16 %v771
      %v1246 = vunpack.c.l.b16 %v772
      %v1247 = vunpack.c.h.b16 %v772
      %v1248 = vunpack.c.l.b16 %v773
      %v1249 = vunpack.c.h.b16 %v773
      %v1250 = vunpack.c.l.b16 %v774
      %v1251 = vunpack.c.h.b16 %v774
      %v1252 = vunpack.c.l.b16 %v775
      %v1253 = vunpack.c.h.b16 %v775
      %v1254 = vunpack.c.l.b16 %v776
      %v1255 = vunpack.c.h.b16 %v776
      %v1256 = vunpack.c.l.b16 %v777
      %v1257 = vunpack.c.h.b16 %v777
      %v1258 = vpack.c.b16 %v942, %v938
      %v1259 = vpack.c.b16 %v943, %v939
      %v1260 = vpack.c.b16 %v944, %v940
      %v1261 = vpack.c.b16 %v945, %v941
      %v1262 = vpack.c.b16 %v950, %v946
      %v1263 = vpack.c.b16 %v951, %v947
      %v1264 = vpack.c.b16 %v952, %v948
      %v1265 = vpack.c.b16 %v953, %v949
      %v1266 = vpack.c.b16 %v958, %v954
      %v1267 = vpack.c.b16 %v959, %v955
      %v1268 = vpack.c.b16 %v960, %v956
      %v1269 = vpack.c.b16 %v961, %v957
      %v1270 = vpack.c.b16 %v966, %v962
      %v1271 = vpack.c.b16 %v967, %v963
      %v1272 = vpack.c.b16 %v968, %v964
      %v1273 = vpack.c.b16 %v969, %v965
      %v1274 = vpack.c.b16 %v974, %v970
      %v1275 = vpack.c.b16 %v975, %v971
      %v1276 = vpack.c.b16 %v976, %v972
      %v1277 = vpack.c.b16 %v977, %v973
      %v1278 = vpack.c.b16 %v982, %v978
      %v1279 = vpack.c.b16 %v983, %v979
      %v1280 = vpack.c.b16 %v984, %v980
      %v1281 = vpack.c.b16 %v985, %v981
      %v1282 = vpack.c.b16 %v990, %v986
      %v1283 = vpack.c.b16 %v991, %v987
      %v1284 = vpack.c.b16 %v992, %v988
      %v1285 = vpack.c.b16 %v993, %v989
      %v1286 = vpack.c.b16 %v998, %v994
      %v1287 = vpack.c.b16 %v999, %v995
      %v1288 = vpack.c.b16 %v1000, %v996
      %v1289 = vpack.c.b16 %v1001, %v997
      %v1290 = vpack.c.b16 %v1006, %v1002
      %v1291 = vpack.c.b16 %v1007, %v1003
      %v1292 = vpack.c.b16 %v1008, %v1004
      %v1293 = vpack.c.b16 %v1009, %v1005
      %v1294 = vpack.c.b16 %v1014, %v1010
      %v1295 = vpack.c.b16 %v1015, %v1011
      %v1296 = vpack.c.b16 %v1016, %v1012
      %v1297 = vpack.c.b16 %v1017, %v1013
      %v1298 = vpack.c.b16 %v1022, %v1018
      %v1299 = vpack.c.b16 %v1023, %v1019
      %v1300 = vpack.c.b16 %v1024, %v1020
      %v1301 = vpack.c.b16 %v1025, %v1021
      %v1302 = vpack.c.b16 %v1030, %v1026
      %v1303 = vpack.c.b16 %v1031, %v1027
      %v1304 = vpack.c.b16 %v1032, %v1028
      %v1305 = vpack.c.b16 %v1033, %v1029
      %v1306 = vpack.c.b16 %v1038, %v1034
      %v1307 = vpack.c.b16 %v1039, %v1035
      %v1308 = vpack.c.b16 %v1040, %v1036
      %v1309 = vpack.c.b16 %v1041, %v1037
      %v1310 = vpack.c.b16 %v1046, %v1042
      %v1311 = vpack.c.b16 %v1047, %v1043
      %v1312 = vpack.c.b16 %v1048, %v1044
      %v1313 = vpack.c.b16 %v1049, %v1045
      %v1314 = vpack.c.b16 %v1054, %v1050
      %v1315 = vpack.c.b16 %v1055, %v1051
      %v1316 = vpack.c.b16 %v1056, %v1052
      %v1317 = vpack.c.b16 %v1057, %v1053
      %v1318 = vpack.c.b16 %v1062, %v1058
      %v1319 = vpack.c.b16 %v1063, %v1059
      %v1320 = vpack.c.b16 %v1064, %v1060
      %v1321 = vpack.c.b16 %v1065, %v1061
      %v1322 = vpack.c.b16 %v1070, %v1066
      %v1323 = vpack.c.b16 %v1071, %v1067
      %v1324 = vpack.c.b16 %v1072, %v1068
      %v1325 = vpack.c.b16 %v1073, %v1069
      %v1326 = vpack.c.b16 %v1078, %v1074
      %v1327 = vpack.c.b16 %v1079, %v1075
      %v1328 = vpack.c.b16 %v1080, %v1076
      %v1329 = vpack.c.b16 %v1081, %v1077
      %v1330 = vpack.c.b16 %v1086, %v1082
      %v1331 = vpack.c.b16 %v1087, %v1083
      %v1332 = vpack.c.b16 %v1088, %v1084
      %v1333 = vpack.c.b16 %v1089, %v1085
      %v1334 = vpack.c.b16 %v1094, %v1090
      %v1335 = vpack.c.b16 %v1095, %v1091
      %v1336 = vpack.c.b16 %v1096, %v1092
      %v1337 = vpack.c.b16 %v1097, %v1093
      %v1338 = vpack.c.b16 %v1102, %v1098
      %v1339 = vpack.c.b16 %v1103, %v1099
      %v1340 = vpack.c.b16 %v1104, %v1100
      %v1341 = vpack.c.b16 %v1105, %v1101
      %v1342 = vpack.c.b16 %v1110, %v1106
      %v1343 = vpack.c.b16 %v1111, %v1107
      %v1344 = vpack.c.b16 %v1112, %v1108
      %v1345 = vpack.c.b16 %v1113, %v1109
      %v1346 = vpack.c.b16 %v1118, %v1114
      %v1347 = vpack.c.b16 %v1119, %v1115
      %v1348 = vpack.c.b16 %v1120, %v1116
      %v1349 = vpack.c.b16 %v1121, %v1117
      %v1350 = vpack.c.b16 %v1126, %v1122
      %v1351 = vpack.c.b16 %v1127, %v1123
      %v1352 = vpack.c.b16 %v1128, %v1124
      %v1353 = vpack.c.b16 %v1129, %v1125
      %v1354 = vpack.c.b16 %v1134, %v1130
      %v1355 = vpack.c.b16 %v1135, %v1131
      %v1356 = vpack.c.b16 %v1136, %v1132
      %v1357 = vpack.c.b16 %v1137, %v1133
      %v1358 = vpack.c.b16 %v1142, %v1138
      %v1359 = vpack.c.b16 %v1143, %v1139
      %v1360 = vpack.c.b16 %v1144, %v1140
      %v1361 = vpack.c.b16 %v1145, %v1141
      %v1362 = vpack.c.b16 %v1150, %v1146
      %v1363 = vpack.c.b16 %v1151, %v1147
      %v1364 = vpack.c.b16 %v1152, %v1148
      %v1365 = vpack.c.b16 %v1153, %v1149
      %v1366 = vpack.c.b16 %v1158, %v1154
      %v1367 = vpack.c.b16 %v1159, %v1155
      %v1368 = vpack.c.b16 %v1160, %v1156
      %v1369 = vpack.c.b16 %v1161, %v1157
      %v1370 = vpack.c.b16 %v1166, %v1162
      %v1371 = vpack.c.b16 %v1167, %v1163
      %v1372 = vpack.c.b16 %v1168, %v1164
      %v1373 = vpack.c.b16 %v1169, %v1165
      %v1374 = vpack.c.b16 %v1174, %v1170
      %v1375 = vpack.c.b16 %v1175, %v1171
      %v1376 = vpack.c.b16 %v1176, %v1172
      %v1377 = vpack.c.b16 %v1177, %v1173
      %v1378 = vpack.c.b16 %v1182, %v1178
      %v1379 = vpack.c.b16 %v1183, %v1179
      %v1380 = vpack.c.b16 %v1184, %v1180
      %v1381 = vpack.c.b16 %v1185, %v1181
      %v1382 = vpack.c.b16 %v1190, %v1186
      %v1383 = vpack.c.b16 %v1191, %v1187
      %v1384 = vpack.c.b16 %v1192, %v1188
      %v1385 = vpack.c.b16 %v1193, %v1189
      %v1386 = vpack.c.b16 %v1198, %v1194
      %v1387 = vpack.c.b16 %v1199, %v1195
      %v1388 = vpack.c.b16 %v1200, %v1196
      %v1389 = vpack.c.b16 %v1201, %v1197
      %v1390 = vpack.c.b16 %v1206, %v1202
      %v1391 = vpack.c.b16 %v1207, %v1203
      %v1392 = vpack.c.b16 %v1208, %v1204
      %v1393 = vpack.c.b16 %v1209, %v1205
      %v1394 = vpack.c.b16 %v1214, %v1210
      %v1395 = vpack.c.b16 %v1215, %v1211
      %v1396 = vpack.c.b16 %v1216, %v1212
      %v1397 = vpack.c.b16 %v1217, %v1213
      %v1398 = vpack.c.b16 %v1222, %v1218
      %v1399 = vpack.c.b16 %v1223, %v1219
      %v1400 = vpack.c.b16 %v1224, %v1220
      %v1401 = vpack.c.b16 %v1225, %v1221
      %v1402 = vpack.c.b16 %v1230, %v1226
      %v1403 = vpack.c.b16 %v1231, %v1227
      %v1404 = vpack.c.b16 %v1232, %v1228
      %v1405 = vpack.c.b16 %v1233, %v1229
      %v1406 = vpack.c.b16 %v1238, %v1234
      %v1407 = vpack.c.b16 %v1239, %v1235
      %v1408 = vpack.c.b16 %v1240, %v1236
      %v1409 = vpack.c.b16 %v1241, %v1237
      %v1410 = vpack.c.b16 %v1246, %v1242
      %v1411 = vpack.c.b16 %v1247, %v1243
      %v1412 = vpack.c.b16 %v1248, %v1244
      %v1413 = vpack.c.b16 %v1249, %v1245
      %v1414 = vpack.c.b16 %v1254, %v1250
      %v1415 = vpack.c.b16 %v1255, %v1251
      %v1416 = vpack.c.b16 %v1256, %v1252
      %v1417 = vpack.c.b16 %v1257, %v1253
      %1578 = vmatprep.subr.bf16.mxu0 %v1287
      %1579 = vmatpush1.bf16.msra.mxu0 %v1286
      %1580 = vmatprep.subr.bf16.mxu0 %v1283
      %1581 = vmatpush1.bf16.msra.mxu0 %v1282
      %1582 = vmatprep.subr.bf16.mxu0 %v1279
      %1583 = vmatpush1.bf16.msra.mxu0 %v1278
      %1584 = vmatprep.subr.bf16.mxu0 %v1275
      %1585 = vmatpush1.bf16.msra.mxu0 %v1274
      %1586 = vmatprep.subr.bf16.mxu0 %v1271
      %1587 = vmatpush1.bf16.msra.mxu0 %v1270
      %1588 = vmatprep.subr.bf16.mxu0 %v1267
      %1589 = vmatpush1.bf16.msra.mxu0 %v1266
      %1590 = vmatprep.subr.bf16.mxu0 %v1263
      %1591 = vmatpush1.bf16.msra.mxu0 %v1262
      %1592 = vmatprep.subr.bf16.mxu0 %v1259
      %1593 = vmatpush1.bf16.msra.mxu0 %v1258
      %1594 = vmatprep.subr.bf16.mxu0 %v1319
      %1595 = vmatpush2.bf16.msra.mxu0 %v1318
      %1596 = vmatprep.subr.bf16.mxu0 %v1315
      %1597 = vmatpush2.bf16.msra.mxu0 %v1314
      %1598 = vmatprep.subr.bf16.mxu0 %v1311
      %1599 = vmatpush2.bf16.msra.mxu0 %v1310
      %1600 = vmatprep.subr.bf16.mxu0 %v1307
      %1601 = vmatpush2.bf16.msra.mxu0 %v1306
      %1602 = vmatprep.subr.bf16.mxu0 %v1303
      %1603 = vmatpush2.bf16.msra.mxu0 %v1302
      %1604 = vmatprep.subr.bf16.mxu0 %v1299
      %1605 = vmatpush2.bf16.msra.mxu0 %v1298
      %1606 = vmatprep.subr.bf16.mxu0 %v1295
      %1607 = vmatpush2.bf16.msra.mxu0 %v1294
      %1608 = vmatprep.subr.bf16.mxu0 %v1291
      %1609 = vmatpush2.bf16.msra.mxu0 %v1290
      %1610 = vmatprep.mubr.bf16.mxu0 %v539
      %1611 = vmatmul.mubr.bf16.gmra.mxu0 %v538
      %v1612 = vpop.f32.mrf.mxu0
      %v1613 = vadd.f32 0.0, %v1612
      %v1614 = vpop.f32.mrf.mxu0
      %v1615 = vadd.f32 0.0, %v1614
      %v1616 = vpop.f32.mrf.mxu0
      %v1617 = vadd.f32 0.0, %v1616
      %v1618 = vpop.f32.mrf.mxu0
      %v1619 = vadd.f32 0.0, %v1618
      %1620 = vmatprep.mubr.bf16.mxu0 %v540
      %1621 = vmatmul.mubr.bf16.gmra.mxu0 %v539
      %v1622 = vpop.f32.mrf.mxu0
      %v1623 = vadd.f32 0.0, %v1622
      %v1624 = vpop.f32.mrf.mxu0
      %v1625 = vadd.f32 0.0, %v1624
      %v1626 = vpop.f32.mrf.mxu0
      %v1627 = vadd.f32 0.0, %v1626
      %v1628 = vpop.f32.mrf.mxu0
      %v1629 = vadd.f32 0.0, %v1628
      %1630 = vmatprep.mubr.bf16.mxu0 %v541
      %1631 = vmatmul.mubr.bf16.gmra.mxu0 %v540
      %v1632 = vpop.f32.mrf.mxu0
      %v1633 = vadd.f32 0.0, %v1632
      %v1634 = vpop.f32.mrf.mxu0
      %v1635 = vadd.f32 0.0, %v1634
      %v1636 = vpop.f32.mrf.mxu0
      %v1637 = vadd.f32 0.0, %v1636
      %v1638 = vpop.f32.mrf.mxu0
      %v1639 = vadd.f32 0.0, %v1638
      %1640 = vmatprep.mubr.bf16.mxu0 %v542
      %1641 = vmatmul.mubr.bf16.gmra.mxu0 %v541
      %v1642 = vpop.f32.mrf.mxu0
      %v1643 = vadd.f32 0.0, %v1642
      %v1644 = vpop.f32.mrf.mxu0
      %v1645 = vadd.f32 0.0, %v1644
      %v1646 = vpop.f32.mrf.mxu0
      %v1647 = vadd.f32 0.0, %v1646
      %v1648 = vpop.f32.mrf.mxu0
      %v1649 = vadd.f32 0.0, %v1648
      %1650 = vmatprep.mubr.bf16.mxu0 %v543
      %1651 = vmatmul.mubr.bf16.gmra.mxu0 %v542
      %v1652 = vpop.f32.mrf.mxu0
      %v1653 = vadd.f32 0.0, %v1652
      %v1654 = vpop.f32.mrf.mxu0
      %v1655 = vadd.f32 0.0, %v1654
      %v1656 = vpop.f32.mrf.mxu0
      %v1657 = vadd.f32 0.0, %v1656
      %v1658 = vpop.f32.mrf.mxu0
      %v1659 = vadd.f32 0.0, %v1658
      %1660 = vmatprep.mubr.bf16.mxu0 %v544
      %1661 = vmatmul.mubr.bf16.gmra.mxu0 %v543
      %v1662 = vpop.f32.mrf.mxu0
      %v1663 = vadd.f32 0.0, %v1662
      %v1664 = vpop.f32.mrf.mxu0
      %v1665 = vadd.f32 0.0, %v1664
      %v1666 = vpop.f32.mrf.mxu0
      %v1667 = vadd.f32 0.0, %v1666
      %v1668 = vpop.f32.mrf.mxu0
      %v1669 = vadd.f32 0.0, %v1668
      %1670 = vmatprep.mubr.bf16.mxu0 %v545
      %1671 = vmatmul.mubr.bf16.gmra.mxu0 %v544
      %v1672 = vpop.f32.mrf.mxu0
      %v1673 = vadd.f32 0.0, %v1672
      %v1674 = vpop.f32.mrf.mxu0
      %v1675 = vadd.f32 0.0, %v1674
      %v1676 = vpop.f32.mrf.mxu0
      %v1677 = vadd.f32 0.0, %v1676
      %v1678 = vpop.f32.mrf.mxu0
      %v1679 = vadd.f32 0.0, %v1678
      %1680 = vmatprep.mubr.bf16.mxu0 %v546
      %1681 = vmatmul.mubr.bf16.gmra.mxu0 %v545
      %v1682 = vpop.f32.mrf.mxu0
      %v1683 = vadd.f32 0.0, %v1682
      %v1684 = vpop.f32.mrf.mxu0
      %v1685 = vadd.f32 0.0, %v1684
      %v1686 = vpop.f32.mrf.mxu0
      %v1687 = vadd.f32 0.0, %v1686
      %v1688 = vpop.f32.mrf.mxu0
      %v1689 = vadd.f32 0.0, %v1688
      %1690 = vmatprep.mubr.bf16.mxu0 %v547
      %1691 = vmatmul.mubr.bf16.gmra.mxu0 %v546
      %v1692 = vpop.f32.mrf.mxu0
      %v1693 = vadd.f32 0.0, %v1692
      %v1694 = vpop.f32.mrf.mxu0
      %v1695 = vadd.f32 0.0, %v1694
      %v1696 = vpop.f32.mrf.mxu0
      %v1697 = vadd.f32 0.0, %v1696
      %v1698 = vpop.f32.mrf.mxu0
      %v1699 = vadd.f32 0.0, %v1698
      %1700 = vmatprep.mubr.bf16.mxu0 %v548
      %1701 = vmatmul.mubr.bf16.gmra.mxu0 %v547
      %v1702 = vpop.f32.mrf.mxu0
      %v1703 = vadd.f32 0.0, %v1702
      %v1704 = vpop.f32.mrf.mxu0
      %v1705 = vadd.f32 0.0, %v1704
      %v1706 = vpop.f32.mrf.mxu0
      %v1707 = vadd.f32 0.0, %v1706
      %v1708 = vpop.f32.mrf.mxu0
      %v1709 = vadd.f32 0.0, %v1708
      %1710 = vmatprep.mubr.bf16.mxu0 %v549
      %1711 = vmatmul.mubr.bf16.gmra.mxu0 %v548
      %v1712 = vpop.f32.mrf.mxu0
      %v1713 = vadd.f32 0.0, %v1712
      %v1714 = vpop.f32.mrf.mxu0
      %v1715 = vadd.f32 0.0, %v1714
      %v1716 = vpop.f32.mrf.mxu0
      %v1717 = vadd.f32 0.0, %v1716
      %v1718 = vpop.f32.mrf.mxu0
      %v1719 = vadd.f32 0.0, %v1718
      %1720 = vmatprep.mubr.bf16.mxu0 %v550
      %1721 = vmatmul.mubr.bf16.gmra.mxu0 %v549
      %v1722 = vpop.f32.mrf.mxu0
      %v1723 = vadd.f32 0.0, %v1722
      %v1724 = vpop.f32.mrf.mxu0
      %v1725 = vadd.f32 0.0, %v1724
      %v1726 = vpop.f32.mrf.mxu0
      %v1727 = vadd.f32 0.0, %v1726
      %v1728 = vpop.f32.mrf.mxu0
      %v1729 = vadd.f32 0.0, %v1728
      %1730 = vmatprep.mubr.bf16.mxu0 %v551
      %1731 = vmatmul.mubr.bf16.gmra.mxu0 %v550
      %v1732 = vpop.f32.mrf.mxu0
      %v1733 = vadd.f32 0.0, %v1732
      %v1734 = vpop.f32.mrf.mxu0
      %v1735 = vadd.f32 0.0, %v1734
      %v1736 = vpop.f32.mrf.mxu0
      %v1737 = vadd.f32 0.0, %v1736
      %v1738 = vpop.f32.mrf.mxu0
      %v1739 = vadd.f32 0.0, %v1738
      %1740 = vmatprep.mubr.bf16.mxu0 %v552
      %1741 = vmatmul.mubr.bf16.gmra.mxu0 %v551
      %v1742 = vpop.f32.mrf.mxu0
      %v1743 = vadd.f32 0.0, %v1742
      %v1744 = vpop.f32.mrf.mxu0
      %v1745 = vadd.f32 0.0, %v1744
      %v1746 = vpop.f32.mrf.mxu0
      %v1747 = vadd.f32 0.0, %v1746
      %v1748 = vpop.f32.mrf.mxu0
      %v1749 = vadd.f32 0.0, %v1748
      %1750 = vmatprep.mubr.bf16.mxu0 %v553
      %1751 = vmatmul.mubr.bf16.gmra.mxu0 %v552
      %v1752 = vpop.f32.mrf.mxu0
      %v1753 = vadd.f32 0.0, %v1752
      %v1754 = vpop.f32.mrf.mxu0
      %v1755 = vadd.f32 0.0, %v1754
      %v1756 = vpop.f32.mrf.mxu0
      %v1757 = vadd.f32 0.0, %v1756
      %v1758 = vpop.f32.mrf.mxu0
      %v1759 = vadd.f32 0.0, %v1758
      %1760 = vmatprep.mubr.bf16.mxu0 %v554
      %1761 = vmatmul.mubr.bf16.gmra.mxu0 %v553
      %v1762 = vpop.f32.mrf.mxu0
      %v1763 = vadd.f32 0.0, %v1762
      %v1764 = vpop.f32.mrf.mxu0
      %v1765 = vadd.f32 0.0, %v1764
      %v1766 = vpop.f32.mrf.mxu0
      %v1767 = vadd.f32 0.0, %v1766
      %v1768 = vpop.f32.mrf.mxu0
      %v1769 = vadd.f32 0.0, %v1768
      %1770 = vmatprep.mubr.bf16.mxu0 %v555
      %1771 = vmatmul.mubr.bf16.gmra.mxu0 %v554
      %v1772 = vpop.f32.mrf.mxu0
      %v1773 = vadd.f32 0.0, %v1772
      %v1774 = vpop.f32.mrf.mxu0
      %v1775 = vadd.f32 0.0, %v1774
      %v1776 = vpop.f32.mrf.mxu0
      %v1777 = vadd.f32 0.0, %v1776
      %v1778 = vpop.f32.mrf.mxu0
      %v1779 = vadd.f32 0.0, %v1778
      %1780 = vmatprep.mubr.bf16.mxu0 %v556
      %1781 = vmatmul.mubr.bf16.gmra.mxu0 %v555
      %v1782 = vpop.f32.mrf.mxu0
      %v1783 = vadd.f32 0.0, %v1782
      %v1784 = vpop.f32.mrf.mxu0
      %v1785 = vadd.f32 0.0, %v1784
      %v1786 = vpop.f32.mrf.mxu0
      %v1787 = vadd.f32 0.0, %v1786
      %v1788 = vpop.f32.mrf.mxu0
      %v1789 = vadd.f32 0.0, %v1788
      %1790 = vmatprep.mubr.bf16.mxu0 %v557
      %1791 = vmatmul.mubr.bf16.gmra.mxu0 %v556
      %v1792 = vpop.f32.mrf.mxu0
      %v1793 = vadd.f32 0.0, %v1792
      %v1794 = vpop.f32.mrf.mxu0
      %v1795 = vadd.f32 0.0, %v1794
      %v1796 = vpop.f32.mrf.mxu0
      %v1797 = vadd.f32 0.0, %v1796
      %v1798 = vpop.f32.mrf.mxu0
      %v1799 = vadd.f32 0.0, %v1798
      %1800 = vmatprep.mubr.bf16.mxu0 %v558
      %1801 = vmatmul.mubr.bf16.gmra.mxu0 %v557
      %v1802 = vpop.f32.mrf.mxu0
      %v1803 = vadd.f32 0.0, %v1802
      %v1804 = vpop.f32.mrf.mxu0
      %v1805 = vadd.f32 0.0, %v1804
      %v1806 = vpop.f32.mrf.mxu0
      %v1807 = vadd.f32 0.0, %v1806
      %v1808 = vpop.f32.mrf.mxu0
      %v1809 = vadd.f32 0.0, %v1808
      %1810 = vmatprep.mubr.bf16.mxu0 %v559
      %1811 = vmatmul.mubr.bf16.gmra.mxu0 %v558
      %v1812 = vpop.f32.mrf.mxu0
      %v1813 = vadd.f32 0.0, %v1812
      %v1814 = vpop.f32.mrf.mxu0
      %v1815 = vadd.f32 0.0, %v1814
      %v1816 = vpop.f32.mrf.mxu0
      %v1817 = vadd.f32 0.0, %v1816
      %v1818 = vpop.f32.mrf.mxu0
      %v1819 = vadd.f32 0.0, %v1818
      %1820 = vmatprep.mubr.bf16.mxu0 %v560
      %1821 = vmatmul.mubr.bf16.gmra.mxu0 %v559
      %v1822 = vpop.f32.mrf.mxu0
      %v1823 = vadd.f32 0.0, %v1822
      %v1824 = vpop.f32.mrf.mxu0
      %v1825 = vadd.f32 0.0, %v1824
      %v1826 = vpop.f32.mrf.mxu0
      %v1827 = vadd.f32 0.0, %v1826
      %v1828 = vpop.f32.mrf.mxu0
      %v1829 = vadd.f32 0.0, %v1828
      %1830 = vmatprep.mubr.bf16.mxu0 %v561
      %1831 = vmatmul.mubr.bf16.gmra.mxu0 %v560
      %v1832 = vpop.f32.mrf.mxu0
      %v1833 = vadd.f32 0.0, %v1832
      %v1834 = vpop.f32.mrf.mxu0
      %v1835 = vadd.f32 0.0, %v1834
      %v1836 = vpop.f32.mrf.mxu0
      %v1837 = vadd.f32 0.0, %v1836
      %v1838 = vpop.f32.mrf.mxu0
      %v1839 = vadd.f32 0.0, %v1838
      %1840 = vmatprep.mubr.bf16.mxu0 %v562
      %1841 = vmatmul.mubr.bf16.gmra.mxu0 %v561
      %v1842 = vpop.f32.mrf.mxu0
      %v1843 = vadd.f32 0.0, %v1842
      %v1844 = vpop.f32.mrf.mxu0
      %v1845 = vadd.f32 0.0, %v1844
      %v1846 = vpop.f32.mrf.mxu0
      %v1847 = vadd.f32 0.0, %v1846
      %v1848 = vpop.f32.mrf.mxu0
      %v1849 = vadd.f32 0.0, %v1848
      %1850 = vmatprep.mubr.bf16.mxu0 %v563
      %1851 = vmatmul.mubr.bf16.gmra.mxu0 %v562
      %v1852 = vpop.f32.mrf.mxu0
      %v1853 = vadd.f32 0.0, %v1852
      %v1854 = vpop.f32.mrf.mxu0
      %v1855 = vadd.f32 0.0, %v1854
      %v1856 = vpop.f32.mrf.mxu0
      %v1857 = vadd.f32 0.0, %v1856
      %v1858 = vpop.f32.mrf.mxu0
      %v1859 = vadd.f32 0.0, %v1858
      %1860 = vmatprep.mubr.bf16.mxu0 %v564
      %1861 = vmatmul.mubr.bf16.gmra.mxu0 %v563
      %v1862 = vpop.f32.mrf.mxu0
      %v1863 = vadd.f32 0.0, %v1862
      %v1864 = vpop.f32.mrf.mxu0
      %v1865 = vadd.f32 0.0, %v1864
      %v1866 = vpop.f32.mrf.mxu0
      %v1867 = vadd.f32 0.0, %v1866
      %v1868 = vpop.f32.mrf.mxu0
      %v1869 = vadd.f32 0.0, %v1868
      %1870 = vmatprep.mubr.bf16.mxu0 %v565
      %1871 = vmatmul.mubr.bf16.gmra.mxu0 %v564
      %v1872 = vpop.f32.mrf.mxu0
      %v1873 = vadd.f32 0.0, %v1872
      %v1874 = vpop.f32.mrf.mxu0
      %v1875 = vadd.f32 0.0, %v1874
      %v1876 = vpop.f32.mrf.mxu0
      %v1877 = vadd.f32 0.0, %v1876
      %v1878 = vpop.f32.mrf.mxu0
      %v1879 = vadd.f32 0.0, %v1878
      %1880 = vmatprep.mubr.bf16.mxu0 %v598
      %1881 = vmatmul.mubr.bf16.gmra.mxu0 %v565
      %v1882 = vpop.f32.mrf.mxu0
      %v1883 = vadd.f32 0.0, %v1882
      %v1884 = vpop.f32.mrf.mxu0
      %v1885 = vadd.f32 0.0, %v1884
      %v1886 = vpop.f32.mrf.mxu0
      %v1887 = vadd.f32 0.0, %v1886
      %v1888 = vpop.f32.mrf.mxu0
      %v1889 = vadd.f32 0.0, %v1888
      %1890 = vdwg.mxu0
      %1891 = vmatprep.subr.bf16.mxu0 %v1351
      %1892 = vmatpush1.bf16.msra.mxu0 %v1350
      %1893 = vmatprep.subr.bf16.mxu0 %v1347
      %1894 = vmatpush1.bf16.msra.mxu0 %v1346
      %1895 = vmatprep.subr.bf16.mxu0 %v1343
      %1896 = vmatpush1.bf16.msra.mxu0 %v1342
      %1897 = vmatprep.subr.bf16.mxu0 %v1339
      %1898 = vmatpush1.bf16.msra.mxu0 %v1338
      %1899 = vmatprep.subr.bf16.mxu0 %v1335
      %1900 = vmatpush1.bf16.msra.mxu0 %v1334
      %1901 = vmatprep.subr.bf16.mxu0 %v1331
      %1902 = vmatpush1.bf16.msra.mxu0 %v1330
      %1903 = vmatprep.subr.bf16.mxu0 %v1327
      %1904 = vmatpush1.bf16.msra.mxu0 %v1326
      %1905 = vmatprep.subr.bf16.mxu0 %v1323
      %1906 = vmatpush1.bf16.msra.mxu0 %v1322
      %1907 = vmatprep.subr.bf16.mxu0 %v1383
      %1908 = vmatpush2.bf16.msra.mxu0 %v1382
      %1909 = vmatprep.subr.bf16.mxu0 %v1379
      %1910 = vmatpush2.bf16.msra.mxu0 %v1378
      %1911 = vmatprep.subr.bf16.mxu0 %v1375
      %1912 = vmatpush2.bf16.msra.mxu0 %v1374
      %1913 = vmatprep.subr.bf16.mxu0 %v1371
      %1914 = vmatpush2.bf16.msra.mxu0 %v1370
      %1915 = vmatprep.subr.bf16.mxu0 %v1367
      %1916 = vmatpush2.bf16.msra.mxu0 %v1366
      %1917 = vmatprep.subr.bf16.mxu0 %v1363
      %1918 = vmatpush2.bf16.msra.mxu0 %v1362
      %1919 = vmatprep.subr.bf16.mxu0 %v1359
      %1920 = vmatpush2.bf16.msra.mxu0 %v1358
      %1921 = vmatprep.subr.bf16.mxu0 %v1355
      %1922 = vmatpush2.bf16.msra.mxu0 %v1354
      %1923 = vmatprep.mubr.bf16.mxu0 %v541
      %1924 = vmatmul.mubr.bf16.gmra.mxu0 %v540
      %v1925 = vpop.f32.mrf.mxu0
      %v1926 = vadd.f32 %v1613, %v1925
      %v1927 = vpop.f32.mrf.mxu0
      %v1928 = vadd.f32 %v1615, %v1927
      %v1929 = vpop.f32.mrf.mxu0
      %v1930 = vadd.f32 %v1617, %v1929
      %v1931 = vpop.f32.mrf.mxu0
      %v1932 = vadd.f32 %v1619, %v1931
      %1933 = vmatprep.mubr.bf16.mxu0 %v542
      %1934 = vmatmul.mubr.bf16.gmra.mxu0 %v541
      %v1935 = vpop.f32.mrf.mxu0
      %v1936 = vadd.f32 %v1623, %v1935
      %v1937 = vpop.f32.mrf.mxu0
      %v1938 = vadd.f32 %v1625, %v1937
      %v1939 = vpop.f32.mrf.mxu0
      %v1940 = vadd.f32 %v1627, %v1939
      %v1941 = vpop.f32.mrf.mxu0
      %v1942 = vadd.f32 %v1629, %v1941
      %1943 = vmatprep.mubr.bf16.mxu0 %v543
      %1944 = vmatmul.mubr.bf16.gmra.mxu0 %v542
      %v1945 = vpop.f32.mrf.mxu0
      %v1946 = vadd.f32 %v1633, %v1945
      %v1947 = vpop.f32.mrf.mxu0
      %v1948 = vadd.f32 %v1635, %v1947
      %v1949 = vpop.f32.mrf.mxu0
      %v1950 = vadd.f32 %v1637, %v1949
      %v1951 = vpop.f32.mrf.mxu0
      %v1952 = vadd.f32 %v1639, %v1951
      %1953 = vmatprep.mubr.bf16.mxu0 %v544
      %1954 = vmatmul.mubr.bf16.gmra.mxu0 %v543
      %v1955 = vpop.f32.mrf.mxu0
      %v1956 = vadd.f32 %v1643, %v1955
      %v1957 = vpop.f32.mrf.mxu0
      %v1958 = vadd.f32 %v1645, %v1957
      %v1959 = vpop.f32.mrf.mxu0
      %v1960 = vadd.f32 %v1647, %v1959
      %v1961 = vpop.f32.mrf.mxu0
      %v1962 = vadd.f32 %v1649, %v1961
      %1963 = vmatprep.mubr.bf16.mxu0 %v545
      %1964 = vmatmul.mubr.bf16.gmra.mxu0 %v544
      %v1965 = vpop.f32.mrf.mxu0
      %v1966 = vadd.f32 %v1653, %v1965
      %v1967 = vpop.f32.mrf.mxu0
      %v1968 = vadd.f32 %v1655, %v1967
      %v1969 = vpop.f32.mrf.mxu0
      %v1970 = vadd.f32 %v1657, %v1969
      %v1971 = vpop.f32.mrf.mxu0
      %v1972 = vadd.f32 %v1659, %v1971
      %1973 = vmatprep.mubr.bf16.mxu0 %v546
      %1974 = vmatmul.mubr.bf16.gmra.mxu0 %v545
      %v1975 = vpop.f32.mrf.mxu0
      %v1976 = vadd.f32 %v1663, %v1975
      %v1977 = vpop.f32.mrf.mxu0
      %v1978 = vadd.f32 %v1665, %v1977
      %v1979 = vpop.f32.mrf.mxu0
      %v1980 = vadd.f32 %v1667, %v1979
      %v1981 = vpop.f32.mrf.mxu0
      %v1982 = vadd.f32 %v1669, %v1981
      %1983 = vmatprep.mubr.bf16.mxu0 %v547
      %1984 = vmatmul.mubr.bf16.gmra.mxu0 %v546
      %v1985 = vpop.f32.mrf.mxu0
      %v1986 = vadd.f32 %v1673, %v1985
      %v1987 = vpop.f32.mrf.mxu0
      %v1988 = vadd.f32 %v1675, %v1987
      %v1989 = vpop.f32.mrf.mxu0
      %v1990 = vadd.f32 %v1677, %v1989
      %v1991 = vpop.f32.mrf.mxu0
      %v1992 = vadd.f32 %v1679, %v1991
      %1993 = vmatprep.mubr.bf16.mxu0 %v548
      %1994 = vmatmul.mubr.bf16.gmra.mxu0 %v547
      %v1995 = vpop.f32.mrf.mxu0
      %v1996 = vadd.f32 %v1683, %v1995
      %v1997 = vpop.f32.mrf.mxu0
      %v1998 = vadd.f32 %v1685, %v1997
      %v1999 = vpop.f32.mrf.mxu0
      %v2000 = vadd.f32 %v1687, %v1999
      %v2001 = vpop.f32.mrf.mxu0
      %v2002 = vadd.f32 %v1689, %v2001
      %2003 = vmatprep.mubr.bf16.mxu0 %v549
      %2004 = vmatmul.mubr.bf16.gmra.mxu0 %v548
      %v2005 = vpop.f32.mrf.mxu0
      %v2006 = vadd.f32 %v1693, %v2005
      %v2007 = vpop.f32.mrf.mxu0
      %v2008 = vadd.f32 %v1695, %v2007
      %v2009 = vpop.f32.mrf.mxu0
      %v2010 = vadd.f32 %v1697, %v2009
      %v2011 = vpop.f32.mrf.mxu0
      %v2012 = vadd.f32 %v1699, %v2011
      %2013 = vmatprep.mubr.bf16.mxu0 %v550
      %2014 = vmatmul.mubr.bf16.gmra.mxu0 %v549
      %v2015 = vpop.f32.mrf.mxu0
      %v2016 = vadd.f32 %v1703, %v2015
      %v2017 = vpop.f32.mrf.mxu0
      %v2018 = vadd.f32 %v1705, %v2017
      %v2019 = vpop.f32.mrf.mxu0
      %v2020 = vadd.f32 %v1707, %v2019
      %v2021 = vpop.f32.mrf.mxu0
      %v2022 = vadd.f32 %v1709, %v2021
      %2023 = vmatprep.mubr.bf16.mxu0 %v551
      %2024 = vmatmul.mubr.bf16.gmra.mxu0 %v550
      %v2025 = vpop.f32.mrf.mxu0
      %v2026 = vadd.f32 %v1713, %v2025
      %v2027 = vpop.f32.mrf.mxu0
      %v2028 = vadd.f32 %v1715, %v2027
      %v2029 = vpop.f32.mrf.mxu0
      %v2030 = vadd.f32 %v1717, %v2029
      %v2031 = vpop.f32.mrf.mxu0
      %v2032 = vadd.f32 %v1719, %v2031
      %2033 = vmatprep.mubr.bf16.mxu0 %v552
      %2034 = vmatmul.mubr.bf16.gmra.mxu0 %v551
      %v2035 = vpop.f32.mrf.mxu0
      %v2036 = vadd.f32 %v1723, %v2035
      %v2037 = vpop.f32.mrf.mxu0
      %v2038 = vadd.f32 %v1725, %v2037
      %v2039 = vpop.f32.mrf.mxu0
      %v2040 = vadd.f32 %v1727, %v2039
      %v2041 = vpop.f32.mrf.mxu0
      %v2042 = vadd.f32 %v1729, %v2041
      %2043 = vmatprep.mubr.bf16.mxu0 %v553
      %2044 = vmatmul.mubr.bf16.gmra.mxu0 %v552
      %v2045 = vpop.f32.mrf.mxu0
      %v2046 = vadd.f32 %v1733, %v2045
      %v2047 = vpop.f32.mrf.mxu0
      %v2048 = vadd.f32 %v1735, %v2047
      %v2049 = vpop.f32.mrf.mxu0
      %v2050 = vadd.f32 %v1737, %v2049
      %v2051 = vpop.f32.mrf.mxu0
      %v2052 = vadd.f32 %v1739, %v2051
      %2053 = vmatprep.mubr.bf16.mxu0 %v554
      %2054 = vmatmul.mubr.bf16.gmra.mxu0 %v553
      %v2055 = vpop.f32.mrf.mxu0
      %v2056 = vadd.f32 %v1743, %v2055
      %v2057 = vpop.f32.mrf.mxu0
      %v2058 = vadd.f32 %v1745, %v2057
      %v2059 = vpop.f32.mrf.mxu0
      %v2060 = vadd.f32 %v1747, %v2059
      %v2061 = vpop.f32.mrf.mxu0
      %v2062 = vadd.f32 %v1749, %v2061
      %2063 = vmatprep.mubr.bf16.mxu0 %v555
      %2064 = vmatmul.mubr.bf16.gmra.mxu0 %v554
      %v2065 = vpop.f32.mrf.mxu0
      %v2066 = vadd.f32 %v1753, %v2065
      %v2067 = vpop.f32.mrf.mxu0
      %v2068 = vadd.f32 %v1755, %v2067
      %v2069 = vpop.f32.mrf.mxu0
      %v2070 = vadd.f32 %v1757, %v2069
      %v2071 = vpop.f32.mrf.mxu0
      %v2072 = vadd.f32 %v1759, %v2071
      %2073 = vmatprep.mubr.bf16.mxu0 %v556
      %2074 = vmatmul.mubr.bf16.gmra.mxu0 %v555
      %v2075 = vpop.f32.mrf.mxu0
      %v2076 = vadd.f32 %v1763, %v2075
      %v2077 = vpop.f32.mrf.mxu0
      %v2078 = vadd.f32 %v1765, %v2077
      %v2079 = vpop.f32.mrf.mxu0
      %v2080 = vadd.f32 %v1767, %v2079
      %v2081 = vpop.f32.mrf.mxu0
      %v2082 = vadd.f32 %v1769, %v2081
      %2083 = vmatprep.mubr.bf16.mxu0 %v557
      %2084 = vmatmul.mubr.bf16.gmra.mxu0 %v556
      %v2085 = vpop.f32.mrf.mxu0
      %v2086 = vadd.f32 %v1773, %v2085
      %v2087 = vpop.f32.mrf.mxu0
      %v2088 = vadd.f32 %v1775, %v2087
      %v2089 = vpop.f32.mrf.mxu0
      %v2090 = vadd.f32 %v1777, %v2089
      %v2091 = vpop.f32.mrf.mxu0
      %v2092 = vadd.f32 %v1779, %v2091
      %2093 = vmatprep.mubr.bf16.mxu0 %v558
      %2094 = vmatmul.mubr.bf16.gmra.mxu0 %v557
      %v2095 = vpop.f32.mrf.mxu0
      %v2096 = vadd.f32 %v1783, %v2095
      %v2097 = vpop.f32.mrf.mxu0
      %v2098 = vadd.f32 %v1785, %v2097
      %v2099 = vpop.f32.mrf.mxu0
      %v2100 = vadd.f32 %v1787, %v2099
      %v2101 = vpop.f32.mrf.mxu0
      %v2102 = vadd.f32 %v1789, %v2101
      %2103 = vmatprep.mubr.bf16.mxu0 %v559
      %2104 = vmatmul.mubr.bf16.gmra.mxu0 %v558
      %v2105 = vpop.f32.mrf.mxu0
      %v2106 = vadd.f32 %v1793, %v2105
      %v2107 = vpop.f32.mrf.mxu0
      %v2108 = vadd.f32 %v1795, %v2107
      %v2109 = vpop.f32.mrf.mxu0
      %v2110 = vadd.f32 %v1797, %v2109
      %v2111 = vpop.f32.mrf.mxu0
      %v2112 = vadd.f32 %v1799, %v2111
      %2113 = vmatprep.mubr.bf16.mxu0 %v560
      %2114 = vmatmul.mubr.bf16.gmra.mxu0 %v559
      %v2115 = vpop.f32.mrf.mxu0
      %v2116 = vadd.f32 %v1803, %v2115
      %v2117 = vpop.f32.mrf.mxu0
      %v2118 = vadd.f32 %v1805, %v2117
      %v2119 = vpop.f32.mrf.mxu0
      %v2120 = vadd.f32 %v1807, %v2119
      %v2121 = vpop.f32.mrf.mxu0
      %v2122 = vadd.f32 %v1809, %v2121
      %2123 = vmatprep.mubr.bf16.mxu0 %v561
      %2124 = vmatmul.mubr.bf16.gmra.mxu0 %v560
      %v2125 = vpop.f32.mrf.mxu0
      %v2126 = vadd.f32 %v1813, %v2125
      %v2127 = vpop.f32.mrf.mxu0
      %v2128 = vadd.f32 %v1815, %v2127
      %v2129 = vpop.f32.mrf.mxu0
      %v2130 = vadd.f32 %v1817, %v2129
      %v2131 = vpop.f32.mrf.mxu0
      %v2132 = vadd.f32 %v1819, %v2131
      %2133 = vmatprep.mubr.bf16.mxu0 %v562
      %2134 = vmatmul.mubr.bf16.gmra.mxu0 %v561
      %v2135 = vpop.f32.mrf.mxu0
      %v2136 = vadd.f32 %v1823, %v2135
      %v2137 = vpop.f32.mrf.mxu0
      %v2138 = vadd.f32 %v1825, %v2137
      %v2139 = vpop.f32.mrf.mxu0
      %v2140 = vadd.f32 %v1827, %v2139
      %v2141 = vpop.f32.mrf.mxu0
      %v2142 = vadd.f32 %v1829, %v2141
      %2143 = vmatprep.mubr.bf16.mxu0 %v563
      %2144 = vmatmul.mubr.bf16.gmra.mxu0 %v562
      %v2145 = vpop.f32.mrf.mxu0
      %v2146 = vadd.f32 %v1833, %v2145
      %v2147 = vpop.f32.mrf.mxu0
      %v2148 = vadd.f32 %v1835, %v2147
      %v2149 = vpop.f32.mrf.mxu0
      %v2150 = vadd.f32 %v1837, %v2149
      %v2151 = vpop.f32.mrf.mxu0
      %v2152 = vadd.f32 %v1839, %v2151
      %2153 = vmatprep.mubr.bf16.mxu0 %v564
      %2154 = vmatmul.mubr.bf16.gmra.mxu0 %v563
      %v2155 = vpop.f32.mrf.mxu0
      %v2156 = vadd.f32 %v1843, %v2155
      %v2157 = vpop.f32.mrf.mxu0
      %v2158 = vadd.f32 %v1845, %v2157
      %v2159 = vpop.f32.mrf.mxu0
      %v2160 = vadd.f32 %v1847, %v2159
      %v2161 = vpop.f32.mrf.mxu0
      %v2162 = vadd.f32 %v1849, %v2161
      %2163 = vmatprep.mubr.bf16.mxu0 %v565
      %2164 = vmatmul.mubr.bf16.gmra.mxu0 %v564
      %v2165 = vpop.f32.mrf.mxu0
      %v2166 = vadd.f32 %v1853, %v2165
      %v2167 = vpop.f32.mrf.mxu0
      %v2168 = vadd.f32 %v1855, %v2167
      %v2169 = vpop.f32.mrf.mxu0
      %v2170 = vadd.f32 %v1857, %v2169
      %v2171 = vpop.f32.mrf.mxu0
      %v2172 = vadd.f32 %v1859, %v2171
      %2173 = vmatprep.mubr.bf16.mxu0 %v598
      %2174 = vmatmul.mubr.bf16.gmra.mxu0 %v565
      %v2175 = vpop.f32.mrf.mxu0
      %v2176 = vadd.f32 %v1863, %v2175
      %v2177 = vpop.f32.mrf.mxu0
      %v2178 = vadd.f32 %v1865, %v2177
      %v2179 = vpop.f32.mrf.mxu0
      %v2180 = vadd.f32 %v1867, %v2179
      %v2181 = vpop.f32.mrf.mxu0
      %v2182 = vadd.f32 %v1869, %v2181
      %2183 = vmatprep.mubr.bf16.mxu0 %v604
      %2184 = vmatmul.mubr.bf16.gmra.mxu0 %v598
      %v2185 = vpop.f32.mrf.mxu0
      %v2186 = vadd.f32 %v1873, %v2185
      %v2187 = vpop.f32.mrf.mxu0
      %v2188 = vadd.f32 %v1875, %v2187
      %v2189 = vpop.f32.mrf.mxu0
      %v2190 = vadd.f32 %v1877, %v2189
      %v2191 = vpop.f32.mrf.mxu0
      %v2192 = vadd.f32 %v1879, %v2191
      %2193 = vmatprep.mubr.bf16.mxu0 %v610
      %2194 = vmatmul.mubr.bf16.gmra.mxu0 %v604
      %v2195 = vpop.f32.mrf.mxu0
      %v2196 = vadd.f32 %v1883, %v2195
      %v2197 = vpop.f32.mrf.mxu0
      %v2198 = vadd.f32 %v1885, %v2197
      %v2199 = vpop.f32.mrf.mxu0
      %v2200 = vadd.f32 %v1887, %v2199
      %v2201 = vpop.f32.mrf.mxu0
      %v2202 = vadd.f32 %v1889, %v2201
      %2203 = vdwg.mxu0
      %2204 = vmatprep.subr.bf16.mxu0 %v1415
      %2205 = vmatpush1.bf16.msra.mxu0 %v1414
      %2206 = vmatprep.subr.bf16.mxu0 %v1411
      %2207 = vmatpush1.bf16.msra.mxu0 %v1410
      %2208 = vmatprep.subr.bf16.mxu0 %v1407
      %2209 = vmatpush1.bf16.msra.mxu0 %v1406
      %2210 = vmatprep.subr.bf16.mxu0 %v1403
      %2211 = vmatpush1.bf16.msra.mxu0 %v1402
      %2212 = vmatprep.subr.bf16.mxu0 %v1399
      %2213 = vmatpush1.bf16.msra.mxu0 %v1398
      %2214 = vmatprep.subr.bf16.mxu0 %v1395
      %2215 = vmatpush1.bf16.msra.mxu0 %v1394
      %2216 = vmatprep.subr.bf16.mxu0 %v1391
      %2217 = vmatpush1.bf16.msra.mxu0 %v1390
      %2218 = vmatprep.subr.bf16.mxu0 %v1387
      %2219 = vmatpush1.bf16.msra.mxu0 %v1386
      %2220 = vmatprep.subr.bf16.mxu0 0
      %2221 = vmatpush2.bf16.msra.mxu0 0
      %2222 = vmatprep.subr.bf16.mxu0 0
      %2223 = vmatpush2.bf16.msra.mxu0 0
      %2224 = vmatprep.subr.bf16.mxu0 0
      %2225 = vmatpush2.bf16.msra.mxu0 0
      %2226 = vmatprep.subr.bf16.mxu0 0
      %2227 = vmatpush2.bf16.msra.mxu0 0
      %2228 = vmatprep.subr.bf16.mxu0 0
      %2229 = vmatpush2.bf16.msra.mxu0 0
      %2230 = vmatprep.subr.bf16.mxu0 0
      %2231 = vmatpush2.bf16.msra.mxu0 0
      %2232 = vmatprep.subr.bf16.mxu0 0
      %2233 = vmatpush2.bf16.msra.mxu0 0
      %2234 = vmatprep.subr.bf16.mxu0 0
      %2235 = vmatpush2.bf16.msra.mxu0 0
      %2236 = vmatprep.mubr.bf16.mxu0 0
      %2237 = vmatmul.mubr.bf16.gmra.mxu0 %v542
      %v2238 = vpop.f32.mrf.mxu0
      %v2239 = vadd.f32 %v1926, %v2238
      %v2240 = vpop.f32.mrf.mxu0
      %v2241 = vadd.f32 %v1928, %v2240
      %v2242 = vpop.f32.mrf.mxu0
      %v2243 = vadd.f32 %v1930, %v2242
      %v2244 = vpop.f32.mrf.mxu0
      %v2245 = vadd.f32 %v1932, %v2244
      %2246 = vmatprep.mubr.bf16.mxu0 0
      %2247 = vmatmul.mubr.bf16.gmra.mxu0 %v543
      %v2248 = vpop.f32.mrf.mxu0
      %v2249 = vadd.f32 %v1936, %v2248
      %v2250 = vpop.f32.mrf.mxu0
      %v2251 = vadd.f32 %v1938, %v2250
      %v2252 = vpop.f32.mrf.mxu0
      %v2253 = vadd.f32 %v1940, %v2252
      %v2254 = vpop.f32.mrf.mxu0
      %v2255 = vadd.f32 %v1942, %v2254
      %2256 = vmatprep.mubr.bf16.mxu0 0
      %2257 = vmatmul.mubr.bf16.gmra.mxu0 %v544
      %v2258 = vpop.f32.mrf.mxu0
      %v2259 = vadd.f32 %v1946, %v2258
      %v2260 = vpop.f32.mrf.mxu0
      %v2261 = vadd.f32 %v1948, %v2260
      %v2262 = vpop.f32.mrf.mxu0
      %v2263 = vadd.f32 %v1950, %v2262
      %v2264 = vpop.f32.mrf.mxu0
      %v2265 = vadd.f32 %v1952, %v2264
      %2266 = vmatprep.mubr.bf16.mxu0 0
      %2267 = vmatmul.mubr.bf16.gmra.mxu0 %v545
      %v2268 = vpop.f32.mrf.mxu0
      %v2269 = vadd.f32 %v1956, %v2268
      %v2270 = vpop.f32.mrf.mxu0
      %v2271 = vadd.f32 %v1958, %v2270
      %v2272 = vpop.f32.mrf.mxu0
      %v2273 = vadd.f32 %v1960, %v2272
      %v2274 = vpop.f32.mrf.mxu0
      %v2275 = vadd.f32 %v1962, %v2274
      %2276 = vmatprep.mubr.bf16.mxu0 0
      %2277 = vmatmul.mubr.bf16.gmra.mxu0 %v546
      %v2278 = vpop.f32.mrf.mxu0
      %v2279 = vadd.f32 %v1966, %v2278
      %v2280 = vpop.f32.mrf.mxu0
      %v2281 = vadd.f32 %v1968, %v2280
      %v2282 = vpop.f32.mrf.mxu0
      %v2283 = vadd.f32 %v1970, %v2282
      %v2284 = vpop.f32.mrf.mxu0
      %v2285 = vadd.f32 %v1972, %v2284
      %2286 = vmatprep.mubr.bf16.mxu0 0
      %2287 = vmatmul.mubr.bf16.gmra.mxu0 %v547
      %v2288 = vpop.f32.mrf.mxu0
      %v2289 = vadd.f32 %v1976, %v2288
      %v2290 = vpop.f32.mrf.mxu0
      %v2291 = vadd.f32 %v1978, %v2290
      %v2292 = vpop.f32.mrf.mxu0
      %v2293 = vadd.f32 %v1980, %v2292
      %v2294 = vpop.f32.mrf.mxu0
      %v2295 = vadd.f32 %v1982, %v2294
      %2296 = vmatprep.mubr.bf16.mxu0 0
      %2297 = vmatmul.mubr.bf16.gmra.mxu0 %v548
      %v2298 = vpop.f32.mrf.mxu0
      %v2299 = vadd.f32 %v1986, %v2298
      %v2300 = vpop.f32.mrf.mxu0
      %v2301 = vadd.f32 %v1988, %v2300
      %v2302 = vpop.f32.mrf.mxu0
      %v2303 = vadd.f32 %v1990, %v2302
      %v2304 = vpop.f32.mrf.mxu0
      %v2305 = vadd.f32 %v1992, %v2304
      %2306 = vmatprep.mubr.bf16.mxu0 0
      %2307 = vmatmul.mubr.bf16.gmra.mxu0 %v549
      %v2308 = vpop.f32.mrf.mxu0
      %v2309 = vadd.f32 %v1996, %v2308
      %v2310 = vpop.f32.mrf.mxu0
      %v2311 = vadd.f32 %v1998, %v2310
      %v2312 = vpop.f32.mrf.mxu0
      %v2313 = vadd.f32 %v2000, %v2312
      %v2314 = vpop.f32.mrf.mxu0
      %v2315 = vadd.f32 %v2002, %v2314
      %2316 = vmatprep.mubr.bf16.mxu0 0
      %2317 = vmatmul.mubr.bf16.gmra.mxu0 %v550
      %v2318 = vpop.f32.mrf.mxu0
      %v2319 = vadd.f32 %v2006, %v2318
      %v2320 = vpop.f32.mrf.mxu0
      %v2321 = vadd.f32 %v2008, %v2320
      %v2322 = vpop.f32.mrf.mxu0
      %v2323 = vadd.f32 %v2010, %v2322
      %v2324 = vpop.f32.mrf.mxu0
      %v2325 = vadd.f32 %v2012, %v2324
      %2326 = vmatprep.mubr.bf16.mxu0 0
      %2327 = vmatmul.mubr.bf16.gmra.mxu0 %v551
      %v2328 = vpop.f32.mrf.mxu0
      %v2329 = vadd.f32 %v2016, %v2328
      %v2330 = vpop.f32.mrf.mxu0
      %v2331 = vadd.f32 %v2018, %v2330
      %v2332 = vpop.f32.mrf.mxu0
      %v2333 = vadd.f32 %v2020, %v2332
      %v2334 = vpop.f32.mrf.mxu0
      %v2335 = vadd.f32 %v2022, %v2334
      %2336 = vmatprep.mubr.bf16.mxu0 0
      %2337 = vmatmul.mubr.bf16.gmra.mxu0 %v552
      %v2338 = vpop.f32.mrf.mxu0
      %v2339 = vadd.f32 %v2026, %v2338
      %v2340 = vpop.f32.mrf.mxu0
      %v2341 = vadd.f32 %v2028, %v2340
      %v2342 = vpop.f32.mrf.mxu0
      %v2343 = vadd.f32 %v2030, %v2342
      %v2344 = vpop.f32.mrf.mxu0
      %v2345 = vadd.f32 %v2032, %v2344
      %2346 = vmatprep.mubr.bf16.mxu0 0
      %2347 = vmatmul.mubr.bf16.gmra.mxu0 %v553
      %v2348 = vpop.f32.mrf.mxu0
      %v2349 = vadd.f32 %v2036, %v2348
      %v2350 = vpop.f32.mrf.mxu0
      %v2351 = vadd.f32 %v2038, %v2350
      %v2352 = vpop.f32.mrf.mxu0
      %v2353 = vadd.f32 %v2040, %v2352
      %v2354 = vpop.f32.mrf.mxu0
      %v2355 = vadd.f32 %v2042, %v2354
      %2356 = vmatprep.mubr.bf16.mxu0 0
      %2357 = vmatmul.mubr.bf16.gmra.mxu0 %v554
      %v2358 = vpop.f32.mrf.mxu0
      %v2359 = vadd.f32 %v2046, %v2358
      %v2360 = vpop.f32.mrf.mxu0
      %v2361 = vadd.f32 %v2048, %v2360
      %v2362 = vpop.f32.mrf.mxu0
      %v2363 = vadd.f32 %v2050, %v2362
      %v2364 = vpop.f32.mrf.mxu0
      %v2365 = vadd.f32 %v2052, %v2364
      %2366 = vmatprep.mubr.bf16.mxu0 0
      %2367 = vmatmul.mubr.bf16.gmra.mxu0 %v555
      %v2368 = vpop.f32.mrf.mxu0
      %v2369 = vadd.f32 %v2056, %v2368
      %v2370 = vpop.f32.mrf.mxu0
      %v2371 = vadd.f32 %v2058, %v2370
      %v2372 = vpop.f32.mrf.mxu0
      %v2373 = vadd.f32 %v2060, %v2372
      %v2374 = vpop.f32.mrf.mxu0
      %v2375 = vadd.f32 %v2062, %v2374
      %2376 = vmatprep.mubr.bf16.mxu0 0
      %2377 = vmatmul.mubr.bf16.gmra.mxu0 %v556
      %v2378 = vpop.f32.mrf.mxu0
      %v2379 = vadd.f32 %v2066, %v2378
      %v2380 = vpop.f32.mrf.mxu0
      %v2381 = vadd.f32 %v2068, %v2380
      %v2382 = vpop.f32.mrf.mxu0
      %v2383 = vadd.f32 %v2070, %v2382
      %v2384 = vpop.f32.mrf.mxu0
      %v2385 = vadd.f32 %v2072, %v2384
      %2386 = vmatprep.mubr.bf16.mxu0 0
      %2387 = vmatmul.mubr.bf16.gmra.mxu0 %v557
      %v2388 = vpop.f32.mrf.mxu0
      %v2389 = vadd.f32 %v2076, %v2388
      %v2390 = vpop.f32.mrf.mxu0
      %v2391 = vadd.f32 %v2078, %v2390
      %v2392 = vpop.f32.mrf.mxu0
      %v2393 = vadd.f32 %v2080, %v2392
      %v2394 = vpop.f32.mrf.mxu0
      %v2395 = vadd.f32 %v2082, %v2394
      %2396 = vmatprep.mubr.bf16.mxu0 0
      %2397 = vmatmul.mubr.bf16.gmra.mxu0 %v558
      %v2398 = vpop.f32.mrf.mxu0
      %v2399 = vadd.f32 %v2086, %v2398
      %v2400 = vpop.f32.mrf.mxu0
      %v2401 = vadd.f32 %v2088, %v2400
      %v2402 = vpop.f32.mrf.mxu0
      %v2403 = vadd.f32 %v2090, %v2402
      %v2404 = vpop.f32.mrf.mxu0
      %v2405 = vadd.f32 %v2092, %v2404
      %2406 = vmatprep.mubr.bf16.mxu0 0
      %2407 = vmatmul.mubr.bf16.gmra.mxu0 %v559
      %v2408 = vpop.f32.mrf.mxu0
      %v2409 = vadd.f32 %v2096, %v2408
      %v2410 = vpop.f32.mrf.mxu0
      %v2411 = vadd.f32 %v2098, %v2410
      %v2412 = vpop.f32.mrf.mxu0
      %v2413 = vadd.f32 %v2100, %v2412
      %v2414 = vpop.f32.mrf.mxu0
      %v2415 = vadd.f32 %v2102, %v2414
      %2416 = vmatprep.mubr.bf16.mxu0 0
      %2417 = vmatmul.mubr.bf16.gmra.mxu0 %v560
      %v2418 = vpop.f32.mrf.mxu0
      %v2419 = vadd.f32 %v2106, %v2418
      %v2420 = vpop.f32.mrf.mxu0
      %v2421 = vadd.f32 %v2108, %v2420
      %v2422 = vpop.f32.mrf.mxu0
      %v2423 = vadd.f32 %v2110, %v2422
      %v2424 = vpop.f32.mrf.mxu0
      %v2425 = vadd.f32 %v2112, %v2424
      %2426 = vmatprep.mubr.bf16.mxu0 0
      %2427 = vmatmul.mubr.bf16.gmra.mxu0 %v561
      %v2428 = vpop.f32.mrf.mxu0
      %v2429 = vadd.f32 %v2116, %v2428
      %v2430 = vpop.f32.mrf.mxu0
      %v2431 = vadd.f32 %v2118, %v2430
      %v2432 = vpop.f32.mrf.mxu0
      %v2433 = vadd.f32 %v2120, %v2432
      %v2434 = vpop.f32.mrf.mxu0
      %v2435 = vadd.f32 %v2122, %v2434
      %2436 = vmatprep.mubr.bf16.mxu0 0
      %2437 = vmatmul.mubr.bf16.gmra.mxu0 %v562
      %v2438 = vpop.f32.mrf.mxu0
      %v2439 = vadd.f32 %v2126, %v2438
      %v2440 = vpop.f32.mrf.mxu0
      %v2441 = vadd.f32 %v2128, %v2440
      %v2442 = vpop.f32.mrf.mxu0
      %v2443 = vadd.f32 %v2130, %v2442
      %v2444 = vpop.f32.mrf.mxu0
      %v2445 = vadd.f32 %v2132, %v2444
      %2446 = vmatprep.mubr.bf16.mxu0 0
      %2447 = vmatmul.mubr.bf16.gmra.mxu0 %v563
      %v2448 = vpop.f32.mrf.mxu0
      %v2449 = vadd.f32 %v2136, %v2448
      %v2450 = vpop.f32.mrf.mxu0
      %v2451 = vadd.f32 %v2138, %v2450
      %v2452 = vpop.f32.mrf.mxu0
      %v2453 = vadd.f32 %v2140, %v2452
      %v2454 = vpop.f32.mrf.mxu0
      %v2455 = vadd.f32 %v2142, %v2454
      %2456 = vmatprep.mubr.bf16.mxu0 0
      %2457 = vmatmul.mubr.bf16.gmra.mxu0 %v564
      %v2458 = vpop.f32.mrf.mxu0
      %v2459 = vadd.f32 %v2146, %v2458
      %v2460 = vpop.f32.mrf.mxu0
      %v2461 = vadd.f32 %v2148, %v2460
      %v2462 = vpop.f32.mrf.mxu0
      %v2463 = vadd.f32 %v2150, %v2462
      %v2464 = vpop.f32.mrf.mxu0
      %v2465 = vadd.f32 %v2152, %v2464
      %2466 = vmatprep.mubr.bf16.mxu0 0
      %2467 = vmatmul.mubr.bf16.gmra.mxu0 %v565
      %v2468 = vpop.f32.mrf.mxu0
      %v2469 = vadd.f32 %v2156, %v2468
      %v2470 = vpop.f32.mrf.mxu0
      %v2471 = vadd.f32 %v2158, %v2470
      %v2472 = vpop.f32.mrf.mxu0
      %v2473 = vadd.f32 %v2160, %v2472
      %v2474 = vpop.f32.mrf.mxu0
      %v2475 = vadd.f32 %v2162, %v2474
      %2476 = vmatprep.mubr.bf16.mxu0 0
      %2477 = vmatmul.mubr.bf16.gmra.mxu0 %v598
      %v2478 = vpop.f32.mrf.mxu0
      %v2479 = vadd.f32 %v2166, %v2478
      %v2480 = vpop.f32.mrf.mxu0
      %v2481 = vadd.f32 %v2168, %v2480
      %v2482 = vpop.f32.mrf.mxu0
      %v2483 = vadd.f32 %v2170, %v2482
      %v2484 = vpop.f32.mrf.mxu0
      %v2485 = vadd.f32 %v2172, %v2484
      %2486 = vmatprep.mubr.bf16.mxu0 0
      %2487 = vmatmul.mubr.bf16.gmra.mxu0 %v604
      %v2488 = vpop.f32.mrf.mxu0
      %v2489 = vadd.f32 %v2176, %v2488
      %v2490 = vpop.f32.mrf.mxu0
      %v2491 = vadd.f32 %v2178, %v2490
      %v2492 = vpop.f32.mrf.mxu0
      %v2493 = vadd.f32 %v2180, %v2492
      %v2494 = vpop.f32.mrf.mxu0
      %v2495 = vadd.f32 %v2182, %v2494
      %2496 = vmatprep.mubr.bf16.mxu0 0
      %2497 = vmatmul.mubr.bf16.gmra.mxu0 %v610
      %v2498 = vpop.f32.mrf.mxu0
      %v2499 = vadd.f32 %v2186, %v2498
      %v2500 = vpop.f32.mrf.mxu0
      %v2501 = vadd.f32 %v2188, %v2500
      %v2502 = vpop.f32.mrf.mxu0
      %v2503 = vadd.f32 %v2190, %v2502
      %v2504 = vpop.f32.mrf.mxu0
      %v2505 = vadd.f32 %v2192, %v2504
      %2506 = vmatprep.mubr.bf16.mxu0 0
      %2507 = vmatmul.mubr.bf16.gmra.mxu0 %v616
      %v2508 = vpop.f32.mrf.mxu0
      %v2509 = vadd.f32 %v2196, %v2508
      %v2510 = vpop.f32.mrf.mxu0
      %v2511 = vadd.f32 %v2198, %v2510
      %v2512 = vpop.f32.mrf.mxu0
      %v2513 = vadd.f32 %v2200, %v2512
      %v2514 = vpop.f32.mrf.mxu0
      %v2515 = vadd.f32 %v2202, %v2514
      %2516 = vdwg.mxu0
      %2517 = vmatprep.subr.bf16.mxu0 %v1289
      %2518 = vmatpush1.bf16.msra.mxu0 %v1288
      %2519 = vmatprep.subr.bf16.mxu0 %v1285
      %2520 = vmatpush1.bf16.msra.mxu0 %v1284
      %2521 = vmatprep.subr.bf16.mxu0 %v1281
      %2522 = vmatpush1.bf16.msra.mxu0 %v1280
      %2523 = vmatprep.subr.bf16.mxu0 %v1277
      %2524 = vmatpush1.bf16.msra.mxu0 %v1276
      %2525 = vmatprep.subr.bf16.mxu0 %v1273
      %2526 = vmatpush1.bf16.msra.mxu0 %v1272
      %2527 = vmatprep.subr.bf16.mxu0 %v1269
      %2528 = vmatpush1.bf16.msra.mxu0 %v1268
      %2529 = vmatprep.subr.bf16.mxu0 %v1265
      %2530 = vmatpush1.bf16.msra.mxu0 %v1264
      %2531 = vmatprep.subr.bf16.mxu0 %v1261
      %2532 = vmatpush1.bf16.msra.mxu0 %v1260
      %2533 = vmatprep.subr.bf16.mxu0 %v1321
      %2534 = vmatpush2.bf16.msra.mxu0 %v1320
      %2535 = vmatprep.subr.bf16.mxu0 %v1317
      %2536 = vmatpush2.bf16.msra.mxu0 %v1316
      %2537 = vmatprep.subr.bf16.mxu0 %v1313
      %2538 = vmatpush2.bf16.msra.mxu0 %v1312
      %2539 = vmatprep.subr.bf16.mxu0 %v1309
      %2540 = vmatpush2.bf16.msra.mxu0 %v1308
      %2541 = vmatprep.subr.bf16.mxu0 %v1305
      %2542 = vmatpush2.bf16.msra.mxu0 %v1304
      %2543 = vmatprep.subr.bf16.mxu0 %v1301
      %2544 = vmatpush2.bf16.msra.mxu0 %v1300
      %2545 = vmatprep.subr.bf16.mxu0 %v1297
      %2546 = vmatpush2.bf16.msra.mxu0 %v1296
      %2547 = vmatprep.subr.bf16.mxu0 %v1293
      %2548 = vmatpush2.bf16.msra.mxu0 %v1292
      %2549 = vmatprep.mubr.bf16.mxu0 %v539
      %2550 = vmatmul.mubr.bf16.gmra.mxu0 %v538
      %v2551 = vpop.f32.mrf.mxu0
      %v2552 = vadd.f32 0.0, %v2551
      %v2553 = vpop.f32.mrf.mxu0
      %v2554 = vadd.f32 0.0, %v2553
      %v2555 = vpop.f32.mrf.mxu0
      %v2556 = vadd.f32 0.0, %v2555
      %v2557 = vpop.f32.mrf.mxu0
      %v2558 = vadd.f32 0.0, %v2557
      %2559 = vmatprep.mubr.bf16.mxu0 %v540
      %2560 = vmatmul.mubr.bf16.gmra.mxu0 %v539
      %v2561 = vpop.f32.mrf.mxu0
      %v2562 = vadd.f32 0.0, %v2561
      %v2563 = vpop.f32.mrf.mxu0
      %v2564 = vadd.f32 0.0, %v2563
      %v2565 = vpop.f32.mrf.mxu0
      %v2566 = vadd.f32 0.0, %v2565
      %v2567 = vpop.f32.mrf.mxu0
      %v2568 = vadd.f32 0.0, %v2567
      %2569 = vmatprep.mubr.bf16.mxu0 %v541
      %2570 = vmatmul.mubr.bf16.gmra.mxu0 %v540
      %v2571 = vpop.f32.mrf.mxu0
      %v2572 = vadd.f32 0.0, %v2571
      %v2573 = vpop.f32.mrf.mxu0
      %v2574 = vadd.f32 0.0, %v2573
      %v2575 = vpop.f32.mrf.mxu0
      %v2576 = vadd.f32 0.0, %v2575
      %v2577 = vpop.f32.mrf.mxu0
      %v2578 = vadd.f32 0.0, %v2577
      %2579 = vmatprep.mubr.bf16.mxu0 %v542
      %2580 = vmatmul.mubr.bf16.gmra.mxu0 %v541
      %v2581 = vpop.f32.mrf.mxu0
      %v2582 = vadd.f32 0.0, %v2581
      %v2583 = vpop.f32.mrf.mxu0
      %v2584 = vadd.f32 0.0, %v2583
      %v2585 = vpop.f32.mrf.mxu0
      %v2586 = vadd.f32 0.0, %v2585
      %v2587 = vpop.f32.mrf.mxu0
      %v2588 = vadd.f32 0.0, %v2587
      %2589 = vmatprep.mubr.bf16.mxu0 %v543
      %2590 = vmatmul.mubr.bf16.gmra.mxu0 %v542
      %v2591 = vpop.f32.mrf.mxu0
      %v2592 = vadd.f32 0.0, %v2591
      %v2593 = vpop.f32.mrf.mxu0
      %v2594 = vadd.f32 0.0, %v2593
      %v2595 = vpop.f32.mrf.mxu0
      %v2596 = vadd.f32 0.0, %v2595
      %v2597 = vpop.f32.mrf.mxu0
      %v2598 = vadd.f32 0.0, %v2597
      %2599 = vmatprep.mubr.bf16.mxu0 %v544
      %2600 = vmatmul.mubr.bf16.gmra.mxu0 %v543
      %v2601 = vpop.f32.mrf.mxu0
      %v2602 = vadd.f32 0.0, %v2601
      %v2603 = vpop.f32.mrf.mxu0
      %v2604 = vadd.f32 0.0, %v2603
      %v2605 = vpop.f32.mrf.mxu0
      %v2606 = vadd.f32 0.0, %v2605
      %v2607 = vpop.f32.mrf.mxu0
      %v2608 = vadd.f32 0.0, %v2607
      %2609 = vmatprep.mubr.bf16.mxu0 %v545
      %2610 = vmatmul.mubr.bf16.gmra.mxu0 %v544
      %v2611 = vpop.f32.mrf.mxu0
      %v2612 = vadd.f32 0.0, %v2611
      %v2613 = vpop.f32.mrf.mxu0
      %v2614 = vadd.f32 0.0, %v2613
      %v2615 = vpop.f32.mrf.mxu0
      %v2616 = vadd.f32 0.0, %v2615
      %v2617 = vpop.f32.mrf.mxu0
      %v2618 = vadd.f32 0.0, %v2617
      %2619 = vmatprep.mubr.bf16.mxu0 %v546
      %2620 = vmatmul.mubr.bf16.gmra.mxu0 %v545
      %v2621 = vpop.f32.mrf.mxu0
      %v2622 = vadd.f32 0.0, %v2621
      %v2623 = vpop.f32.mrf.mxu0
      %v2624 = vadd.f32 0.0, %v2623
      %v2625 = vpop.f32.mrf.mxu0
      %v2626 = vadd.f32 0.0, %v2625
      %v2627 = vpop.f32.mrf.mxu0
      %v2628 = vadd.f32 0.0, %v2627
      %2629 = vmatprep.mubr.bf16.mxu0 %v547
      %2630 = vmatmul.mubr.bf16.gmra.mxu0 %v546
      %v2631 = vpop.f32.mrf.mxu0
      %v2632 = vadd.f32 0.0, %v2631
      %v2633 = vpop.f32.mrf.mxu0
      %v2634 = vadd.f32 0.0, %v2633
      %v2635 = vpop.f32.mrf.mxu0
      %v2636 = vadd.f32 0.0, %v2635
      %v2637 = vpop.f32.mrf.mxu0
      %v2638 = vadd.f32 0.0, %v2637
      %2639 = vmatprep.mubr.bf16.mxu0 %v548
      %2640 = vmatmul.mubr.bf16.gmra.mxu0 %v547
      %v2641 = vpop.f32.mrf.mxu0
      %v2642 = vadd.f32 0.0, %v2641
      %v2643 = vpop.f32.mrf.mxu0
      %v2644 = vadd.f32 0.0, %v2643
      %v2645 = vpop.f32.mrf.mxu0
      %v2646 = vadd.f32 0.0, %v2645
      %v2647 = vpop.f32.mrf.mxu0
      %v2648 = vadd.f32 0.0, %v2647
      %2649 = vmatprep.mubr.bf16.mxu0 %v549
      %2650 = vmatmul.mubr.bf16.gmra.mxu0 %v548
      %v2651 = vpop.f32.mrf.mxu0
      %v2652 = vadd.f32 0.0, %v2651
      %v2653 = vpop.f32.mrf.mxu0
      %v2654 = vadd.f32 0.0, %v2653
      %v2655 = vpop.f32.mrf.mxu0
      %v2656 = vadd.f32 0.0, %v2655
      %v2657 = vpop.f32.mrf.mxu0
      %v2658 = vadd.f32 0.0, %v2657
      %2659 = vmatprep.mubr.bf16.mxu0 %v550
      %2660 = vmatmul.mubr.bf16.gmra.mxu0 %v549
      %v2661 = vpop.f32.mrf.mxu0
      %v2662 = vadd.f32 0.0, %v2661
      %v2663 = vpop.f32.mrf.mxu0
      %v2664 = vadd.f32 0.0, %v2663
      %v2665 = vpop.f32.mrf.mxu0
      %v2666 = vadd.f32 0.0, %v2665
      %v2667 = vpop.f32.mrf.mxu0
      %v2668 = vadd.f32 0.0, %v2667
      %2669 = vmatprep.mubr.bf16.mxu0 %v551
      %2670 = vmatmul.mubr.bf16.gmra.mxu0 %v550
      %v2671 = vpop.f32.mrf.mxu0
      %v2672 = vadd.f32 0.0, %v2671
      %v2673 = vpop.f32.mrf.mxu0
      %v2674 = vadd.f32 0.0, %v2673
      %v2675 = vpop.f32.mrf.mxu0
      %v2676 = vadd.f32 0.0, %v2675
      %v2677 = vpop.f32.mrf.mxu0
      %v2678 = vadd.f32 0.0, %v2677
      %2679 = vmatprep.mubr.bf16.mxu0 %v552
      %2680 = vmatmul.mubr.bf16.gmra.mxu0 %v551
      %v2681 = vpop.f32.mrf.mxu0
      %v2682 = vadd.f32 0.0, %v2681
      %v2683 = vpop.f32.mrf.mxu0
      %v2684 = vadd.f32 0.0, %v2683
      %v2685 = vpop.f32.mrf.mxu0
      %v2686 = vadd.f32 0.0, %v2685
      %v2687 = vpop.f32.mrf.mxu0
      %v2688 = vadd.f32 0.0, %v2687
      %2689 = vmatprep.mubr.bf16.mxu0 %v553
      %2690 = vmatmul.mubr.bf16.gmra.mxu0 %v552
      %v2691 = vpop.f32.mrf.mxu0
      %v2692 = vadd.f32 0.0, %v2691
      %v2693 = vpop.f32.mrf.mxu0
      %v2694 = vadd.f32 0.0, %v2693
      %v2695 = vpop.f32.mrf.mxu0
      %v2696 = vadd.f32 0.0, %v2695
      %v2697 = vpop.f32.mrf.mxu0
      %v2698 = vadd.f32 0.0, %v2697
      %2699 = vmatprep.mubr.bf16.mxu0 %v554
      %2700 = vmatmul.mubr.bf16.gmra.mxu0 %v553
      %v2701 = vpop.f32.mrf.mxu0
      %v2702 = vadd.f32 0.0, %v2701
      %v2703 = vpop.f32.mrf.mxu0
      %v2704 = vadd.f32 0.0, %v2703
      %v2705 = vpop.f32.mrf.mxu0
      %v2706 = vadd.f32 0.0, %v2705
      %v2707 = vpop.f32.mrf.mxu0
      %v2708 = vadd.f32 0.0, %v2707
      %2709 = vmatprep.mubr.bf16.mxu0 %v555
      %2710 = vmatmul.mubr.bf16.gmra.mxu0 %v554
      %v2711 = vpop.f32.mrf.mxu0
      %v2712 = vadd.f32 0.0, %v2711
      %v2713 = vpop.f32.mrf.mxu0
      %v2714 = vadd.f32 0.0, %v2713
      %v2715 = vpop.f32.mrf.mxu0
      %v2716 = vadd.f32 0.0, %v2715
      %v2717 = vpop.f32.mrf.mxu0
      %v2718 = vadd.f32 0.0, %v2717
      %2719 = vmatprep.mubr.bf16.mxu0 %v556
      %2720 = vmatmul.mubr.bf16.gmra.mxu0 %v555
      %v2721 = vpop.f32.mrf.mxu0
      %v2722 = vadd.f32 0.0, %v2721
      %v2723 = vpop.f32.mrf.mxu0
      %v2724 = vadd.f32 0.0, %v2723
      %v2725 = vpop.f32.mrf.mxu0
      %v2726 = vadd.f32 0.0, %v2725
      %v2727 = vpop.f32.mrf.mxu0
      %v2728 = vadd.f32 0.0, %v2727
      %2729 = vmatprep.mubr.bf16.mxu0 %v557
      %2730 = vmatmul.mubr.bf16.gmra.mxu0 %v556
      %v2731 = vpop.f32.mrf.mxu0
      %v2732 = vadd.f32 0.0, %v2731
      %v2733 = vpop.f32.mrf.mxu0
      %v2734 = vadd.f32 0.0, %v2733
      %v2735 = vpop.f32.mrf.mxu0
      %v2736 = vadd.f32 0.0, %v2735
      %v2737 = vpop.f32.mrf.mxu0
      %v2738 = vadd.f32 0.0, %v2737
      %2739 = vmatprep.mubr.bf16.mxu0 %v558
      %2740 = vmatmul.mubr.bf16.gmra.mxu0 %v557
      %v2741 = vpop.f32.mrf.mxu0
      %v2742 = vadd.f32 0.0, %v2741
      %v2743 = vpop.f32.mrf.mxu0
      %v2744 = vadd.f32 0.0, %v2743
      %v2745 = vpop.f32.mrf.mxu0
      %v2746 = vadd.f32 0.0, %v2745
      %v2747 = vpop.f32.mrf.mxu0
      %v2748 = vadd.f32 0.0, %v2747
      %2749 = vmatprep.mubr.bf16.mxu0 %v559
      %2750 = vmatmul.mubr.bf16.gmra.mxu0 %v558
      %v2751 = vpop.f32.mrf.mxu0
      %v2752 = vadd.f32 0.0, %v2751
      %v2753 = vpop.f32.mrf.mxu0
      %v2754 = vadd.f32 0.0, %v2753
      %v2755 = vpop.f32.mrf.mxu0
      %v2756 = vadd.f32 0.0, %v2755
      %v2757 = vpop.f32.mrf.mxu0
      %v2758 = vadd.f32 0.0, %v2757
      %2759 = vmatprep.mubr.bf16.mxu0 %v560
      %2760 = vmatmul.mubr.bf16.gmra.mxu0 %v559
      %v2761 = vpop.f32.mrf.mxu0
      %v2762 = vadd.f32 0.0, %v2761
      %v2763 = vpop.f32.mrf.mxu0
      %v2764 = vadd.f32 0.0, %v2763
      %v2765 = vpop.f32.mrf.mxu0
      %v2766 = vadd.f32 0.0, %v2765
      %v2767 = vpop.f32.mrf.mxu0
      %v2768 = vadd.f32 0.0, %v2767
      %2769 = vmatprep.mubr.bf16.mxu0 %v561
      %2770 = vmatmul.mubr.bf16.gmra.mxu0 %v560
      %v2771 = vpop.f32.mrf.mxu0
      %v2772 = vadd.f32 0.0, %v2771
      %v2773 = vpop.f32.mrf.mxu0
      %v2774 = vadd.f32 0.0, %v2773
      %v2775 = vpop.f32.mrf.mxu0
      %v2776 = vadd.f32 0.0, %v2775
      %v2777 = vpop.f32.mrf.mxu0
      %v2778 = vadd.f32 0.0, %v2777
      %2779 = vmatprep.mubr.bf16.mxu0 %v562
      %2780 = vmatmul.mubr.bf16.gmra.mxu0 %v561
      %v2781 = vpop.f32.mrf.mxu0
      %v2782 = vadd.f32 0.0, %v2781
      %v2783 = vpop.f32.mrf.mxu0
      %v2784 = vadd.f32 0.0, %v2783
      %v2785 = vpop.f32.mrf.mxu0
      %v2786 = vadd.f32 0.0, %v2785
      %v2787 = vpop.f32.mrf.mxu0
      %v2788 = vadd.f32 0.0, %v2787
      %2789 = vmatprep.mubr.bf16.mxu0 %v563
      %2790 = vmatmul.mubr.bf16.gmra.mxu0 %v562
      %v2791 = vpop.f32.mrf.mxu0
      %v2792 = vadd.f32 0.0, %v2791
      %v2793 = vpop.f32.mrf.mxu0
      %v2794 = vadd.f32 0.0, %v2793
      %v2795 = vpop.f32.mrf.mxu0
      %v2796 = vadd.f32 0.0, %v2795
      %v2797 = vpop.f32.mrf.mxu0
      %v2798 = vadd.f32 0.0, %v2797
      %2799 = vmatprep.mubr.bf16.mxu0 %v564
      %2800 = vmatmul.mubr.bf16.gmra.mxu0 %v563
      %v2801 = vpop.f32.mrf.mxu0
      %v2802 = vadd.f32 0.0, %v2801
      %v2803 = vpop.f32.mrf.mxu0
      %v2804 = vadd.f32 0.0, %v2803
      %v2805 = vpop.f32.mrf.mxu0
      %v2806 = vadd.f32 0.0, %v2805
      %v2807 = vpop.f32.mrf.mxu0
      %v2808 = vadd.f32 0.0, %v2807
      %2809 = vmatprep.mubr.bf16.mxu0 %v565
      %2810 = vmatmul.mubr.bf16.gmra.mxu0 %v564
      %v2811 = vpop.f32.mrf.mxu0
      %v2812 = vadd.f32 0.0, %v2811
      %v2813 = vpop.f32.mrf.mxu0
      %v2814 = vadd.f32 0.0, %v2813
      %v2815 = vpop.f32.mrf.mxu0
      %v2816 = vadd.f32 0.0, %v2815
      %v2817 = vpop.f32.mrf.mxu0
      %v2818 = vadd.f32 0.0, %v2817
      %2819 = vmatprep.mubr.bf16.mxu0 %v598
      %2820 = vmatmul.mubr.bf16.gmra.mxu0 %v565
      %v2821 = vpop.f32.mrf.mxu0
      %v2822 = vadd.f32 0.0, %v2821
      %v2823 = vpop.f32.mrf.mxu0
      %v2824 = vadd.f32 0.0, %v2823
      %v2825 = vpop.f32.mrf.mxu0
      %v2826 = vadd.f32 0.0, %v2825
      %v2827 = vpop.f32.mrf.mxu0
      %v2828 = vadd.f32 0.0, %v2827
      %2829 = vdwg.mxu0
      %2830 = vmatprep.subr.bf16.mxu0 %v1353
      %2831 = vmatpush1.bf16.msra.mxu0 %v1352
      %2832 = vmatprep.subr.bf16.mxu0 %v1349
      %2833 = vmatpush1.bf16.msra.mxu0 %v1348
      %2834 = vmatprep.subr.bf16.mxu0 %v1345
      %2835 = vmatpush1.bf16.msra.mxu0 %v1344
      %2836 = vmatprep.subr.bf16.mxu0 %v1341
      %2837 = vmatpush1.bf16.msra.mxu0 %v1340
      %2838 = vmatprep.subr.bf16.mxu0 %v1337
      %2839 = vmatpush1.bf16.msra.mxu0 %v1336
      %2840 = vmatprep.subr.bf16.mxu0 %v1333
      %2841 = vmatpush1.bf16.msra.mxu0 %v1332
      %2842 = vmatprep.subr.bf16.mxu0 %v1329
      %2843 = vmatpush1.bf16.msra.mxu0 %v1328
      %2844 = vmatprep.subr.bf16.mxu0 %v1325
      %2845 = vmatpush1.bf16.msra.mxu0 %v1324
      %2846 = vmatprep.subr.bf16.mxu0 %v1385
      %2847 = vmatpush2.bf16.msra.mxu0 %v1384
      %2848 = vmatprep.subr.bf16.mxu0 %v1381
      %2849 = vmatpush2.bf16.msra.mxu0 %v1380
      %2850 = vmatprep.subr.bf16.mxu0 %v1377
      %2851 = vmatpush2.bf16.msra.mxu0 %v1376
      %2852 = vmatprep.subr.bf16.mxu0 %v1373
      %2853 = vmatpush2.bf16.msra.mxu0 %v1372
      %2854 = vmatprep.subr.bf16.mxu0 %v1369
      %2855 = vmatpush2.bf16.msra.mxu0 %v1368
      %2856 = vmatprep.subr.bf16.mxu0 %v1365
      %2857 = vmatpush2.bf16.msra.mxu0 %v1364
      %2858 = vmatprep.subr.bf16.mxu0 %v1361
      %2859 = vmatpush2.bf16.msra.mxu0 %v1360
      %2860 = vmatprep.subr.bf16.mxu0 %v1357
      %2861 = vmatpush2.bf16.msra.mxu0 %v1356
      %2862 = vmatprep.mubr.bf16.mxu0 %v541
      %2863 = vmatmul.mubr.bf16.gmra.mxu0 %v540
      %v2864 = vpop.f32.mrf.mxu0
      %v2865 = vadd.f32 %v2552, %v2864
      %v2866 = vpop.f32.mrf.mxu0
      %v2867 = vadd.f32 %v2554, %v2866
      %v2868 = vpop.f32.mrf.mxu0
      %v2869 = vadd.f32 %v2556, %v2868
      %v2870 = vpop.f32.mrf.mxu0
      %v2871 = vadd.f32 %v2558, %v2870
      %2872 = vmatprep.mubr.bf16.mxu0 %v542
      %2873 = vmatmul.mubr.bf16.gmra.mxu0 %v541
      %v2874 = vpop.f32.mrf.mxu0
      %v2875 = vadd.f32 %v2562, %v2874
      %v2876 = vpop.f32.mrf.mxu0
      %v2877 = vadd.f32 %v2564, %v2876
      %v2878 = vpop.f32.mrf.mxu0
      %v2879 = vadd.f32 %v2566, %v2878
      %v2880 = vpop.f32.mrf.mxu0
      %v2881 = vadd.f32 %v2568, %v2880
      %2882 = vmatprep.mubr.bf16.mxu0 %v543
      %2883 = vmatmul.mubr.bf16.gmra.mxu0 %v542
      %v2884 = vpop.f32.mrf.mxu0
      %v2885 = vadd.f32 %v2572, %v2884
      %v2886 = vpop.f32.mrf.mxu0
      %v2887 = vadd.f32 %v2574, %v2886
      %v2888 = vpop.f32.mrf.mxu0
      %v2889 = vadd.f32 %v2576, %v2888
      %v2890 = vpop.f32.mrf.mxu0
      %v2891 = vadd.f32 %v2578, %v2890
      %2892 = vmatprep.mubr.bf16.mxu0 %v544
      %2893 = vmatmul.mubr.bf16.gmra.mxu0 %v543
      %v2894 = vpop.f32.mrf.mxu0
      %v2895 = vadd.f32 %v2582, %v2894
      %v2896 = vpop.f32.mrf.mxu0
      %v2897 = vadd.f32 %v2584, %v2896
      %v2898 = vpop.f32.mrf.mxu0
      %v2899 = vadd.f32 %v2586, %v2898
      %v2900 = vpop.f32.mrf.mxu0
      %v2901 = vadd.f32 %v2588, %v2900
      %2902 = vmatprep.mubr.bf16.mxu0 %v545
      %2903 = vmatmul.mubr.bf16.gmra.mxu0 %v544
      %v2904 = vpop.f32.mrf.mxu0
      %v2905 = vadd.f32 %v2592, %v2904
      %v2906 = vpop.f32.mrf.mxu0
      %v2907 = vadd.f32 %v2594, %v2906
      %v2908 = vpop.f32.mrf.mxu0
      %v2909 = vadd.f32 %v2596, %v2908
      %v2910 = vpop.f32.mrf.mxu0
      %v2911 = vadd.f32 %v2598, %v2910
      %2912 = vmatprep.mubr.bf16.mxu0 %v546
      %2913 = vmatmul.mubr.bf16.gmra.mxu0 %v545
      %v2914 = vpop.f32.mrf.mxu0
      %v2915 = vadd.f32 %v2602, %v2914
      %v2916 = vpop.f32.mrf.mxu0
      %v2917 = vadd.f32 %v2604, %v2916
      %v2918 = vpop.f32.mrf.mxu0
      %v2919 = vadd.f32 %v2606, %v2918
      %v2920 = vpop.f32.mrf.mxu0
      %v2921 = vadd.f32 %v2608, %v2920
      %2922 = vmatprep.mubr.bf16.mxu0 %v547
      %2923 = vmatmul.mubr.bf16.gmra.mxu0 %v546
      %v2924 = vpop.f32.mrf.mxu0
      %v2925 = vadd.f32 %v2612, %v2924
      %v2926 = vpop.f32.mrf.mxu0
      %v2927 = vadd.f32 %v2614, %v2926
      %v2928 = vpop.f32.mrf.mxu0
      %v2929 = vadd.f32 %v2616, %v2928
      %v2930 = vpop.f32.mrf.mxu0
      %v2931 = vadd.f32 %v2618, %v2930
      %2932 = vmatprep.mubr.bf16.mxu0 %v548
      %2933 = vmatmul.mubr.bf16.gmra.mxu0 %v547
      %v2934 = vpop.f32.mrf.mxu0
      %v2935 = vadd.f32 %v2622, %v2934
      %v2936 = vpop.f32.mrf.mxu0
      %v2937 = vadd.f32 %v2624, %v2936
      %v2938 = vpop.f32.mrf.mxu0
      %v2939 = vadd.f32 %v2626, %v2938
      %v2940 = vpop.f32.mrf.mxu0
      %v2941 = vadd.f32 %v2628, %v2940
      %2942 = vmatprep.mubr.bf16.mxu0 %v549
      %2943 = vmatmul.mubr.bf16.gmra.mxu0 %v548
      %v2944 = vpop.f32.mrf.mxu0
      %v2945 = vadd.f32 %v2632, %v2944
      %v2946 = vpop.f32.mrf.mxu0
      %v2947 = vadd.f32 %v2634, %v2946
      %v2948 = vpop.f32.mrf.mxu0
      %v2949 = vadd.f32 %v2636, %v2948
      %v2950 = vpop.f32.mrf.mxu0
      %v2951 = vadd.f32 %v2638, %v2950
      %2952 = vmatprep.mubr.bf16.mxu0 %v550
      %2953 = vmatmul.mubr.bf16.gmra.mxu0 %v549
      %v2954 = vpop.f32.mrf.mxu0
      %v2955 = vadd.f32 %v2642, %v2954
      %v2956 = vpop.f32.mrf.mxu0
      %v2957 = vadd.f32 %v2644, %v2956
      %v2958 = vpop.f32.mrf.mxu0
      %v2959 = vadd.f32 %v2646, %v2958
      %v2960 = vpop.f32.mrf.mxu0
      %v2961 = vadd.f32 %v2648, %v2960
      %2962 = vmatprep.mubr.bf16.mxu0 %v551
      %2963 = vmatmul.mubr.bf16.gmra.mxu0 %v550
      %v2964 = vpop.f32.mrf.mxu0
      %v2965 = vadd.f32 %v2652, %v2964
      %v2966 = vpop.f32.mrf.mxu0
      %v2967 = vadd.f32 %v2654, %v2966
      %v2968 = vpop.f32.mrf.mxu0
      %v2969 = vadd.f32 %v2656, %v2968
      %v2970 = vpop.f32.mrf.mxu0
      %v2971 = vadd.f32 %v2658, %v2970
      %2972 = vmatprep.mubr.bf16.mxu0 %v552
      %2973 = vmatmul.mubr.bf16.gmra.mxu0 %v551
      %v2974 = vpop.f32.mrf.mxu0
      %v2975 = vadd.f32 %v2662, %v2974
      %v2976 = vpop.f32.mrf.mxu0
      %v2977 = vadd.f32 %v2664, %v2976
      %v2978 = vpop.f32.mrf.mxu0
      %v2979 = vadd.f32 %v2666, %v2978
      %v2980 = vpop.f32.mrf.mxu0
      %v2981 = vadd.f32 %v2668, %v2980
      %2982 = vmatprep.mubr.bf16.mxu0 %v553
      %2983 = vmatmul.mubr.bf16.gmra.mxu0 %v552
      %v2984 = vpop.f32.mrf.mxu0
      %v2985 = vadd.f32 %v2672, %v2984
      %v2986 = vpop.f32.mrf.mxu0
      %v2987 = vadd.f32 %v2674, %v2986
      %v2988 = vpop.f32.mrf.mxu0
      %v2989 = vadd.f32 %v2676, %v2988
      %v2990 = vpop.f32.mrf.mxu0
      %v2991 = vadd.f32 %v2678, %v2990
      %2992 = vmatprep.mubr.bf16.mxu0 %v554
      %2993 = vmatmul.mubr.bf16.gmra.mxu0 %v553
      %v2994 = vpop.f32.mrf.mxu0
      %v2995 = vadd.f32 %v2682, %v2994
      %v2996 = vpop.f32.mrf.mxu0
      %v2997 = vadd.f32 %v2684, %v2996
      %v2998 = vpop.f32.mrf.mxu0
      %v2999 = vadd.f32 %v2686, %v2998
      %v3000 = vpop.f32.mrf.mxu0
      %v3001 = vadd.f32 %v2688, %v3000
      %3002 = vmatprep.mubr.bf16.mxu0 %v555
      %3003 = vmatmul.mubr.bf16.gmra.mxu0 %v554
      %v3004 = vpop.f32.mrf.mxu0
      %v3005 = vadd.f32 %v2692, %v3004
      %v3006 = vpop.f32.mrf.mxu0
      %v3007 = vadd.f32 %v2694, %v3006
      %v3008 = vpop.f32.mrf.mxu0
      %v3009 = vadd.f32 %v2696, %v3008
      %v3010 = vpop.f32.mrf.mxu0
      %v3011 = vadd.f32 %v2698, %v3010
      %3012 = vmatprep.mubr.bf16.mxu0 %v556
      %3013 = vmatmul.mubr.bf16.gmra.mxu0 %v555
      %v3014 = vpop.f32.mrf.mxu0
      %v3015 = vadd.f32 %v2702, %v3014
      %v3016 = vpop.f32.mrf.mxu0
      %v3017 = vadd.f32 %v2704, %v3016
      %v3018 = vpop.f32.mrf.mxu0
      %v3019 = vadd.f32 %v2706, %v3018
      %v3020 = vpop.f32.mrf.mxu0
      %v3021 = vadd.f32 %v2708, %v3020
      %3022 = vmatprep.mubr.bf16.mxu0 %v557
      %3023 = vmatmul.mubr.bf16.gmra.mxu0 %v556
      %v3024 = vpop.f32.mrf.mxu0
      %v3025 = vadd.f32 %v2712, %v3024
      %v3026 = vpop.f32.mrf.mxu0
      %v3027 = vadd.f32 %v2714, %v3026
      %v3028 = vpop.f32.mrf.mxu0
      %v3029 = vadd.f32 %v2716, %v3028
      %v3030 = vpop.f32.mrf.mxu0
      %v3031 = vadd.f32 %v2718, %v3030
      %3032 = vmatprep.mubr.bf16.mxu0 %v558
      %3033 = vmatmul.mubr.bf16.gmra.mxu0 %v557
      %v3034 = vpop.f32.mrf.mxu0
      %v3035 = vadd.f32 %v2722, %v3034
      %v3036 = vpop.f32.mrf.mxu0
      %v3037 = vadd.f32 %v2724, %v3036
      %v3038 = vpop.f32.mrf.mxu0
      %v3039 = vadd.f32 %v2726, %v3038
      %v3040 = vpop.f32.mrf.mxu0
      %v3041 = vadd.f32 %v2728, %v3040
      %3042 = vmatprep.mubr.bf16.mxu0 %v559
      %3043 = vmatmul.mubr.bf16.gmra.mxu0 %v558
      %v3044 = vpop.f32.mrf.mxu0
      %v3045 = vadd.f32 %v2732, %v3044
      %v3046 = vpop.f32.mrf.mxu0
      %v3047 = vadd.f32 %v2734, %v3046
      %v3048 = vpop.f32.mrf.mxu0
      %v3049 = vadd.f32 %v2736, %v3048
      %v3050 = vpop.f32.mrf.mxu0
      %v3051 = vadd.f32 %v2738, %v3050
      %3052 = vmatprep.mubr.bf16.mxu0 %v560
      %3053 = vmatmul.mubr.bf16.gmra.mxu0 %v559
      %v3054 = vpop.f32.mrf.mxu0
      %v3055 = vadd.f32 %v2742, %v3054
      %v3056 = vpop.f32.mrf.mxu0
      %v3057 = vadd.f32 %v2744, %v3056
      %v3058 = vpop.f32.mrf.mxu0
      %v3059 = vadd.f32 %v2746, %v3058
      %v3060 = vpop.f32.mrf.mxu0
      %v3061 = vadd.f32 %v2748, %v3060
      %3062 = vmatprep.mubr.bf16.mxu0 %v561
      %3063 = vmatmul.mubr.bf16.gmra.mxu0 %v560
      %v3064 = vpop.f32.mrf.mxu0
      %v3065 = vadd.f32 %v2752, %v3064
      %v3066 = vpop.f32.mrf.mxu0
      %v3067 = vadd.f32 %v2754, %v3066
      %v3068 = vpop.f32.mrf.mxu0
      %v3069 = vadd.f32 %v2756, %v3068
      %v3070 = vpop.f32.mrf.mxu0
      %v3071 = vadd.f32 %v2758, %v3070
      %3072 = vmatprep.mubr.bf16.mxu0 %v562
      %3073 = vmatmul.mubr.bf16.gmra.mxu0 %v561
      %v3074 = vpop.f32.mrf.mxu0
      %v3075 = vadd.f32 %v2762, %v3074
      %v3076 = vpop.f32.mrf.mxu0
      %v3077 = vadd.f32 %v2764, %v3076
      %v3078 = vpop.f32.mrf.mxu0
      %v3079 = vadd.f32 %v2766, %v3078
      %v3080 = vpop.f32.mrf.mxu0
      %v3081 = vadd.f32 %v2768, %v3080
      %3082 = vmatprep.mubr.bf16.mxu0 %v563
      %3083 = vmatmul.mubr.bf16.gmra.mxu0 %v562
      %v3084 = vpop.f32.mrf.mxu0
      %v3085 = vadd.f32 %v2772, %v3084
      %v3086 = vpop.f32.mrf.mxu0
      %v3087 = vadd.f32 %v2774, %v3086
      %v3088 = vpop.f32.mrf.mxu0
      %v3089 = vadd.f32 %v2776, %v3088
      %v3090 = vpop.f32.mrf.mxu0
      %v3091 = vadd.f32 %v2778, %v3090
      %3092 = vmatprep.mubr.bf16.mxu0 %v564
      %3093 = vmatmul.mubr.bf16.gmra.mxu0 %v563
      %v3094 = vpop.f32.mrf.mxu0
      %v3095 = vadd.f32 %v2782, %v3094
      %v3096 = vpop.f32.mrf.mxu0
      %v3097 = vadd.f32 %v2784, %v3096
      %v3098 = vpop.f32.mrf.mxu0
      %v3099 = vadd.f32 %v2786, %v3098
      %v3100 = vpop.f32.mrf.mxu0
      %v3101 = vadd.f32 %v2788, %v3100
      %3102 = vmatprep.mubr.bf16.mxu0 %v565
      %3103 = vmatmul.mubr.bf16.gmra.mxu0 %v564
      %v3104 = vpop.f32.mrf.mxu0
      %v3105 = vadd.f32 %v2792, %v3104
      %v3106 = vpop.f32.mrf.mxu0
      %v3107 = vadd.f32 %v2794, %v3106
      %v3108 = vpop.f32.mrf.mxu0
      %v3109 = vadd.f32 %v2796, %v3108
      %v3110 = vpop.f32.mrf.mxu0
      %v3111 = vadd.f32 %v2798, %v3110
      %3112 = vmatprep.mubr.bf16.mxu0 %v598
      %3113 = vmatmul.mubr.bf16.gmra.mxu0 %v565
      %v3114 = vpop.f32.mrf.mxu0
      %v3115 = vadd.f32 %v2802, %v3114
      %v3116 = vpop.f32.mrf.mxu0
      %v3117 = vadd.f32 %v2804, %v3116
      %v3118 = vpop.f32.mrf.mxu0
      %v3119 = vadd.f32 %v2806, %v3118
      %v3120 = vpop.f32.mrf.mxu0
      %v3121 = vadd.f32 %v2808, %v3120
      %3122 = vmatprep.mubr.bf16.mxu0 %v604
      %3123 = vmatmul.mubr.bf16.gmra.mxu0 %v598
      %v3124 = vpop.f32.mrf.mxu0
      %v3125 = vadd.f32 %v2812, %v3124
      %v3126 = vpop.f32.mrf.mxu0
      %v3127 = vadd.f32 %v2814, %v3126
      %v3128 = vpop.f32.mrf.mxu0
      %v3129 = vadd.f32 %v2816, %v3128
      %v3130 = vpop.f32.mrf.mxu0
      %v3131 = vadd.f32 %v2818, %v3130
      %3132 = vmatprep.mubr.bf16.mxu0 %v610
      %3133 = vmatmul.mubr.bf16.gmra.mxu0 %v604
      %v3134 = vpop.f32.mrf.mxu0
      %v3135 = vadd.f32 %v2822, %v3134
      %v3136 = vpop.f32.mrf.mxu0
      %v3137 = vadd.f32 %v2824, %v3136
      %v3138 = vpop.f32.mrf.mxu0
      %v3139 = vadd.f32 %v2826, %v3138
      %v3140 = vpop.f32.mrf.mxu0
      %v3141 = vadd.f32 %v2828, %v3140
      %3142 = vdwg.mxu0
      %3143 = vmatprep.subr.bf16.mxu0 %v1417
      %3144 = vmatpush1.bf16.msra.mxu0 %v1416
      %3145 = vmatprep.subr.bf16.mxu0 %v1413
      %3146 = vmatpush1.bf16.msra.mxu0 %v1412
      %3147 = vmatprep.subr.bf16.mxu0 %v1409
      %3148 = vmatpush1.bf16.msra.mxu0 %v1408
      %3149 = vmatprep.subr.bf16.mxu0 %v1405
      %3150 = vmatpush1.bf16.msra.mxu0 %v1404
      %3151 = vmatprep.subr.bf16.mxu0 %v1401
      %3152 = vmatpush1.bf16.msra.mxu0 %v1400
      %3153 = vmatprep.subr.bf16.mxu0 %v1397
      %3154 = vmatpush1.bf16.msra.mxu0 %v1396
      %3155 = vmatprep.subr.bf16.mxu0 %v1393
      %3156 = vmatpush1.bf16.msra.mxu0 %v1392
      %3157 = vmatprep.subr.bf16.mxu0 %v1389
      %3158 = vmatpush1.bf16.msra.mxu0 %v1388
      %3159 = vmatprep.subr.bf16.mxu0 0
      %3160 = vmatpush2.bf16.msra.mxu0 0
      %3161 = vmatprep.subr.bf16.mxu0 0
      %3162 = vmatpush2.bf16.msra.mxu0 0
      %3163 = vmatprep.subr.bf16.mxu0 0
      %3164 = vmatpush2.bf16.msra.mxu0 0
      %3165 = vmatprep.subr.bf16.mxu0 0
      %3166 = vmatpush2.bf16.msra.mxu0 0
      %3167 = vmatprep.subr.bf16.mxu0 0
      %3168 = vmatpush2.bf16.msra.mxu0 0
      %3169 = vmatprep.subr.bf16.mxu0 0
      %3170 = vmatpush2.bf16.msra.mxu0 0
      %3171 = vmatprep.subr.bf16.mxu0 0
      %3172 = vmatpush2.bf16.msra.mxu0 0
      %3173 = vmatprep.subr.bf16.mxu0 0
      %3174 = vmatpush2.bf16.msra.mxu0 0
      %3175 = vmatprep.mubr.bf16.mxu0 0
      %3176 = vmatmul.mubr.bf16.gmra.mxu0 %v542
      %v3177 = vpop.f32.mrf.mxu0
      %v3178 = vadd.f32 %v2865, %v3177
      %v3179 = vpop.f32.mrf.mxu0
      %v3180 = vadd.f32 %v2867, %v3179
      %v3181 = vpop.f32.mrf.mxu0
      %v3182 = vadd.f32 %v2869, %v3181
      %v3183 = vpop.f32.mrf.mxu0
      %v3184 = vadd.f32 %v2871, %v3183
      %3185 = vmatprep.mubr.bf16.mxu0 0
      %3186 = vmatmul.mubr.bf16.gmra.mxu0 %v543
      %v3187 = vpop.f32.mrf.mxu0
      %v3188 = vadd.f32 %v2875, %v3187
      %v3189 = vpop.f32.mrf.mxu0
      %v3190 = vadd.f32 %v2877, %v3189
      %v3191 = vpop.f32.mrf.mxu0
      %v3192 = vadd.f32 %v2879, %v3191
      %v3193 = vpop.f32.mrf.mxu0
      %v3194 = vadd.f32 %v2881, %v3193
      %3195 = vmatprep.mubr.bf16.mxu0 0
      %3196 = vmatmul.mubr.bf16.gmra.mxu0 %v544
      %v3197 = vpop.f32.mrf.mxu0
      %v3198 = vadd.f32 %v2885, %v3197
      %v3199 = vpop.f32.mrf.mxu0
      %v3200 = vadd.f32 %v2887, %v3199
      %v3201 = vpop.f32.mrf.mxu0
      %v3202 = vadd.f32 %v2889, %v3201
      %v3203 = vpop.f32.mrf.mxu0
      %v3204 = vadd.f32 %v2891, %v3203
      %3205 = vmatprep.mubr.bf16.mxu0 0
      %3206 = vmatmul.mubr.bf16.gmra.mxu0 %v545
      %v3207 = vpop.f32.mrf.mxu0
      %v3208 = vadd.f32 %v2895, %v3207
      %v3209 = vpop.f32.mrf.mxu0
      %v3210 = vadd.f32 %v2897, %v3209
      %v3211 = vpop.f32.mrf.mxu0
      %v3212 = vadd.f32 %v2899, %v3211
      %v3213 = vpop.f32.mrf.mxu0
      %v3214 = vadd.f32 %v2901, %v3213
      %3215 = vmatprep.mubr.bf16.mxu0 0
      %3216 = vmatmul.mubr.bf16.gmra.mxu0 %v546
      %v3217 = vpop.f32.mrf.mxu0
      %v3218 = vadd.f32 %v2905, %v3217
      %v3219 = vpop.f32.mrf.mxu0
      %v3220 = vadd.f32 %v2907, %v3219
      %v3221 = vpop.f32.mrf.mxu0
      %v3222 = vadd.f32 %v2909, %v3221
      %v3223 = vpop.f32.mrf.mxu0
      %v3224 = vadd.f32 %v2911, %v3223
      %3225 = vmatprep.mubr.bf16.mxu0 0
      %3226 = vmatmul.mubr.bf16.gmra.mxu0 %v547
      %v3227 = vpop.f32.mrf.mxu0
      %v3228 = vadd.f32 %v2915, %v3227
      %v3229 = vpop.f32.mrf.mxu0
      %v3230 = vadd.f32 %v2917, %v3229
      %v3231 = vpop.f32.mrf.mxu0
      %v3232 = vadd.f32 %v2919, %v3231
      %v3233 = vpop.f32.mrf.mxu0
      %v3234 = vadd.f32 %v2921, %v3233
      %3235 = vmatprep.mubr.bf16.mxu0 0
      %3236 = vmatmul.mubr.bf16.gmra.mxu0 %v548
      %v3237 = vpop.f32.mrf.mxu0
      %v3238 = vadd.f32 %v2925, %v3237
      %v3239 = vpop.f32.mrf.mxu0
      %v3240 = vadd.f32 %v2927, %v3239
      %v3241 = vpop.f32.mrf.mxu0
      %v3242 = vadd.f32 %v2929, %v3241
      %v3243 = vpop.f32.mrf.mxu0
      %v3244 = vadd.f32 %v2931, %v3243
      %3245 = vmatprep.mubr.bf16.mxu0 0
      %3246 = vmatmul.mubr.bf16.gmra.mxu0 %v549
      %v3247 = vpop.f32.mrf.mxu0
      %v3248 = vadd.f32 %v2935, %v3247
      %v3249 = vpop.f32.mrf.mxu0
      %v3250 = vadd.f32 %v2937, %v3249
      %v3251 = vpop.f32.mrf.mxu0
      %v3252 = vadd.f32 %v2939, %v3251
      %v3253 = vpop.f32.mrf.mxu0
      %v3254 = vadd.f32 %v2941, %v3253
      %3255 = vmatprep.mubr.bf16.mxu0 0
      %3256 = vmatmul.mubr.bf16.gmra.mxu0 %v550
      %v3257 = vpop.f32.mrf.mxu0
      %v3258 = vadd.f32 %v2945, %v3257
      %v3259 = vpop.f32.mrf.mxu0
      %v3260 = vadd.f32 %v2947, %v3259
      %v3261 = vpop.f32.mrf.mxu0
      %v3262 = vadd.f32 %v2949, %v3261
      %v3263 = vpop.f32.mrf.mxu0
      %v3264 = vadd.f32 %v2951, %v3263
      %3265 = vmatprep.mubr.bf16.mxu0 0
      %3266 = vmatmul.mubr.bf16.gmra.mxu0 %v551
      %v3267 = vpop.f32.mrf.mxu0
      %v3268 = vadd.f32 %v2955, %v3267
      %v3269 = vpop.f32.mrf.mxu0
      %v3270 = vadd.f32 %v2957, %v3269
      %v3271 = vpop.f32.mrf.mxu0
      %v3272 = vadd.f32 %v2959, %v3271
      %v3273 = vpop.f32.mrf.mxu0
      %v3274 = vadd.f32 %v2961, %v3273
      %3275 = vmatprep.mubr.bf16.mxu0 0
      %3276 = vmatmul.mubr.bf16.gmra.mxu0 %v552
      %v3277 = vpop.f32.mrf.mxu0
      %v3278 = vadd.f32 %v2965, %v3277
      %v3279 = vpop.f32.mrf.mxu0
      %v3280 = vadd.f32 %v2967, %v3279
      %v3281 = vpop.f32.mrf.mxu0
      %v3282 = vadd.f32 %v2969, %v3281
      %v3283 = vpop.f32.mrf.mxu0
      %v3284 = vadd.f32 %v2971, %v3283
      %3285 = vmatprep.mubr.bf16.mxu0 0
      %3286 = vmatmul.mubr.bf16.gmra.mxu0 %v553
      %v3287 = vpop.f32.mrf.mxu0
      %v3288 = vadd.f32 %v2975, %v3287
      %v3289 = vpop.f32.mrf.mxu0
      %v3290 = vadd.f32 %v2977, %v3289
      %v3291 = vpop.f32.mrf.mxu0
      %v3292 = vadd.f32 %v2979, %v3291
      %v3293 = vpop.f32.mrf.mxu0
      %v3294 = vadd.f32 %v2981, %v3293
      %3295 = vmatprep.mubr.bf16.mxu0 0
      %3296 = vmatmul.mubr.bf16.gmra.mxu0 %v554
      %v3297 = vpop.f32.mrf.mxu0
      %v3298 = vadd.f32 %v2985, %v3297
      %v3299 = vpop.f32.mrf.mxu0
      %v3300 = vadd.f32 %v2987, %v3299
      %v3301 = vpop.f32.mrf.mxu0
      %v3302 = vadd.f32 %v2989, %v3301
      %v3303 = vpop.f32.mrf.mxu0
      %v3304 = vadd.f32 %v2991, %v3303
      %3305 = vmatprep.mubr.bf16.mxu0 0
      %3306 = vmatmul.mubr.bf16.gmra.mxu0 %v555
      %v3307 = vpop.f32.mrf.mxu0
      %v3308 = vadd.f32 %v2995, %v3307
      %v3309 = vpop.f32.mrf.mxu0
      %v3310 = vadd.f32 %v2997, %v3309
      %v3311 = vpop.f32.mrf.mxu0
      %v3312 = vadd.f32 %v2999, %v3311
      %v3313 = vpop.f32.mrf.mxu0
      %v3314 = vadd.f32 %v3001, %v3313
      %3315 = vmatprep.mubr.bf16.mxu0 0
      %3316 = vmatmul.mubr.bf16.gmra.mxu0 %v556
      %v3317 = vpop.f32.mrf.mxu0
      %v3318 = vadd.f32 %v3005, %v3317
      %v3319 = vpop.f32.mrf.mxu0
      %v3320 = vadd.f32 %v3007, %v3319
      %v3321 = vpop.f32.mrf.mxu0
      %v3322 = vadd.f32 %v3009, %v3321
      %v3323 = vpop.f32.mrf.mxu0
      %v3324 = vadd.f32 %v3011, %v3323
      %3325 = vmatprep.mubr.bf16.mxu0 0
      %3326 = vmatmul.mubr.bf16.gmra.mxu0 %v557
      %v3327 = vpop.f32.mrf.mxu0
      %v3328 = vadd.f32 %v3015, %v3327
      %v3329 = vpop.f32.mrf.mxu0
      %v3330 = vadd.f32 %v3017, %v3329
      %v3331 = vpop.f32.mrf.mxu0
      %v3332 = vadd.f32 %v3019, %v3331
      %v3333 = vpop.f32.mrf.mxu0
      %v3334 = vadd.f32 %v3021, %v3333
      %3335 = vmatprep.mubr.bf16.mxu0 0
      %3336 = vmatmul.mubr.bf16.gmra.mxu0 %v558
      %v3337 = vpop.f32.mrf.mxu0
      %v3338 = vadd.f32 %v3025, %v3337
      %v3339 = vpop.f32.mrf.mxu0
      %v3340 = vadd.f32 %v3027, %v3339
      %v3341 = vpop.f32.mrf.mxu0
      %v3342 = vadd.f32 %v3029, %v3341
      %v3343 = vpop.f32.mrf.mxu0
      %v3344 = vadd.f32 %v3031, %v3343
      %3345 = vmatprep.mubr.bf16.mxu0 0
      %3346 = vmatmul.mubr.bf16.gmra.mxu0 %v559
      %v3347 = vpop.f32.mrf.mxu0
      %v3348 = vadd.f32 %v3035, %v3347
      %v3349 = vpop.f32.mrf.mxu0
      %v3350 = vadd.f32 %v3037, %v3349
      %v3351 = vpop.f32.mrf.mxu0
      %v3352 = vadd.f32 %v3039, %v3351
      %v3353 = vpop.f32.mrf.mxu0
      %v3354 = vadd.f32 %v3041, %v3353
      %3355 = vmatprep.mubr.bf16.mxu0 0
      %3356 = vmatmul.mubr.bf16.gmra.mxu0 %v560
      %v3357 = vpop.f32.mrf.mxu0
      %v3358 = vadd.f32 %v3045, %v3357
      %v3359 = vpop.f32.mrf.mxu0
      %v3360 = vadd.f32 %v3047, %v3359
      %v3361 = vpop.f32.mrf.mxu0
      %v3362 = vadd.f32 %v3049, %v3361
      %v3363 = vpop.f32.mrf.mxu0
      %v3364 = vadd.f32 %v3051, %v3363
      %3365 = vmatprep.mubr.bf16.mxu0 0
      %3366 = vmatmul.mubr.bf16.gmra.mxu0 %v561
      %v3367 = vpop.f32.mrf.mxu0
      %v3368 = vadd.f32 %v3055, %v3367
      %v3369 = vpop.f32.mrf.mxu0
      %v3370 = vadd.f32 %v3057, %v3369
      %v3371 = vpop.f32.mrf.mxu0
      %v3372 = vadd.f32 %v3059, %v3371
      %v3373 = vpop.f32.mrf.mxu0
      %v3374 = vadd.f32 %v3061, %v3373
      %3375 = vmatprep.mubr.bf16.mxu0 0
      %3376 = vmatmul.mubr.bf16.gmra.mxu0 %v562
      %v3377 = vpop.f32.mrf.mxu0
      %v3378 = vadd.f32 %v3065, %v3377
      %v3379 = vpop.f32.mrf.mxu0
      %v3380 = vadd.f32 %v3067, %v3379
      %v3381 = vpop.f32.mrf.mxu0
      %v3382 = vadd.f32 %v3069, %v3381
      %v3383 = vpop.f32.mrf.mxu0
      %v3384 = vadd.f32 %v3071, %v3383
      %3385 = vmatprep.mubr.bf16.mxu0 0
      %3386 = vmatmul.mubr.bf16.gmra.mxu0 %v563
      %v3387 = vpop.f32.mrf.mxu0
      %v3388 = vadd.f32 %v3075, %v3387
      %v3389 = vpop.f32.mrf.mxu0
      %v3390 = vadd.f32 %v3077, %v3389
      %v3391 = vpop.f32.mrf.mxu0
      %v3392 = vadd.f32 %v3079, %v3391
      %v3393 = vpop.f32.mrf.mxu0
      %v3394 = vadd.f32 %v3081, %v3393
      %3395 = vmatprep.mubr.bf16.mxu0 0
      %3396 = vmatmul.mubr.bf16.gmra.mxu0 %v564
      %v3397 = vpop.f32.mrf.mxu0
      %v3398 = vadd.f32 %v3085, %v3397
      %v3399 = vpop.f32.mrf.mxu0
      %v3400 = vadd.f32 %v3087, %v3399
      %v3401 = vpop.f32.mrf.mxu0
      %v3402 = vadd.f32 %v3089, %v3401
      %v3403 = vpop.f32.mrf.mxu0
      %v3404 = vadd.f32 %v3091, %v3403
      %3405 = vmatprep.mubr.bf16.mxu0 0
      %3406 = vmatmul.mubr.bf16.gmra.mxu0 %v565
      %v3407 = vpop.f32.mrf.mxu0
      %v3408 = vadd.f32 %v3095, %v3407
      %v3409 = vpop.f32.mrf.mxu0
      %v3410 = vadd.f32 %v3097, %v3409
      %v3411 = vpop.f32.mrf.mxu0
      %v3412 = vadd.f32 %v3099, %v3411
      %v3413 = vpop.f32.mrf.mxu0
      %v3414 = vadd.f32 %v3101, %v3413
      %3415 = vmatprep.mubr.bf16.mxu0 0
      %3416 = vmatmul.mubr.bf16.gmra.mxu0 %v598
      %v3417 = vpop.f32.mrf.mxu0
      %v3418 = vadd.f32 %v3105, %v3417
      %v3419 = vpop.f32.mrf.mxu0
      %v3420 = vadd.f32 %v3107, %v3419
      %v3421 = vpop.f32.mrf.mxu0
      %v3422 = vadd.f32 %v3109, %v3421
      %v3423 = vpop.f32.mrf.mxu0
      %v3424 = vadd.f32 %v3111, %v3423
      %3425 = vmatprep.mubr.bf16.mxu0 0
      %3426 = vmatmul.mubr.bf16.gmra.mxu0 %v604
      %v3427 = vpop.f32.mrf.mxu0
      %v3428 = vadd.f32 %v3115, %v3427
      %v3429 = vpop.f32.mrf.mxu0
      %v3430 = vadd.f32 %v3117, %v3429
      %v3431 = vpop.f32.mrf.mxu0
      %v3432 = vadd.f32 %v3119, %v3431
      %v3433 = vpop.f32.mrf.mxu0
      %v3434 = vadd.f32 %v3121, %v3433
      %3435 = vmatprep.mubr.bf16.mxu0 0
      %3436 = vmatmul.mubr.bf16.gmra.mxu0 %v610
      %v3437 = vpop.f32.mrf.mxu0
      %v3438 = vadd.f32 %v3125, %v3437
      %v3439 = vpop.f32.mrf.mxu0
      %v3440 = vadd.f32 %v3127, %v3439
      %v3441 = vpop.f32.mrf.mxu0
      %v3442 = vadd.f32 %v3129, %v3441
      %v3443 = vpop.f32.mrf.mxu0
      %v3444 = vadd.f32 %v3131, %v3443
      %3445 = vmatprep.mubr.bf16.mxu0 0
      %3446 = vmatmul.mubr.bf16.gmra.mxu0 %v616
      %v3447 = vpop.f32.mrf.mxu0
      %v3448 = vadd.f32 %v3135, %v3447
      %v3449 = vpop.f32.mrf.mxu0
      %v3450 = vadd.f32 %v3137, %v3449
      %v3451 = vpop.f32.mrf.mxu0
      %v3452 = vadd.f32 %v3139, %v3451
      %v3453 = vpop.f32.mrf.mxu0
      %v3454 = vadd.f32 %v3141, %v3453
      %3455 = vdwg.mxu0
      %v3456 = vmax.f32 %v2239, %v3178
      %v3457 = vmax.f32 %v2241, %v3180
      %v3458 = vmax.f32 %v2243, %v3182
      %v3459 = vmax.f32 %v2245, %v3184
      %v3460 = vmax.f32 %v2249, %v3188
      %v3461 = vmax.f32 %v2251, %v3190
      %v3462 = vmax.f32 %v2253, %v3192
      %v3463 = vmax.f32 %v2255, %v3194
      %v3464 = vmax.f32 %v2259, %v3198
      %v3465 = vmax.f32 %v2261, %v3200
      %v3466 = vmax.f32 %v2263, %v3202
      %v3467 = vmax.f32 %v2265, %v3204
      %v3468 = vmax.f32 %v2269, %v3208
      %v3469 = vmax.f32 %v2271, %v3210
      %v3470 = vmax.f32 %v2273, %v3212
      %v3471 = vmax.f32 %v2275, %v3214
      %v3472 = vmax.f32 %v2279, %v3218
      %v3473 = vmax.f32 %v2281, %v3220
      %v3474 = vmax.f32 %v2283, %v3222
      %v3475 = vmax.f32 %v2285, %v3224
      %v3476 = vmax.f32 %v2289, %v3228
      %v3477 = vmax.f32 %v2291, %v3230
      %v3478 = vmax.f32 %v2293, %v3232
      %v3479 = vmax.f32 %v2295, %v3234
      %v3480 = vmax.f32 %v2299, %v3238
      %v3481 = vmax.f32 %v2301, %v3240
      %v3482 = vmax.f32 %v2303, %v3242
      %v3483 = vmax.f32 %v2305, %v3244
      %v3484 = vmax.f32 %v2309, %v3248
      %v3485 = vmax.f32 %v2311, %v3250
      %v3486 = vmax.f32 %v2313, %v3252
      %v3487 = vmax.f32 %v2315, %v3254
      %v3488 = vmax.f32 %v2319, %v3258
      %v3489 = vmax.f32 %v2321, %v3260
      %v3490 = vmax.f32 %v2323, %v3262
      %v3491 = vmax.f32 %v2325, %v3264
      %v3492 = vmax.f32 %v2329, %v3268
      %v3493 = vmax.f32 %v2331, %v3270
      %v3494 = vmax.f32 %v2333, %v3272
      %v3495 = vmax.f32 %v2335, %v3274
      %v3496 = vmax.f32 %v2339, %v3278
      %v3497 = vmax.f32 %v2341, %v3280
      %v3498 = vmax.f32 %v2343, %v3282
      %v3499 = vmax.f32 %v2345, %v3284
      %v3500 = vmax.f32 %v2349, %v3288
      %v3501 = vmax.f32 %v2351, %v3290
      %v3502 = vmax.f32 %v2353, %v3292
      %v3503 = vmax.f32 %v2355, %v3294
      %v3504 = vmax.f32 %v2359, %v3298
      %v3505 = vmax.f32 %v2361, %v3300
      %v3506 = vmax.f32 %v2363, %v3302
      %v3507 = vmax.f32 %v2365, %v3304
      %v3508 = vmax.f32 %v2369, %v3308
      %v3509 = vmax.f32 %v2371, %v3310
      %v3510 = vmax.f32 %v2373, %v3312
      %v3511 = vmax.f32 %v2375, %v3314
      %v3512 = vmax.f32 %v2379, %v3318
      %v3513 = vmax.f32 %v2381, %v3320
      %v3514 = vmax.f32 %v2383, %v3322
      %v3515 = vmax.f32 %v2385, %v3324
      %v3516 = vmax.f32 %v2389, %v3328
      %v3517 = vmax.f32 %v2391, %v3330
      %v3518 = vmax.f32 %v2393, %v3332
      %v3519 = vmax.f32 %v2395, %v3334
      %v3520 = vmax.f32 %v2399, %v3338
      %v3521 = vmax.f32 %v2401, %v3340
      %v3522 = vmax.f32 %v2403, %v3342
      %v3523 = vmax.f32 %v2405, %v3344
      %v3524 = vmax.f32 %v2409, %v3348
      %v3525 = vmax.f32 %v2411, %v3350
      %v3526 = vmax.f32 %v2413, %v3352
      %v3527 = vmax.f32 %v2415, %v3354
      %v3528 = vmax.f32 %v2419, %v3358
      %v3529 = vmax.f32 %v2421, %v3360
      %v3530 = vmax.f32 %v2423, %v3362
      %v3531 = vmax.f32 %v2425, %v3364
      %v3532 = vmax.f32 %v2429, %v3368
      %v3533 = vmax.f32 %v2431, %v3370
      %v3534 = vmax.f32 %v2433, %v3372
      %v3535 = vmax.f32 %v2435, %v3374
      %v3536 = vmax.f32 %v2439, %v3378
      %v3537 = vmax.f32 %v2441, %v3380
      %v3538 = vmax.f32 %v2443, %v3382
      %v3539 = vmax.f32 %v2445, %v3384
      %v3540 = vmax.f32 %v2449, %v3388
      %v3541 = vmax.f32 %v2451, %v3390
      %v3542 = vmax.f32 %v2453, %v3392
      %v3543 = vmax.f32 %v2455, %v3394
      %v3544 = vmax.f32 %v2459, %v3398
      %v3545 = vmax.f32 %v2461, %v3400
      %v3546 = vmax.f32 %v2463, %v3402
      %v3547 = vmax.f32 %v2465, %v3404
      %v3548 = vmax.f32 %v2469, %v3408
      %v3549 = vmax.f32 %v2471, %v3410
      %v3550 = vmax.f32 %v2473, %v3412
      %v3551 = vmax.f32 %v2475, %v3414
      %v3552 = vmax.f32 %v2479, %v3418
      %v3553 = vmax.f32 %v2481, %v3420
      %v3554 = vmax.f32 %v2483, %v3422
      %v3555 = vmax.f32 %v2485, %v3424
      %v3556 = vmax.f32 %v2489, %v3428
      %v3557 = vmax.f32 %v2491, %v3430
      %v3558 = vmax.f32 %v2493, %v3432
      %v3559 = vmax.f32 %v2495, %v3434
      %v3560 = vmax.f32 %v2499, %v3438
      %v3561 = vmax.f32 %v2501, %v3440
      %v3562 = vmax.f32 %v2503, %v3442
      %v3563 = vmax.f32 %v2505, %v3444
      %v3564 = vmax.f32 %v2509, %v3448
      %v3565 = vmax.f32 %v2511, %v3450
      %v3566 = vmax.f32 %v2513, %v3452
      %v3567 = vmax.f32 %v2515, %v3454
      %v3568 = vmax.f32 %v3456, 0.0
      %v3569 = vmax.f32 %v3457, 0.0
      %v3570 = vmax.f32 %v3458, 0.0
      %v3571 = vmax.f32 %v3459, 0.0
      %v3572 = vmax.f32 %v3460, 0.0
      %v3573 = vmax.f32 %v3461, 0.0
      %v3574 = vmax.f32 %v3462, 0.0
      %v3575 = vmax.f32 %v3463, 0.0
      %v3576 = vmax.f32 %v3464, 0.0
      %v3577 = vmax.f32 %v3465, 0.0
      %v3578 = vmax.f32 %v3466, 0.0
      %v3579 = vmax.f32 %v3467, 0.0
      %v3580 = vmax.f32 %v3468, 0.0
      %v3581 = vmax.f32 %v3469, 0.0
      %v3582 = vmax.f32 %v3470, 0.0
      %v3583 = vmax.f32 %v3471, 0.0
      %v3584 = vmax.f32 %v3472, 0.0
      %v3585 = vmax.f32 %v3473, 0.0
      %v3586 = vmax.f32 %v3474, 0.0
      %v3587 = vmax.f32 %v3475, 0.0
      %v3588 = vmax.f32 %v3476, 0.0
      %v3589 = vmax.f32 %v3477, 0.0
      %v3590 = vmax.f32 %v3478, 0.0
      %v3591 = vmax.f32 %v3479, 0.0
      %v3592 = vmax.f32 %v3480, 0.0
      %v3593 = vmax.f32 %v3481, 0.0
      %v3594 = vmax.f32 %v3482, 0.0
      %v3595 = vmax.f32 %v3483, 0.0
      %v3596 = vmax.f32 %v3484, 0.0
      %v3597 = vmax.f32 %v3485, 0.0
      %v3598 = vmax.f32 %v3486, 0.0
      %v3599 = vmax.f32 %v3487, 0.0
      %v3600 = vmax.f32 %v3488, 0.0
      %v3601 = vmax.f32 %v3489, 0.0
      %v3602 = vmax.f32 %v3490, 0.0
      %v3603 = vmax.f32 %v3491, 0.0
      %v3604 = vmax.f32 %v3492, 0.0
      %v3605 = vmax.f32 %v3493, 0.0
      %v3606 = vmax.f32 %v3494, 0.0
      %v3607 = vmax.f32 %v3495, 0.0
      %v3608 = vmax.f32 %v3496, 0.0
      %v3609 = vmax.f32 %v3497, 0.0
      %v3610 = vmax.f32 %v3498, 0.0
      %v3611 = vmax.f32 %v3499, 0.0
      %v3612 = vmax.f32 %v3500, 0.0
      %v3613 = vmax.f32 %v3501, 0.0
      %v3614 = vmax.f32 %v3502, 0.0
      %v3615 = vmax.f32 %v3503, 0.0
      %v3616 = vmax.f32 %v3504, 0.0
      %v3617 = vmax.f32 %v3505, 0.0
      %v3618 = vmax.f32 %v3506, 0.0
      %v3619 = vmax.f32 %v3507, 0.0
      %v3620 = vmax.f32 %v3508, 0.0
      %v3621 = vmax.f32 %v3509, 0.0
      %v3622 = vmax.f32 %v3510, 0.0
      %v3623 = vmax.f32 %v3511, 0.0
      %v3624 = vmax.f32 %v3512, 0.0
      %v3625 = vmax.f32 %v3513, 0.0
      %v3626 = vmax.f32 %v3514, 0.0
      %v3627 = vmax.f32 %v3515, 0.0
      %v3628 = vmax.f32 %v3516, 0.0
      %v3629 = vmax.f32 %v3517, 0.0
      %v3630 = vmax.f32 %v3518, 0.0
      %v3631 = vmax.f32 %v3519, 0.0
      %v3632 = vmax.f32 %v3520, 0.0
      %v3633 = vmax.f32 %v3521, 0.0
      %v3634 = vmax.f32 %v3522, 0.0
      %v3635 = vmax.f32 %v3523, 0.0
      %v3636 = vmax.f32 %v3524, 0.0
      %v3637 = vmax.f32 %v3525, 0.0
      %v3638 = vmax.f32 %v3526, 0.0
      %v3639 = vmax.f32 %v3527, 0.0
      %v3640 = vmax.f32 %v3528, 0.0
      %v3641 = vmax.f32 %v3529, 0.0
      %v3642 = vmax.f32 %v3530, 0.0
      %v3643 = vmax.f32 %v3531, 0.0
      %v3644 = vmax.f32 %v3532, 0.0
      %v3645 = vmax.f32 %v3533, 0.0
      %v3646 = vmax.f32 %v3534, 0.0
      %v3647 = vmax.f32 %v3535, 0.0
      %v3648 = vmax.f32 %v3536, 0.0
      %v3649 = vmax.f32 %v3537, 0.0
      %v3650 = vmax.f32 %v3538, 0.0
      %v3651 = vmax.f32 %v3539, 0.0
      %v3652 = vmax.f32 %v3540, 0.0
      %v3653 = vmax.f32 %v3541, 0.0
      %v3654 = vmax.f32 %v3542, 0.0
      %v3655 = vmax.f32 %v3543, 0.0
      %v3656 = vmax.f32 %v3544, 0.0
      %v3657 = vmax.f32 %v3545, 0.0
      %v3658 = vmax.f32 %v3546, 0.0
      %v3659 = vmax.f32 %v3547, 0.0
      %v3660 = vmax.f32 %v3548, 0.0
      %v3661 = vmax.f32 %v3549, 0.0
      %v3662 = vmax.f32 %v3550, 0.0
      %v3663 = vmax.f32 %v3551, 0.0
      %v3664 = vmax.f32 %v3552, 0.0
      %v3665 = vmax.f32 %v3553, 0.0
      %v3666 = vmax.f32 %v3554, 0.0
      %v3667 = vmax.f32 %v3555, 0.0
      %v3668 = vmax.f32 %v3556, 0.0
      %v3669 = vmax.f32 %v3557, 0.0
      %v3670 = vmax.f32 %v3558, 0.0
      %v3671 = vmax.f32 %v3559, 0.0
      %v3672 = vmax.f32 %v3560, 0.0
      %v3673 = vmax.f32 %v3561, 0.0
      %v3674 = vmax.f32 %v3562, 0.0
      %v3675 = vmax.f32 %v3563, 0.0
      %v3676 = vmax.f32 %v3564, 0.0
      %v3677 = vmax.f32 %v3565, 0.0
      %v3678 = vmax.f32 %v3566, 0.0
      %v3679 = vmax.f32 %v3567, 0.0
      %v3680 = vmax.f32 %v3568, %v3572
      %v3681 = vmax.f32 %v3569, %v3573
      %v3682 = vmax.f32 %v3570, %v3574
      %v3683 = vmax.f32 %v3571, %v3575
      %v3684 = vmax.f32 %v3572, %v3576
      %v3685 = vmax.f32 %v3573, %v3577
      %v3686 = vmax.f32 %v3574, %v3578
      %v3687 = vmax.f32 %v3575, %v3579
      %v3688 = vmax.f32 %v3576, %v3580
      %v3689 = vmax.f32 %v3577, %v3581
      %v3690 = vmax.f32 %v3578, %v3582
      %v3691 = vmax.f32 %v3579, %v3583
      %v3692 = vmax.f32 %v3580, %v3584
      %v3693 = vmax.f32 %v3581, %v3585
      %v3694 = vmax.f32 %v3582, %v3586
      %v3695 = vmax.f32 %v3583, %v3587
      %v3696 = vmax.f32 %v3584, %v3588
      %v3697 = vmax.f32 %v3585, %v3589
      %v3698 = vmax.f32 %v3586, %v3590
      %v3699 = vmax.f32 %v3587, %v3591
      %v3700 = vmax.f32 %v3588, %v3592
      %v3701 = vmax.f32 %v3589, %v3593
      %v3702 = vmax.f32 %v3590, %v3594
      %v3703 = vmax.f32 %v3591, %v3595
      %v3704 = vmax.f32 %v3592, %v3596
      %v3705 = vmax.f32 %v3593, %v3597
      %v3706 = vmax.f32 %v3594, %v3598
      %v3707 = vmax.f32 %v3595, %v3599
      %v3708 = vmax.f32 %v3596, %v3600
      %v3709 = vmax.f32 %v3597, %v3601
      %v3710 = vmax.f32 %v3598, %v3602
      %v3711 = vmax.f32 %v3599, %v3603
      %v3712 = vmax.f32 %v3600, %v3604
      %v3713 = vmax.f32 %v3601, %v3605
      %v3714 = vmax.f32 %v3602, %v3606
      %v3715 = vmax.f32 %v3603, %v3607
      %v3716 = vmax.f32 %v3604, %v3608
      %v3717 = vmax.f32 %v3605, %v3609
      %v3718 = vmax.f32 %v3606, %v3610
      %v3719 = vmax.f32 %v3607, %v3611
      %v3720 = vmax.f32 %v3608, %v3612
      %v3721 = vmax.f32 %v3609, %v3613
      %v3722 = vmax.f32 %v3610, %v3614
      %v3723 = vmax.f32 %v3611, %v3615
      %v3724 = vmax.f32 %v3612, %v3616
      %v3725 = vmax.f32 %v3613, %v3617
      %v3726 = vmax.f32 %v3614, %v3618
      %v3727 = vmax.f32 %v3615, %v3619
      %v3728 = vmax.f32 %v3616, %v3620
      %v3729 = vmax.f32 %v3617, %v3621
      %v3730 = vmax.f32 %v3618, %v3622
      %v3731 = vmax.f32 %v3619, %v3623
      %v3732 = vmax.f32 %v3620, %v3624
      %v3733 = vmax.f32 %v3621, %v3625
      %v3734 = vmax.f32 %v3622, %v3626
      %v3735 = vmax.f32 %v3623, %v3627
      %v3736 = vmax.f32 %v3624, %v3628
      %v3737 = vmax.f32 %v3625, %v3629
      %v3738 = vmax.f32 %v3626, %v3630
      %v3739 = vmax.f32 %v3627, %v3631
      %v3740 = vmax.f32 %v3628, %v3632
      %v3741 = vmax.f32 %v3629, %v3633
      %v3742 = vmax.f32 %v3630, %v3634
      %v3743 = vmax.f32 %v3631, %v3635
      %v3744 = vmax.f32 %v3632, %v3636
      %v3745 = vmax.f32 %v3633, %v3637
      %v3746 = vmax.f32 %v3634, %v3638
      %v3747 = vmax.f32 %v3635, %v3639
      %v3748 = vmax.f32 %v3636, %v3640
      %v3749 = vmax.f32 %v3637, %v3641
      %v3750 = vmax.f32 %v3638, %v3642
      %v3751 = vmax.f32 %v3639, %v3643
      %v3752 = vmax.f32 %v3640, %v3644
      %v3753 = vmax.f32 %v3641, %v3645
      %v3754 = vmax.f32 %v3642, %v3646
      %v3755 = vmax.f32 %v3643, %v3647
      %v3756 = vmax.f32 %v3644, %v3648
      %v3757 = vmax.f32 %v3645, %v3649
      %v3758 = vmax.f32 %v3646, %v3650
      %v3759 = vmax.f32 %v3647, %v3651
      %v3760 = vmax.f32 %v3648, %v3652
      %v3761 = vmax.f32 %v3649, %v3653
      %v3762 = vmax.f32 %v3650, %v3654
      %v3763 = vmax.f32 %v3651, %v3655
      %v3764 = vmax.f32 %v3652, %v3656
      %v3765 = vmax.f32 %v3653, %v3657
      %v3766 = vmax.f32 %v3654, %v3658
      %v3767 = vmax.f32 %v3655, %v3659
      %v3768 = vmax.f32 %v3656, %v3660
      %v3769 = vmax.f32 %v3657, %v3661
      %v3770 = vmax.f32 %v3658, %v3662
      %v3771 = vmax.f32 %v3659, %v3663
      %v3772 = vmax.f32 %v3660, %v3664
      %v3773 = vmax.f32 %v3661, %v3665
      %v3774 = vmax.f32 %v3662, %v3666
      %v3775 = vmax.f32 %v3663, %v3667
      %v3776 = vmax.f32 %v3664, %v3668
      %v3777 = vmax.f32 %v3665, %v3669
      %v3778 = vmax.f32 %v3666, %v3670
      %v3779 = vmax.f32 %v3667, %v3671
      %v3780 = vmax.f32 %v3668, %v3672
      %v3781 = vmax.f32 %v3669, %v3673
      %v3782 = vmax.f32 %v3670, %v3674
      %v3783 = vmax.f32 %v3671, %v3675
      %v3784 = vmax.f32 %v3672, %v3676
      %v3785 = vmax.f32 %v3673, %v3677
      %v3786 = vmax.f32 %v3674, %v3678
      %v3787 = vmax.f32 %v3675, %v3679
      %v3788 = vpack.c.bf16 %v3682, %v3680
      %v3789 = vpack.c.bf16 %v3683, %v3681
      %v3790 = vpack.c.bf16 %v3686, %v3684
      %v3791 = vpack.c.bf16 %v3687, %v3685
      %v3792 = vpack.c.bf16 %v3690, %v3688
      %v3793 = vpack.c.bf16 %v3691, %v3689
      %v3794 = vpack.c.bf16 %v3694, %v3692
      %v3795 = vpack.c.bf16 %v3695, %v3693
      %v3796 = vpack.c.bf16 %v3698, %v3696
      %v3797 = vpack.c.bf16 %v3699, %v3697
      %v3798 = vpack.c.bf16 %v3702, %v3700
      %v3799 = vpack.c.bf16 %v3703, %v3701
      %v3800 = vpack.c.bf16 %v3706, %v3704
      %v3801 = vpack.c.bf16 %v3707, %v3705
      %v3802 = vpack.c.bf16 %v3710, %v3708
      %v3803 = vpack.c.bf16 %v3711, %v3709
      %v3804 = vpack.c.bf16 %v3714, %v3712
      %v3805 = vpack.c.bf16 %v3715, %v3713
      %v3806 = vpack.c.bf16 %v3718, %v3716
      %v3807 = vpack.c.bf16 %v3719, %v3717
      %v3808 = vpack.c.bf16 %v3722, %v3720
      %v3809 = vpack.c.bf16 %v3723, %v3721
      %v3810 = vpack.c.bf16 %v3726, %v3724
      %v3811 = vpack.c.bf16 %v3727, %v3725
      %v3812 = vpack.c.bf16 %v3730, %v3728
      %v3813 = vpack.c.bf16 %v3731, %v3729
      %v3814 = vpack.c.bf16 %v3734, %v3732
      %v3815 = vpack.c.bf16 %v3735, %v3733
      %v3816 = vpack.c.bf16 %v3738, %v3736
      %v3817 = vpack.c.bf16 %v3739, %v3737
      %v3818 = vpack.c.bf16 %v3742, %v3740
      %v3819 = vpack.c.bf16 %v3743, %v3741
      %v3820 = vpack.c.bf16 %v3746, %v3744
      %v3821 = vpack.c.bf16 %v3747, %v3745
      %v3822 = vpack.c.bf16 %v3750, %v3748
      %v3823 = vpack.c.bf16 %v3751, %v3749
      %v3824 = vpack.c.bf16 %v3754, %v3752
      %v3825 = vpack.c.bf16 %v3755, %v3753
      %v3826 = vpack.c.bf16 %v3758, %v3756
      %v3827 = vpack.c.bf16 %v3759, %v3757
      %v3828 = vpack.c.bf16 %v3762, %v3760
      %v3829 = vpack.c.bf16 %v3763, %v3761
      %v3830 = vpack.c.bf16 %v3766, %v3764
      %v3831 = vpack.c.bf16 %v3767, %v3765
      %v3832 = vpack.c.bf16 %v3770, %v3768
      %v3833 = vpack.c.bf16 %v3771, %v3769
      %v3834 = vpack.c.bf16 %v3774, %v3772
      %v3835 = vpack.c.bf16 %v3775, %v3773
      %v3836 = vpack.c.bf16 %v3778, %v3776
      %v3837 = vpack.c.bf16 %v3779, %v3777
      %v3838 = vpack.c.bf16 %v3782, %v3780
      %v3839 = vpack.c.bf16 %v3783, %v3781
      %v3840 = vpack.c.bf16 %v3786, %v3784
      %v3841 = vpack.c.bf16 %v3787, %v3785
      %v3842 = vld [vmem:[%s3] sm:$0xff]
      %v3843 = vld [vmem:[%s3 + $0x8] sm:$0xff]
      %v3844 = vld [vmem:[%s3 + $0x10] sm:$0xff]
      %v3845 = vld [vmem:[%s3 + $0x18] sm:$0xff]
      %v3846 = vld [vmem:[%s3 + $0x20] sm:$0xff]
      %v3847 = vld [vmem:[%s3 + $0x28] sm:$0xff]
      %v3848 = vld [vmem:[%s3 + $0x30] sm:$0xff]
      %v3849 = vld [vmem:[%s3 + $0x38] sm:$0xff]
      %v3850 = vld [vmem:[%s3 + $0x40] sm:$0xff]
      %v3851 = vld [vmem:[%s3 + $0x48] sm:$0xff]
      %v3852 = vld [vmem:[%s3 + $0x50] sm:$0xff]
      %v3853 = vld [vmem:[%s3 + $0x58] sm:$0xff]
      %v3854 = vld [vmem:[%s3 + $0x60] sm:$0xff]
      %v3855 = vld [vmem:[%s3 + $0x68] sm:$0xff]
      %v3856 = vld [vmem:[%s3 + $0x70] sm:$0xff]
      %v3857 = vld [vmem:[%s3 + $0x78] sm:$0xff]
      %v3858 = vld [vmem:[%s3 + $0x80] sm:$0xff]
      %v3859 = vld [vmem:[%s3 + $0x88] sm:$0xff]
      %v3860 = vld [vmem:[%s3 + $0x90] sm:$0xff]
      %v3861 = vld [vmem:[%s3 + $0x98] sm:$0xff]
      %v3862 = vld [vmem:[%s3 + $0xa0] sm:$0xff]
      %v3863 = vld [vmem:[%s3 + $0xa8] sm:$0xff]
      %v3864 = vld [vmem:[%s3 + $0xb0] sm:$0xff]
      %v3865 = vld [vmem:[%s3 + $0xb8] sm:$0xff]
      %v3866 = vld [vmem:[%s3 + $0xc0] sm:$0xff]
      %v3867 = vld [vmem:[%s3 + $0xc8] sm:$0xff]
      %v3868 = vld [vmem:[%s3 + $0xd0] sm:$0xff]
      %v3869 = vld [vmem:[%s3 + $0xd8] sm:$0xff]
      %v3870 = vld [vmem:[%s3 + $0xe0] sm:$0xff]
      %v3871 = vld [vmem:[%s3 + $0xe8] sm:$0xff]
      %v3872 = vld [vmem:[%s3 + $0xf0] sm:$0xff]
      %v3873 = vld [vmem:[%s3 + $0xf8] sm:$0xff]
      %v3874 = vld [vmem:[%s3 + $0x100] sm:$0xff]
      %v3875 = vld [vmem:[%s3 + $0x108] sm:$0xff]
      %v3876 = vld [vmem:[%s3 + $0x110] sm:$0xff]
      %v3877 = vld [vmem:[%s3 + $0x118] sm:$0xff]
      %v3878 = vld [vmem:[%s3 + $0x120] sm:$0xff]
      %v3879 = vld [vmem:[%s3 + $0x128] sm:$0xff]
      %v3880 = vld [vmem:[%s3 + $0x130] sm:$0xff]
      %v3881 = vld [vmem:[%s3 + $0x138] sm:$0xff]
      %v3882 = vld [vmem:[%s3 + $0x140] sm:$0xff]
      %v3883 = vld [vmem:[%s3 + $0x148] sm:$0xff]
      %v3884 = vld [vmem:[%s3 + $0x150] sm:$0xff]
      %v3885 = vld [vmem:[%s3 + $0x158] sm:$0xff]
      %v3886 = vld [vmem:[%s3 + $0x160] sm:$0xff]
      %v3887 = vld [vmem:[%s3 + $0x168] sm:$0xff]
      %v3888 = vld [vmem:[%s3 + $0x170] sm:$0xff]
      %v3889 = vld [vmem:[%s3 + $0x178] sm:$0xff]
      %v3890 = vld [vmem:[%s3 + $0x180] sm:$0xff]
      %v3891 = vld [vmem:[%s3 + $0x188] sm:$0xff]
      %v3892 = vld [vmem:[%s3 + $0x190] sm:$0xff]
      %v3893 = vld [vmem:[%s3 + $0x198] sm:$0xff]
      %v3894 = vld [vmem:[%s3 + $0x1a0] sm:$0xff]
      %v3895 = vld [vmem:[%s3 + $0x1a8] sm:$0xff]
      %v3896 = vld [vmem:[%s3 + $0x1b0] sm:$0xff]
      %v3897 = vld [vmem:[%s3 + $0x1b8] sm:$0xff]
      %v3898 = vld [vmem:[%s3 + $0x1c0] sm:$0xff]
      %v3899 = vld [vmem:[%s3 + $0x1c8] sm:$0xff]
      %v3900 = vld [vmem:[%s3 + $0x1d0] sm:$0xff]
      %v3901 = vld [vmem:[%s3 + $0x1d8] sm:$0xff]
      %v3902 = vld [vmem:[%s3 + $0x1e0] sm:$0xff]
      %v3903 = vld [vmem:[%s3 + $0x1e8] sm:$0xff]
      %v3904 = vld [vmem:[%s3 + $0x1f0] sm:$0xff]
      %v3905 = vld [vmem:[%s3 + $0x1f8] sm:$0xff]
      %v3906 = vld [vmem:[%s3 + $0x200] sm:$0xff]
      %v3907 = vld [vmem:[%s3 + $0x208] sm:$0xff]
      %v3908 = vld [vmem:[%s3 + $0x210] sm:$0xff]
      %v3909 = vld [vmem:[%s3 + $0x218] sm:$0xff]
      %v3910 = vld [vmem:[%s3 + $0x220] sm:$0xff]
      %v3911 = vld [vmem:[%s3 + $0x228] sm:$0xff]
      %v3912 = vld [vmem:[%s3 + $0x230] sm:$0xff]
      %v3913 = vld [vmem:[%s3 + $0x238] sm:$0xff]
      %v3914 = vld [vmem:[%s3 + $0x240] sm:$0xff]
      %v3915 = vld [vmem:[%s3 + $0x248] sm:$0xff]
      %v3916 = vld [vmem:[%s3 + $0x250] sm:$0xff]
      %v3917 = vld [vmem:[%s3 + $0x258] sm:$0xff]
      %v3918 = vld [vmem:[%s3 + $0x260] sm:$0xff]
      %v3919 = vld [vmem:[%s3 + $0x268] sm:$0xff]
      %v3920 = vld [vmem:[%s3 + $0x270] sm:$0xff]
      %v3921 = vld [vmem:[%s3 + $0x278] sm:$0xff]
      %v3922 = vld [vmem:[%s3 + $0x280] sm:$0xff]
      %v3923 = vld [vmem:[%s3 + $0x288] sm:$0xff]
      %v3924 = vld [vmem:[%s3 + $0x290] sm:$0xff]
      %v3925 = vld [vmem:[%s3 + $0x298] sm:$0xff]
      %v3926 = vld [vmem:[%s3 + $0x2a0] sm:$0xff]
      %v3927 = vld [vmem:[%s3 + $0x2a8] sm:$0xff]
      %v3928 = vld [vmem:[%s3 + $0x2b0] sm:$0xff]
      %v3929 = vld [vmem:[%s3 + $0x2b8] sm:$0xff]
      %v3930 = vld [vmem:[%s3 + $0x2c0] sm:$0xff]
      %v3931 = vld [vmem:[%s3 + $0x2c8] sm:$0xff]
      %v3932 = vld [vmem:[%s3 + $0x2d0] sm:$0xff]
      %v3933 = vld [vmem:[%s3 + $0x2d8] sm:$0xff]
      %v3934 = vld [vmem:[%s3 + $0x2e0] sm:$0xff]
      %v3935 = vld [vmem:[%s3 + $0x2e8] sm:$0xff]
      %v3936 = vld [vmem:[%s3 + $0x2f0] sm:$0xff]
      %v3937 = vld [vmem:[%s3 + $0x2f8] sm:$0xff]
      %v3938 = vld [vmem:[%s3 + $0x300] sm:$0xff]
      %v3939 = vld [vmem:[%s3 + $0x308] sm:$0xff]
      %v3940 = vld [vmem:[%s3 + $0x310] sm:$0xff]
      %v3941 = vld [vmem:[%s3 + $0x318] sm:$0xff]
      %v3942 = vld [vmem:[%s3 + $0x320] sm:$0xff]
      %v3943 = vld [vmem:[%s3 + $0x328] sm:$0xff]
      %v3944 = vld [vmem:[%s3 + $0x330] sm:$0xff]
      %v3945 = vld [vmem:[%s3 + $0x338] sm:$0xff]
      %v3946 = vld [vmem:[%s3 + $0x340] sm:$0xff]
      %v3947 = vld [vmem:[%s3 + $0x348] sm:$0xff]
      %v3948 = vld [vmem:[%s3 + $0x350] sm:$0xff]
      %v3949 = vld [vmem:[%s3 + $0x358] sm:$0xff]
      %v3950 = vld [vmem:[%s3 + $0x360] sm:$0xff]
      %v3951 = vld [vmem:[%s3 + $0x368] sm:$0xff]
      %v3952 = vld [vmem:[%s3 + $0x370] sm:$0xff]
      %v3953 = vld [vmem:[%s3 + $0x378] sm:$0xff]
      %v3954 = vld [vmem:[%s3 + $0x380] sm:$0xff]
      %v3955 = vld [vmem:[%s3 + $0x388] sm:$0xff]
      %v3956 = vld [vmem:[%s3 + $0x390] sm:$0xff]
      %v3957 = vld [vmem:[%s3 + $0x398] sm:$0xff]
      %v3958 = vld [vmem:[%s3 + $0x3a0] sm:$0xff]
      %v3959 = vld [vmem:[%s3 + $0x3a8] sm:$0xff]
      %v3960 = vld [vmem:[%s3 + $0x3b0] sm:$0xff]
      %v3961 = vld [vmem:[%s3 + $0x3b8] sm:$0xff]
      %v3962 = vld [vmem:[%s3 + $0x3c0] sm:$0xff]
      %v3963 = vld [vmem:[%s3 + $0x3c8] sm:$0xff]
      %v3964 = vld [vmem:[%s3 + $0x3d0] sm:$0xff]
      %v3965 = vld [vmem:[%s3 + $0x3d8] sm:$0xff]
      %v3966 = vld [vmem:[%s3 + $0x3e0] sm:$0xff]
      %v3967 = vld [vmem:[%s3 + $0x3e8] sm:$0xff]
      %v3968 = vld [vmem:[%s3 + $0x3f0] sm:$0xff]
      %v3969 = vld [vmem:[%s3 + $0x3f8] sm:$0xff]
      %v3970 = vld [vmem:[%s3 + $0x400] sm:$0xff]
      %v3971 = vld [vmem:[%s3 + $0x408] sm:$0xff]
      %v3972 = vld [vmem:[%s3 + $0x410] sm:$0xff]
      %v3973 = vld [vmem:[%s3 + $0x418] sm:$0xff]
      %v3974 = vld [vmem:[%s3 + $0x420] sm:$0xff]
      %v3975 = vld [vmem:[%s3 + $0x428] sm:$0xff]
      %v3976 = vld [vmem:[%s3 + $0x430] sm:$0xff]
      %v3977 = vld [vmem:[%s3 + $0x438] sm:$0xff]
      %v3978 = vld [vmem:[%s3 + $0x440] sm:$0xff]
      %v3979 = vld [vmem:[%s3 + $0x448] sm:$0xff]
      %v3980 = vld [vmem:[%s3 + $0x450] sm:$0xff]
      %v3981 = vld [vmem:[%s3 + $0x458] sm:$0xff]
      %v3982 = vld [vmem:[%s3 + $0x460] sm:$0xff]
      %v3983 = vld [vmem:[%s3 + $0x468] sm:$0xff]
      %v3984 = vld [vmem:[%s3 + $0x470] sm:$0xff]
      %v3985 = vld [vmem:[%s3 + $0x478] sm:$0xff]
      %v3986 = vld [vmem:[%s3 + $0x480] sm:$0xff]
      %v3987 = vld [vmem:[%s3 + $0x488] sm:$0xff]
      %v3988 = vld [vmem:[%s3 + $0x490] sm:$0xff]
      %v3989 = vld [vmem:[%s3 + $0x498] sm:$0xff]
      %v3990 = vld [vmem:[%s3 + $0x4a0] sm:$0xff]
      %v3991 = vld [vmem:[%s3 + $0x4a8] sm:$0xff]
      %v3992 = vld [vmem:[%s3 + $0x4b0] sm:$0xff]
      %v3993 = vld [vmem:[%s3 + $0x4b8] sm:$0xff]
      %v3994 = vld [vmem:[%s3 + $0x4c0] sm:$0xff]
      %v3995 = vld [vmem:[%s3 + $0x4c8] sm:$0xff]
      %v3996 = vld [vmem:[%s3 + $0x4d0] sm:$0xff]
      %v3997 = vld [vmem:[%s3 + $0x4d8] sm:$0xff]
      %v3998 = vld [vmem:[%s3 + $0x4e0] sm:$0xff]
      %v3999 = vld [vmem:[%s3 + $0x4e8] sm:$0xff]
      %v4000 = vld [vmem:[%s3 + $0x4f0] sm:$0xff]
      %v4001 = vld [vmem:[%s3 + $0x4f8] sm:$0xff]
      %v4002 = vld [vmem:[%s3 + $0x500] sm:$0xff]
      %v4003 = vld [vmem:[%s3 + $0x508] sm:$0xff]
      %v4004 = vld [vmem:[%s3 + $0x510] sm:$0xff]
      %v4005 = vld [vmem:[%s3 + $0x518] sm:$0xff]
      %v4006 = vld [vmem:[%s3 + $0x520] sm:$0xff]
      %v4007 = vld [vmem:[%s3 + $0x528] sm:$0xff]
      %v4008 = vld [vmem:[%s3 + $0x530] sm:$0xff]
      %v4009 = vld [vmem:[%s3 + $0x538] sm:$0xff]
      %v4010 = vld [vmem:[%s3 + $0x540] sm:$0xff]
      %v4011 = vld [vmem:[%s3 + $0x548] sm:$0xff]
      %v4012 = vld [vmem:[%s3 + $0x550] sm:$0xff]
      %v4013 = vld [vmem:[%s3 + $0x558] sm:$0xff]
      %v4014 = vld [vmem:[%s3 + $0x560] sm:$0xff]
      %v4015 = vld [vmem:[%s3 + $0x568] sm:$0xff]
      %v4016 = vld [vmem:[%s3 + $0x570] sm:$0xff]
      %v4017 = vld [vmem:[%s3 + $0x578] sm:$0xff]
      %v4018 = vld [vmem:[%s3 + $0x580] sm:$0xff]
      %v4019 = vld [vmem:[%s3 + $0x588] sm:$0xff]
      %v4020 = vld [vmem:[%s3 + $0x590] sm:$0xff]
      %v4021 = vld [vmem:[%s3 + $0x598] sm:$0xff]
      %v4022 = vld [vmem:[%s3 + $0x5a0] sm:$0xff]
      %v4023 = vld [vmem:[%s3 + $0x5a8] sm:$0xff]
      %v4024 = vld [vmem:[%s3 + $0x5b0] sm:$0xff]
      %v4025 = vld [vmem:[%s3 + $0x5b8] sm:$0xff]
      %v4026 = vld [vmem:[%s3 + $0x5c0] sm:$0xff]
      %v4027 = vld [vmem:[%s3 + $0x5c8] sm:$0xff]
      %v4028 = vld [vmem:[%s3 + $0x5d0] sm:$0xff]
      %v4029 = vld [vmem:[%s3 + $0x5d8] sm:$0xff]
      %v4030 = vld [vmem:[%s3 + $0x5e0] sm:$0xff]
      %v4031 = vld [vmem:[%s3 + $0x5e8] sm:$0xff]
      %v4032 = vld [vmem:[%s3 + $0x5f0] sm:$0xff]
      %v4033 = vld [vmem:[%s3 + $0x5f8] sm:$0xff]
      %v4034 = vld [vmem:[%s3 + $0x600] sm:$0xff]
      %v4035 = vld [vmem:[%s3 + $0x608] sm:$0xff]
      %v4036 = vld [vmem:[%s3 + $0x610] sm:$0xff]
      %v4037 = vld [vmem:[%s3 + $0x618] sm:$0xff]
      %v4038 = vld [vmem:[%s3 + $0x620] sm:$0xff]
      %v4039 = vld [vmem:[%s3 + $0x628] sm:$0xff]
      %v4040 = vld [vmem:[%s3 + $0x630] sm:$0xff]
      %v4041 = vld [vmem:[%s3 + $0x638] sm:$0xff]
      %v4042 = vld [vmem:[%s3 + $0x640] sm:$0xff]
      %v4043 = vld [vmem:[%s3 + $0x648] sm:$0xff]
      %v4044 = vld [vmem:[%s3 + $0x650] sm:$0xff]
      %v4045 = vld [vmem:[%s3 + $0x658] sm:$0xff]
      %v4046 = vld [vmem:[%s3 + $0x660] sm:$0xff]
      %v4047 = vld [vmem:[%s3 + $0x668] sm:$0xff]
      %v4048 = vld [vmem:[%s3 + $0x670] sm:$0xff]
      %v4049 = vld [vmem:[%s3 + $0x678] sm:$0xff]
      %v4050 = vld [vmem:[%s3 + $0x680] sm:$0xff]
      %v4051 = vld [vmem:[%s3 + $0x688] sm:$0xff]
      %v4052 = vld [vmem:[%s3 + $0x690] sm:$0xff]
      %v4053 = vld [vmem:[%s3 + $0x698] sm:$0xff]
      %v4054 = vld [vmem:[%s3 + $0x6a0] sm:$0xff]
      %v4055 = vld [vmem:[%s3 + $0x6a8] sm:$0xff]
      %v4056 = vld [vmem:[%s3 + $0x6b0] sm:$0xff]
      %v4057 = vld [vmem:[%s3 + $0x6b8] sm:$0xff]
      %v4058 = vld [vmem:[%s3 + $0x6c0] sm:$0xff]
      %v4059 = vld [vmem:[%s3 + $0x6c8] sm:$0xff]
      %v4060 = vld [vmem:[%s3 + $0x6d0] sm:$0xff]
      %v4061 = vld [vmem:[%s3 + $0x6d8] sm:$0xff]
      %v4062 = vld [vmem:[%s3 + $0x6e0] sm:$0xff]
      %v4063 = vld [vmem:[%s3 + $0x6e8] sm:$0xff]
      %v4064 = vld [vmem:[%s3 + $0x6f0] sm:$0xff]
      %v4065 = vld [vmem:[%s3 + $0x6f8] sm:$0xff]
      %v4066 = vld [vmem:[%s3 + $0x700] sm:$0xff]
      %v4067 = vld [vmem:[%s3 + $0x708] sm:$0xff]
      %v4068 = vld [vmem:[%s3 + $0x710] sm:$0xff]
      %v4069 = vld [vmem:[%s3 + $0x718] sm:$0xff]
      %v4070 = vld [vmem:[%s3 + $0x720] sm:$0xff]
      %v4071 = vld [vmem:[%s3 + $0x728] sm:$0xff]
      %v4072 = vld [vmem:[%s3 + $0x730] sm:$0xff]
      %v4073 = vld [vmem:[%s3 + $0x738] sm:$0xff]
      %v4074 = vld [vmem:[%s3 + $0x740] sm:$0xff]
      %v4075 = vld [vmem:[%s3 + $0x748] sm:$0xff]
      %v4076 = vld [vmem:[%s3 + $0x750] sm:$0xff]
      %v4077 = vld [vmem:[%s3 + $0x758] sm:$0xff]
      %v4078 = vld [vmem:[%s3 + $0x760] sm:$0xff]
      %v4079 = vld [vmem:[%s3 + $0x768] sm:$0xff]
      %v4080 = vld [vmem:[%s3 + $0x770] sm:$0xff]
      %v4081 = vld [vmem:[%s3 + $0x778] sm:$0xff]
      %v4082 = vld [vmem:[%s3 + $0x780] sm:$0xff]
      %v4083 = vld [vmem:[%s3 + $0x788] sm:$0xff]
      %v4084 = vld [vmem:[%s3 + $0x790] sm:$0xff]
      %v4085 = vld [vmem:[%s3 + $0x798] sm:$0xff]
      %v4086 = vld [vmem:[%s3 + $0x7a0] sm:$0xff]
      %v4087 = vld [vmem:[%s3 + $0x7a8] sm:$0xff]
      %v4088 = vld [vmem:[%s3 + $0x7b0] sm:$0xff]
      %v4089 = vld [vmem:[%s3 + $0x7b8] sm:$0xff]
      %v4090 = vld [vmem:[%s3 + $0x7c0] sm:$0xff]
      %v4091 = vld [vmem:[%s3 + $0x7c8] sm:$0xff]
      %v4092 = vld [vmem:[%s3 + $0x7d0] sm:$0xff]
      %v4093 = vld [vmem:[%s3 + $0x7d8] sm:$0xff]
      %v4094 = vld [vmem:[%s3 + $0x7e0] sm:$0xff]
      %v4095 = vld [vmem:[%s3 + $0x7e8] sm:$0xff]
      %v4096 = vld [vmem:[%s3 + $0x7f0] sm:$0xff]
      %v4097 = vld [vmem:[%s3 + $0x7f8] sm:$0xff]
      %v4098 = vld [vmem:[%s3 + $0x800] sm:$0xff]
      %v4099 = vld [vmem:[%s3 + $0x808] sm:$0xff]
      %v4100 = vld [vmem:[%s3 + $0x810] sm:$0xff]
      %v4101 = vld [vmem:[%s3 + $0x818] sm:$0xff]
      %v4102 = vld [vmem:[%s3 + $0x820] sm:$0xff]
      %v4103 = vld [vmem:[%s3 + $0x828] sm:$0xff]
      %v4104 = vld [vmem:[%s3 + $0x830] sm:$0xff]
      %v4105 = vld [vmem:[%s3 + $0x838] sm:$0xff]
      %v4106 = vld [vmem:[%s3 + $0x840] sm:$0xff]
      %v4107 = vld [vmem:[%s3 + $0x848] sm:$0xff]
      %v4108 = vld [vmem:[%s3 + $0x850] sm:$0xff]
      %v4109 = vld [vmem:[%s3 + $0x858] sm:$0xff]
      %v4110 = vld [vmem:[%s3 + $0x860] sm:$0xff]
      %v4111 = vld [vmem:[%s3 + $0x868] sm:$0xff]
      %v4112 = vld [vmem:[%s3 + $0x870] sm:$0xff]
      %v4113 = vld [vmem:[%s3 + $0x878] sm:$0xff]
      %v4114 = vld [vmem:[%s3 + $0x880] sm:$0xff]
      %v4115 = vld [vmem:[%s3 + $0x888] sm:$0xff]
      %v4116 = vld [vmem:[%s3 + $0x890] sm:$0xff]
      %v4117 = vld [vmem:[%s3 + $0x898] sm:$0xff]
      %v4118 = vld [vmem:[%s3 + $0x8a0] sm:$0xff]
      %v4119 = vld [vmem:[%s3 + $0x8a8] sm:$0xff]
      %v4120 = vld [vmem:[%s3 + $0x8b0] sm:$0xff]
      %v4121 = vld [vmem:[%s3 + $0x8b8] sm:$0xff]
      %v4122 = vld [vmem:[%s3 + $0x8c0] sm:$0xff]
      %v4123 = vld [vmem:[%s3 + $0x8c8] sm:$0xff]
      %v4124 = vld [vmem:[%s3 + $0x8d0] sm:$0xff]
      %v4125 = vld [vmem:[%s3 + $0x8d8] sm:$0xff]
      %v4126 = vld [vmem:[%s3 + $0x8e0] sm:$0xff]
      %v4127 = vld [vmem:[%s3 + $0x8e8] sm:$0xff]
      %v4128 = vld [vmem:[%s3 + $0x8f0] sm:$0xff]
      %v4129 = vld [vmem:[%s3 + $0x8f8] sm:$0xff]
      %v4130 = vld [vmem:[%s3 + $0x900] sm:$0xff]
      %v4131 = vld [vmem:[%s3 + $0x908] sm:$0xff]
      %v4132 = vld [vmem:[%s3 + $0x910] sm:$0xff]
      %v4133 = vld [vmem:[%s3 + $0x918] sm:$0xff]
      %v4134 = vld [vmem:[%s3 + $0x920] sm:$0xff]
      %v4135 = vld [vmem:[%s3 + $0x928] sm:$0xff]
      %v4136 = vld [vmem:[%s3 + $0x930] sm:$0xff]
      %v4137 = vld [vmem:[%s3 + $0x938] sm:$0xff]
      %v4138 = vld [vmem:[%s3 + $0x940] sm:$0xff]
      %v4139 = vld [vmem:[%s3 + $0x948] sm:$0xff]
      %v4140 = vld [vmem:[%s3 + $0x950] sm:$0xff]
      %v4141 = vld [vmem:[%s3 + $0x958] sm:$0xff]
      %v4142 = vld [vmem:[%s3 + $0x960] sm:$0xff]
      %v4143 = vld [vmem:[%s3 + $0x968] sm:$0xff]
      %v4144 = vld [vmem:[%s3 + $0x970] sm:$0xff]
      %v4145 = vld [vmem:[%s3 + $0x978] sm:$0xff]
      %v4146 = vld [vmem:[%s3 + $0x980] sm:$0xff]
      %v4147 = vld [vmem:[%s3 + $0x988] sm:$0xff]
      %v4148 = vld [vmem:[%s3 + $0x990] sm:$0xff]
      %v4149 = vld [vmem:[%s3 + $0x998] sm:$0xff]
      %v4150 = vld [vmem:[%s3 + $0x9a0] sm:$0xff]
      %v4151 = vld [vmem:[%s3 + $0x9a8] sm:$0xff]
      %v4152 = vld [vmem:[%s3 + $0x9b0] sm:$0xff]
      %v4153 = vld [vmem:[%s3 + $0x9b8] sm:$0xff]
      %v4154 = vld [vmem:[%s3 + $0x9c0] sm:$0xff]
      %v4155 = vld [vmem:[%s3 + $0x9c8] sm:$0xff]
      %v4156 = vld [vmem:[%s3 + $0x9d0] sm:$0xff]
      %v4157 = vld [vmem:[%s3 + $0x9d8] sm:$0xff]
      %v4158 = vld [vmem:[%s3 + $0x9e0] sm:$0xff]
      %v4159 = vld [vmem:[%s3 + $0x9e8] sm:$0xff]
      %v4160 = vld [vmem:[%s3 + $0x9f0] sm:$0xff]
      %v4161 = vld [vmem:[%s3 + $0x9f8] sm:$0xff]
      %v4482 = vunpack.c.l.b16 %v3842
      %v4483 = vunpack.c.h.b16 %v3842
      %v4484 = vunpack.c.l.b16 %v3843
      %v4485 = vunpack.c.h.b16 %v3843
      %v4486 = vunpack.c.l.b16 %v3844
      %v4487 = vunpack.c.h.b16 %v3844
      %v4488 = vunpack.c.l.b16 %v3845
      %v4489 = vunpack.c.h.b16 %v3845
      %v4490 = vunpack.c.l.b16 %v3846
      %v4491 = vunpack.c.h.b16 %v3846
      %v4492 = vunpack.c.l.b16 %v3847
      %v4493 = vunpack.c.h.b16 %v3847
      %v4494 = vunpack.c.l.b16 %v3848
      %v4495 = vunpack.c.h.b16 %v3848
      %v4496 = vunpack.c.l.b16 %v3849
      %v4497 = vunpack.c.h.b16 %v3849
      %v4498 = vunpack.c.l.b16 %v3850
      %v4499 = vunpack.c.h.b16 %v3850
      %v4500 = vunpack.c.l.b16 %v3851
      %v4501 = vunpack.c.h.b16 %v3851
      %v4502 = vunpack.c.l.b16 %v3852
      %v4503 = vunpack.c.h.b16 %v3852
      %v4504 = vunpack.c.l.b16 %v3853
      %v4505 = vunpack.c.h.b16 %v3853
      %v4506 = vunpack.c.l.b16 %v3854
      %v4507 = vunpack.c.h.b16 %v3854
      %v4508 = vunpack.c.l.b16 %v3855
      %v4509 = vunpack.c.h.b16 %v3855
      %v4510 = vunpack.c.l.b16 %v3856
      %v4511 = vunpack.c.h.b16 %v3856
      %v4512 = vunpack.c.l.b16 %v3857
      %v4513 = vunpack.c.h.b16 %v3857
      %v4514 = vunpack.c.l.b16 %v3858
      %v4515 = vunpack.c.h.b16 %v3858
      %v4516 = vunpack.c.l.b16 %v3859
      %v4517 = vunpack.c.h.b16 %v3859
      %v4518 = vunpack.c.l.b16 %v3860
      %v4519 = vunpack.c.h.b16 %v3860
      %v4520 = vunpack.c.l.b16 %v3861
      %v4521 = vunpack.c.h.b16 %v3861
      %v4522 = vunpack.c.l.b16 %v3862
      %v4523 = vunpack.c.h.b16 %v3862
      %v4524 = vunpack.c.l.b16 %v3863
      %v4525 = vunpack.c.h.b16 %v3863
      %v4526 = vunpack.c.l.b16 %v3864
      %v4527 = vunpack.c.h.b16 %v3864
      %v4528 = vunpack.c.l.b16 %v3865
      %v4529 = vunpack.c.h.b16 %v3865
      %v4530 = vunpack.c.l.b16 %v3866
      %v4531 = vunpack.c.h.b16 %v3866
      %v4532 = vunpack.c.l.b16 %v3867
      %v4533 = vunpack.c.h.b16 %v3867
      %v4534 = vunpack.c.l.b16 %v3868
      %v4535 = vunpack.c.h.b16 %v3868
      %v4536 = vunpack.c.l.b16 %v3869
      %v4537 = vunpack.c.h.b16 %v3869
      %v4538 = vunpack.c.l.b16 %v3870
      %v4539 = vunpack.c.h.b16 %v3870
      %v4540 = vunpack.c.l.b16 %v3871
      %v4541 = vunpack.c.h.b16 %v3871
      %v4542 = vunpack.c.l.b16 %v3872
      %v4543 = vunpack.c.h.b16 %v3872
      %v4544 = vunpack.c.l.b16 %v3873
      %v4545 = vunpack.c.h.b16 %v3873
      %v4546 = vunpack.c.l.b16 %v3874
      %v4547 = vunpack.c.h.b16 %v3874
      %v4548 = vunpack.c.l.b16 %v3875
      %v4549 = vunpack.c.h.b16 %v3875
      %v4550 = vunpack.c.l.b16 %v3876
      %v4551 = vunpack.c.h.b16 %v3876
      %v4552 = vunpack.c.l.b16 %v3877
      %v4553 = vunpack.c.h.b16 %v3877
      %v4554 = vunpack.c.l.b16 %v3878
      %v4555 = vunpack.c.h.b16 %v3878
      %v4556 = vunpack.c.l.b16 %v3879
      %v4557 = vunpack.c.h.b16 %v3879
      %v4558 = vunpack.c.l.b16 %v3880
      %v4559 = vunpack.c.h.b16 %v3880
      %v4560 = vunpack.c.l.b16 %v3881
      %v4561 = vunpack.c.h.b16 %v3881
      %v4562 = vunpack.c.l.b16 %v3882
      %v4563 = vunpack.c.h.b16 %v3882
      %v4564 = vunpack.c.l.b16 %v3883
      %v4565 = vunpack.c.h.b16 %v3883
      %v4566 = vunpack.c.l.b16 %v3884
      %v4567 = vunpack.c.h.b16 %v3884
      %v4568 = vunpack.c.l.b16 %v3885
      %v4569 = vunpack.c.h.b16 %v3885
      %v4570 = vunpack.c.l.b16 %v3886
      %v4571 = vunpack.c.h.b16 %v3886
      %v4572 = vunpack.c.l.b16 %v3887
      %v4573 = vunpack.c.h.b16 %v3887
      %v4574 = vunpack.c.l.b16 %v3888
      %v4575 = vunpack.c.h.b16 %v3888
      %v4576 = vunpack.c.l.b16 %v3889
      %v4577 = vunpack.c.h.b16 %v3889
      %v4578 = vunpack.c.l.b16 %v3890
      %v4579 = vunpack.c.h.b16 %v3890
      %v4580 = vunpack.c.l.b16 %v3891
      %v4581 = vunpack.c.h.b16 %v3891
      %v4582 = vunpack.c.l.b16 %v3892
      %v4583 = vunpack.c.h.b16 %v3892
      %v4584 = vunpack.c.l.b16 %v3893
      %v4585 = vunpack.c.h.b16 %v3893
      %v4586 = vunpack.c.l.b16 %v3894
      %v4587 = vunpack.c.h.b16 %v3894
      %v4588 = vunpack.c.l.b16 %v3895
      %v4589 = vunpack.c.h.b16 %v3895
      %v4590 = vunpack.c.l.b16 %v3896
      %v4591 = vunpack.c.h.b16 %v3896
      %v4592 = vunpack.c.l.b16 %v3897
      %v4593 = vunpack.c.h.b16 %v3897
      %v4594 = vunpack.c.l.b16 %v3898
      %v4595 = vunpack.c.h.b16 %v3898
      %v4596 = vunpack.c.l.b16 %v3899
      %v4597 = vunpack.c.h.b16 %v3899
      %v4598 = vunpack.c.l.b16 %v3900
      %v4599 = vunpack.c.h.b16 %v3900
      %v4600 = vunpack.c.l.b16 %v3901
      %v4601 = vunpack.c.h.b16 %v3901
      %v4602 = vunpack.c.l.b16 %v3902
      %v4603 = vunpack.c.h.b16 %v3902
      %v4604 = vunpack.c.l.b16 %v3903
      %v4605 = vunpack.c.h.b16 %v3903
      %v4606 = vunpack.c.l.b16 %v3904
      %v4607 = vunpack.c.h.b16 %v3904
      %v4608 = vunpack.c.l.b16 %v3905
      %v4609 = vunpack.c.h.b16 %v3905
      %v4610 = vunpack.c.l.b16 %v3906
      %v4611 = vunpack.c.h.b16 %v3906
      %v4612 = vunpack.c.l.b16 %v3907
      %v4613 = vunpack.c.h.b16 %v3907
      %v4614 = vunpack.c.l.b16 %v3908
      %v4615 = vunpack.c.h.b16 %v3908
      %v4616 = vunpack.c.l.b16 %v3909
      %v4617 = vunpack.c.h.b16 %v3909
      %v4618 = vunpack.c.l.b16 %v3910
      %v4619 = vunpack.c.h.b16 %v3910
      %v4620 = vunpack.c.l.b16 %v3911
      %v4621 = vunpack.c.h.b16 %v3911
      %v4622 = vunpack.c.l.b16 %v3912
      %v4623 = vunpack.c.h.b16 %v3912
      %v4624 = vunpack.c.l.b16 %v3913
      %v4625 = vunpack.c.h.b16 %v3913
      %v4626 = vunpack.c.l.b16 %v3914
      %v4627 = vunpack.c.h.b16 %v3914
      %v4628 = vunpack.c.l.b16 %v3915
      %v4629 = vunpack.c.h.b16 %v3915
      %v4630 = vunpack.c.l.b16 %v3916
      %v4631 = vunpack.c.h.b16 %v3916
      %v4632 = vunpack.c.l.b16 %v3917
      %v4633 = vunpack.c.h.b16 %v3917
      %v4634 = vunpack.c.l.b16 %v3918
      %v4635 = vunpack.c.h.b16 %v3918
      %v4636 = vunpack.c.l.b16 %v3919
      %v4637 = vunpack.c.h.b16 %v3919
      %v4638 = vunpack.c.l.b16 %v3920
      %v4639 = vunpack.c.h.b16 %v3920
      %v4640 = vunpack.c.l.b16 %v3921
      %v4641 = vunpack.c.h.b16 %v3921
      %v4642 = vunpack.c.l.b16 %v3922
      %v4643 = vunpack.c.h.b16 %v3922
      %v4644 = vunpack.c.l.b16 %v3923
      %v4645 = vunpack.c.h.b16 %v3923
      %v4646 = vunpack.c.l.b16 %v3924
      %v4647 = vunpack.c.h.b16 %v3924
      %v4648 = vunpack.c.l.b16 %v3925
      %v4649 = vunpack.c.h.b16 %v3925
      %v4650 = vunpack.c.l.b16 %v3926
      %v4651 = vunpack.c.h.b16 %v3926
      %v4652 = vunpack.c.l.b16 %v3927
      %v4653 = vunpack.c.h.b16 %v3927
      %v4654 = vunpack.c.l.b16 %v3928
      %v4655 = vunpack.c.h.b16 %v3928
      %v4656 = vunpack.c.l.b16 %v3929
      %v4657 = vunpack.c.h.b16 %v3929
      %v4658 = vunpack.c.l.b16 %v3930
      %v4659 = vunpack.c.h.b16 %v3930
      %v4660 = vunpack.c.l.b16 %v3931
      %v4661 = vunpack.c.h.b16 %v3931
      %v4662 = vunpack.c.l.b16 %v3932
      %v4663 = vunpack.c.h.b16 %v3932
      %v4664 = vunpack.c.l.b16 %v3933
      %v4665 = vunpack.c.h.b16 %v3933
      %v4666 = vunpack.c.l.b16 %v3934
      %v4667 = vunpack.c.h.b16 %v3934
      %v4668 = vunpack.c.l.b16 %v3935
      %v4669 = vunpack.c.h.b16 %v3935
      %v4670 = vunpack.c.l.b16 %v3936
      %v4671 = vunpack.c.h.b16 %v3936
      %v4672 = vunpack.c.l.b16 %v3937
      %v4673 = vunpack.c.h.b16 %v3937
      %v4674 = vunpack.c.l.b16 %v3938
      %v4675 = vunpack.c.h.b16 %v3938
      %v4676 = vunpack.c.l.b16 %v3939
      %v4677 = vunpack.c.h.b16 %v3939
      %v4678 = vunpack.c.l.b16 %v3940
      %v4679 = vunpack.c.h.b16 %v3940
      %v4680 = vunpack.c.l.b16 %v3941
      %v4681 = vunpack.c.h.b16 %v3941
      %v4682 = vunpack.c.l.b16 %v3942
      %v4683 = vunpack.c.h.b16 %v3942
      %v4684 = vunpack.c.l.b16 %v3943
      %v4685 = vunpack.c.h.b16 %v3943
      %v4686 = vunpack.c.l.b16 %v3944
      %v4687 = vunpack.c.h.b16 %v3944
      %v4688 = vunpack.c.l.b16 %v3945
      %v4689 = vunpack.c.h.b16 %v3945
      %v4690 = vunpack.c.l.b16 %v3946
      %v4691 = vunpack.c.h.b16 %v3946
      %v4692 = vunpack.c.l.b16 %v3947
      %v4693 = vunpack.c.h.b16 %v3947
      %v4694 = vunpack.c.l.b16 %v3948
      %v4695 = vunpack.c.h.b16 %v3948
      %v4696 = vunpack.c.l.b16 %v3949
      %v4697 = vunpack.c.h.b16 %v3949
      %v4698 = vunpack.c.l.b16 %v3950
      %v4699 = vunpack.c.h.b16 %v3950
      %v4700 = vunpack.c.l.b16 %v3951
      %v4701 = vunpack.c.h.b16 %v3951
      %v4702 = vunpack.c.l.b16 %v3952
      %v4703 = vunpack.c.h.b16 %v3952
      %v4704 = vunpack.c.l.b16 %v3953
      %v4705 = vunpack.c.h.b16 %v3953
      %v4706 = vunpack.c.l.b16 %v3954
      %v4707 = vunpack.c.h.b16 %v3954
      %v4708 = vunpack.c.l.b16 %v3955
      %v4709 = vunpack.c.h.b16 %v3955
      %v4710 = vunpack.c.l.b16 %v3956
      %v4711 = vunpack.c.h.b16 %v3956
      %v4712 = vunpack.c.l.b16 %v3957
      %v4713 = vunpack.c.h.b16 %v3957
      %v4714 = vunpack.c.l.b16 %v3958
      %v4715 = vunpack.c.h.b16 %v3958
      %v4716 = vunpack.c.l.b16 %v3959
      %v4717 = vunpack.c.h.b16 %v3959
      %v4718 = vunpack.c.l.b16 %v3960
      %v4719 = vunpack.c.h.b16 %v3960
      %v4720 = vunpack.c.l.b16 %v3961
      %v4721 = vunpack.c.h.b16 %v3961
      %v4722 = vunpack.c.l.b16 %v3962
      %v4723 = vunpack.c.h.b16 %v3962
      %v4724 = vunpack.c.l.b16 %v3963
      %v4725 = vunpack.c.h.b16 %v3963
      %v4726 = vunpack.c.l.b16 %v3964
      %v4727 = vunpack.c.h.b16 %v3964
      %v4728 = vunpack.c.l.b16 %v3965
      %v4729 = vunpack.c.h.b16 %v3965
      %v4730 = vunpack.c.l.b16 %v3966
      %v4731 = vunpack.c.h.b16 %v3966
      %v4732 = vunpack.c.l.b16 %v3967
      %v4733 = vunpack.c.h.b16 %v3967
      %v4734 = vunpack.c.l.b16 %v3968
      %v4735 = vunpack.c.h.b16 %v3968
      %v4736 = vunpack.c.l.b16 %v3969
      %v4737 = vunpack.c.h.b16 %v3969
      %v4738 = vunpack.c.l.b16 %v3970
      %v4739 = vunpack.c.h.b16 %v3970
      %v4740 = vunpack.c.l.b16 %v3971
      %v4741 = vunpack.c.h.b16 %v3971
      %v4742 = vunpack.c.l.b16 %v3972
      %v4743 = vunpack.c.h.b16 %v3972
      %v4744 = vunpack.c.l.b16 %v3973
      %v4745 = vunpack.c.h.b16 %v3973
      %v4746 = vunpack.c.l.b16 %v3974
      %v4747 = vunpack.c.h.b16 %v3974
      %v4748 = vunpack.c.l.b16 %v3975
      %v4749 = vunpack.c.h.b16 %v3975
      %v4750 = vunpack.c.l.b16 %v3976
      %v4751 = vunpack.c.h.b16 %v3976
      %v4752 = vunpack.c.l.b16 %v3977
      %v4753 = vunpack.c.h.b16 %v3977
      %v4754 = vunpack.c.l.b16 %v3978
      %v4755 = vunpack.c.h.b16 %v3978
      %v4756 = vunpack.c.l.b16 %v3979
      %v4757 = vunpack.c.h.b16 %v3979
      %v4758 = vunpack.c.l.b16 %v3980
      %v4759 = vunpack.c.h.b16 %v3980
      %v4760 = vunpack.c.l.b16 %v3981
      %v4761 = vunpack.c.h.b16 %v3981
      %v4762 = vunpack.c.l.b16 %v3982
      %v4763 = vunpack.c.h.b16 %v3982
      %v4764 = vunpack.c.l.b16 %v3983
      %v4765 = vunpack.c.h.b16 %v3983
      %v4766 = vunpack.c.l.b16 %v3984
      %v4767 = vunpack.c.h.b16 %v3984
      %v4768 = vunpack.c.l.b16 %v3985
      %v4769 = vunpack.c.h.b16 %v3985
      %v4770 = vunpack.c.l.b16 %v3986
      %v4771 = vunpack.c.h.b16 %v3986
      %v4772 = vunpack.c.l.b16 %v3987
      %v4773 = vunpack.c.h.b16 %v3987
      %v4774 = vunpack.c.l.b16 %v3988
      %v4775 = vunpack.c.h.b16 %v3988
      %v4776 = vunpack.c.l.b16 %v3989
      %v4777 = vunpack.c.h.b16 %v3989
      %v4778 = vunpack.c.l.b16 %v3990
      %v4779 = vunpack.c.h.b16 %v3990
      %v4780 = vunpack.c.l.b16 %v3991
      %v4781 = vunpack.c.h.b16 %v3991
      %v4782 = vunpack.c.l.b16 %v3992
      %v4783 = vunpack.c.h.b16 %v3992
      %v4784 = vunpack.c.l.b16 %v3993
      %v4785 = vunpack.c.h.b16 %v3993
      %v4786 = vunpack.c.l.b16 %v3994
      %v4787 = vunpack.c.h.b16 %v3994
      %v4788 = vunpack.c.l.b16 %v3995
      %v4789 = vunpack.c.h.b16 %v3995
      %v4790 = vunpack.c.l.b16 %v3996
      %v4791 = vunpack.c.h.b16 %v3996
      %v4792 = vunpack.c.l.b16 %v3997
      %v4793 = vunpack.c.h.b16 %v3997
      %v4794 = vunpack.c.l.b16 %v3998
      %v4795 = vunpack.c.h.b16 %v3998
      %v4796 = vunpack.c.l.b16 %v3999
      %v4797 = vunpack.c.h.b16 %v3999
      %v4798 = vunpack.c.l.b16 %v4000
      %v4799 = vunpack.c.h.b16 %v4000
      %v4800 = vunpack.c.l.b16 %v4001
      %v4801 = vunpack.c.h.b16 %v4001
      %v4802 = vunpack.c.l.b16 %v4002
      %v4803 = vunpack.c.h.b16 %v4002
      %v4804 = vunpack.c.l.b16 %v4003
      %v4805 = vunpack.c.h.b16 %v4003
      %v4806 = vunpack.c.l.b16 %v4004
      %v4807 = vunpack.c.h.b16 %v4004
      %v4808 = vunpack.c.l.b16 %v4005
      %v4809 = vunpack.c.h.b16 %v4005
      %v4810 = vunpack.c.l.b16 %v4006
      %v4811 = vunpack.c.h.b16 %v4006
      %v4812 = vunpack.c.l.b16 %v4007
      %v4813 = vunpack.c.h.b16 %v4007
      %v4814 = vunpack.c.l.b16 %v4008
      %v4815 = vunpack.c.h.b16 %v4008
      %v4816 = vunpack.c.l.b16 %v4009
      %v4817 = vunpack.c.h.b16 %v4009
      %v4818 = vunpack.c.l.b16 %v4010
      %v4819 = vunpack.c.h.b16 %v4010
      %v4820 = vunpack.c.l.b16 %v4011
      %v4821 = vunpack.c.h.b16 %v4011
      %v4822 = vunpack.c.l.b16 %v4012
      %v4823 = vunpack.c.h.b16 %v4012
      %v4824 = vunpack.c.l.b16 %v4013
      %v4825 = vunpack.c.h.b16 %v4013
      %v4826 = vunpack.c.l.b16 %v4014
      %v4827 = vunpack.c.h.b16 %v4014
      %v4828 = vunpack.c.l.b16 %v4015
      %v4829 = vunpack.c.h.b16 %v4015
      %v4830 = vunpack.c.l.b16 %v4016
      %v4831 = vunpack.c.h.b16 %v4016
      %v4832 = vunpack.c.l.b16 %v4017
      %v4833 = vunpack.c.h.b16 %v4017
      %v4834 = vunpack.c.l.b16 %v4018
      %v4835 = vunpack.c.h.b16 %v4018
      %v4836 = vunpack.c.l.b16 %v4019
      %v4837 = vunpack.c.h.b16 %v4019
      %v4838 = vunpack.c.l.b16 %v4020
      %v4839 = vunpack.c.h.b16 %v4020
      %v4840 = vunpack.c.l.b16 %v4021
      %v4841 = vunpack.c.h.b16 %v4021
      %v4842 = vunpack.c.l.b16 %v4022
      %v4843 = vunpack.c.h.b16 %v4022
      %v4844 = vunpack.c.l.b16 %v4023
      %v4845 = vunpack.c.h.b16 %v4023
      %v4846 = vunpack.c.l.b16 %v4024
      %v4847 = vunpack.c.h.b16 %v4024
      %v4848 = vunpack.c.l.b16 %v4025
      %v4849 = vunpack.c.h.b16 %v4025
      %v4850 = vunpack.c.l.b16 %v4026
      %v4851 = vunpack.c.h.b16 %v4026
      %v4852 = vunpack.c.l.b16 %v4027
      %v4853 = vunpack.c.h.b16 %v4027
      %v4854 = vunpack.c.l.b16 %v4028
      %v4855 = vunpack.c.h.b16 %v4028
      %v4856 = vunpack.c.l.b16 %v4029
      %v4857 = vunpack.c.h.b16 %v4029
      %v4858 = vunpack.c.l.b16 %v4030
      %v4859 = vunpack.c.h.b16 %v4030
      %v4860 = vunpack.c.l.b16 %v4031
      %v4861 = vunpack.c.h.b16 %v4031
      %v4862 = vunpack.c.l.b16 %v4032
      %v4863 = vunpack.c.h.b16 %v4032
      %v4864 = vunpack.c.l.b16 %v4033
      %v4865 = vunpack.c.h.b16 %v4033
      %v4866 = vunpack.c.l.b16 %v4034
      %v4867 = vunpack.c.h.b16 %v4034
      %v4868 = vunpack.c.l.b16 %v4035
      %v4869 = vunpack.c.h.b16 %v4035
      %v4870 = vunpack.c.l.b16 %v4036
      %v4871 = vunpack.c.h.b16 %v4036
      %v4872 = vunpack.c.l.b16 %v4037
      %v4873 = vunpack.c.h.b16 %v4037
      %v4874 = vunpack.c.l.b16 %v4038
      %v4875 = vunpack.c.h.b16 %v4038
      %v4876 = vunpack.c.l.b16 %v4039
      %v4877 = vunpack.c.h.b16 %v4039
      %v4878 = vunpack.c.l.b16 %v4040
      %v4879 = vunpack.c.h.b16 %v4040
      %v4880 = vunpack.c.l.b16 %v4041
      %v4881 = vunpack.c.h.b16 %v4041
      %v4882 = vunpack.c.l.b16 %v4042
      %v4883 = vunpack.c.h.b16 %v4042
      %v4884 = vunpack.c.l.b16 %v4043
      %v4885 = vunpack.c.h.b16 %v4043
      %v4886 = vunpack.c.l.b16 %v4044
      %v4887 = vunpack.c.h.b16 %v4044
      %v4888 = vunpack.c.l.b16 %v4045
      %v4889 = vunpack.c.h.b16 %v4045
      %v4890 = vunpack.c.l.b16 %v4046
      %v4891 = vunpack.c.h.b16 %v4046
      %v4892 = vunpack.c.l.b16 %v4047
      %v4893 = vunpack.c.h.b16 %v4047
      %v4894 = vunpack.c.l.b16 %v4048
      %v4895 = vunpack.c.h.b16 %v4048
      %v4896 = vunpack.c.l.b16 %v4049
      %v4897 = vunpack.c.h.b16 %v4049
      %v4898 = vunpack.c.l.b16 %v4050
      %v4899 = vunpack.c.h.b16 %v4050
      %v4900 = vunpack.c.l.b16 %v4051
      %v4901 = vunpack.c.h.b16 %v4051
      %v4902 = vunpack.c.l.b16 %v4052
      %v4903 = vunpack.c.h.b16 %v4052
      %v4904 = vunpack.c.l.b16 %v4053
      %v4905 = vunpack.c.h.b16 %v4053
      %v4906 = vunpack.c.l.b16 %v4054
      %v4907 = vunpack.c.h.b16 %v4054
      %v4908 = vunpack.c.l.b16 %v4055
      %v4909 = vunpack.c.h.b16 %v4055
      %v4910 = vunpack.c.l.b16 %v4056
      %v4911 = vunpack.c.h.b16 %v4056
      %v4912 = vunpack.c.l.b16 %v4057
      %v4913 = vunpack.c.h.b16 %v4057
      %v4914 = vunpack.c.l.b16 %v4058
      %v4915 = vunpack.c.h.b16 %v4058
      %v4916 = vunpack.c.l.b16 %v4059
      %v4917 = vunpack.c.h.b16 %v4059
      %v4918 = vunpack.c.l.b16 %v4060
      %v4919 = vunpack.c.h.b16 %v4060
      %v4920 = vunpack.c.l.b16 %v4061
      %v4921 = vunpack.c.h.b16 %v4061
      %v4922 = vunpack.c.l.b16 %v4062
      %v4923 = vunpack.c.h.b16 %v4062
      %v4924 = vunpack.c.l.b16 %v4063
      %v4925 = vunpack.c.h.b16 %v4063
      %v4926 = vunpack.c.l.b16 %v4064
      %v4927 = vunpack.c.h.b16 %v4064
      %v4928 = vunpack.c.l.b16 %v4065
      %v4929 = vunpack.c.h.b16 %v4065
      %v4930 = vunpack.c.l.b16 %v4066
      %v4931 = vunpack.c.h.b16 %v4066
      %v4932 = vunpack.c.l.b16 %v4067
      %v4933 = vunpack.c.h.b16 %v4067
      %v4934 = vunpack.c.l.b16 %v4068
      %v4935 = vunpack.c.h.b16 %v4068
      %v4936 = vunpack.c.l.b16 %v4069
      %v4937 = vunpack.c.h.b16 %v4069
      %v4938 = vunpack.c.l.b16 %v4070
      %v4939 = vunpack.c.h.b16 %v4070
      %v4940 = vunpack.c.l.b16 %v4071
      %v4941 = vunpack.c.h.b16 %v4071
      %v4942 = vunpack.c.l.b16 %v4072
      %v4943 = vunpack.c.h.b16 %v4072
      %v4944 = vunpack.c.l.b16 %v4073
      %v4945 = vunpack.c.h.b16 %v4073
      %v4946 = vunpack.c.l.b16 %v4074
      %v4947 = vunpack.c.h.b16 %v4074
      %v4948 = vunpack.c.l.b16 %v4075
      %v4949 = vunpack.c.h.b16 %v4075
      %v4950 = vunpack.c.l.b16 %v4076
      %v4951 = vunpack.c.h.b16 %v4076
      %v4952 = vunpack.c.l.b16 %v4077
      %v4953 = vunpack.c.h.b16 %v4077
      %v4954 = vunpack.c.l.b16 %v4078
      %v4955 = vunpack.c.h.b16 %v4078
      %v4956 = vunpack.c.l.b16 %v4079
      %v4957 = vunpack.c.h.b16 %v4079
      %v4958 = vunpack.c.l.b16 %v4080
      %v4959 = vunpack.c.h.b16 %v4080
      %v4960 = vunpack.c.l.b16 %v4081
      %v4961 = vunpack.c.h.b16 %v4081
      %v4962 = vunpack.c.l.b16 %v4082
      %v4963 = vunpack.c.h.b16 %v4082
      %v4964 = vunpack.c.l.b16 %v4083
      %v4965 = vunpack.c.h.b16 %v4083
      %v4966 = vunpack.c.l.b16 %v4084
      %v4967 = vunpack.c.h.b16 %v4084
      %v4968 = vunpack.c.l.b16 %v4085
      %v4969 = vunpack.c.h.b16 %v4085
      %v4970 = vunpack.c.l.b16 %v4086
      %v4971 = vunpack.c.h.b16 %v4086
      %v4972 = vunpack.c.l.b16 %v4087
      %v4973 = vunpack.c.h.b16 %v4087
      %v4974 = vunpack.c.l.b16 %v4088
      %v4975 = vunpack.c.h.b16 %v4088
      %v4976 = vunpack.c.l.b16 %v4089
      %v4977 = vunpack.c.h.b16 %v4089
      %v4978 = vunpack.c.l.b16 %v4090
      %v4979 = vunpack.c.h.b16 %v4090
      %v4980 = vunpack.c.l.b16 %v4091
      %v4981 = vunpack.c.h.b16 %v4091
      %v4982 = vunpack.c.l.b16 %v4092
      %v4983 = vunpack.c.h.b16 %v4092
      %v4984 = vunpack.c.l.b16 %v4093
      %v4985 = vunpack.c.h.b16 %v4093
      %v4986 = vunpack.c.l.b16 %v4094
      %v4987 = vunpack.c.h.b16 %v4094
      %v4988 = vunpack.c.l.b16 %v4095
      %v4989 = vunpack.c.h.b16 %v4095
      %v4990 = vunpack.c.l.b16 %v4096
      %v4991 = vunpack.c.h.b16 %v4096
      %v4992 = vunpack.c.l.b16 %v4097
      %v4993 = vunpack.c.h.b16 %v4097
      %v4994 = vunpack.c.l.b16 %v4098
      %v4995 = vunpack.c.h.b16 %v4098
      %v4996 = vunpack.c.l.b16 %v4099
      %v4997 = vunpack.c.h.b16 %v4099
      %v4998 = vunpack.c.l.b16 %v4100
      %v4999 = vunpack.c.h.b16 %v4100
      %v5000 = vunpack.c.l.b16 %v4101
      %v5001 = vunpack.c.h.b16 %v4101
      %v5002 = vunpack.c.l.b16 %v4102
      %v5003 = vunpack.c.h.b16 %v4102
      %v5004 = vunpack.c.l.b16 %v4103
      %v5005 = vunpack.c.h.b16 %v4103
      %v5006 = vunpack.c.l.b16 %v4104
      %v5007 = vunpack.c.h.b16 %v4104
      %v5008 = vunpack.c.l.b16 %v4105
      %v5009 = vunpack.c.h.b16 %v4105
      %v5010 = vunpack.c.l.b16 %v4106
      %v5011 = vunpack.c.h.b16 %v4106
      %v5012 = vunpack.c.l.b16 %v4107
      %v5013 = vunpack.c.h.b16 %v4107
      %v5014 = vunpack.c.l.b16 %v4108
      %v5015 = vunpack.c.h.b16 %v4108
      %v5016 = vunpack.c.l.b16 %v4109
      %v5017 = vunpack.c.h.b16 %v4109
      %v5018 = vunpack.c.l.b16 %v4110
      %v5019 = vunpack.c.h.b16 %v4110
      %v5020 = vunpack.c.l.b16 %v4111
      %v5021 = vunpack.c.h.b16 %v4111
      %v5022 = vunpack.c.l.b16 %v4112
      %v5023 = vunpack.c.h.b16 %v4112
      %v5024 = vunpack.c.l.b16 %v4113
      %v5025 = vunpack.c.h.b16 %v4113
      %v5026 = vunpack.c.l.b16 %v4114
      %v5027 = vunpack.c.h.b16 %v4114
      %v5028 = vunpack.c.l.b16 %v4115
      %v5029 = vunpack.c.h.b16 %v4115
      %v5030 = vunpack.c.l.b16 %v4116
      %v5031 = vunpack.c.h.b16 %v4116
      %v5032 = vunpack.c.l.b16 %v4117
      %v5033 = vunpack.c.h.b16 %v4117
      %v5034 = vunpack.c.l.b16 %v4118
      %v5035 = vunpack.c.h.b16 %v4118
      %v5036 = vunpack.c.l.b16 %v4119
      %v5037 = vunpack.c.h.b16 %v4119
      %v5038 = vunpack.c.l.b16 %v4120
      %v5039 = vunpack.c.h.b16 %v4120
      %v5040 = vunpack.c.l.b16 %v4121
      %v5041 = vunpack.c.h.b16 %v4121
      %v5042 = vunpack.c.l.b16 %v4122
      %v5043 = vunpack.c.h.b16 %v4122
      %v5044 = vunpack.c.l.b16 %v4123
      %v5045 = vunpack.c.h.b16 %v4123
      %v5046 = vunpack.c.l.b16 %v4124
      %v5047 = vunpack.c.h.b16 %v4124
      %v5048 = vunpack.c.l.b16 %v4125
      %v5049 = vunpack.c.h.b16 %v4125
      %v5050 = vunpack.c.l.b16 %v4126
      %v5051 = vunpack.c.h.b16 %v4126
      %v5052 = vunpack.c.l.b16 %v4127
      %v5053 = vunpack.c.h.b16 %v4127
      %v5054 = vunpack.c.l.b16 %v4128
      %v5055 = vunpack.c.h.b16 %v4128
      %v5056 = vunpack.c.l.b16 %v4129
      %v5057 = vunpack.c.h.b16 %v4129
      %v5058 = vunpack.c.l.b16 %v4130
      %v5059 = vunpack.c.h.b16 %v4130
      %v5060 = vunpack.c.l.b16 %v4131
      %v5061 = vunpack.c.h.b16 %v4131
      %v5062 = vunpack.c.l.b16 %v4132
      %v5063 = vunpack.c.h.b16 %v4132
      %v5064 = vunpack.c.l.b16 %v4133
      %v5065 = vunpack.c.h.b16 %v4133
      %v5066 = vunpack.c.l.b16 %v4134
      %v5067 = vunpack.c.h.b16 %v4134
      %v5068 = vunpack.c.l.b16 %v4135
      %v5069 = vunpack.c.h.b16 %v4135
      %v5070 = vunpack.c.l.b16 %v4136
      %v5071 = vunpack.c.h.b16 %v4136
      %v5072 = vunpack.c.l.b16 %v4137
      %v5073 = vunpack.c.h.b16 %v4137
      %v5074 = vunpack.c.l.b16 %v4138
      %v5075 = vunpack.c.h.b16 %v4138
      %v5076 = vunpack.c.l.b16 %v4139
      %v5077 = vunpack.c.h.b16 %v4139
      %v5078 = vunpack.c.l.b16 %v4140
      %v5079 = vunpack.c.h.b16 %v4140
      %v5080 = vunpack.c.l.b16 %v4141
      %v5081 = vunpack.c.h.b16 %v4141
      %v5082 = vunpack.c.l.b16 %v4142
      %v5083 = vunpack.c.h.b16 %v4142
      %v5084 = vunpack.c.l.b16 %v4143
      %v5085 = vunpack.c.h.b16 %v4143
      %v5086 = vunpack.c.l.b16 %v4144
      %v5087 = vunpack.c.h.b16 %v4144
      %v5088 = vunpack.c.l.b16 %v4145
      %v5089 = vunpack.c.h.b16 %v4145
      %v5090 = vunpack.c.l.b16 %v4146
      %v5091 = vunpack.c.h.b16 %v4146
      %v5092 = vunpack.c.l.b16 %v4147
      %v5093 = vunpack.c.h.b16 %v4147
      %v5094 = vunpack.c.l.b16 %v4148
      %v5095 = vunpack.c.h.b16 %v4148
      %v5096 = vunpack.c.l.b16 %v4149
      %v5097 = vunpack.c.h.b16 %v4149
      %v5098 = vunpack.c.l.b16 %v4150
      %v5099 = vunpack.c.h.b16 %v4150
      %v5100 = vunpack.c.l.b16 %v4151
      %v5101 = vunpack.c.h.b16 %v4151
      %v5102 = vunpack.c.l.b16 %v4152
      %v5103 = vunpack.c.h.b16 %v4152
      %v5104 = vunpack.c.l.b16 %v4153
      %v5105 = vunpack.c.h.b16 %v4153
      %v5106 = vunpack.c.l.b16 %v4154
      %v5107 = vunpack.c.h.b16 %v4154
      %v5108 = vunpack.c.l.b16 %v4155
      %v5109 = vunpack.c.h.b16 %v4155
      %v5110 = vunpack.c.l.b16 %v4156
      %v5111 = vunpack.c.h.b16 %v4156
      %v5112 = vunpack.c.l.b16 %v4157
      %v5113 = vunpack.c.h.b16 %v4157
      %v5114 = vunpack.c.l.b16 %v4158
      %v5115 = vunpack.c.h.b16 %v4158
      %v5116 = vunpack.c.l.b16 %v4159
      %v5117 = vunpack.c.h.b16 %v4159
      %v5118 = vunpack.c.l.b16 %v4160
      %v5119 = vunpack.c.h.b16 %v4160
      %v5120 = vunpack.c.l.b16 %v4161
      %v5121 = vunpack.c.h.b16 %v4161
      %v5122 = vpack.c.b16 %v4486, %v4482
      %v5123 = vpack.c.b16 %v4487, %v4483
      %v5124 = vpack.c.b16 %v4488, %v4484
      %v5125 = vpack.c.b16 %v4489, %v4485
      %v5126 = vpack.c.b16 %v4494, %v4490
      %v5127 = vpack.c.b16 %v4495, %v4491
      %v5128 = vpack.c.b16 %v4496, %v4492
      %v5129 = vpack.c.b16 %v4497, %v4493
      %v5130 = vpack.c.b16 %v4502, %v4498
      %v5131 = vpack.c.b16 %v4503, %v4499
      %v5132 = vpack.c.b16 %v4504, %v4500
      %v5133 = vpack.c.b16 %v4505, %v4501
      %v5134 = vpack.c.b16 %v4510, %v4506
      %v5135 = vpack.c.b16 %v4511, %v4507
      %v5136 = vpack.c.b16 %v4512, %v4508
      %v5137 = vpack.c.b16 %v4513, %v4509
      %v5138 = vpack.c.b16 %v4518, %v4514
      %v5139 = vpack.c.b16 %v4519, %v4515
      %v5140 = vpack.c.b16 %v4520, %v4516
      %v5141 = vpack.c.b16 %v4521, %v4517
      %v5142 = vpack.c.b16 %v4526, %v4522
      %v5143 = vpack.c.b16 %v4527, %v4523
      %v5144 = vpack.c.b16 %v4528, %v4524
      %v5145 = vpack.c.b16 %v4529, %v4525
      %v5146 = vpack.c.b16 %v4534, %v4530
      %v5147 = vpack.c.b16 %v4535, %v4531
      %v5148 = vpack.c.b16 %v4536, %v4532
      %v5149 = vpack.c.b16 %v4537, %v4533
      %v5150 = vpack.c.b16 %v4542, %v4538
      %v5151 = vpack.c.b16 %v4543, %v4539
      %v5152 = vpack.c.b16 %v4544, %v4540
      %v5153 = vpack.c.b16 %v4545, %v4541
      %v5154 = vpack.c.b16 %v4550, %v4546
      %v5155 = vpack.c.b16 %v4551, %v4547
      %v5156 = vpack.c.b16 %v4552, %v4548
      %v5157 = vpack.c.b16 %v4553, %v4549
      %v5158 = vpack.c.b16 %v4558, %v4554
      %v5159 = vpack.c.b16 %v4559, %v4555
      %v5160 = vpack.c.b16 %v4560, %v4556
      %v5161 = vpack.c.b16 %v4561, %v4557
      %v5162 = vpack.c.b16 %v4566, %v4562
      %v5163 = vpack.c.b16 %v4567, %v4563
      %v5164 = vpack.c.b16 %v4568, %v4564
      %v5165 = vpack.c.b16 %v4569, %v4565
      %v5166 = vpack.c.b16 %v4574, %v4570
      %v5167 = vpack.c.b16 %v4575, %v4571
      %v5168 = vpack.c.b16 %v4576, %v4572
      %v5169 = vpack.c.b16 %v4577, %v4573
      %v5170 = vpack.c.b16 %v4582, %v4578
      %v5171 = vpack.c.b16 %v4583, %v4579
      %v5172 = vpack.c.b16 %v4584, %v4580
      %v5173 = vpack.c.b16 %v4585, %v4581
      %v5174 = vpack.c.b16 %v4590, %v4586
      %v5175 = vpack.c.b16 %v4591, %v4587
      %v5176 = vpack.c.b16 %v4592, %v4588
      %v5177 = vpack.c.b16 %v4593, %v4589
      %v5178 = vpack.c.b16 %v4598, %v4594
      %v5179 = vpack.c.b16 %v4599, %v4595
      %v5180 = vpack.c.b16 %v4600, %v4596
      %v5181 = vpack.c.b16 %v4601, %v4597
      %v5182 = vpack.c.b16 %v4606, %v4602
      %v5183 = vpack.c.b16 %v4607, %v4603
      %v5184 = vpack.c.b16 %v4608, %v4604
      %v5185 = vpack.c.b16 %v4609, %v4605
      %v5186 = vpack.c.b16 %v4614, %v4610
      %v5187 = vpack.c.b16 %v4615, %v4611
      %v5188 = vpack.c.b16 %v4616, %v4612
      %v5189 = vpack.c.b16 %v4617, %v4613
      %v5190 = vpack.c.b16 %v4622, %v4618
      %v5191 = vpack.c.b16 %v4623, %v4619
      %v5192 = vpack.c.b16 %v4624, %v4620
      %v5193 = vpack.c.b16 %v4625, %v4621
      %v5194 = vpack.c.b16 %v4630, %v4626
      %v5195 = vpack.c.b16 %v4631, %v4627
      %v5196 = vpack.c.b16 %v4632, %v4628
      %v5197 = vpack.c.b16 %v4633, %v4629
      %v5198 = vpack.c.b16 %v4638, %v4634
      %v5199 = vpack.c.b16 %v4639, %v4635
      %v5200 = vpack.c.b16 %v4640, %v4636
      %v5201 = vpack.c.b16 %v4641, %v4637
      %v5202 = vpack.c.b16 %v4646, %v4642
      %v5203 = vpack.c.b16 %v4647, %v4643
      %v5204 = vpack.c.b16 %v4648, %v4644
      %v5205 = vpack.c.b16 %v4649, %v4645
      %v5206 = vpack.c.b16 %v4654, %v4650
      %v5207 = vpack.c.b16 %v4655, %v4651
      %v5208 = vpack.c.b16 %v4656, %v4652
      %v5209 = vpack.c.b16 %v4657, %v4653
      %v5210 = vpack.c.b16 %v4662, %v4658
      %v5211 = vpack.c.b16 %v4663, %v4659
      %v5212 = vpack.c.b16 %v4664, %v4660
      %v5213 = vpack.c.b16 %v4665, %v4661
      %v5214 = vpack.c.b16 %v4670, %v4666
      %v5215 = vpack.c.b16 %v4671, %v4667
      %v5216 = vpack.c.b16 %v4672, %v4668
      %v5217 = vpack.c.b16 %v4673, %v4669
      %v5218 = vpack.c.b16 %v4678, %v4674
      %v5219 = vpack.c.b16 %v4679, %v4675
      %v5220 = vpack.c.b16 %v4680, %v4676
      %v5221 = vpack.c.b16 %v4681, %v4677
      %v5222 = vpack.c.b16 %v4686, %v4682
      %v5223 = vpack.c.b16 %v4687, %v4683
      %v5224 = vpack.c.b16 %v4688, %v4684
      %v5225 = vpack.c.b16 %v4689, %v4685
      %v5226 = vpack.c.b16 %v4694, %v4690
      %v5227 = vpack.c.b16 %v4695, %v4691
      %v5228 = vpack.c.b16 %v4696, %v4692
      %v5229 = vpack.c.b16 %v4697, %v4693
      %v5230 = vpack.c.b16 %v4702, %v4698
      %v5231 = vpack.c.b16 %v4703, %v4699
      %v5232 = vpack.c.b16 %v4704, %v4700
      %v5233 = vpack.c.b16 %v4705, %v4701
      %v5234 = vpack.c.b16 %v4710, %v4706
      %v5235 = vpack.c.b16 %v4711, %v4707
      %v5236 = vpack.c.b16 %v4712, %v4708
      %v5237 = vpack.c.b16 %v4713, %v4709
      %v5238 = vpack.c.b16 %v4718, %v4714
      %v5239 = vpack.c.b16 %v4719, %v4715
      %v5240 = vpack.c.b16 %v4720, %v4716
      %v5241 = vpack.c.b16 %v4721, %v4717
      %v5242 = vpack.c.b16 %v4726, %v4722
      %v5243 = vpack.c.b16 %v4727, %v4723
      %v5244 = vpack.c.b16 %v4728, %v4724
      %v5245 = vpack.c.b16 %v4729, %v4725
      %v5246 = vpack.c.b16 %v4734, %v4730
      %v5247 = vpack.c.b16 %v4735, %v4731
      %v5248 = vpack.c.b16 %v4736, %v4732
      %v5249 = vpack.c.b16 %v4737, %v4733
      %v5250 = vpack.c.b16 %v4742, %v4738
      %v5251 = vpack.c.b16 %v4743, %v4739
      %v5252 = vpack.c.b16 %v4744, %v4740
      %v5253 = vpack.c.b16 %v4745, %v4741
      %v5254 = vpack.c.b16 %v4750, %v4746
      %v5255 = vpack.c.b16 %v4751, %v4747
      %v5256 = vpack.c.b16 %v4752, %v4748
      %v5257 = vpack.c.b16 %v4753, %v4749
      %v5258 = vpack.c.b16 %v4758, %v4754
      %v5259 = vpack.c.b16 %v4759, %v4755
      %v5260 = vpack.c.b16 %v4760, %v4756
      %v5261 = vpack.c.b16 %v4761, %v4757
      %v5262 = vpack.c.b16 %v4766, %v4762
      %v5263 = vpack.c.b16 %v4767, %v4763
      %v5264 = vpack.c.b16 %v4768, %v4764
      %v5265 = vpack.c.b16 %v4769, %v4765
      %v5266 = vpack.c.b16 %v4774, %v4770
      %v5267 = vpack.c.b16 %v4775, %v4771
      %v5268 = vpack.c.b16 %v4776, %v4772
      %v5269 = vpack.c.b16 %v4777, %v4773
      %v5270 = vpack.c.b16 %v4782, %v4778
      %v5271 = vpack.c.b16 %v4783, %v4779
      %v5272 = vpack.c.b16 %v4784, %v4780
      %v5273 = vpack.c.b16 %v4785, %v4781
      %v5274 = vpack.c.b16 %v4790, %v4786
      %v5275 = vpack.c.b16 %v4791, %v4787
      %v5276 = vpack.c.b16 %v4792, %v4788
      %v5277 = vpack.c.b16 %v4793, %v4789
      %v5278 = vpack.c.b16 %v4798, %v4794
      %v5279 = vpack.c.b16 %v4799, %v4795
      %v5280 = vpack.c.b16 %v4800, %v4796
      %v5281 = vpack.c.b16 %v4801, %v4797
      %v5282 = vpack.c.b16 %v4806, %v4802
      %v5283 = vpack.c.b16 %v4807, %v4803
      %v5284 = vpack.c.b16 %v4808, %v4804
      %v5285 = vpack.c.b16 %v4809, %v4805
      %v5286 = vpack.c.b16 %v4814, %v4810
      %v5287 = vpack.c.b16 %v4815, %v4811
      %v5288 = vpack.c.b16 %v4816, %v4812
      %v5289 = vpack.c.b16 %v4817, %v4813
      %v5290 = vpack.c.b16 %v4822, %v4818
      %v5291 = vpack.c.b16 %v4823, %v4819
      %v5292 = vpack.c.b16 %v4824, %v4820
      %v5293 = vpack.c.b16 %v4825, %v4821
      %v5294 = vpack.c.b16 %v4830, %v4826
      %v5295 = vpack.c.b16 %v4831, %v4827
      %v5296 = vpack.c.b16 %v4832, %v4828
      %v5297 = vpack.c.b16 %v4833, %v4829
      %v5298 = vpack.c.b16 %v4838, %v4834
      %v5299 = vpack.c.b16 %v4839, %v4835
      %v5300 = vpack.c.b16 %v4840, %v4836
      %v5301 = vpack.c.b16 %v4841, %v4837
      %v5302 = vpack.c.b16 %v4846, %v4842
      %v5303 = vpack.c.b16 %v4847, %v4843
      %v5304 = vpack.c.b16 %v4848, %v4844
      %v5305 = vpack.c.b16 %v4849, %v4845
      %v5306 = vpack.c.b16 %v4854, %v4850
      %v5307 = vpack.c.b16 %v4855, %v4851
      %v5308 = vpack.c.b16 %v4856, %v4852
      %v5309 = vpack.c.b16 %v4857, %v4853
      %v5310 = vpack.c.b16 %v4862, %v4858
      %v5311 = vpack.c.b16 %v4863, %v4859
      %v5312 = vpack.c.b16 %v4864, %v4860
      %v5313 = vpack.c.b16 %v4865, %v4861
      %v5314 = vpack.c.b16 %v4870, %v4866
      %v5315 = vpack.c.b16 %v4871, %v4867
      %v5316 = vpack.c.b16 %v4872, %v4868
      %v5317 = vpack.c.b16 %v4873, %v4869
      %v5318 = vpack.c.b16 %v4878, %v4874
      %v5319 = vpack.c.b16 %v4879, %v4875
      %v5320 = vpack.c.b16 %v4880, %v4876
      %v5321 = vpack.c.b16 %v4881, %v4877
      %v5322 = vpack.c.b16 %v4886, %v4882
      %v5323 = vpack.c.b16 %v4887, %v4883
      %v5324 = vpack.c.b16 %v4888, %v4884
      %v5325 = vpack.c.b16 %v4889, %v4885
      %v5326 = vpack.c.b16 %v4894, %v4890
      %v5327 = vpack.c.b16 %v4895, %v4891
      %v5328 = vpack.c.b16 %v4896, %v4892
      %v5329 = vpack.c.b16 %v4897, %v4893
      %v5330 = vpack.c.b16 %v4902, %v4898
      %v5331 = vpack.c.b16 %v4903, %v4899
      %v5332 = vpack.c.b16 %v4904, %v4900
      %v5333 = vpack.c.b16 %v4905, %v4901
      %v5334 = vpack.c.b16 %v4910, %v4906
      %v5335 = vpack.c.b16 %v4911, %v4907
      %v5336 = vpack.c.b16 %v4912, %v4908
      %v5337 = vpack.c.b16 %v4913, %v4909
      %v5338 = vpack.c.b16 %v4918, %v4914
      %v5339 = vpack.c.b16 %v4919, %v4915
      %v5340 = vpack.c.b16 %v4920, %v4916
      %v5341 = vpack.c.b16 %v4921, %v4917
      %v5342 = vpack.c.b16 %v4926, %v4922
      %v5343 = vpack.c.b16 %v4927, %v4923
      %v5344 = vpack.c.b16 %v4928, %v4924
      %v5345 = vpack.c.b16 %v4929, %v4925
      %v5346 = vpack.c.b16 %v4934, %v4930
      %v5347 = vpack.c.b16 %v4935, %v4931
      %v5348 = vpack.c.b16 %v4936, %v4932
      %v5349 = vpack.c.b16 %v4937, %v4933
      %v5350 = vpack.c.b16 %v4942, %v4938
      %v5351 = vpack.c.b16 %v4943, %v4939
      %v5352 = vpack.c.b16 %v4944, %v4940
      %v5353 = vpack.c.b16 %v4945, %v4941
      %v5354 = vpack.c.b16 %v4950, %v4946
      %v5355 = vpack.c.b16 %v4951, %v4947
      %v5356 = vpack.c.b16 %v4952, %v4948
      %v5357 = vpack.c.b16 %v4953, %v4949
      %v5358 = vpack.c.b16 %v4958, %v4954
      %v5359 = vpack.c.b16 %v4959, %v4955
      %v5360 = vpack.c.b16 %v4960, %v4956
      %v5361 = vpack.c.b16 %v4961, %v4957
      %v5362 = vpack.c.b16 %v4966, %v4962
      %v5363 = vpack.c.b16 %v4967, %v4963
      %v5364 = vpack.c.b16 %v4968, %v4964
      %v5365 = vpack.c.b16 %v4969, %v4965
      %v5366 = vpack.c.b16 %v4974, %v4970
      %v5367 = vpack.c.b16 %v4975, %v4971
      %v5368 = vpack.c.b16 %v4976, %v4972
      %v5369 = vpack.c.b16 %v4977, %v4973
      %v5370 = vpack.c.b16 %v4982, %v4978
      %v5371 = vpack.c.b16 %v4983, %v4979
      %v5372 = vpack.c.b16 %v4984, %v4980
      %v5373 = vpack.c.b16 %v4985, %v4981
      %v5374 = vpack.c.b16 %v4990, %v4986
      %v5375 = vpack.c.b16 %v4991, %v4987
      %v5376 = vpack.c.b16 %v4992, %v4988
      %v5377 = vpack.c.b16 %v4993, %v4989
      %v5378 = vpack.c.b16 %v4998, %v4994
      %v5379 = vpack.c.b16 %v4999, %v4995
      %v5380 = vpack.c.b16 %v5000, %v4996
      %v5381 = vpack.c.b16 %v5001, %v4997
      %v5382 = vpack.c.b16 %v5006, %v5002
      %v5383 = vpack.c.b16 %v5007, %v5003
      %v5384 = vpack.c.b16 %v5008, %v5004
      %v5385 = vpack.c.b16 %v5009, %v5005
      %v5386 = vpack.c.b16 %v5014, %v5010
      %v5387 = vpack.c.b16 %v5015, %v5011
      %v5388 = vpack.c.b16 %v5016, %v5012
      %v5389 = vpack.c.b16 %v5017, %v5013
      %v5390 = vpack.c.b16 %v5022, %v5018
      %v5391 = vpack.c.b16 %v5023, %v5019
      %v5392 = vpack.c.b16 %v5024, %v5020
      %v5393 = vpack.c.b16 %v5025, %v5021
      %v5394 = vpack.c.b16 %v5030, %v5026
      %v5395 = vpack.c.b16 %v5031, %v5027
      %v5396 = vpack.c.b16 %v5032, %v5028
      %v5397 = vpack.c.b16 %v5033, %v5029
      %v5398 = vpack.c.b16 %v5038, %v5034
      %v5399 = vpack.c.b16 %v5039, %v5035
      %v5400 = vpack.c.b16 %v5040, %v5036
      %v5401 = vpack.c.b16 %v5041, %v5037
      %v5402 = vpack.c.b16 %v5046, %v5042
      %v5403 = vpack.c.b16 %v5047, %v5043
      %v5404 = vpack.c.b16 %v5048, %v5044
      %v5405 = vpack.c.b16 %v5049, %v5045
      %v5406 = vpack.c.b16 %v5054, %v5050
      %v5407 = vpack.c.b16 %v5055, %v5051
      %v5408 = vpack.c.b16 %v5056, %v5052
      %v5409 = vpack.c.b16 %v5057, %v5053
      %v5410 = vpack.c.b16 %v5062, %v5058
      %v5411 = vpack.c.b16 %v5063, %v5059
      %v5412 = vpack.c.b16 %v5064, %v5060
      %v5413 = vpack.c.b16 %v5065, %v5061
      %v5414 = vpack.c.b16 %v5070, %v5066
      %v5415 = vpack.c.b16 %v5071, %v5067
      %v5416 = vpack.c.b16 %v5072, %v5068
      %v5417 = vpack.c.b16 %v5073, %v5069
      %v5418 = vpack.c.b16 %v5078, %v5074
      %v5419 = vpack.c.b16 %v5079, %v5075
      %v5420 = vpack.c.b16 %v5080, %v5076
      %v5421 = vpack.c.b16 %v5081, %v5077
      %v5422 = vpack.c.b16 %v5086, %v5082
      %v5423 = vpack.c.b16 %v5087, %v5083
      %v5424 = vpack.c.b16 %v5088, %v5084
      %v5425 = vpack.c.b16 %v5089, %v5085
      %v5426 = vpack.c.b16 %v5094, %v5090
      %v5427 = vpack.c.b16 %v5095, %v5091
      %v5428 = vpack.c.b16 %v5096, %v5092
      %v5429 = vpack.c.b16 %v5097, %v5093
      %v5430 = vpack.c.b16 %v5102, %v5098
      %v5431 = vpack.c.b16 %v5103, %v5099
      %v5432 = vpack.c.b16 %v5104, %v5100
      %v5433 = vpack.c.b16 %v5105, %v5101
      %v5434 = vpack.c.b16 %v5110, %v5106
      %v5435 = vpack.c.b16 %v5111, %v5107
      %v5436 = vpack.c.b16 %v5112, %v5108
      %v5437 = vpack.c.b16 %v5113, %v5109
      %v5438 = vpack.c.b16 %v5118, %v5114
      %v5439 = vpack.c.b16 %v5119, %v5115
      %v5440 = vpack.c.b16 %v5120, %v5116
      %v5441 = vpack.c.b16 %v5121, %v5117
      %5762 = vmatprep.subr.bf16.mxu0 %v5151
      %5763 = vmatpush1.bf16.msra.mxu0 %v5150
      %5764 = vmatprep.subr.bf16.mxu0 %v5147
      %5765 = vmatpush1.bf16.msra.mxu0 %v5146
      %5766 = vmatprep.subr.bf16.mxu0 %v5143
      %5767 = vmatpush1.bf16.msra.mxu0 %v5142
      %5768 = vmatprep.subr.bf16.mxu0 %v5139
      %5769 = vmatpush1.bf16.msra.mxu0 %v5138
      %5770 = vmatprep.subr.bf16.mxu0 %v5135
      %5771 = vmatpush1.bf16.msra.mxu0 %v5134
      %5772 = vmatprep.subr.bf16.mxu0 %v5131
      %5773 = vmatpush1.bf16.msra.mxu0 %v5130
      %5774 = vmatprep.subr.bf16.mxu0 %v5127
      %5775 = vmatpush1.bf16.msra.mxu0 %v5126
      %5776 = vmatprep.subr.bf16.mxu0 %v5123
      %5777 = vmatpush1.bf16.msra.mxu0 %v5122
      %5778 = vmatprep.subr.bf16.mxu0 %v5183
      %5779 = vmatpush2.bf16.msra.mxu0 %v5182
      %5780 = vmatprep.subr.bf16.mxu0 %v5179
      %5781 = vmatpush2.bf16.msra.mxu0 %v5178
      %5782 = vmatprep.subr.bf16.mxu0 %v5175
      %5783 = vmatpush2.bf16.msra.mxu0 %v5174
      %5784 = vmatprep.subr.bf16.mxu0 %v5171
      %5785 = vmatpush2.bf16.msra.mxu0 %v5170
      %5786 = vmatprep.subr.bf16.mxu0 %v5167
      %5787 = vmatpush2.bf16.msra.mxu0 %v5166
      %5788 = vmatprep.subr.bf16.mxu0 %v5163
      %5789 = vmatpush2.bf16.msra.mxu0 %v5162
      %5790 = vmatprep.subr.bf16.mxu0 %v5159
      %5791 = vmatpush2.bf16.msra.mxu0 %v5158
      %5792 = vmatprep.subr.bf16.mxu0 %v5155
      %5793 = vmatpush2.bf16.msra.mxu0 %v5154
      %5794 = vmatprep.mubr.bf16.mxu0 %v3789
      %5795 = vmatmul.mubr.bf16.gmra.mxu0 %v3788
      %v5796 = vpop.f32.mrf.mxu0
      %v5797 = vadd.f32 0.0, %v5796
      %v5798 = vpop.f32.mrf.mxu0
      %v5799 = vadd.f32 0.0, %v5798
      %v5800 = vpop.f32.mrf.mxu0
      %v5801 = vadd.f32 0.0, %v5800
      %v5802 = vpop.f32.mrf.mxu0
      %v5803 = vadd.f32 0.0, %v5802
      %5804 = vmatprep.mubr.bf16.mxu0 %v3791
      %5805 = vmatmul.mubr.bf16.gmra.mxu0 %v3790
      %v5806 = vpop.f32.mrf.mxu0
      %v5807 = vpop.f32.mrf.mxu0
      %v5808 = vpop.f32.mrf.mxu0
      %v5809 = vpop.f32.mrf.mxu0
      %5810 = vmatprep.mubr.bf16.mxu0 %v3793
      %5811 = vmatmul.mubr.bf16.gmra.mxu0 %v3792
      %v5812 = vpop.f32.mrf.mxu0
      %v5813 = vadd.f32 0.0, %v5812
      %v5814 = vpop.f32.mrf.mxu0
      %v5815 = vadd.f32 0.0, %v5814
      %v5816 = vpop.f32.mrf.mxu0
      %v5817 = vadd.f32 0.0, %v5816
      %v5818 = vpop.f32.mrf.mxu0
      %v5819 = vadd.f32 0.0, %v5818
      %5820 = vmatprep.mubr.bf16.mxu0 %v3795
      %5821 = vmatmul.mubr.bf16.gmra.mxu0 %v3794
      %v5822 = vpop.f32.mrf.mxu0
      %v5823 = vpop.f32.mrf.mxu0
      %v5824 = vpop.f32.mrf.mxu0
      %v5825 = vpop.f32.mrf.mxu0
      %5826 = vmatprep.mubr.bf16.mxu0 %v3797
      %5827 = vmatmul.mubr.bf16.gmra.mxu0 %v3796
      %v5828 = vpop.f32.mrf.mxu0
      %v5829 = vadd.f32 0.0, %v5828
      %v5830 = vpop.f32.mrf.mxu0
      %v5831 = vadd.f32 0.0, %v5830
      %v5832 = vpop.f32.mrf.mxu0
      %v5833 = vadd.f32 0.0, %v5832
      %v5834 = vpop.f32.mrf.mxu0
      %v5835 = vadd.f32 0.0, %v5834
      %5836 = vmatprep.mubr.bf16.mxu0 %v3799
      %5837 = vmatmul.mubr.bf16.gmra.mxu0 %v3798
      %v5838 = vpop.f32.mrf.mxu0
      %v5839 = vpop.f32.mrf.mxu0
      %v5840 = vpop.f32.mrf.mxu0
      %v5841 = vpop.f32.mrf.mxu0
      %5842 = vmatprep.mubr.bf16.mxu0 %v3801
      %5843 = vmatmul.mubr.bf16.gmra.mxu0 %v3800
      %v5844 = vpop.f32.mrf.mxu0
      %v5845 = vadd.f32 0.0, %v5844
      %v5846 = vpop.f32.mrf.mxu0
      %v5847 = vadd.f32 0.0, %v5846
      %v5848 = vpop.f32.mrf.mxu0
      %v5849 = vadd.f32 0.0, %v5848
      %v5850 = vpop.f32.mrf.mxu0
      %v5851 = vadd.f32 0.0, %v5850
      %5852 = vmatprep.mubr.bf16.mxu0 %v3803
      %5853 = vmatmul.mubr.bf16.gmra.mxu0 %v3802
      %v5854 = vpop.f32.mrf.mxu0
      %v5855 = vpop.f32.mrf.mxu0
      %v5856 = vpop.f32.mrf.mxu0
      %v5857 = vpop.f32.mrf.mxu0
      %5858 = vmatprep.mubr.bf16.mxu0 %v3805
      %5859 = vmatmul.mubr.bf16.gmra.mxu0 %v3804
      %v5860 = vpop.f32.mrf.mxu0
      %v5861 = vadd.f32 0.0, %v5860
      %v5862 = vpop.f32.mrf.mxu0
      %v5863 = vadd.f32 0.0, %v5862
      %v5864 = vpop.f32.mrf.mxu0
      %v5865 = vadd.f32 0.0, %v5864
      %v5866 = vpop.f32.mrf.mxu0
      %v5867 = vadd.f32 0.0, %v5866
      %5868 = vmatprep.mubr.bf16.mxu0 %v3807
      %5869 = vmatmul.mubr.bf16.gmra.mxu0 %v3806
      %v5870 = vpop.f32.mrf.mxu0
      %v5871 = vpop.f32.mrf.mxu0
      %v5872 = vpop.f32.mrf.mxu0
      %v5873 = vpop.f32.mrf.mxu0
      %5874 = vmatprep.mubr.bf16.mxu0 %v3809
      %5875 = vmatmul.mubr.bf16.gmra.mxu0 %v3808
      %v5876 = vpop.f32.mrf.mxu0
      %v5877 = vadd.f32 0.0, %v5876
      %v5878 = vpop.f32.mrf.mxu0
      %v5879 = vadd.f32 0.0, %v5878
      %v5880 = vpop.f32.mrf.mxu0
      %v5881 = vadd.f32 0.0, %v5880
      %v5882 = vpop.f32.mrf.mxu0
      %v5883 = vadd.f32 0.0, %v5882
      %5884 = vmatprep.mubr.bf16.mxu0 %v3811
      %5885 = vmatmul.mubr.bf16.gmra.mxu0 %v3810
      %v5886 = vpop.f32.mrf.mxu0
      %v5887 = vpop.f32.mrf.mxu0
      %v5888 = vpop.f32.mrf.mxu0
      %v5889 = vpop.f32.mrf.mxu0
      %5890 = vmatprep.mubr.bf16.mxu0 %v3813
      %5891 = vmatmul.mubr.bf16.gmra.mxu0 %v3812
      %v5892 = vpop.f32.mrf.mxu0
      %v5893 = vadd.f32 0.0, %v5892
      %v5894 = vpop.f32.mrf.mxu0
      %v5895 = vadd.f32 0.0, %v5894
      %v5896 = vpop.f32.mrf.mxu0
      %v5897 = vadd.f32 0.0, %v5896
      %v5898 = vpop.f32.mrf.mxu0
      %v5899 = vadd.f32 0.0, %v5898
      %5900 = vmatprep.mubr.bf16.mxu0 %v3815
      %5901 = vmatmul.mubr.bf16.gmra.mxu0 %v3814
      %v5902 = vpop.f32.mrf.mxu0
      %v5903 = vpop.f32.mrf.mxu0
      %v5904 = vpop.f32.mrf.mxu0
      %v5905 = vpop.f32.mrf.mxu0
      %5906 = vmatprep.mubr.bf16.mxu0 %v3817
      %5907 = vmatmul.mubr.bf16.gmra.mxu0 %v3816
      %v5908 = vpop.f32.mrf.mxu0
      %v5909 = vadd.f32 0.0, %v5908
      %v5910 = vpop.f32.mrf.mxu0
      %v5911 = vadd.f32 0.0, %v5910
      %v5912 = vpop.f32.mrf.mxu0
      %v5913 = vadd.f32 0.0, %v5912
      %v5914 = vpop.f32.mrf.mxu0
      %v5915 = vadd.f32 0.0, %v5914
      %5916 = vmatprep.mubr.bf16.mxu0 %v3819
      %5917 = vmatmul.mubr.bf16.gmra.mxu0 %v3818
      %v5918 = vpop.f32.mrf.mxu0
      %v5919 = vpop.f32.mrf.mxu0
      %v5920 = vpop.f32.mrf.mxu0
      %v5921 = vpop.f32.mrf.mxu0
      %5922 = vmatprep.mubr.bf16.mxu0 %v3821
      %5923 = vmatmul.mubr.bf16.gmra.mxu0 %v3820
      %v5924 = vpop.f32.mrf.mxu0
      %v5925 = vadd.f32 0.0, %v5924
      %v5926 = vpop.f32.mrf.mxu0
      %v5927 = vadd.f32 0.0, %v5926
      %v5928 = vpop.f32.mrf.mxu0
      %v5929 = vadd.f32 0.0, %v5928
      %v5930 = vpop.f32.mrf.mxu0
      %v5931 = vadd.f32 0.0, %v5930
      %5932 = vmatprep.mubr.bf16.mxu0 %v3823
      %5933 = vmatmul.mubr.bf16.gmra.mxu0 %v3822
      %v5934 = vpop.f32.mrf.mxu0
      %v5935 = vpop.f32.mrf.mxu0
      %v5936 = vpop.f32.mrf.mxu0
      %v5937 = vpop.f32.mrf.mxu0
      %5938 = vmatprep.mubr.bf16.mxu0 %v3825
      %5939 = vmatmul.mubr.bf16.gmra.mxu0 %v3824
      %v5940 = vpop.f32.mrf.mxu0
      %v5941 = vadd.f32 0.0, %v5940
      %v5942 = vpop.f32.mrf.mxu0
      %v5943 = vadd.f32 0.0, %v5942
      %v5944 = vpop.f32.mrf.mxu0
      %v5945 = vadd.f32 0.0, %v5944
      %v5946 = vpop.f32.mrf.mxu0
      %v5947 = vadd.f32 0.0, %v5946
      %5948 = vdwg.mxu0
      %5949 = vmatprep.subr.bf16.mxu0 %v5215
      %5950 = vmatpush1.bf16.msra.mxu0 %v5214
      %5951 = vmatprep.subr.bf16.mxu0 %v5211
      %5952 = vmatpush1.bf16.msra.mxu0 %v5210
      %5953 = vmatprep.subr.bf16.mxu0 %v5207
      %5954 = vmatpush1.bf16.msra.mxu0 %v5206
      %5955 = vmatprep.subr.bf16.mxu0 %v5203
      %5956 = vmatpush1.bf16.msra.mxu0 %v5202
      %5957 = vmatprep.subr.bf16.mxu0 %v5199
      %5958 = vmatpush1.bf16.msra.mxu0 %v5198
      %5959 = vmatprep.subr.bf16.mxu0 %v5195
      %5960 = vmatpush1.bf16.msra.mxu0 %v5194
      %5961 = vmatprep.subr.bf16.mxu0 %v5191
      %5962 = vmatpush1.bf16.msra.mxu0 %v5190
      %5963 = vmatprep.subr.bf16.mxu0 %v5187
      %5964 = vmatpush1.bf16.msra.mxu0 %v5186
      %5965 = vmatprep.subr.bf16.mxu0 %v5247
      %5966 = vmatpush2.bf16.msra.mxu0 %v5246
      %5967 = vmatprep.subr.bf16.mxu0 %v5243
      %5968 = vmatpush2.bf16.msra.mxu0 %v5242
      %5969 = vmatprep.subr.bf16.mxu0 %v5239
      %5970 = vmatpush2.bf16.msra.mxu0 %v5238
      %5971 = vmatprep.subr.bf16.mxu0 %v5235
      %5972 = vmatpush2.bf16.msra.mxu0 %v5234
      %5973 = vmatprep.subr.bf16.mxu0 %v5231
      %5974 = vmatpush2.bf16.msra.mxu0 %v5230
      %5975 = vmatprep.subr.bf16.mxu0 %v5227
      %5976 = vmatpush2.bf16.msra.mxu0 %v5226
      %5977 = vmatprep.subr.bf16.mxu0 %v5223
      %5978 = vmatpush2.bf16.msra.mxu0 %v5222
      %5979 = vmatprep.subr.bf16.mxu0 %v5219
      %5980 = vmatpush2.bf16.msra.mxu0 %v5218
      %5981 = vmatprep.mubr.bf16.mxu0 %v3793
      %5982 = vmatmul.mubr.bf16.gmra.mxu0 %v3792
      %v5983 = vpop.f32.mrf.mxu0
      %v5984 = vadd.f32 %v5797, %v5983
      %v5985 = vpop.f32.mrf.mxu0
      %v5986 = vadd.f32 %v5799, %v5985
      %v5987 = vpop.f32.mrf.mxu0
      %v5988 = vadd.f32 %v5801, %v5987
      %v5989 = vpop.f32.mrf.mxu0
      %v5990 = vadd.f32 %v5803, %v5989
      %5991 = vmatprep.mubr.bf16.mxu0 %v3795
      %5992 = vmatmul.mubr.bf16.gmra.mxu0 %v3794
      %v5993 = vpop.f32.mrf.mxu0
      %v5994 = vpop.f32.mrf.mxu0
      %v5995 = vpop.f32.mrf.mxu0
      %v5996 = vpop.f32.mrf.mxu0
      %5997 = vmatprep.mubr.bf16.mxu0 %v3797
      %5998 = vmatmul.mubr.bf16.gmra.mxu0 %v3796
      %v5999 = vpop.f32.mrf.mxu0
      %v6000 = vadd.f32 %v5813, %v5999
      %v6001 = vpop.f32.mrf.mxu0
      %v6002 = vadd.f32 %v5815, %v6001
      %v6003 = vpop.f32.mrf.mxu0
      %v6004 = vadd.f32 %v5817, %v6003
      %v6005 = vpop.f32.mrf.mxu0
      %v6006 = vadd.f32 %v5819, %v6005
      %6007 = vmatprep.mubr.bf16.mxu0 %v3799
      %6008 = vmatmul.mubr.bf16.gmra.mxu0 %v3798
      %v6009 = vpop.f32.mrf.mxu0
      %v6010 = vpop.f32.mrf.mxu0
      %v6011 = vpop.f32.mrf.mxu0
      %v6012 = vpop.f32.mrf.mxu0
      %6013 = vmatprep.mubr.bf16.mxu0 %v3801
      %6014 = vmatmul.mubr.bf16.gmra.mxu0 %v3800
      %v6015 = vpop.f32.mrf.mxu0
      %v6016 = vadd.f32 %v5829, %v6015
      %v6017 = vpop.f32.mrf.mxu0
      %v6018 = vadd.f32 %v5831, %v6017
      %v6019 = vpop.f32.mrf.mxu0
      %v6020 = vadd.f32 %v5833, %v6019
      %v6021 = vpop.f32.mrf.mxu0
      %v6022 = vadd.f32 %v5835, %v6021
      %6023 = vmatprep.mubr.bf16.mxu0 %v3803
      %6024 = vmatmul.mubr.bf16.gmra.mxu0 %v3802
      %v6025 = vpop.f32.mrf.mxu0
      %v6026 = vpop.f32.mrf.mxu0
      %v6027 = vpop.f32.mrf.mxu0
      %v6028 = vpop.f32.mrf.mxu0
      %6029 = vmatprep.mubr.bf16.mxu0 %v3805
      %6030 = vmatmul.mubr.bf16.gmra.mxu0 %v3804
      %v6031 = vpop.f32.mrf.mxu0
      %v6032 = vadd.f32 %v5845, %v6031
      %v6033 = vpop.f32.mrf.mxu0
      %v6034 = vadd.f32 %v5847, %v6033
      %v6035 = vpop.f32.mrf.mxu0
      %v6036 = vadd.f32 %v5849, %v6035
      %v6037 = vpop.f32.mrf.mxu0
      %v6038 = vadd.f32 %v5851, %v6037
      %6039 = vmatprep.mubr.bf16.mxu0 %v3807
      %6040 = vmatmul.mubr.bf16.gmra.mxu0 %v3806
      %v6041 = vpop.f32.mrf.mxu0
      %v6042 = vpop.f32.mrf.mxu0
      %v6043 = vpop.f32.mrf.mxu0
      %v6044 = vpop.f32.mrf.mxu0
      %6045 = vmatprep.mubr.bf16.mxu0 %v3809
      %6046 = vmatmul.mubr.bf16.gmra.mxu0 %v3808
      %v6047 = vpop.f32.mrf.mxu0
      %v6048 = vadd.f32 %v5861, %v6047
      %v6049 = vpop.f32.mrf.mxu0
      %v6050 = vadd.f32 %v5863, %v6049
      %v6051 = vpop.f32.mrf.mxu0
      %v6052 = vadd.f32 %v5865, %v6051
      %v6053 = vpop.f32.mrf.mxu0
      %v6054 = vadd.f32 %v5867, %v6053
      %6055 = vmatprep.mubr.bf16.mxu0 %v3811
      %6056 = vmatmul.mubr.bf16.gmra.mxu0 %v3810
      %v6057 = vpop.f32.mrf.mxu0
      %v6058 = vpop.f32.mrf.mxu0
      %v6059 = vpop.f32.mrf.mxu0
      %v6060 = vpop.f32.mrf.mxu0
      %6061 = vmatprep.mubr.bf16.mxu0 %v3813
      %6062 = vmatmul.mubr.bf16.gmra.mxu0 %v3812
      %v6063 = vpop.f32.mrf.mxu0
      %v6064 = vadd.f32 %v5877, %v6063
      %v6065 = vpop.f32.mrf.mxu0
      %v6066 = vadd.f32 %v5879, %v6065
      %v6067 = vpop.f32.mrf.mxu0
      %v6068 = vadd.f32 %v5881, %v6067
      %v6069 = vpop.f32.mrf.mxu0
      %v6070 = vadd.f32 %v5883, %v6069
      %6071 = vmatprep.mubr.bf16.mxu0 %v3815
      %6072 = vmatmul.mubr.bf16.gmra.mxu0 %v3814
      %v6073 = vpop.f32.mrf.mxu0
      %v6074 = vpop.f32.mrf.mxu0
      %v6075 = vpop.f32.mrf.mxu0
      %v6076 = vpop.f32.mrf.mxu0
      %6077 = vmatprep.mubr.bf16.mxu0 %v3817
      %6078 = vmatmul.mubr.bf16.gmra.mxu0 %v3816
      %v6079 = vpop.f32.mrf.mxu0
      %v6080 = vadd.f32 %v5893, %v6079
      %v6081 = vpop.f32.mrf.mxu0
      %v6082 = vadd.f32 %v5895, %v6081
      %v6083 = vpop.f32.mrf.mxu0
      %v6084 = vadd.f32 %v5897, %v6083
      %v6085 = vpop.f32.mrf.mxu0
      %v6086 = vadd.f32 %v5899, %v6085
      %6087 = vmatprep.mubr.bf16.mxu0 %v3819
      %6088 = vmatmul.mubr.bf16.gmra.mxu0 %v3818
      %v6089 = vpop.f32.mrf.mxu0
      %v6090 = vpop.f32.mrf.mxu0
      %v6091 = vpop.f32.mrf.mxu0
      %v6092 = vpop.f32.mrf.mxu0
      %6093 = vmatprep.mubr.bf16.mxu0 %v3821
      %6094 = vmatmul.mubr.bf16.gmra.mxu0 %v3820
      %v6095 = vpop.f32.mrf.mxu0
      %v6096 = vadd.f32 %v5909, %v6095
      %v6097 = vpop.f32.mrf.mxu0
      %v6098 = vadd.f32 %v5911, %v6097
      %v6099 = vpop.f32.mrf.mxu0
      %v6100 = vadd.f32 %v5913, %v6099
      %v6101 = vpop.f32.mrf.mxu0
      %v6102 = vadd.f32 %v5915, %v6101
      %6103 = vmatprep.mubr.bf16.mxu0 %v3823
      %6104 = vmatmul.mubr.bf16.gmra.mxu0 %v3822
      %v6105 = vpop.f32.mrf.mxu0
      %v6106 = vpop.f32.mrf.mxu0
      %v6107 = vpop.f32.mrf.mxu0
      %v6108 = vpop.f32.mrf.mxu0
      %6109 = vmatprep.mubr.bf16.mxu0 %v3825
      %6110 = vmatmul.mubr.bf16.gmra.mxu0 %v3824
      %v6111 = vpop.f32.mrf.mxu0
      %v6112 = vadd.f32 %v5925, %v6111
      %v6113 = vpop.f32.mrf.mxu0
      %v6114 = vadd.f32 %v5927, %v6113
      %v6115 = vpop.f32.mrf.mxu0
      %v6116 = vadd.f32 %v5929, %v6115
      %v6117 = vpop.f32.mrf.mxu0
      %v6118 = vadd.f32 %v5931, %v6117
      %6119 = vmatprep.mubr.bf16.mxu0 %v3827
      %6120 = vmatmul.mubr.bf16.gmra.mxu0 %v3826
      %v6121 = vpop.f32.mrf.mxu0
      %v6122 = vpop.f32.mrf.mxu0
      %v6123 = vpop.f32.mrf.mxu0
      %v6124 = vpop.f32.mrf.mxu0
      %6125 = vmatprep.mubr.bf16.mxu0 %v3829
      %6126 = vmatmul.mubr.bf16.gmra.mxu0 %v3828
      %v6127 = vpop.f32.mrf.mxu0
      %v6128 = vadd.f32 %v5941, %v6127
      %v6129 = vpop.f32.mrf.mxu0
      %v6130 = vadd.f32 %v5943, %v6129
      %v6131 = vpop.f32.mrf.mxu0
      %v6132 = vadd.f32 %v5945, %v6131
      %v6133 = vpop.f32.mrf.mxu0
      %v6134 = vadd.f32 %v5947, %v6133
      %6135 = vdwg.mxu0
      %6136 = vmatprep.subr.bf16.mxu0 %v5279
      %6137 = vmatpush1.bf16.msra.mxu0 %v5278
      %6138 = vmatprep.subr.bf16.mxu0 %v5275
      %6139 = vmatpush1.bf16.msra.mxu0 %v5274
      %6140 = vmatprep.subr.bf16.mxu0 %v5271
      %6141 = vmatpush1.bf16.msra.mxu0 %v5270
      %6142 = vmatprep.subr.bf16.mxu0 %v5267
      %6143 = vmatpush1.bf16.msra.mxu0 %v5266
      %6144 = vmatprep.subr.bf16.mxu0 %v5263
      %6145 = vmatpush1.bf16.msra.mxu0 %v5262
      %6146 = vmatprep.subr.bf16.mxu0 %v5259
      %6147 = vmatpush1.bf16.msra.mxu0 %v5258
      %6148 = vmatprep.subr.bf16.mxu0 %v5255
      %6149 = vmatpush1.bf16.msra.mxu0 %v5254
      %6150 = vmatprep.subr.bf16.mxu0 %v5251
      %6151 = vmatpush1.bf16.msra.mxu0 %v5250
      %6152 = vmatprep.subr.bf16.mxu0 %v5311
      %6153 = vmatpush2.bf16.msra.mxu0 %v5310
      %6154 = vmatprep.subr.bf16.mxu0 %v5307
      %6155 = vmatpush2.bf16.msra.mxu0 %v5306
      %6156 = vmatprep.subr.bf16.mxu0 %v5303
      %6157 = vmatpush2.bf16.msra.mxu0 %v5302
      %6158 = vmatprep.subr.bf16.mxu0 %v5299
      %6159 = vmatpush2.bf16.msra.mxu0 %v5298
      %6160 = vmatprep.subr.bf16.mxu0 %v5295
      %6161 = vmatpush2.bf16.msra.mxu0 %v5294
      %6162 = vmatprep.subr.bf16.mxu0 %v5291
      %6163 = vmatpush2.bf16.msra.mxu0 %v5290
      %6164 = vmatprep.subr.bf16.mxu0 %v5287
      %6165 = vmatpush2.bf16.msra.mxu0 %v5286
      %6166 = vmatprep.subr.bf16.mxu0 %v5283
      %6167 = vmatpush2.bf16.msra.mxu0 %v5282
      %6168 = vmatprep.mubr.bf16.mxu0 %v3797
      %6169 = vmatmul.mubr.bf16.gmra.mxu0 %v3796
      %v6170 = vpop.f32.mrf.mxu0
      %v6171 = vadd.f32 %v5984, %v6170
      %v6172 = vpop.f32.mrf.mxu0
      %v6173 = vadd.f32 %v5986, %v6172
      %v6174 = vpop.f32.mrf.mxu0
      %v6175 = vadd.f32 %v5988, %v6174
      %v6176 = vpop.f32.mrf.mxu0
      %v6177 = vadd.f32 %v5990, %v6176
      %6178 = vmatprep.mubr.bf16.mxu0 %v3799
      %6179 = vmatmul.mubr.bf16.gmra.mxu0 %v3798
      %v6180 = vpop.f32.mrf.mxu0
      %v6181 = vpop.f32.mrf.mxu0
      %v6182 = vpop.f32.mrf.mxu0
      %v6183 = vpop.f32.mrf.mxu0
      %6184 = vmatprep.mubr.bf16.mxu0 %v3801
      %6185 = vmatmul.mubr.bf16.gmra.mxu0 %v3800
      %v6186 = vpop.f32.mrf.mxu0
      %v6187 = vadd.f32 %v6000, %v6186
      %v6188 = vpop.f32.mrf.mxu0
      %v6189 = vadd.f32 %v6002, %v6188
      %v6190 = vpop.f32.mrf.mxu0
      %v6191 = vadd.f32 %v6004, %v6190
      %v6192 = vpop.f32.mrf.mxu0
      %v6193 = vadd.f32 %v6006, %v6192
      %6194 = vmatprep.mubr.bf16.mxu0 %v3803
      %6195 = vmatmul.mubr.bf16.gmra.mxu0 %v3802
      %v6196 = vpop.f32.mrf.mxu0
      %v6197 = vpop.f32.mrf.mxu0
      %v6198 = vpop.f32.mrf.mxu0
      %v6199 = vpop.f32.mrf.mxu0
      %6200 = vmatprep.mubr.bf16.mxu0 %v3805
      %6201 = vmatmul.mubr.bf16.gmra.mxu0 %v3804
      %v6202 = vpop.f32.mrf.mxu0
      %v6203 = vadd.f32 %v6016, %v6202
      %v6204 = vpop.f32.mrf.mxu0
      %v6205 = vadd.f32 %v6018, %v6204
      %v6206 = vpop.f32.mrf.mxu0
      %v6207 = vadd.f32 %v6020, %v6206
      %v6208 = vpop.f32.mrf.mxu0
      %v6209 = vadd.f32 %v6022, %v6208
      %6210 = vmatprep.mubr.bf16.mxu0 %v3807
      %6211 = vmatmul.mubr.bf16.gmra.mxu0 %v3806
      %v6212 = vpop.f32.mrf.mxu0
      %v6213 = vpop.f32.mrf.mxu0
      %v6214 = vpop.f32.mrf.mxu0
      %v6215 = vpop.f32.mrf.mxu0
      %6216 = vmatprep.mubr.bf16.mxu0 %v3809
      %6217 = vmatmul.mubr.bf16.gmra.mxu0 %v3808
      %v6218 = vpop.f32.mrf.mxu0
      %v6219 = vadd.f32 %v6032, %v6218
      %v6220 = vpop.f32.mrf.mxu0
      %v6221 = vadd.f32 %v6034, %v6220
      %v6222 = vpop.f32.mrf.mxu0
      %v6223 = vadd.f32 %v6036, %v6222
      %v6224 = vpop.f32.mrf.mxu0
      %v6225 = vadd.f32 %v6038, %v6224
      %6226 = vmatprep.mubr.bf16.mxu0 %v3811
      %6227 = vmatmul.mubr.bf16.gmra.mxu0 %v3810
      %v6228 = vpop.f32.mrf.mxu0
      %v6229 = vpop.f32.mrf.mxu0
      %v6230 = vpop.f32.mrf.mxu0
      %v6231 = vpop.f32.mrf.mxu0
      %6232 = vmatprep.mubr.bf16.mxu0 %v3813
      %6233 = vmatmul.mubr.bf16.gmra.mxu0 %v3812
      %v6234 = vpop.f32.mrf.mxu0
      %v6235 = vadd.f32 %v6048, %v6234
      %v6236 = vpop.f32.mrf.mxu0
      %v6237 = vadd.f32 %v6050, %v6236
      %v6238 = vpop.f32.mrf.mxu0
      %v6239 = vadd.f32 %v6052, %v6238
      %v6240 = vpop.f32.mrf.mxu0
      %v6241 = vadd.f32 %v6054, %v6240
      %6242 = vmatprep.mubr.bf16.mxu0 %v3815
      %6243 = vmatmul.mubr.bf16.gmra.mxu0 %v3814
      %v6244 = vpop.f32.mrf.mxu0
      %v6245 = vpop.f32.mrf.mxu0
      %v6246 = vpop.f32.mrf.mxu0
      %v6247 = vpop.f32.mrf.mxu0
      %6248 = vmatprep.mubr.bf16.mxu0 %v3817
      %6249 = vmatmul.mubr.bf16.gmra.mxu0 %v3816
      %v6250 = vpop.f32.mrf.mxu0
      %v6251 = vadd.f32 %v6064, %v6250
      %v6252 = vpop.f32.mrf.mxu0
      %v6253 = vadd.f32 %v6066, %v6252
      %v6254 = vpop.f32.mrf.mxu0
      %v6255 = vadd.f32 %v6068, %v6254
      %v6256 = vpop.f32.mrf.mxu0
      %v6257 = vadd.f32 %v6070, %v6256
      %6258 = vmatprep.mubr.bf16.mxu0 %v3819
      %6259 = vmatmul.mubr.bf16.gmra.mxu0 %v3818
      %v6260 = vpop.f32.mrf.mxu0
      %v6261 = vpop.f32.mrf.mxu0
      %v6262 = vpop.f32.mrf.mxu0
      %v6263 = vpop.f32.mrf.mxu0
      %6264 = vmatprep.mubr.bf16.mxu0 %v3821
      %6265 = vmatmul.mubr.bf16.gmra.mxu0 %v3820
      %v6266 = vpop.f32.mrf.mxu0
      %v6267 = vadd.f32 %v6080, %v6266
      %v6268 = vpop.f32.mrf.mxu0
      %v6269 = vadd.f32 %v6082, %v6268
      %v6270 = vpop.f32.mrf.mxu0
      %v6271 = vadd.f32 %v6084, %v6270
      %v6272 = vpop.f32.mrf.mxu0
      %v6273 = vadd.f32 %v6086, %v6272
      %6274 = vmatprep.mubr.bf16.mxu0 %v3823
      %6275 = vmatmul.mubr.bf16.gmra.mxu0 %v3822
      %v6276 = vpop.f32.mrf.mxu0
      %v6277 = vpop.f32.mrf.mxu0
      %v6278 = vpop.f32.mrf.mxu0
      %v6279 = vpop.f32.mrf.mxu0
      %6280 = vmatprep.mubr.bf16.mxu0 %v3825
      %6281 = vmatmul.mubr.bf16.gmra.mxu0 %v3824
      %v6282 = vpop.f32.mrf.mxu0
      %v6283 = vadd.f32 %v6096, %v6282
      %v6284 = vpop.f32.mrf.mxu0
      %v6285 = vadd.f32 %v6098, %v6284
      %v6286 = vpop.f32.mrf.mxu0
      %v6287 = vadd.f32 %v6100, %v6286
      %v6288 = vpop.f32.mrf.mxu0
      %v6289 = vadd.f32 %v6102, %v6288
      %6290 = vmatprep.mubr.bf16.mxu0 %v3827
      %6291 = vmatmul.mubr.bf16.gmra.mxu0 %v3826
      %v6292 = vpop.f32.mrf.mxu0
      %v6293 = vpop.f32.mrf.mxu0
      %v6294 = vpop.f32.mrf.mxu0
      %v6295 = vpop.f32.mrf.mxu0
      %6296 = vmatprep.mubr.bf16.mxu0 %v3829
      %6297 = vmatmul.mubr.bf16.gmra.mxu0 %v3828
      %v6298 = vpop.f32.mrf.mxu0
      %v6299 = vadd.f32 %v6112, %v6298
      %v6300 = vpop.f32.mrf.mxu0
      %v6301 = vadd.f32 %v6114, %v6300
      %v6302 = vpop.f32.mrf.mxu0
      %v6303 = vadd.f32 %v6116, %v6302
      %v6304 = vpop.f32.mrf.mxu0
      %v6305 = vadd.f32 %v6118, %v6304
      %6306 = vmatprep.mubr.bf16.mxu0 %v3831
      %6307 = vmatmul.mubr.bf16.gmra.mxu0 %v3830
      %v6308 = vpop.f32.mrf.mxu0
      %v6309 = vpop.f32.mrf.mxu0
      %v6310 = vpop.f32.mrf.mxu0
      %v6311 = vpop.f32.mrf.mxu0
      %6312 = vmatprep.mubr.bf16.mxu0 %v3833
      %6313 = vmatmul.mubr.bf16.gmra.mxu0 %v3832
      %v6314 = vpop.f32.mrf.mxu0
      %v6315 = vadd.f32 %v6128, %v6314
      %v6316 = vpop.f32.mrf.mxu0
      %v6317 = vadd.f32 %v6130, %v6316
      %v6318 = vpop.f32.mrf.mxu0
      %v6319 = vadd.f32 %v6132, %v6318
      %v6320 = vpop.f32.mrf.mxu0
      %v6321 = vadd.f32 %v6134, %v6320
      %6322 = vdwg.mxu0
      %6323 = vmatprep.subr.bf16.mxu0 %v5343
      %6324 = vmatpush1.bf16.msra.mxu0 %v5342
      %6325 = vmatprep.subr.bf16.mxu0 %v5339
      %6326 = vmatpush1.bf16.msra.mxu0 %v5338
      %6327 = vmatprep.subr.bf16.mxu0 %v5335
      %6328 = vmatpush1.bf16.msra.mxu0 %v5334
      %6329 = vmatprep.subr.bf16.mxu0 %v5331
      %6330 = vmatpush1.bf16.msra.mxu0 %v5330
      %6331 = vmatprep.subr.bf16.mxu0 %v5327
      %6332 = vmatpush1.bf16.msra.mxu0 %v5326
      %6333 = vmatprep.subr.bf16.mxu0 %v5323
      %6334 = vmatpush1.bf16.msra.mxu0 %v5322
      %6335 = vmatprep.subr.bf16.mxu0 %v5319
      %6336 = vmatpush1.bf16.msra.mxu0 %v5318
      %6337 = vmatprep.subr.bf16.mxu0 %v5315
      %6338 = vmatpush1.bf16.msra.mxu0 %v5314
      %6339 = vmatprep.subr.bf16.mxu0 %v5375
      %6340 = vmatpush2.bf16.msra.mxu0 %v5374
      %6341 = vmatprep.subr.bf16.mxu0 %v5371
      %6342 = vmatpush2.bf16.msra.mxu0 %v5370
      %6343 = vmatprep.subr.bf16.mxu0 %v5367
      %6344 = vmatpush2.bf16.msra.mxu0 %v5366
      %6345 = vmatprep.subr.bf16.mxu0 %v5363
      %6346 = vmatpush2.bf16.msra.mxu0 %v5362
      %6347 = vmatprep.subr.bf16.mxu0 %v5359
      %6348 = vmatpush2.bf16.msra.mxu0 %v5358
      %6349 = vmatprep.subr.bf16.mxu0 %v5355
      %6350 = vmatpush2.bf16.msra.mxu0 %v5354
      %6351 = vmatprep.subr.bf16.mxu0 %v5351
      %6352 = vmatpush2.bf16.msra.mxu0 %v5350
      %6353 = vmatprep.subr.bf16.mxu0 %v5347
      %6354 = vmatpush2.bf16.msra.mxu0 %v5346
      %6355 = vmatprep.mubr.bf16.mxu0 %v3801
      %6356 = vmatmul.mubr.bf16.gmra.mxu0 %v3800
      %v6357 = vpop.f32.mrf.mxu0
      %v6358 = vadd.f32 %v6171, %v6357
      %v6359 = vpop.f32.mrf.mxu0
      %v6360 = vadd.f32 %v6173, %v6359
      %v6361 = vpop.f32.mrf.mxu0
      %v6362 = vadd.f32 %v6175, %v6361
      %v6363 = vpop.f32.mrf.mxu0
      %v6364 = vadd.f32 %v6177, %v6363
      %6365 = vmatprep.mubr.bf16.mxu0 %v3803
      %6366 = vmatmul.mubr.bf16.gmra.mxu0 %v3802
      %v6367 = vpop.f32.mrf.mxu0
      %v6368 = vpop.f32.mrf.mxu0
      %v6369 = vpop.f32.mrf.mxu0
      %v6370 = vpop.f32.mrf.mxu0
      %6371 = vmatprep.mubr.bf16.mxu0 %v3805
      %6372 = vmatmul.mubr.bf16.gmra.mxu0 %v3804
      %v6373 = vpop.f32.mrf.mxu0
      %v6374 = vadd.f32 %v6187, %v6373
      %v6375 = vpop.f32.mrf.mxu0
      %v6376 = vadd.f32 %v6189, %v6375
      %v6377 = vpop.f32.mrf.mxu0
      %v6378 = vadd.f32 %v6191, %v6377
      %v6379 = vpop.f32.mrf.mxu0
      %v6380 = vadd.f32 %v6193, %v6379
      %6381 = vmatprep.mubr.bf16.mxu0 %v3807
      %6382 = vmatmul.mubr.bf16.gmra.mxu0 %v3806
      %v6383 = vpop.f32.mrf.mxu0
      %v6384 = vpop.f32.mrf.mxu0
      %v6385 = vpop.f32.mrf.mxu0
      %v6386 = vpop.f32.mrf.mxu0
      %6387 = vmatprep.mubr.bf16.mxu0 %v3809
      %6388 = vmatmul.mubr.bf16.gmra.mxu0 %v3808
      %v6389 = vpop.f32.mrf.mxu0
      %v6390 = vadd.f32 %v6203, %v6389
      %v6391 = vpop.f32.mrf.mxu0
      %v6392 = vadd.f32 %v6205, %v6391
      %v6393 = vpop.f32.mrf.mxu0
      %v6394 = vadd.f32 %v6207, %v6393
      %v6395 = vpop.f32.mrf.mxu0
      %v6396 = vadd.f32 %v6209, %v6395
      %6397 = vmatprep.mubr.bf16.mxu0 %v3811
      %6398 = vmatmul.mubr.bf16.gmra.mxu0 %v3810
      %v6399 = vpop.f32.mrf.mxu0
      %v6400 = vpop.f32.mrf.mxu0
      %v6401 = vpop.f32.mrf.mxu0
      %v6402 = vpop.f32.mrf.mxu0
      %6403 = vmatprep.mubr.bf16.mxu0 %v3813
      %6404 = vmatmul.mubr.bf16.gmra.mxu0 %v3812
      %v6405 = vpop.f32.mrf.mxu0
      %v6406 = vadd.f32 %v6219, %v6405
      %v6407 = vpop.f32.mrf.mxu0
      %v6408 = vadd.f32 %v6221, %v6407
      %v6409 = vpop.f32.mrf.mxu0
      %v6410 = vadd.f32 %v6223, %v6409
      %v6411 = vpop.f32.mrf.mxu0
      %v6412 = vadd.f32 %v6225, %v6411
      %6413 = vmatprep.mubr.bf16.mxu0 %v3815
      %6414 = vmatmul.mubr.bf16.gmra.mxu0 %v3814
      %v6415 = vpop.f32.mrf.mxu0
      %v6416 = vpop.f32.mrf.mxu0
      %v6417 = vpop.f32.mrf.mxu0
      %v6418 = vpop.f32.mrf.mxu0
      %6419 = vmatprep.mubr.bf16.mxu0 %v3817
      %6420 = vmatmul.mubr.bf16.gmra.mxu0 %v3816
      %v6421 = vpop.f32.mrf.mxu0
      %v6422 = vadd.f32 %v6235, %v6421
      %v6423 = vpop.f32.mrf.mxu0
      %v6424 = vadd.f32 %v6237, %v6423
      %v6425 = vpop.f32.mrf.mxu0
      %v6426 = vadd.f32 %v6239, %v6425
      %v6427 = vpop.f32.mrf.mxu0
      %v6428 = vadd.f32 %v6241, %v6427
      %6429 = vmatprep.mubr.bf16.mxu0 %v3819
      %6430 = vmatmul.mubr.bf16.gmra.mxu0 %v3818
      %v6431 = vpop.f32.mrf.mxu0
      %v6432 = vpop.f32.mrf.mxu0
      %v6433 = vpop.f32.mrf.mxu0
      %v6434 = vpop.f32.mrf.mxu0
      %6435 = vmatprep.mubr.bf16.mxu0 %v3821
      %6436 = vmatmul.mubr.bf16.gmra.mxu0 %v3820
      %v6437 = vpop.f32.mrf.mxu0
      %v6438 = vadd.f32 %v6251, %v6437
      %v6439 = vpop.f32.mrf.mxu0
      %v6440 = vadd.f32 %v6253, %v6439
      %v6441 = vpop.f32.mrf.mxu0
      %v6442 = vadd.f32 %v6255, %v6441
      %v6443 = vpop.f32.mrf.mxu0
      %v6444 = vadd.f32 %v6257, %v6443
      %6445 = vmatprep.mubr.bf16.mxu0 %v3823
      %6446 = vmatmul.mubr.bf16.gmra.mxu0 %v3822
      %v6447 = vpop.f32.mrf.mxu0
      %v6448 = vpop.f32.mrf.mxu0
      %v6449 = vpop.f32.mrf.mxu0
      %v6450 = vpop.f32.mrf.mxu0
      %6451 = vmatprep.mubr.bf16.mxu0 %v3825
      %6452 = vmatmul.mubr.bf16.gmra.mxu0 %v3824
      %v6453 = vpop.f32.mrf.mxu0
      %v6454 = vadd.f32 %v6267, %v6453
      %v6455 = vpop.f32.mrf.mxu0
      %v6456 = vadd.f32 %v6269, %v6455
      %v6457 = vpop.f32.mrf.mxu0
      %v6458 = vadd.f32 %v6271, %v6457
      %v6459 = vpop.f32.mrf.mxu0
      %v6460 = vadd.f32 %v6273, %v6459
      %6461 = vmatprep.mubr.bf16.mxu0 %v3827
      %6462 = vmatmul.mubr.bf16.gmra.mxu0 %v3826
      %v6463 = vpop.f32.mrf.mxu0
      %v6464 = vpop.f32.mrf.mxu0
      %v6465 = vpop.f32.mrf.mxu0
      %v6466 = vpop.f32.mrf.mxu0
      %6467 = vmatprep.mubr.bf16.mxu0 %v3829
      %6468 = vmatmul.mubr.bf16.gmra.mxu0 %v3828
      %v6469 = vpop.f32.mrf.mxu0
      %v6470 = vadd.f32 %v6283, %v6469
      %v6471 = vpop.f32.mrf.mxu0
      %v6472 = vadd.f32 %v6285, %v6471
      %v6473 = vpop.f32.mrf.mxu0
      %v6474 = vadd.f32 %v6287, %v6473
      %v6475 = vpop.f32.mrf.mxu0
      %v6476 = vadd.f32 %v6289, %v6475
      %6477 = vmatprep.mubr.bf16.mxu0 %v3831
      %6478 = vmatmul.mubr.bf16.gmra.mxu0 %v3830
      %v6479 = vpop.f32.mrf.mxu0
      %v6480 = vpop.f32.mrf.mxu0
      %v6481 = vpop.f32.mrf.mxu0
      %v6482 = vpop.f32.mrf.mxu0
      %6483 = vmatprep.mubr.bf16.mxu0 %v3833
      %6484 = vmatmul.mubr.bf16.gmra.mxu0 %v3832
      %v6485 = vpop.f32.mrf.mxu0
      %v6486 = vadd.f32 %v6299, %v6485
      %v6487 = vpop.f32.mrf.mxu0
      %v6488 = vadd.f32 %v6301, %v6487
      %v6489 = vpop.f32.mrf.mxu0
      %v6490 = vadd.f32 %v6303, %v6489
      %v6491 = vpop.f32.mrf.mxu0
      %v6492 = vadd.f32 %v6305, %v6491
      %6493 = vmatprep.mubr.bf16.mxu0 %v3835
      %6494 = vmatmul.mubr.bf16.gmra.mxu0 %v3834
      %v6495 = vpop.f32.mrf.mxu0
      %v6496 = vpop.f32.mrf.mxu0
      %v6497 = vpop.f32.mrf.mxu0
      %v6498 = vpop.f32.mrf.mxu0
      %6499 = vmatprep.mubr.bf16.mxu0 %v3837
      %6500 = vmatmul.mubr.bf16.gmra.mxu0 %v3836
      %v6501 = vpop.f32.mrf.mxu0
      %v6502 = vadd.f32 %v6315, %v6501
      %v6503 = vpop.f32.mrf.mxu0
      %v6504 = vadd.f32 %v6317, %v6503
      %v6505 = vpop.f32.mrf.mxu0
      %v6506 = vadd.f32 %v6319, %v6505
      %v6507 = vpop.f32.mrf.mxu0
      %v6508 = vadd.f32 %v6321, %v6507
      %6509 = vdwg.mxu0
      %6510 = vmatprep.subr.bf16.mxu0 %v5407
      %6511 = vmatpush1.bf16.msra.mxu0 %v5406
      %6512 = vmatprep.subr.bf16.mxu0 %v5403
      %6513 = vmatpush1.bf16.msra.mxu0 %v5402
      %6514 = vmatprep.subr.bf16.mxu0 %v5399
      %6515 = vmatpush1.bf16.msra.mxu0 %v5398
      %6516 = vmatprep.subr.bf16.mxu0 %v5395
      %6517 = vmatpush1.bf16.msra.mxu0 %v5394
      %6518 = vmatprep.subr.bf16.mxu0 %v5391
      %6519 = vmatpush1.bf16.msra.mxu0 %v5390
      %6520 = vmatprep.subr.bf16.mxu0 %v5387
      %6521 = vmatpush1.bf16.msra.mxu0 %v5386
      %6522 = vmatprep.subr.bf16.mxu0 %v5383
      %6523 = vmatpush1.bf16.msra.mxu0 %v5382
      %6524 = vmatprep.subr.bf16.mxu0 %v5379
      %6525 = vmatpush1.bf16.msra.mxu0 %v5378
      %6526 = vmatprep.subr.bf16.mxu0 %v5439
      %6527 = vmatpush2.bf16.msra.mxu0 %v5438
      %6528 = vmatprep.subr.bf16.mxu0 %v5435
      %6529 = vmatpush2.bf16.msra.mxu0 %v5434
      %6530 = vmatprep.subr.bf16.mxu0 %v5431
      %6531 = vmatpush2.bf16.msra.mxu0 %v5430
      %6532 = vmatprep.subr.bf16.mxu0 %v5427
      %6533 = vmatpush2.bf16.msra.mxu0 %v5426
      %6534 = vmatprep.subr.bf16.mxu0 %v5423
      %6535 = vmatpush2.bf16.msra.mxu0 %v5422
      %6536 = vmatprep.subr.bf16.mxu0 %v5419
      %6537 = vmatpush2.bf16.msra.mxu0 %v5418
      %6538 = vmatprep.subr.bf16.mxu0 %v5415
      %6539 = vmatpush2.bf16.msra.mxu0 %v5414
      %6540 = vmatprep.subr.bf16.mxu0 %v5411
      %6541 = vmatpush2.bf16.msra.mxu0 %v5410
      %6542 = vmatprep.mubr.bf16.mxu0 %v3805
      %6543 = vmatmul.mubr.bf16.gmra.mxu0 %v3804
      %v6544 = vpop.f32.mrf.mxu0
      %v6545 = vadd.f32 %v6358, %v6544
      %v6546 = vpop.f32.mrf.mxu0
      %v6547 = vadd.f32 %v6360, %v6546
      %v6548 = vpop.f32.mrf.mxu0
      %v6549 = vadd.f32 %v6362, %v6548
      %v6550 = vpop.f32.mrf.mxu0
      %v6551 = vadd.f32 %v6364, %v6550
      %6552 = vmatprep.mubr.bf16.mxu0 %v3807
      %6553 = vmatmul.mubr.bf16.gmra.mxu0 %v3806
      %v6554 = vpop.f32.mrf.mxu0
      %v6555 = vpop.f32.mrf.mxu0
      %v6556 = vpop.f32.mrf.mxu0
      %v6557 = vpop.f32.mrf.mxu0
      %6558 = vmatprep.mubr.bf16.mxu0 %v3809
      %6559 = vmatmul.mubr.bf16.gmra.mxu0 %v3808
      %v6560 = vpop.f32.mrf.mxu0
      %v6561 = vadd.f32 %v6374, %v6560
      %v6562 = vpop.f32.mrf.mxu0
      %v6563 = vadd.f32 %v6376, %v6562
      %v6564 = vpop.f32.mrf.mxu0
      %v6565 = vadd.f32 %v6378, %v6564
      %v6566 = vpop.f32.mrf.mxu0
      %v6567 = vadd.f32 %v6380, %v6566
      %6568 = vmatprep.mubr.bf16.mxu0 %v3811
      %6569 = vmatmul.mubr.bf16.gmra.mxu0 %v3810
      %v6570 = vpop.f32.mrf.mxu0
      %v6571 = vpop.f32.mrf.mxu0
      %v6572 = vpop.f32.mrf.mxu0
      %v6573 = vpop.f32.mrf.mxu0
      %6574 = vmatprep.mubr.bf16.mxu0 %v3813
      %6575 = vmatmul.mubr.bf16.gmra.mxu0 %v3812
      %v6576 = vpop.f32.mrf.mxu0
      %v6577 = vadd.f32 %v6390, %v6576
      %v6578 = vpop.f32.mrf.mxu0
      %v6579 = vadd.f32 %v6392, %v6578
      %v6580 = vpop.f32.mrf.mxu0
      %v6581 = vadd.f32 %v6394, %v6580
      %v6582 = vpop.f32.mrf.mxu0
      %v6583 = vadd.f32 %v6396, %v6582
      %6584 = vmatprep.mubr.bf16.mxu0 %v3815
      %6585 = vmatmul.mubr.bf16.gmra.mxu0 %v3814
      %v6586 = vpop.f32.mrf.mxu0
      %v6587 = vpop.f32.mrf.mxu0
      %v6588 = vpop.f32.mrf.mxu0
      %v6589 = vpop.f32.mrf.mxu0
      %6590 = vmatprep.mubr.bf16.mxu0 %v3817
      %6591 = vmatmul.mubr.bf16.gmra.mxu0 %v3816
      %v6592 = vpop.f32.mrf.mxu0
      %v6593 = vadd.f32 %v6406, %v6592
      %v6594 = vpop.f32.mrf.mxu0
      %v6595 = vadd.f32 %v6408, %v6594
      %v6596 = vpop.f32.mrf.mxu0
      %v6597 = vadd.f32 %v6410, %v6596
      %v6598 = vpop.f32.mrf.mxu0
      %v6599 = vadd.f32 %v6412, %v6598
      %6600 = vmatprep.mubr.bf16.mxu0 %v3819
      %6601 = vmatmul.mubr.bf16.gmra.mxu0 %v3818
      %v6602 = vpop.f32.mrf.mxu0
      %v6603 = vpop.f32.mrf.mxu0
      %v6604 = vpop.f32.mrf.mxu0
      %v6605 = vpop.f32.mrf.mxu0
      %6606 = vmatprep.mubr.bf16.mxu0 %v3821
      %6607 = vmatmul.mubr.bf16.gmra.mxu0 %v3820
      %v6608 = vpop.f32.mrf.mxu0
      %v6609 = vadd.f32 %v6422, %v6608
      %v6610 = vpop.f32.mrf.mxu0
      %v6611 = vadd.f32 %v6424, %v6610
      %v6612 = vpop.f32.mrf.mxu0
      %v6613 = vadd.f32 %v6426, %v6612
      %v6614 = vpop.f32.mrf.mxu0
      %v6615 = vadd.f32 %v6428, %v6614
      %6616 = vmatprep.mubr.bf16.mxu0 %v3823
      %6617 = vmatmul.mubr.bf16.gmra.mxu0 %v3822
      %v6618 = vpop.f32.mrf.mxu0
      %v6619 = vpop.f32.mrf.mxu0
      %v6620 = vpop.f32.mrf.mxu0
      %v6621 = vpop.f32.mrf.mxu0
      %6622 = vmatprep.mubr.bf16.mxu0 %v3825
      %6623 = vmatmul.mubr.bf16.gmra.mxu0 %v3824
      %v6624 = vpop.f32.mrf.mxu0
      %v6625 = vadd.f32 %v6438, %v6624
      %v6626 = vpop.f32.mrf.mxu0
      %v6627 = vadd.f32 %v6440, %v6626
      %v6628 = vpop.f32.mrf.mxu0
      %v6629 = vadd.f32 %v6442, %v6628
      %v6630 = vpop.f32.mrf.mxu0
      %v6631 = vadd.f32 %v6444, %v6630
      %6632 = vmatprep.mubr.bf16.mxu0 %v3827
      %6633 = vmatmul.mubr.bf16.gmra.mxu0 %v3826
      %v6634 = vpop.f32.mrf.mxu0
      %v6635 = vpop.f32.mrf.mxu0
      %v6636 = vpop.f32.mrf.mxu0
      %v6637 = vpop.f32.mrf.mxu0
      %6638 = vmatprep.mubr.bf16.mxu0 %v3829
      %6639 = vmatmul.mubr.bf16.gmra.mxu0 %v3828
      %v6640 = vpop.f32.mrf.mxu0
      %v6641 = vadd.f32 %v6454, %v6640
      %v6642 = vpop.f32.mrf.mxu0
      %v6643 = vadd.f32 %v6456, %v6642
      %v6644 = vpop.f32.mrf.mxu0
      %v6645 = vadd.f32 %v6458, %v6644
      %v6646 = vpop.f32.mrf.mxu0
      %v6647 = vadd.f32 %v6460, %v6646
      %6648 = vmatprep.mubr.bf16.mxu0 %v3831
      %6649 = vmatmul.mubr.bf16.gmra.mxu0 %v3830
      %v6650 = vpop.f32.mrf.mxu0
      %v6651 = vpop.f32.mrf.mxu0
      %v6652 = vpop.f32.mrf.mxu0
      %v6653 = vpop.f32.mrf.mxu0
      %6654 = vmatprep.mubr.bf16.mxu0 %v3833
      %6655 = vmatmul.mubr.bf16.gmra.mxu0 %v3832
      %v6656 = vpop.f32.mrf.mxu0
      %v6657 = vadd.f32 %v6470, %v6656
      %v6658 = vpop.f32.mrf.mxu0
      %v6659 = vadd.f32 %v6472, %v6658
      %v6660 = vpop.f32.mrf.mxu0
      %v6661 = vadd.f32 %v6474, %v6660
      %v6662 = vpop.f32.mrf.mxu0
      %v6663 = vadd.f32 %v6476, %v6662
      %6664 = vmatprep.mubr.bf16.mxu0 %v3835
      %6665 = vmatmul.mubr.bf16.gmra.mxu0 %v3834
      %v6666 = vpop.f32.mrf.mxu0
      %v6667 = vpop.f32.mrf.mxu0
      %v6668 = vpop.f32.mrf.mxu0
      %v6669 = vpop.f32.mrf.mxu0
      %6670 = vmatprep.mubr.bf16.mxu0 %v3837
      %6671 = vmatmul.mubr.bf16.gmra.mxu0 %v3836
      %v6672 = vpop.f32.mrf.mxu0
      %v6673 = vadd.f32 %v6486, %v6672
      %v6674 = vpop.f32.mrf.mxu0
      %v6675 = vadd.f32 %v6488, %v6674
      %v6676 = vpop.f32.mrf.mxu0
      %v6677 = vadd.f32 %v6490, %v6676
      %v6678 = vpop.f32.mrf.mxu0
      %v6679 = vadd.f32 %v6492, %v6678
      %6680 = vmatprep.mubr.bf16.mxu0 %v3839
      %6681 = vmatmul.mubr.bf16.gmra.mxu0 %v3838
      %v6682 = vpop.f32.mrf.mxu0
      %v6683 = vpop.f32.mrf.mxu0
      %v6684 = vpop.f32.mrf.mxu0
      %v6685 = vpop.f32.mrf.mxu0
      %6686 = vmatprep.mubr.bf16.mxu0 %v3841
      %6687 = vmatmul.mubr.bf16.gmra.mxu0 %v3840
      %v6688 = vpop.f32.mrf.mxu0
      %v6689 = vadd.f32 %v6502, %v6688
      %v6690 = vpop.f32.mrf.mxu0
      %v6691 = vadd.f32 %v6504, %v6690
      %v6692 = vpop.f32.mrf.mxu0
      %v6693 = vadd.f32 %v6506, %v6692
      %v6694 = vpop.f32.mrf.mxu0
      %v6695 = vadd.f32 %v6508, %v6694
      %6696 = vdwg.mxu0
      %6697 = vmatprep.subr.bf16.mxu0 %v5153
      %6698 = vmatpush1.bf16.msra.mxu0 %v5152
      %6699 = vmatprep.subr.bf16.mxu0 %v5149
      %6700 = vmatpush1.bf16.msra.mxu0 %v5148
      %6701 = vmatprep.subr.bf16.mxu0 %v5145
      %6702 = vmatpush1.bf16.msra.mxu0 %v5144
      %6703 = vmatprep.subr.bf16.mxu0 %v5141
      %6704 = vmatpush1.bf16.msra.mxu0 %v5140
      %6705 = vmatprep.subr.bf16.mxu0 %v5137
      %6706 = vmatpush1.bf16.msra.mxu0 %v5136
      %6707 = vmatprep.subr.bf16.mxu0 %v5133
      %6708 = vmatpush1.bf16.msra.mxu0 %v5132
      %6709 = vmatprep.subr.bf16.mxu0 %v5129
      %6710 = vmatpush1.bf16.msra.mxu0 %v5128
      %6711 = vmatprep.subr.bf16.mxu0 %v5125
      %6712 = vmatpush1.bf16.msra.mxu0 %v5124
      %6713 = vmatprep.subr.bf16.mxu0 %v5185
      %6714 = vmatpush2.bf16.msra.mxu0 %v5184
      %6715 = vmatprep.subr.bf16.mxu0 %v5181
      %6716 = vmatpush2.bf16.msra.mxu0 %v5180
      %6717 = vmatprep.subr.bf16.mxu0 %v5177
      %6718 = vmatpush2.bf16.msra.mxu0 %v5176
      %6719 = vmatprep.subr.bf16.mxu0 %v5173
      %6720 = vmatpush2.bf16.msra.mxu0 %v5172
      %6721 = vmatprep.subr.bf16.mxu0 %v5169
      %6722 = vmatpush2.bf16.msra.mxu0 %v5168
      %6723 = vmatprep.subr.bf16.mxu0 %v5165
      %6724 = vmatpush2.bf16.msra.mxu0 %v5164
      %6725 = vmatprep.subr.bf16.mxu0 %v5161
      %6726 = vmatpush2.bf16.msra.mxu0 %v5160
      %6727 = vmatprep.subr.bf16.mxu0 %v5157
      %6728 = vmatpush2.bf16.msra.mxu0 %v5156
      %6729 = vmatprep.mubr.bf16.mxu0 %v3789
      %6730 = vmatmul.mubr.bf16.gmra.mxu0 %v3788
      %v6731 = vpop.f32.mrf.mxu0
      %v6732 = vadd.f32 0.0, %v6731
      %v6733 = vpop.f32.mrf.mxu0
      %v6734 = vadd.f32 0.0, %v6733
      %v6735 = vpop.f32.mrf.mxu0
      %v6736 = vadd.f32 0.0, %v6735
      %v6737 = vpop.f32.mrf.mxu0
      %v6738 = vadd.f32 0.0, %v6737
      %6739 = vmatprep.mubr.bf16.mxu0 %v3791
      %6740 = vmatmul.mubr.bf16.gmra.mxu0 %v3790
      %v6741 = vpop.f32.mrf.mxu0
      %v6742 = vpop.f32.mrf.mxu0
      %v6743 = vpop.f32.mrf.mxu0
      %v6744 = vpop.f32.mrf.mxu0
      %6745 = vmatprep.mubr.bf16.mxu0 %v3793
      %6746 = vmatmul.mubr.bf16.gmra.mxu0 %v3792
      %v6747 = vpop.f32.mrf.mxu0
      %v6748 = vadd.f32 0.0, %v6747
      %v6749 = vpop.f32.mrf.mxu0
      %v6750 = vadd.f32 0.0, %v6749
      %v6751 = vpop.f32.mrf.mxu0
      %v6752 = vadd.f32 0.0, %v6751
      %v6753 = vpop.f32.mrf.mxu0
      %v6754 = vadd.f32 0.0, %v6753
      %6755 = vmatprep.mubr.bf16.mxu0 %v3795
      %6756 = vmatmul.mubr.bf16.gmra.mxu0 %v3794
      %v6757 = vpop.f32.mrf.mxu0
      %v6758 = vpop.f32.mrf.mxu0
      %v6759 = vpop.f32.mrf.mxu0
      %v6760 = vpop.f32.mrf.mxu0
      %6761 = vmatprep.mubr.bf16.mxu0 %v3797
      %6762 = vmatmul.mubr.bf16.gmra.mxu0 %v3796
      %v6763 = vpop.f32.mrf.mxu0
      %v6764 = vadd.f32 0.0, %v6763
      %v6765 = vpop.f32.mrf.mxu0
      %v6766 = vadd.f32 0.0, %v6765
      %v6767 = vpop.f32.mrf.mxu0
      %v6768 = vadd.f32 0.0, %v6767
      %v6769 = vpop.f32.mrf.mxu0
      %v6770 = vadd.f32 0.0, %v6769
      %6771 = vmatprep.mubr.bf16.mxu0 %v3799
      %6772 = vmatmul.mubr.bf16.gmra.mxu0 %v3798
      %v6773 = vpop.f32.mrf.mxu0
      %v6774 = vpop.f32.mrf.mxu0
      %v6775 = vpop.f32.mrf.mxu0
      %v6776 = vpop.f32.mrf.mxu0
      %6777 = vmatprep.mubr.bf16.mxu0 %v3801
      %6778 = vmatmul.mubr.bf16.gmra.mxu0 %v3800
      %v6779 = vpop.f32.mrf.mxu0
      %v6780 = vadd.f32 0.0, %v6779
      %v6781 = vpop.f32.mrf.mxu0
      %v6782 = vadd.f32 0.0, %v6781
      %v6783 = vpop.f32.mrf.mxu0
      %v6784 = vadd.f32 0.0, %v6783
      %v6785 = vpop.f32.mrf.mxu0
      %v6786 = vadd.f32 0.0, %v6785
      %6787 = vmatprep.mubr.bf16.mxu0 %v3803
      %6788 = vmatmul.mubr.bf16.gmra.mxu0 %v3802
      %v6789 = vpop.f32.mrf.mxu0
      %v6790 = vpop.f32.mrf.mxu0
      %v6791 = vpop.f32.mrf.mxu0
      %v6792 = vpop.f32.mrf.mxu0
      %6793 = vmatprep.mubr.bf16.mxu0 %v3805
      %6794 = vmatmul.mubr.bf16.gmra.mxu0 %v3804
      %v6795 = vpop.f32.mrf.mxu0
      %v6796 = vadd.f32 0.0, %v6795
      %v6797 = vpop.f32.mrf.mxu0
      %v6798 = vadd.f32 0.0, %v6797
      %v6799 = vpop.f32.mrf.mxu0
      %v6800 = vadd.f32 0.0, %v6799
      %v6801 = vpop.f32.mrf.mxu0
      %v6802 = vadd.f32 0.0, %v6801
      %6803 = vmatprep.mubr.bf16.mxu0 %v3807
      %6804 = vmatmul.mubr.bf16.gmra.mxu0 %v3806
      %v6805 = vpop.f32.mrf.mxu0
      %v6806 = vpop.f32.mrf.mxu0
      %v6807 = vpop.f32.mrf.mxu0
      %v6808 = vpop.f32.mrf.mxu0
      %6809 = vmatprep.mubr.bf16.mxu0 %v3809
      %6810 = vmatmul.mubr.bf16.gmra.mxu0 %v3808
      %v6811 = vpop.f32.mrf.mxu0
      %v6812 = vadd.f32 0.0, %v6811
      %v6813 = vpop.f32.mrf.mxu0
      %v6814 = vadd.f32 0.0, %v6813
      %v6815 = vpop.f32.mrf.mxu0
      %v6816 = vadd.f32 0.0, %v6815
      %v6817 = vpop.f32.mrf.mxu0
      %v6818 = vadd.f32 0.0, %v6817
      %6819 = vmatprep.mubr.bf16.mxu0 %v3811
      %6820 = vmatmul.mubr.bf16.gmra.mxu0 %v3810
      %v6821 = vpop.f32.mrf.mxu0
      %v6822 = vpop.f32.mrf.mxu0
      %v6823 = vpop.f32.mrf.mxu0
      %v6824 = vpop.f32.mrf.mxu0
      %6825 = vmatprep.mubr.bf16.mxu0 %v3813
      %6826 = vmatmul.mubr.bf16.gmra.mxu0 %v3812
      %v6827 = vpop.f32.mrf.mxu0
      %v6828 = vadd.f32 0.0, %v6827
      %v6829 = vpop.f32.mrf.mxu0
      %v6830 = vadd.f32 0.0, %v6829
      %v6831 = vpop.f32.mrf.mxu0
      %v6832 = vadd.f32 0.0, %v6831
      %v6833 = vpop.f32.mrf.mxu0
      %v6834 = vadd.f32 0.0, %v6833
      %6835 = vmatprep.mubr.bf16.mxu0 %v3815
      %6836 = vmatmul.mubr.bf16.gmra.mxu0 %v3814
      %v6837 = vpop.f32.mrf.mxu0
      %v6838 = vpop.f32.mrf.mxu0
      %v6839 = vpop.f32.mrf.mxu0
      %v6840 = vpop.f32.mrf.mxu0
      %6841 = vmatprep.mubr.bf16.mxu0 %v3817
      %6842 = vmatmul.mubr.bf16.gmra.mxu0 %v3816
      %v6843 = vpop.f32.mrf.mxu0
      %v6844 = vadd.f32 0.0, %v6843
      %v6845 = vpop.f32.mrf.mxu0
      %v6846 = vadd.f32 0.0, %v6845
      %v6847 = vpop.f32.mrf.mxu0
      %v6848 = vadd.f32 0.0, %v6847
      %v6849 = vpop.f32.mrf.mxu0
      %v6850 = vadd.f32 0.0, %v6849
      %6851 = vmatprep.mubr.bf16.mxu0 %v3819
      %6852 = vmatmul.mubr.bf16.gmra.mxu0 %v3818
      %v6853 = vpop.f32.mrf.mxu0
      %v6854 = vpop.f32.mrf.mxu0
      %v6855 = vpop.f32.mrf.mxu0
      %v6856 = vpop.f32.mrf.mxu0
      %6857 = vmatprep.mubr.bf16.mxu0 %v3821
      %6858 = vmatmul.mubr.bf16.gmra.mxu0 %v3820
      %v6859 = vpop.f32.mrf.mxu0
      %v6860 = vadd.f32 0.0, %v6859
      %v6861 = vpop.f32.mrf.mxu0
      %v6862 = vadd.f32 0.0, %v6861
      %v6863 = vpop.f32.mrf.mxu0
      %v6864 = vadd.f32 0.0, %v6863
      %v6865 = vpop.f32.mrf.mxu0
      %v6866 = vadd.f32 0.0, %v6865
      %6867 = vmatprep.mubr.bf16.mxu0 %v3823
      %6868 = vmatmul.mubr.bf16.gmra.mxu0 %v3822
      %v6869 = vpop.f32.mrf.mxu0
      %v6870 = vpop.f32.mrf.mxu0
      %v6871 = vpop.f32.mrf.mxu0
      %v6872 = vpop.f32.mrf.mxu0
      %6873 = vmatprep.mubr.bf16.mxu0 %v3825
      %6874 = vmatmul.mubr.bf16.gmra.mxu0 %v3824
      %v6875 = vpop.f32.mrf.mxu0
      %v6876 = vadd.f32 0.0, %v6875
      %v6877 = vpop.f32.mrf.mxu0
      %v6878 = vadd.f32 0.0, %v6877
      %v6879 = vpop.f32.mrf.mxu0
      %v6880 = vadd.f32 0.0, %v6879
      %v6881 = vpop.f32.mrf.mxu0
      %v6882 = vadd.f32 0.0, %v6881
      %6883 = vdwg.mxu0
      %6884 = vmatprep.subr.bf16.mxu0 %v5217
      %6885 = vmatpush1.bf16.msra.mxu0 %v5216
      %6886 = vmatprep.subr.bf16.mxu0 %v5213
      %6887 = vmatpush1.bf16.msra.mxu0 %v5212
      %6888 = vmatprep.subr.bf16.mxu0 %v5209
      %6889 = vmatpush1.bf16.msra.mxu0 %v5208
      %6890 = vmatprep.subr.bf16.mxu0 %v5205
      %6891 = vmatpush1.bf16.msra.mxu0 %v5204
      %6892 = vmatprep.subr.bf16.mxu0 %v5201
      %6893 = vmatpush1.bf16.msra.mxu0 %v5200
      %6894 = vmatprep.subr.bf16.mxu0 %v5197
      %6895 = vmatpush1.bf16.msra.mxu0 %v5196
      %6896 = vmatprep.subr.bf16.mxu0 %v5193
      %6897 = vmatpush1.bf16.msra.mxu0 %v5192
      %6898 = vmatprep.subr.bf16.mxu0 %v5189
      %6899 = vmatpush1.bf16.msra.mxu0 %v5188
      %6900 = vmatprep.subr.bf16.mxu0 %v5249
      %6901 = vmatpush2.bf16.msra.mxu0 %v5248
      %6902 = vmatprep.subr.bf16.mxu0 %v5245
      %6903 = vmatpush2.bf16.msra.mxu0 %v5244
      %6904 = vmatprep.subr.bf16.mxu0 %v5241
      %6905 = vmatpush2.bf16.msra.mxu0 %v5240
      %6906 = vmatprep.subr.bf16.mxu0 %v5237
      %6907 = vmatpush2.bf16.msra.mxu0 %v5236
      %6908 = vmatprep.subr.bf16.mxu0 %v5233
      %6909 = vmatpush2.bf16.msra.mxu0 %v5232
      %6910 = vmatprep.subr.bf16.mxu0 %v5229
      %6911 = vmatpush2.bf16.msra.mxu0 %v5228
      %6912 = vmatprep.subr.bf16.mxu0 %v5225
      %6913 = vmatpush2.bf16.msra.mxu0 %v5224
      %6914 = vmatprep.subr.bf16.mxu0 %v5221
      %6915 = vmatpush2.bf16.msra.mxu0 %v5220
      %6916 = vmatprep.mubr.bf16.mxu0 %v3793
      %6917 = vmatmul.mubr.bf16.gmra.mxu0 %v3792
      %v6918 = vpop.f32.mrf.mxu0
      %v6919 = vadd.f32 %v6732, %v6918
      %v6920 = vpop.f32.mrf.mxu0
      %v6921 = vadd.f32 %v6734, %v6920
      %v6922 = vpop.f32.mrf.mxu0
      %v6923 = vadd.f32 %v6736, %v6922
      %v6924 = vpop.f32.mrf.mxu0
      %v6925 = vadd.f32 %v6738, %v6924
      %6926 = vmatprep.mubr.bf16.mxu0 %v3795
      %6927 = vmatmul.mubr.bf16.gmra.mxu0 %v3794
      %v6928 = vpop.f32.mrf.mxu0
      %v6929 = vpop.f32.mrf.mxu0
      %v6930 = vpop.f32.mrf.mxu0
      %v6931 = vpop.f32.mrf.mxu0
      %6932 = vmatprep.mubr.bf16.mxu0 %v3797
      %6933 = vmatmul.mubr.bf16.gmra.mxu0 %v3796
      %v6934 = vpop.f32.mrf.mxu0
      %v6935 = vadd.f32 %v6748, %v6934
      %v6936 = vpop.f32.mrf.mxu0
      %v6937 = vadd.f32 %v6750, %v6936
      %v6938 = vpop.f32.mrf.mxu0
      %v6939 = vadd.f32 %v6752, %v6938
      %v6940 = vpop.f32.mrf.mxu0
      %v6941 = vadd.f32 %v6754, %v6940
      %6942 = vmatprep.mubr.bf16.mxu0 %v3799
      %6943 = vmatmul.mubr.bf16.gmra.mxu0 %v3798
      %v6944 = vpop.f32.mrf.mxu0
      %v6945 = vpop.f32.mrf.mxu0
      %v6946 = vpop.f32.mrf.mxu0
      %v6947 = vpop.f32.mrf.mxu0
      %6948 = vmatprep.mubr.bf16.mxu0 %v3801
      %6949 = vmatmul.mubr.bf16.gmra.mxu0 %v3800
      %v6950 = vpop.f32.mrf.mxu0
      %v6951 = vadd.f32 %v6764, %v6950
      %v6952 = vpop.f32.mrf.mxu0
      %v6953 = vadd.f32 %v6766, %v6952
      %v6954 = vpop.f32.mrf.mxu0
      %v6955 = vadd.f32 %v6768, %v6954
      %v6956 = vpop.f32.mrf.mxu0
      %v6957 = vadd.f32 %v6770, %v6956
      %6958 = vmatprep.mubr.bf16.mxu0 %v3803
      %6959 = vmatmul.mubr.bf16.gmra.mxu0 %v3802
      %v6960 = vpop.f32.mrf.mxu0
      %v6961 = vpop.f32.mrf.mxu0
      %v6962 = vpop.f32.mrf.mxu0
      %v6963 = vpop.f32.mrf.mxu0
      %6964 = vmatprep.mubr.bf16.mxu0 %v3805
      %6965 = vmatmul.mubr.bf16.gmra.mxu0 %v3804
      %v6966 = vpop.f32.mrf.mxu0
      %v6967 = vadd.f32 %v6780, %v6966
      %v6968 = vpop.f32.mrf.mxu0
      %v6969 = vadd.f32 %v6782, %v6968
      %v6970 = vpop.f32.mrf.mxu0
      %v6971 = vadd.f32 %v6784, %v6970
      %v6972 = vpop.f32.mrf.mxu0
      %v6973 = vadd.f32 %v6786, %v6972
      %6974 = vmatprep.mubr.bf16.mxu0 %v3807
      %6975 = vmatmul.mubr.bf16.gmra.mxu0 %v3806
      %v6976 = vpop.f32.mrf.mxu0
      %v6977 = vpop.f32.mrf.mxu0
      %v6978 = vpop.f32.mrf.mxu0
      %v6979 = vpop.f32.mrf.mxu0
      %6980 = vmatprep.mubr.bf16.mxu0 %v3809
      %6981 = vmatmul.mubr.bf16.gmra.mxu0 %v3808
      %v6982 = vpop.f32.mrf.mxu0
      %v6983 = vadd.f32 %v6796, %v6982
      %v6984 = vpop.f32.mrf.mxu0
      %v6985 = vadd.f32 %v6798, %v6984
      %v6986 = vpop.f32.mrf.mxu0
      %v6987 = vadd.f32 %v6800, %v6986
      %v6988 = vpop.f32.mrf.mxu0
      %v6989 = vadd.f32 %v6802, %v6988
      %6990 = vmatprep.mubr.bf16.mxu0 %v3811
      %6991 = vmatmul.mubr.bf16.gmra.mxu0 %v3810
      %v6992 = vpop.f32.mrf.mxu0
      %v6993 = vpop.f32.mrf.mxu0
      %v6994 = vpop.f32.mrf.mxu0
      %v6995 = vpop.f32.mrf.mxu0
      %6996 = vmatprep.mubr.bf16.mxu0 %v3813
      %6997 = vmatmul.mubr.bf16.gmra.mxu0 %v3812
      %v6998 = vpop.f32.mrf.mxu0
      %v6999 = vadd.f32 %v6812, %v6998
      %v7000 = vpop.f32.mrf.mxu0
      %v7001 = vadd.f32 %v6814, %v7000
      %v7002 = vpop.f32.mrf.mxu0
      %v7003 = vadd.f32 %v6816, %v7002
      %v7004 = vpop.f32.mrf.mxu0
      %v7005 = vadd.f32 %v6818, %v7004
      %7006 = vmatprep.mubr.bf16.mxu0 %v3815
      %7007 = vmatmul.mubr.bf16.gmra.mxu0 %v3814
      %v7008 = vpop.f32.mrf.mxu0
      %v7009 = vpop.f32.mrf.mxu0
      %v7010 = vpop.f32.mrf.mxu0
      %v7011 = vpop.f32.mrf.mxu0
      %7012 = vmatprep.mubr.bf16.mxu0 %v3817
      %7013 = vmatmul.mubr.bf16.gmra.mxu0 %v3816
      %v7014 = vpop.f32.mrf.mxu0
      %v7015 = vadd.f32 %v6828, %v7014
      %v7016 = vpop.f32.mrf.mxu0
      %v7017 = vadd.f32 %v6830, %v7016
      %v7018 = vpop.f32.mrf.mxu0
      %v7019 = vadd.f32 %v6832, %v7018
      %v7020 = vpop.f32.mrf.mxu0
      %v7021 = vadd.f32 %v6834, %v7020
      %7022 = vmatprep.mubr.bf16.mxu0 %v3819
      %7023 = vmatmul.mubr.bf16.gmra.mxu0 %v3818
      %v7024 = vpop.f32.mrf.mxu0
      %v7025 = vpop.f32.mrf.mxu0
      %v7026 = vpop.f32.mrf.mxu0
      %v7027 = vpop.f32.mrf.mxu0
      %7028 = vmatprep.mubr.bf16.mxu0 %v3821
      %7029 = vmatmul.mubr.bf16.gmra.mxu0 %v3820
      %v7030 = vpop.f32.mrf.mxu0
      %v7031 = vadd.f32 %v6844, %v7030
      %v7032 = vpop.f32.mrf.mxu0
      %v7033 = vadd.f32 %v6846, %v7032
      %v7034 = vpop.f32.mrf.mxu0
      %v7035 = vadd.f32 %v6848, %v7034
      %v7036 = vpop.f32.mrf.mxu0
      %v7037 = vadd.f32 %v6850, %v7036
      %7038 = vmatprep.mubr.bf16.mxu0 %v3823
      %7039 = vmatmul.mubr.bf16.gmra.mxu0 %v3822
      %v7040 = vpop.f32.mrf.mxu0
      %v7041 = vpop.f32.mrf.mxu0
      %v7042 = vpop.f32.mrf.mxu0
      %v7043 = vpop.f32.mrf.mxu0
      %7044 = vmatprep.mubr.bf16.mxu0 %v3825
      %7045 = vmatmul.mubr.bf16.gmra.mxu0 %v3824
      %v7046 = vpop.f32.mrf.mxu0
      %v7047 = vadd.f32 %v6860, %v7046
      %v7048 = vpop.f32.mrf.mxu0
      %v7049 = vadd.f32 %v6862, %v7048
      %v7050 = vpop.f32.mrf.mxu0
      %v7051 = vadd.f32 %v6864, %v7050
      %v7052 = vpop.f32.mrf.mxu0
      %v7053 = vadd.f32 %v6866, %v7052
      %7054 = vmatprep.mubr.bf16.mxu0 %v3827
      %7055 = vmatmul.mubr.bf16.gmra.mxu0 %v3826
      %v7056 = vpop.f32.mrf.mxu0
      %v7057 = vpop.f32.mrf.mxu0
      %v7058 = vpop.f32.mrf.mxu0
      %v7059 = vpop.f32.mrf.mxu0
      %7060 = vmatprep.mubr.bf16.mxu0 %v3829
      %7061 = vmatmul.mubr.bf16.gmra.mxu0 %v3828
      %v7062 = vpop.f32.mrf.mxu0
      %v7063 = vadd.f32 %v6876, %v7062
      %v7064 = vpop.f32.mrf.mxu0
      %v7065 = vadd.f32 %v6878, %v7064
      %v7066 = vpop.f32.mrf.mxu0
      %v7067 = vadd.f32 %v6880, %v7066
      %v7068 = vpop.f32.mrf.mxu0
      %v7069 = vadd.f32 %v6882, %v7068
      %7070 = vdwg.mxu0
      %7071 = vmatprep.subr.bf16.mxu0 %v5281
      %7072 = vmatpush1.bf16.msra.mxu0 %v5280
      %7073 = vmatprep.subr.bf16.mxu0 %v5277
      %7074 = vmatpush1.bf16.msra.mxu0 %v5276
      %7075 = vmatprep.subr.bf16.mxu0 %v5273
      %7076 = vmatpush1.bf16.msra.mxu0 %v5272
      %7077 = vmatprep.subr.bf16.mxu0 %v5269
      %7078 = vmatpush1.bf16.msra.mxu0 %v5268
      %7079 = vmatprep.subr.bf16.mxu0 %v5265
      %7080 = vmatpush1.bf16.msra.mxu0 %v5264
      %7081 = vmatprep.subr.bf16.mxu0 %v5261
      %7082 = vmatpush1.bf16.msra.mxu0 %v5260
      %7083 = vmatprep.subr.bf16.mxu0 %v5257
      %7084 = vmatpush1.bf16.msra.mxu0 %v5256
      %7085 = vmatprep.subr.bf16.mxu0 %v5253
      %7086 = vmatpush1.bf16.msra.mxu0 %v5252
      %7087 = vmatprep.subr.bf16.mxu0 %v5313
      %7088 = vmatpush2.bf16.msra.mxu0 %v5312
      %7089 = vmatprep.subr.bf16.mxu0 %v5309
      %7090 = vmatpush2.bf16.msra.mxu0 %v5308
      %7091 = vmatprep.subr.bf16.mxu0 %v5305
      %7092 = vmatpush2.bf16.msra.mxu0 %v5304
      %7093 = vmatprep.subr.bf16.mxu0 %v5301
      %7094 = vmatpush2.bf16.msra.mxu0 %v5300
      %7095 = vmatprep.subr.bf16.mxu0 %v5297
      %7096 = vmatpush2.bf16.msra.mxu0 %v5296
      %7097 = vmatprep.subr.bf16.mxu0 %v5293
      %7098 = vmatpush2.bf16.msra.mxu0 %v5292
      %7099 = vmatprep.subr.bf16.mxu0 %v5289
      %7100 = vmatpush2.bf16.msra.mxu0 %v5288
      %7101 = vmatprep.subr.bf16.mxu0 %v5285
      %7102 = vmatpush2.bf16.msra.mxu0 %v5284
      %7103 = vmatprep.mubr.bf16.mxu0 %v3797
      %7104 = vmatmul.mubr.bf16.gmra.mxu0 %v3796
      %v7105 = vpop.f32.mrf.mxu0
      %v7106 = vadd.f32 %v6919, %v7105
      %v7107 = vpop.f32.mrf.mxu0
      %v7108 = vadd.f32 %v6921, %v7107
      %v7109 = vpop.f32.mrf.mxu0
      %v7110 = vadd.f32 %v6923, %v7109
      %v7111 = vpop.f32.mrf.mxu0
      %v7112 = vadd.f32 %v6925, %v7111
      %7113 = vmatprep.mubr.bf16.mxu0 %v3799
      %7114 = vmatmul.mubr.bf16.gmra.mxu0 %v3798
      %v7115 = vpop.f32.mrf.mxu0
      %v7116 = vpop.f32.mrf.mxu0
      %v7117 = vpop.f32.mrf.mxu0
      %v7118 = vpop.f32.mrf.mxu0
      %7119 = vmatprep.mubr.bf16.mxu0 %v3801
      %7120 = vmatmul.mubr.bf16.gmra.mxu0 %v3800
      %v7121 = vpop.f32.mrf.mxu0
      %v7122 = vadd.f32 %v6935, %v7121
      %v7123 = vpop.f32.mrf.mxu0
      %v7124 = vadd.f32 %v6937, %v7123
      %v7125 = vpop.f32.mrf.mxu0
      %v7126 = vadd.f32 %v6939, %v7125
      %v7127 = vpop.f32.mrf.mxu0
      %v7128 = vadd.f32 %v6941, %v7127
      %7129 = vmatprep.mubr.bf16.mxu0 %v3803
      %7130 = vmatmul.mubr.bf16.gmra.mxu0 %v3802
      %v7131 = vpop.f32.mrf.mxu0
      %v7132 = vpop.f32.mrf.mxu0
      %v7133 = vpop.f32.mrf.mxu0
      %v7134 = vpop.f32.mrf.mxu0
      %7135 = vmatprep.mubr.bf16.mxu0 %v3805
      %7136 = vmatmul.mubr.bf16.gmra.mxu0 %v3804
      %v7137 = vpop.f32.mrf.mxu0
      %v7138 = vadd.f32 %v6951, %v7137
      %v7139 = vpop.f32.mrf.mxu0
      %v7140 = vadd.f32 %v6953, %v7139
      %v7141 = vpop.f32.mrf.mxu0
      %v7142 = vadd.f32 %v6955, %v7141
      %v7143 = vpop.f32.mrf.mxu0
      %v7144 = vadd.f32 %v6957, %v7143
      %7145 = vmatprep.mubr.bf16.mxu0 %v3807
      %7146 = vmatmul.mubr.bf16.gmra.mxu0 %v3806
      %v7147 = vpop.f32.mrf.mxu0
      %v7148 = vpop.f32.mrf.mxu0
      %v7149 = vpop.f32.mrf.mxu0
      %v7150 = vpop.f32.mrf.mxu0
      %7151 = vmatprep.mubr.bf16.mxu0 %v3809
      %7152 = vmatmul.mubr.bf16.gmra.mxu0 %v3808
      %v7153 = vpop.f32.mrf.mxu0
      %v7154 = vadd.f32 %v6967, %v7153
      %v7155 = vpop.f32.mrf.mxu0
      %v7156 = vadd.f32 %v6969, %v7155
      %v7157 = vpop.f32.mrf.mxu0
      %v7158 = vadd.f32 %v6971, %v7157
      %v7159 = vpop.f32.mrf.mxu0
      %v7160 = vadd.f32 %v6973, %v7159
      %7161 = vmatprep.mubr.bf16.mxu0 %v3811
      %7162 = vmatmul.mubr.bf16.gmra.mxu0 %v3810
      %v7163 = vpop.f32.mrf.mxu0
      %v7164 = vpop.f32.mrf.mxu0
      %v7165 = vpop.f32.mrf.mxu0
      %v7166 = vpop.f32.mrf.mxu0
      %7167 = vmatprep.mubr.bf16.mxu0 %v3813
      %7168 = vmatmul.mubr.bf16.gmra.mxu0 %v3812
      %v7169 = vpop.f32.mrf.mxu0
      %v7170 = vadd.f32 %v6983, %v7169
      %v7171 = vpop.f32.mrf.mxu0
      %v7172 = vadd.f32 %v6985, %v7171
      %v7173 = vpop.f32.mrf.mxu0
      %v7174 = vadd.f32 %v6987, %v7173
      %v7175 = vpop.f32.mrf.mxu0
      %v7176 = vadd.f32 %v6989, %v7175
      %7177 = vmatprep.mubr.bf16.mxu0 %v3815
      %7178 = vmatmul.mubr.bf16.gmra.mxu0 %v3814
      %v7179 = vpop.f32.mrf.mxu0
      %v7180 = vpop.f32.mrf.mxu0
      %v7181 = vpop.f32.mrf.mxu0
      %v7182 = vpop.f32.mrf.mxu0
      %7183 = vmatprep.mubr.bf16.mxu0 %v3817
      %7184 = vmatmul.mubr.bf16.gmra.mxu0 %v3816
      %v7185 = vpop.f32.mrf.mxu0
      %v7186 = vadd.f32 %v6999, %v7185
      %v7187 = vpop.f32.mrf.mxu0
      %v7188 = vadd.f32 %v7001, %v7187
      %v7189 = vpop.f32.mrf.mxu0
      %v7190 = vadd.f32 %v7003, %v7189
      %v7191 = vpop.f32.mrf.mxu0
      %v7192 = vadd.f32 %v7005, %v7191
      %7193 = vmatprep.mubr.bf16.mxu0 %v3819
      %7194 = vmatmul.mubr.bf16.gmra.mxu0 %v3818
      %v7195 = vpop.f32.mrf.mxu0
      %v7196 = vpop.f32.mrf.mxu0
      %v7197 = vpop.f32.mrf.mxu0
      %v7198 = vpop.f32.mrf.mxu0
      %7199 = vmatprep.mubr.bf16.mxu0 %v3821
      %7200 = vmatmul.mubr.bf16.gmra.mxu0 %v3820
      %v7201 = vpop.f32.mrf.mxu0
      %v7202 = vadd.f32 %v7015, %v7201
      %v7203 = vpop.f32.mrf.mxu0
      %v7204 = vadd.f32 %v7017, %v7203
      %v7205 = vpop.f32.mrf.mxu0
      %v7206 = vadd.f32 %v7019, %v7205
      %v7207 = vpop.f32.mrf.mxu0
      %v7208 = vadd.f32 %v7021, %v7207
      %7209 = vmatprep.mubr.bf16.mxu0 %v3823
      %7210 = vmatmul.mubr.bf16.gmra.mxu0 %v3822
      %v7211 = vpop.f32.mrf.mxu0
      %v7212 = vpop.f32.mrf.mxu0
      %v7213 = vpop.f32.mrf.mxu0
      %v7214 = vpop.f32.mrf.mxu0
      %7215 = vmatprep.mubr.bf16.mxu0 %v3825
      %7216 = vmatmul.mubr.bf16.gmra.mxu0 %v3824
      %v7217 = vpop.f32.mrf.mxu0
      %v7218 = vadd.f32 %v7031, %v7217
      %v7219 = vpop.f32.mrf.mxu0
      %v7220 = vadd.f32 %v7033, %v7219
      %v7221 = vpop.f32.mrf.mxu0
      %v7222 = vadd.f32 %v7035, %v7221
      %v7223 = vpop.f32.mrf.mxu0
      %v7224 = vadd.f32 %v7037, %v7223
      %7225 = vmatprep.mubr.bf16.mxu0 %v3827
      %7226 = vmatmul.mubr.bf16.gmra.mxu0 %v3826
      %v7227 = vpop.f32.mrf.mxu0
      %v7228 = vpop.f32.mrf.mxu0
      %v7229 = vpop.f32.mrf.mxu0
      %v7230 = vpop.f32.mrf.mxu0
      %7231 = vmatprep.mubr.bf16.mxu0 %v3829
      %7232 = vmatmul.mubr.bf16.gmra.mxu0 %v3828
      %v7233 = vpop.f32.mrf.mxu0
      %v7234 = vadd.f32 %v7047, %v7233
      %v7235 = vpop.f32.mrf.mxu0
      %v7236 = vadd.f32 %v7049, %v7235
      %v7237 = vpop.f32.mrf.mxu0
      %v7238 = vadd.f32 %v7051, %v7237
      %v7239 = vpop.f32.mrf.mxu0
      %v7240 = vadd.f32 %v7053, %v7239
      %7241 = vmatprep.mubr.bf16.mxu0 %v3831
      %7242 = vmatmul.mubr.bf16.gmra.mxu0 %v3830
      %v7243 = vpop.f32.mrf.mxu0
      %v7244 = vpop.f32.mrf.mxu0
      %v7245 = vpop.f32.mrf.mxu0
      %v7246 = vpop.f32.mrf.mxu0
      %7247 = vmatprep.mubr.bf16.mxu0 %v3833
      %7248 = vmatmul.mubr.bf16.gmra.mxu0 %v3832
      %v7249 = vpop.f32.mrf.mxu0
      %v7250 = vadd.f32 %v7063, %v7249
      %v7251 = vpop.f32.mrf.mxu0
      %v7252 = vadd.f32 %v7065, %v7251
      %v7253 = vpop.f32.mrf.mxu0
      %v7254 = vadd.f32 %v7067, %v7253
      %v7255 = vpop.f32.mrf.mxu0
      %v7256 = vadd.f32 %v7069, %v7255
      %7257 = vdwg.mxu0
      %7258 = vmatprep.subr.bf16.mxu0 %v5345
      %7259 = vmatpush1.bf16.msra.mxu0 %v5344
      %7260 = vmatprep.subr.bf16.mxu0 %v5341
      %7261 = vmatpush1.bf16.msra.mxu0 %v5340
      %7262 = vmatprep.subr.bf16.mxu0 %v5337
      %7263 = vmatpush1.bf16.msra.mxu0 %v5336
      %7264 = vmatprep.subr.bf16.mxu0 %v5333
      %7265 = vmatpush1.bf16.msra.mxu0 %v5332
      %7266 = vmatprep.subr.bf16.mxu0 %v5329
      %7267 = vmatpush1.bf16.msra.mxu0 %v5328
      %7268 = vmatprep.subr.bf16.mxu0 %v5325
      %7269 = vmatpush1.bf16.msra.mxu0 %v5324
      %7270 = vmatprep.subr.bf16.mxu0 %v5321
      %7271 = vmatpush1.bf16.msra.mxu0 %v5320
      %7272 = vmatprep.subr.bf16.mxu0 %v5317
      %7273 = vmatpush1.bf16.msra.mxu0 %v5316
      %7274 = vmatprep.subr.bf16.mxu0 %v5377
      %7275 = vmatpush2.bf16.msra.mxu0 %v5376
      %7276 = vmatprep.subr.bf16.mxu0 %v5373
      %7277 = vmatpush2.bf16.msra.mxu0 %v5372
      %7278 = vmatprep.subr.bf16.mxu0 %v5369
      %7279 = vmatpush2.bf16.msra.mxu0 %v5368
      %7280 = vmatprep.subr.bf16.mxu0 %v5365
      %7281 = vmatpush2.bf16.msra.mxu0 %v5364
      %7282 = vmatprep.subr.bf16.mxu0 %v5361
      %7283 = vmatpush2.bf16.msra.mxu0 %v5360
      %7284 = vmatprep.subr.bf16.mxu0 %v5357
      %7285 = vmatpush2.bf16.msra.mxu0 %v5356
      %7286 = vmatprep.subr.bf16.mxu0 %v5353
      %7287 = vmatpush2.bf16.msra.mxu0 %v5352
      %7288 = vmatprep.subr.bf16.mxu0 %v5349
      %7289 = vmatpush2.bf16.msra.mxu0 %v5348
      %7290 = vmatprep.mubr.bf16.mxu0 %v3801
      %7291 = vmatmul.mubr.bf16.gmra.mxu0 %v3800
      %v7292 = vpop.f32.mrf.mxu0
      %v7293 = vadd.f32 %v7106, %v7292
      %v7294 = vpop.f32.mrf.mxu0
      %v7295 = vadd.f32 %v7108, %v7294
      %v7296 = vpop.f32.mrf.mxu0
      %v7297 = vadd.f32 %v7110, %v7296
      %v7298 = vpop.f32.mrf.mxu0
      %v7299 = vadd.f32 %v7112, %v7298
      %7300 = vmatprep.mubr.bf16.mxu0 %v3803
      %7301 = vmatmul.mubr.bf16.gmra.mxu0 %v3802
      %v7302 = vpop.f32.mrf.mxu0
      %v7303 = vpop.f32.mrf.mxu0
      %v7304 = vpop.f32.mrf.mxu0
      %v7305 = vpop.f32.mrf.mxu0
      %7306 = vmatprep.mubr.bf16.mxu0 %v3805
      %7307 = vmatmul.mubr.bf16.gmra.mxu0 %v3804
      %v7308 = vpop.f32.mrf.mxu0
      %v7309 = vadd.f32 %v7122, %v7308
      %v7310 = vpop.f32.mrf.mxu0
      %v7311 = vadd.f32 %v7124, %v7310
      %v7312 = vpop.f32.mrf.mxu0
      %v7313 = vadd.f32 %v7126, %v7312
      %v7314 = vpop.f32.mrf.mxu0
      %v7315 = vadd.f32 %v7128, %v7314
      %7316 = vmatprep.mubr.bf16.mxu0 %v3807
      %7317 = vmatmul.mubr.bf16.gmra.mxu0 %v3806
      %v7318 = vpop.f32.mrf.mxu0
      %v7319 = vpop.f32.mrf.mxu0
      %v7320 = vpop.f32.mrf.mxu0
      %v7321 = vpop.f32.mrf.mxu0
      %7322 = vmatprep.mubr.bf16.mxu0 %v3809
      %7323 = vmatmul.mubr.bf16.gmra.mxu0 %v3808
      %v7324 = vpop.f32.mrf.mxu0
      %v7325 = vadd.f32 %v7138, %v7324
      %v7326 = vpop.f32.mrf.mxu0
      %v7327 = vadd.f32 %v7140, %v7326
      %v7328 = vpop.f32.mrf.mxu0
      %v7329 = vadd.f32 %v7142, %v7328
      %v7330 = vpop.f32.mrf.mxu0
      %v7331 = vadd.f32 %v7144, %v7330
      %7332 = vmatprep.mubr.bf16.mxu0 %v3811
      %7333 = vmatmul.mubr.bf16.gmra.mxu0 %v3810
      %v7334 = vpop.f32.mrf.mxu0
      %v7335 = vpop.f32.mrf.mxu0
      %v7336 = vpop.f32.mrf.mxu0
      %v7337 = vpop.f32.mrf.mxu0
      %7338 = vmatprep.mubr.bf16.mxu0 %v3813
      %7339 = vmatmul.mubr.bf16.gmra.mxu0 %v3812
      %v7340 = vpop.f32.mrf.mxu0
      %v7341 = vadd.f32 %v7154, %v7340
      %v7342 = vpop.f32.mrf.mxu0
      %v7343 = vadd.f32 %v7156, %v7342
      %v7344 = vpop.f32.mrf.mxu0
      %v7345 = vadd.f32 %v7158, %v7344
      %v7346 = vpop.f32.mrf.mxu0
      %v7347 = vadd.f32 %v7160, %v7346
      %7348 = vmatprep.mubr.bf16.mxu0 %v3815
      %7349 = vmatmul.mubr.bf16.gmra.mxu0 %v3814
      %v7350 = vpop.f32.mrf.mxu0
      %v7351 = vpop.f32.mrf.mxu0
      %v7352 = vpop.f32.mrf.mxu0
      %v7353 = vpop.f32.mrf.mxu0
      %7354 = vmatprep.mubr.bf16.mxu0 %v3817
      %7355 = vmatmul.mubr.bf16.gmra.mxu0 %v3816
      %v7356 = vpop.f32.mrf.mxu0
      %v7357 = vadd.f32 %v7170, %v7356
      %v7358 = vpop.f32.mrf.mxu0
      %v7359 = vadd.f32 %v7172, %v7358
      %v7360 = vpop.f32.mrf.mxu0
      %v7361 = vadd.f32 %v7174, %v7360
      %v7362 = vpop.f32.mrf.mxu0
      %v7363 = vadd.f32 %v7176, %v7362
      %7364 = vmatprep.mubr.bf16.mxu0 %v3819
      %7365 = vmatmul.mubr.bf16.gmra.mxu0 %v3818
      %v7366 = vpop.f32.mrf.mxu0
      %v7367 = vpop.f32.mrf.mxu0
      %v7368 = vpop.f32.mrf.mxu0
      %v7369 = vpop.f32.mrf.mxu0
      %7370 = vmatprep.mubr.bf16.mxu0 %v3821
      %7371 = vmatmul.mubr.bf16.gmra.mxu0 %v3820
      %v7372 = vpop.f32.mrf.mxu0
      %v7373 = vadd.f32 %v7186, %v7372
      %v7374 = vpop.f32.mrf.mxu0
      %v7375 = vadd.f32 %v7188, %v7374
      %v7376 = vpop.f32.mrf.mxu0
      %v7377 = vadd.f32 %v7190, %v7376
      %v7378 = vpop.f32.mrf.mxu0
      %v7379 = vadd.f32 %v7192, %v7378
      %7380 = vmatprep.mubr.bf16.mxu0 %v3823
      %7381 = vmatmul.mubr.bf16.gmra.mxu0 %v3822
      %v7382 = vpop.f32.mrf.mxu0
      %v7383 = vpop.f32.mrf.mxu0
      %v7384 = vpop.f32.mrf.mxu0
      %v7385 = vpop.f32.mrf.mxu0
      %7386 = vmatprep.mubr.bf16.mxu0 %v3825
      %7387 = vmatmul.mubr.bf16.gmra.mxu0 %v3824
      %v7388 = vpop.f32.mrf.mxu0
      %v7389 = vadd.f32 %v7202, %v7388
      %v7390 = vpop.f32.mrf.mxu0
      %v7391 = vadd.f32 %v7204, %v7390
      %v7392 = vpop.f32.mrf.mxu0
      %v7393 = vadd.f32 %v7206, %v7392
      %v7394 = vpop.f32.mrf.mxu0
      %v7395 = vadd.f32 %v7208, %v7394
      %7396 = vmatprep.mubr.bf16.mxu0 %v3827
      %7397 = vmatmul.mubr.bf16.gmra.mxu0 %v3826
      %v7398 = vpop.f32.mrf.mxu0
      %v7399 = vpop.f32.mrf.mxu0
      %v7400 = vpop.f32.mrf.mxu0
      %v7401 = vpop.f32.mrf.mxu0
      %7402 = vmatprep.mubr.bf16.mxu0 %v3829
      %7403 = vmatmul.mubr.bf16.gmra.mxu0 %v3828
      %v7404 = vpop.f32.mrf.mxu0
      %v7405 = vadd.f32 %v7218, %v7404
      %v7406 = vpop.f32.mrf.mxu0
      %v7407 = vadd.f32 %v7220, %v7406
      %v7408 = vpop.f32.mrf.mxu0
      %v7409 = vadd.f32 %v7222, %v7408
      %v7410 = vpop.f32.mrf.mxu0
      %v7411 = vadd.f32 %v7224, %v7410
      %7412 = vmatprep.mubr.bf16.mxu0 %v3831
      %7413 = vmatmul.mubr.bf16.gmra.mxu0 %v3830
      %v7414 = vpop.f32.mrf.mxu0
      %v7415 = vpop.f32.mrf.mxu0
      %v7416 = vpop.f32.mrf.mxu0
      %v7417 = vpop.f32.mrf.mxu0
      %7418 = vmatprep.mubr.bf16.mxu0 %v3833
      %7419 = vmatmul.mubr.bf16.gmra.mxu0 %v3832
      %v7420 = vpop.f32.mrf.mxu0
      %v7421 = vadd.f32 %v7234, %v7420
      %v7422 = vpop.f32.mrf.mxu0
      %v7423 = vadd.f32 %v7236, %v7422
      %v7424 = vpop.f32.mrf.mxu0
      %v7425 = vadd.f32 %v7238, %v7424
      %v7426 = vpop.f32.mrf.mxu0
      %v7427 = vadd.f32 %v7240, %v7426
      %7428 = vmatprep.mubr.bf16.mxu0 %v3835
      %7429 = vmatmul.mubr.bf16.gmra.mxu0 %v3834
      %v7430 = vpop.f32.mrf.mxu0
      %v7431 = vpop.f32.mrf.mxu0
      %v7432 = vpop.f32.mrf.mxu0
      %v7433 = vpop.f32.mrf.mxu0
      %7434 = vmatprep.mubr.bf16.mxu0 %v3837
      %7435 = vmatmul.mubr.bf16.gmra.mxu0 %v3836
      %v7436 = vpop.f32.mrf.mxu0
      %v7437 = vadd.f32 %v7250, %v7436
      %v7438 = vpop.f32.mrf.mxu0
      %v7439 = vadd.f32 %v7252, %v7438
      %v7440 = vpop.f32.mrf.mxu0
      %v7441 = vadd.f32 %v7254, %v7440
      %v7442 = vpop.f32.mrf.mxu0
      %v7443 = vadd.f32 %v7256, %v7442
      %7444 = vdwg.mxu0
      %7445 = vmatprep.subr.bf16.mxu0 %v5409
      %7446 = vmatpush1.bf16.msra.mxu0 %v5408
      %7447 = vmatprep.subr.bf16.mxu0 %v5405
      %7448 = vmatpush1.bf16.msra.mxu0 %v5404
      %7449 = vmatprep.subr.bf16.mxu0 %v5401
      %7450 = vmatpush1.bf16.msra.mxu0 %v5400
      %7451 = vmatprep.subr.bf16.mxu0 %v5397
      %7452 = vmatpush1.bf16.msra.mxu0 %v5396
      %7453 = vmatprep.subr.bf16.mxu0 %v5393
      %7454 = vmatpush1.bf16.msra.mxu0 %v5392
      %7455 = vmatprep.subr.bf16.mxu0 %v5389
      %7456 = vmatpush1.bf16.msra.mxu0 %v5388
      %7457 = vmatprep.subr.bf16.mxu0 %v5385
      %7458 = vmatpush1.bf16.msra.mxu0 %v5384
      %7459 = vmatprep.subr.bf16.mxu0 %v5381
      %7460 = vmatpush1.bf16.msra.mxu0 %v5380
      %7461 = vmatprep.subr.bf16.mxu0 %v5441
      %7462 = vmatpush2.bf16.msra.mxu0 %v5440
      %7463 = vmatprep.subr.bf16.mxu0 %v5437
      %7464 = vmatpush2.bf16.msra.mxu0 %v5436
      %7465 = vmatprep.subr.bf16.mxu0 %v5433
      %7466 = vmatpush2.bf16.msra.mxu0 %v5432
      %7467 = vmatprep.subr.bf16.mxu0 %v5429
      %7468 = vmatpush2.bf16.msra.mxu0 %v5428
      %7469 = vmatprep.subr.bf16.mxu0 %v5425
      %7470 = vmatpush2.bf16.msra.mxu0 %v5424
      %7471 = vmatprep.subr.bf16.mxu0 %v5421
      %7472 = vmatpush2.bf16.msra.mxu0 %v5420
      %7473 = vmatprep.subr.bf16.mxu0 %v5417
      %7474 = vmatpush2.bf16.msra.mxu0 %v5416
      %7475 = vmatprep.subr.bf16.mxu0 %v5413
      %7476 = vmatpush2.bf16.msra.mxu0 %v5412
      %7477 = vmatprep.mubr.bf16.mxu0 %v3805
      %7478 = vmatmul.mubr.bf16.gmra.mxu0 %v3804
      %v7479 = vpop.f32.mrf.mxu0
      %v7480 = vadd.f32 %v7293, %v7479
      %v7481 = vpop.f32.mrf.mxu0
      %v7482 = vadd.f32 %v7295, %v7481
      %v7483 = vpop.f32.mrf.mxu0
      %v7484 = vadd.f32 %v7297, %v7483
      %v7485 = vpop.f32.mrf.mxu0
      %v7486 = vadd.f32 %v7299, %v7485
      %7487 = vmatprep.mubr.bf16.mxu0 %v3807
      %7488 = vmatmul.mubr.bf16.gmra.mxu0 %v3806
      %v7489 = vpop.f32.mrf.mxu0
      %v7490 = vpop.f32.mrf.mxu0
      %v7491 = vpop.f32.mrf.mxu0
      %v7492 = vpop.f32.mrf.mxu0
      %7493 = vmatprep.mubr.bf16.mxu0 %v3809
      %7494 = vmatmul.mubr.bf16.gmra.mxu0 %v3808
      %v7495 = vpop.f32.mrf.mxu0
      %v7496 = vadd.f32 %v7309, %v7495
      %v7497 = vpop.f32.mrf.mxu0
      %v7498 = vadd.f32 %v7311, %v7497
      %v7499 = vpop.f32.mrf.mxu0
      %v7500 = vadd.f32 %v7313, %v7499
      %v7501 = vpop.f32.mrf.mxu0
      %v7502 = vadd.f32 %v7315, %v7501
      %7503 = vmatprep.mubr.bf16.mxu0 %v3811
      %7504 = vmatmul.mubr.bf16.gmra.mxu0 %v3810
      %v7505 = vpop.f32.mrf.mxu0
      %v7506 = vpop.f32.mrf.mxu0
      %v7507 = vpop.f32.mrf.mxu0
      %v7508 = vpop.f32.mrf.mxu0
      %7509 = vmatprep.mubr.bf16.mxu0 %v3813
      %7510 = vmatmul.mubr.bf16.gmra.mxu0 %v3812
      %v7511 = vpop.f32.mrf.mxu0
      %v7512 = vadd.f32 %v7325, %v7511
      %v7513 = vpop.f32.mrf.mxu0
      %v7514 = vadd.f32 %v7327, %v7513
      %v7515 = vpop.f32.mrf.mxu0
      %v7516 = vadd.f32 %v7329, %v7515
      %v7517 = vpop.f32.mrf.mxu0
      %v7518 = vadd.f32 %v7331, %v7517
      %7519 = vmatprep.mubr.bf16.mxu0 %v3815
      %7520 = vmatmul.mubr.bf16.gmra.mxu0 %v3814
      %v7521 = vpop.f32.mrf.mxu0
      %v7522 = vpop.f32.mrf.mxu0
      %v7523 = vpop.f32.mrf.mxu0
      %v7524 = vpop.f32.mrf.mxu0
      %7525 = vmatprep.mubr.bf16.mxu0 %v3817
      %7526 = vmatmul.mubr.bf16.gmra.mxu0 %v3816
      %v7527 = vpop.f32.mrf.mxu0
      %v7528 = vadd.f32 %v7341, %v7527
      %v7529 = vpop.f32.mrf.mxu0
      %v7530 = vadd.f32 %v7343, %v7529
      %v7531 = vpop.f32.mrf.mxu0
      %v7532 = vadd.f32 %v7345, %v7531
      %v7533 = vpop.f32.mrf.mxu0
      %v7534 = vadd.f32 %v7347, %v7533
      %7535 = vmatprep.mubr.bf16.mxu0 %v3819
      %7536 = vmatmul.mubr.bf16.gmra.mxu0 %v3818
      %v7537 = vpop.f32.mrf.mxu0
      %v7538 = vpop.f32.mrf.mxu0
      %v7539 = vpop.f32.mrf.mxu0
      %v7540 = vpop.f32.mrf.mxu0
      %7541 = vmatprep.mubr.bf16.mxu0 %v3821
      %7542 = vmatmul.mubr.bf16.gmra.mxu0 %v3820
      %v7543 = vpop.f32.mrf.mxu0
      %v7544 = vadd.f32 %v7357, %v7543
      %v7545 = vpop.f32.mrf.mxu0
      %v7546 = vadd.f32 %v7359, %v7545
      %v7547 = vpop.f32.mrf.mxu0
      %v7548 = vadd.f32 %v7361, %v7547
      %v7549 = vpop.f32.mrf.mxu0
      %v7550 = vadd.f32 %v7363, %v7549
      %7551 = vmatprep.mubr.bf16.mxu0 %v3823
      %7552 = vmatmul.mubr.bf16.gmra.mxu0 %v3822
      %v7553 = vpop.f32.mrf.mxu0
      %v7554 = vpop.f32.mrf.mxu0
      %v7555 = vpop.f32.mrf.mxu0
      %v7556 = vpop.f32.mrf.mxu0
      %7557 = vmatprep.mubr.bf16.mxu0 %v3825
      %7558 = vmatmul.mubr.bf16.gmra.mxu0 %v3824
      %v7559 = vpop.f32.mrf.mxu0
      %v7560 = vadd.f32 %v7373, %v7559
      %v7561 = vpop.f32.mrf.mxu0
      %v7562 = vadd.f32 %v7375, %v7561
      %v7563 = vpop.f32.mrf.mxu0
      %v7564 = vadd.f32 %v7377, %v7563
      %v7565 = vpop.f32.mrf.mxu0
      %v7566 = vadd.f32 %v7379, %v7565
      %7567 = vmatprep.mubr.bf16.mxu0 %v3827
      %7568 = vmatmul.mubr.bf16.gmra.mxu0 %v3826
      %v7569 = vpop.f32.mrf.mxu0
      %v7570 = vpop.f32.mrf.mxu0
      %v7571 = vpop.f32.mrf.mxu0
      %v7572 = vpop.f32.mrf.mxu0
      %7573 = vmatprep.mubr.bf16.mxu0 %v3829
      %7574 = vmatmul.mubr.bf16.gmra.mxu0 %v3828
      %v7575 = vpop.f32.mrf.mxu0
      %v7576 = vadd.f32 %v7389, %v7575
      %v7577 = vpop.f32.mrf.mxu0
      %v7578 = vadd.f32 %v7391, %v7577
      %v7579 = vpop.f32.mrf.mxu0
      %v7580 = vadd.f32 %v7393, %v7579
      %v7581 = vpop.f32.mrf.mxu0
      %v7582 = vadd.f32 %v7395, %v7581
      %7583 = vmatprep.mubr.bf16.mxu0 %v3831
      %7584 = vmatmul.mubr.bf16.gmra.mxu0 %v3830
      %v7585 = vpop.f32.mrf.mxu0
      %v7586 = vpop.f32.mrf.mxu0
      %v7587 = vpop.f32.mrf.mxu0
      %v7588 = vpop.f32.mrf.mxu0
      %7589 = vmatprep.mubr.bf16.mxu0 %v3833
      %7590 = vmatmul.mubr.bf16.gmra.mxu0 %v3832
      %v7591 = vpop.f32.mrf.mxu0
      %v7592 = vadd.f32 %v7405, %v7591
      %v7593 = vpop.f32.mrf.mxu0
      %v7594 = vadd.f32 %v7407, %v7593
      %v7595 = vpop.f32.mrf.mxu0
      %v7596 = vadd.f32 %v7409, %v7595
      %v7597 = vpop.f32.mrf.mxu0
      %v7598 = vadd.f32 %v7411, %v7597
      %7599 = vmatprep.mubr.bf16.mxu0 %v3835
      %7600 = vmatmul.mubr.bf16.gmra.mxu0 %v3834
      %v7601 = vpop.f32.mrf.mxu0
      %v7602 = vpop.f32.mrf.mxu0
      %v7603 = vpop.f32.mrf.mxu0
      %v7604 = vpop.f32.mrf.mxu0
      %7605 = vmatprep.mubr.bf16.mxu0 %v3837
      %7606 = vmatmul.mubr.bf16.gmra.mxu0 %v3836
      %v7607 = vpop.f32.mrf.mxu0
      %v7608 = vadd.f32 %v7421, %v7607
      %v7609 = vpop.f32.mrf.mxu0
      %v7610 = vadd.f32 %v7423, %v7609
      %v7611 = vpop.f32.mrf.mxu0
      %v7612 = vadd.f32 %v7425, %v7611
      %v7613 = vpop.f32.mrf.mxu0
      %v7614 = vadd.f32 %v7427, %v7613
      %7615 = vmatprep.mubr.bf16.mxu0 %v3839
      %7616 = vmatmul.mubr.bf16.gmra.mxu0 %v3838
      %v7617 = vpop.f32.mrf.mxu0
      %v7618 = vpop.f32.mrf.mxu0
      %v7619 = vpop.f32.mrf.mxu0
      %v7620 = vpop.f32.mrf.mxu0
      %7621 = vmatprep.mubr.bf16.mxu0 %v3841
      %7622 = vmatmul.mubr.bf16.gmra.mxu0 %v3840
      %v7623 = vpop.f32.mrf.mxu0
      %v7624 = vadd.f32 %v7437, %v7623
      %v7625 = vpop.f32.mrf.mxu0
      %v7626 = vadd.f32 %v7439, %v7625
      %v7627 = vpop.f32.mrf.mxu0
      %v7628 = vadd.f32 %v7441, %v7627
      %v7629 = vpop.f32.mrf.mxu0
      %v7630 = vadd.f32 %v7443, %v7629
      %7631 = vdwg.mxu0
      %v7632 = vmax.f32 %v6545, %v7480
      %v7633 = vmax.f32 %v6547, %v7482
      %v7634 = vmax.f32 %v6549, %v7484
      %v7635 = vmax.f32 %v6551, %v7486
      %v7636 = vmax.f32 %v6561, %v7496
      %v7637 = vmax.f32 %v6563, %v7498
      %v7638 = vmax.f32 %v6565, %v7500
      %v7639 = vmax.f32 %v6567, %v7502
      %v7640 = vmax.f32 %v6577, %v7512
      %v7641 = vmax.f32 %v6579, %v7514
      %v7642 = vmax.f32 %v6581, %v7516
      %v7643 = vmax.f32 %v6583, %v7518
      %v7644 = vmax.f32 %v6593, %v7528
      %v7645 = vmax.f32 %v6595, %v7530
      %v7646 = vmax.f32 %v6597, %v7532
      %v7647 = vmax.f32 %v6599, %v7534
      %v7648 = vmax.f32 %v6609, %v7544
      %v7649 = vmax.f32 %v6611, %v7546
      %v7650 = vmax.f32 %v6613, %v7548
      %v7651 = vmax.f32 %v6615, %v7550
      %v7652 = vmax.f32 %v6625, %v7560
      %v7653 = vmax.f32 %v6627, %v7562
      %v7654 = vmax.f32 %v6629, %v7564
      %v7655 = vmax.f32 %v6631, %v7566
      %v7656 = vmax.f32 %v6641, %v7576
      %v7657 = vmax.f32 %v6643, %v7578
      %v7658 = vmax.f32 %v6645, %v7580
      %v7659 = vmax.f32 %v6647, %v7582
      %v7660 = vmax.f32 %v6657, %v7592
      %v7661 = vmax.f32 %v6659, %v7594
      %v7662 = vmax.f32 %v6661, %v7596
      %v7663 = vmax.f32 %v6663, %v7598
      %v7664 = vmax.f32 %v6673, %v7608
      %v7665 = vmax.f32 %v6675, %v7610
      %v7666 = vmax.f32 %v6677, %v7612
      %v7667 = vmax.f32 %v6679, %v7614
      %v7668 = vmax.f32 %v6689, %v7624
      %v7669 = vmax.f32 %v6691, %v7626
      %v7670 = vmax.f32 %v6693, %v7628
      %v7671 = vmax.f32 %v6695, %v7630
      %v7672 = vld [vmem:[%s2] sm:$0x3]
      %v7674 = vlaneseq
      %v7675 = vshrl.u32 %v7674, 7
      %v7676 = vsub.s32 0, %v7675
      %v7677 = vrot.slane %v7672, %v7676
      %v7678 = vlaneseq
      %v7679 = vshrl.u32 %v7678, 7
      %v7680 = vsub.s32 1, %v7679
      %v7681 = vrot.slane %v7672, %v7680
      %v7684 = vadd.f32 %v7632, %v7677
      %v7685 = vadd.f32 %v7633, %v7681
      %v7686 = vadd.f32 %v7634, %v7677
      %v7687 = vadd.f32 %v7635, %v7681
      %v7688 = vadd.f32 %v7636, %v7677
      %v7689 = vadd.f32 %v7637, %v7681
      %v7690 = vadd.f32 %v7638, %v7677
      %v7691 = vadd.f32 %v7639, %v7681
      %v7692 = vadd.f32 %v7640, %v7677
      %v7693 = vadd.f32 %v7641, %v7681
      %v7694 = vadd.f32 %v7642, %v7677
      %v7695 = vadd.f32 %v7643, %v7681
      %v7696 = vadd.f32 %v7644, %v7677
      %v7697 = vadd.f32 %v7645, %v7681
      %v7698 = vadd.f32 %v7646, %v7677
      %v7699 = vadd.f32 %v7647, %v7681
      %v7700 = vadd.f32 %v7648, %v7677
      %v7701 = vadd.f32 %v7649, %v7681
      %v7702 = vadd.f32 %v7650, %v7677
      %v7703 = vadd.f32 %v7651, %v7681
      %v7704 = vadd.f32 %v7652, %v7677
      %v7705 = vadd.f32 %v7653, %v7681
      %v7706 = vadd.f32 %v7654, %v7677
      %v7707 = vadd.f32 %v7655, %v7681
      %v7708 = vadd.f32 %v7656, %v7677
      %v7709 = vadd.f32 %v7657, %v7681
      %v7710 = vadd.f32 %v7658, %v7677
      %v7711 = vadd.f32 %v7659, %v7681
      %v7712 = vadd.f32 %v7660, %v7677
      %v7713 = vadd.f32 %v7661, %v7681
      %v7714 = vadd.f32 %v7662, %v7677
      %v7715 = vadd.f32 %v7663, %v7681
      %v7716 = vadd.f32 %v7664, %v7677
      %v7717 = vadd.f32 %v7665, %v7681
      %v7718 = vadd.f32 %v7666, %v7677
      %v7719 = vadd.f32 %v7667, %v7681
      %v7720 = vadd.f32 %v7668, %v7677
      %v7721 = vadd.f32 %v7669, %v7681
      %v7722 = vadd.f32 %v7670, %v7677
      %v7723 = vadd.f32 %v7671, %v7681
      %v7724 = vmax.f32 %v7684, 0.0
      %v7725 = vmax.f32 %v7685, 0.0
      %v7726 = vmax.f32 %v7686, 0.0
      %v7727 = vmax.f32 %v7687, 0.0
      %v7728 = vmax.f32 %v7688, 0.0
      %v7729 = vmax.f32 %v7689, 0.0
      %v7730 = vmax.f32 %v7690, 0.0
      %v7731 = vmax.f32 %v7691, 0.0
      %v7732 = vmax.f32 %v7692, 0.0
      %v7733 = vmax.f32 %v7693, 0.0
      %v7734 = vmax.f32 %v7694, 0.0
      %v7735 = vmax.f32 %v7695, 0.0
      %v7736 = vmax.f32 %v7696, 0.0
      %v7737 = vmax.f32 %v7697, 0.0
      %v7738 = vmax.f32 %v7698, 0.0
      %v7739 = vmax.f32 %v7699, 0.0
      %v7740 = vmax.f32 %v7700, 0.0
      %v7741 = vmax.f32 %v7701, 0.0
      %v7742 = vmax.f32 %v7702, 0.0
      %v7743 = vmax.f32 %v7703, 0.0
      %v7744 = vmax.f32 %v7704, 0.0
      %v7745 = vmax.f32 %v7705, 0.0
      %v7746 = vmax.f32 %v7706, 0.0
      %v7747 = vmax.f32 %v7707, 0.0
      %v7748 = vmax.f32 %v7708, 0.0
      %v7749 = vmax.f32 %v7709, 0.0
      %v7750 = vmax.f32 %v7710, 0.0
      %v7751 = vmax.f32 %v7711, 0.0
      %v7752 = vmax.f32 %v7712, 0.0
      %v7753 = vmax.f32 %v7713, 0.0
      %v7754 = vmax.f32 %v7714, 0.0
      %v7755 = vmax.f32 %v7715, 0.0
      %v7756 = vmax.f32 %v7716, 0.0
      %v7757 = vmax.f32 %v7717, 0.0
      %v7758 = vmax.f32 %v7718, 0.0
      %v7759 = vmax.f32 %v7719, 0.0
      %v7760 = vmax.f32 %v7720, 0.0
      %v7761 = vmax.f32 %v7721, 0.0
      %v7762 = vmax.f32 %v7722, 0.0
      %v7763 = vmax.f32 %v7723, 0.0
      %v7764 = vmax.f32 %v7724, %v7728
      %v7765 = vmax.f32 %v7725, %v7729
      %v7766 = vmax.f32 %v7726, %v7730
      %v7767 = vmax.f32 %v7727, %v7731
      %v7768 = vmax.f32 %v7732, %v7736
      %v7769 = vmax.f32 %v7733, %v7737
      %v7770 = vmax.f32 %v7734, %v7738
      %v7771 = vmax.f32 %v7735, %v7739
      %v7772 = vmax.f32 %v7740, %v7744
      %v7773 = vmax.f32 %v7741, %v7745
      %v7774 = vmax.f32 %v7742, %v7746
      %v7775 = vmax.f32 %v7743, %v7747
      %v7776 = vmax.f32 %v7748, %v7752
      %v7777 = vmax.f32 %v7749, %v7753
      %v7778 = vmax.f32 %v7750, %v7754
      %v7779 = vmax.f32 %v7751, %v7755
      %v7780 = vmax.f32 %v7756, %v7760
      %v7781 = vmax.f32 %v7757, %v7761
      %v7782 = vmax.f32 %v7758, %v7762
      %v7783 = vmax.f32 %v7759, %v7763
      %v7784 = vpack.c.bf16 %v7766, %v7764
      %v7785 = vpack.c.bf16 %v7767, %v7765
      %v7786 = vpack.c.bf16 %v7770, %v7768
      %v7787 = vpack.c.bf16 %v7771, %v7769
      %v7788 = vpack.c.bf16 %v7774, %v7772
      %v7789 = vpack.c.bf16 %v7775, %v7773
      %v7790 = vpack.c.bf16 %v7778, %v7776
      %v7791 = vpack.c.bf16 %v7779, %v7777
      %v7792 = vpack.c.bf16 %v7782, %v7780
      %v7793 = vpack.c.bf16 %v7783, %v7781
      %v7794 = vld [vmem:[%s4] sm:$0xf]
      %v7795 = vld [vmem:[%s4 + $0x4] sm:$0xf]
      %v7796 = vld [vmem:[%s4 + $0x8] sm:$0xf]
      %v7797 = vld [vmem:[%s4 + $0xc] sm:$0xf]
      %v7798 = vld [vmem:[%s4 + $0x10] sm:$0xf]
      %v7799 = vld [vmem:[%s4 + $0x14] sm:$0xf]
      %v7800 = vld [vmem:[%s4 + $0x18] sm:$0xf]
      %v7801 = vld [vmem:[%s4 + $0x1c] sm:$0xf]
      %v7802 = vld [vmem:[%s4 + $0x20] sm:$0xf]
      %v7803 = vld [vmem:[%s4 + $0x24] sm:$0xf]
      %v7804 = vld [vmem:[%s4 + $0x28] sm:$0xf]
      %v7805 = vld [vmem:[%s4 + $0x2c] sm:$0xf]
      %v7806 = vld [vmem:[%s4 + $0x30] sm:$0xf]
      %v7807 = vld [vmem:[%s4 + $0x34] sm:$0xf]
      %v7808 = vld [vmem:[%s4 + $0x38] sm:$0xf]
      %v7809 = vld [vmem:[%s4 + $0x3c] sm:$0xf]
      %v7810 = vld [vmem:[%s4 + $0x40] sm:$0xf]
      %v7811 = vld [vmem:[%s4 + $0x44] sm:$0xf]
      %v7812 = vld [vmem:[%s4 + $0x48] sm:$0xf]
      %v7813 = vld [vmem:[%s4 + $0x4c] sm:$0xf]
      %v7814 = vld [vmem:[%s4 + $0x50] sm:$0xf]
      %v7815 = vld [vmem:[%s4 + $0x54] sm:$0xf]
      %v7816 = vld [vmem:[%s4 + $0x58] sm:$0xf]
      %v7817 = vld [vmem:[%s4 + $0x5c] sm:$0xf]
      %v7818 = vld [vmem:[%s4 + $0x60] sm:$0xf]
      %v7819 = vld [vmem:[%s4 + $0x64] sm:$0xf]
      %v7820 = vld [vmem:[%s4 + $0x68] sm:$0xf]
      %v7821 = vld [vmem:[%s4 + $0x6c] sm:$0xf]
      %v7822 = vld [vmem:[%s4 + $0x70] sm:$0xf]
      %v7823 = vld [vmem:[%s4 + $0x74] sm:$0xf]
      %v7824 = vld [vmem:[%s4 + $0x78] sm:$0xf]
      %v7825 = vld [vmem:[%s4 + $0x7c] sm:$0xf]
      %v7826 = vld [vmem:[%s4 + $0x80] sm:$0xf]
      %v7827 = vld [vmem:[%s4 + $0x84] sm:$0xf]
      %v7828 = vld [vmem:[%s4 + $0x88] sm:$0xf]
      %v7829 = vld [vmem:[%s4 + $0x8c] sm:$0xf]
      %v7830 = vld [vmem:[%s4 + $0x90] sm:$0xf]
      %v7831 = vld [vmem:[%s4 + $0x94] sm:$0xf]
      %v7832 = vld [vmem:[%s4 + $0x98] sm:$0xf]
      %v7833 = vld [vmem:[%s4 + $0x9c] sm:$0xf]
      %v7834 = vld [vmem:[%s4 + $0xa0] sm:$0xf]
      %v7835 = vld [vmem:[%s4 + $0xa4] sm:$0xf]
      %v7836 = vld [vmem:[%s4 + $0xa8] sm:$0xf]
      %v7837 = vld [vmem:[%s4 + $0xac] sm:$0xf]
      %v7838 = vld [vmem:[%s4 + $0xb0] sm:$0xf]
      %v7839 = vld [vmem:[%s4 + $0xb4] sm:$0xf]
      %v7840 = vld [vmem:[%s4 + $0xb8] sm:$0xf]
      %v7841 = vld [vmem:[%s4 + $0xbc] sm:$0xf]
      %v7842 = vld [vmem:[%s4 + $0xc0] sm:$0xf]
      %v7843 = vld [vmem:[%s4 + $0xc4] sm:$0xf]
      %v7844 = vld [vmem:[%s4 + $0xc8] sm:$0xf]
      %v7845 = vld [vmem:[%s4 + $0xcc] sm:$0xf]
      %v7846 = vld [vmem:[%s4 + $0xd0] sm:$0xf]
      %v7847 = vld [vmem:[%s4 + $0xd4] sm:$0xf]
      %v7848 = vld [vmem:[%s4 + $0xd8] sm:$0xf]
      %v7849 = vld [vmem:[%s4 + $0xdc] sm:$0xf]
      %v7850 = vld [vmem:[%s4 + $0xe0] sm:$0xf]
      %v7851 = vld [vmem:[%s4 + $0xe4] sm:$0xf]
      %v7852 = vld [vmem:[%s4 + $0xe8] sm:$0xf]
      %v7853 = vld [vmem:[%s4 + $0xec] sm:$0xf]
      %v7854 = vld [vmem:[%s4 + $0xf0] sm:$0xf]
      %v7855 = vld [vmem:[%s4 + $0xf4] sm:$0xf]
      %v7856 = vld [vmem:[%s4 + $0xf8] sm:$0xf]
      %v7857 = vld [vmem:[%s4 + $0xfc] sm:$0xf]
      %v7858 = vld [vmem:[%s4 + $0x100] sm:$0xf]
      %v7859 = vld [vmem:[%s4 + $0x104] sm:$0xf]
      %v7860 = vld [vmem:[%s4 + $0x108] sm:$0xf]
      %v7861 = vld [vmem:[%s4 + $0x10c] sm:$0xf]
      %v7862 = vld [vmem:[%s4 + $0x110] sm:$0xf]
      %v7863 = vld [vmem:[%s4 + $0x114] sm:$0xf]
      %v7864 = vld [vmem:[%s4 + $0x118] sm:$0xf]
      %v7865 = vld [vmem:[%s4 + $0x11c] sm:$0xf]
      %v7866 = vld [vmem:[%s4 + $0x120] sm:$0xf]
      %v7867 = vld [vmem:[%s4 + $0x124] sm:$0xf]
      %v7868 = vld [vmem:[%s4 + $0x128] sm:$0xf]
      %v7869 = vld [vmem:[%s4 + $0x12c] sm:$0xf]
      %v7870 = vld [vmem:[%s4 + $0x130] sm:$0xf]
      %v7871 = vld [vmem:[%s4 + $0x134] sm:$0xf]
      %v7872 = vld [vmem:[%s4 + $0x138] sm:$0xf]
      %v7873 = vld [vmem:[%s4 + $0x13c] sm:$0xf]
      %v7874 = vld [vmem:[%s4 + $0x140] sm:$0xf]
      %v7875 = vld [vmem:[%s4 + $0x144] sm:$0xf]
      %v7876 = vld [vmem:[%s4 + $0x148] sm:$0xf]
      %v7877 = vld [vmem:[%s4 + $0x14c] sm:$0xf]
      %v7878 = vld [vmem:[%s4 + $0x150] sm:$0xf]
      %v7879 = vld [vmem:[%s4 + $0x154] sm:$0xf]
      %v7880 = vld [vmem:[%s4 + $0x158] sm:$0xf]
      %v7881 = vld [vmem:[%s4 + $0x15c] sm:$0xf]
      %v7882 = vld [vmem:[%s4 + $0x160] sm:$0xf]
      %v7883 = vld [vmem:[%s4 + $0x164] sm:$0xf]
      %v7884 = vld [vmem:[%s4 + $0x168] sm:$0xf]
      %v7885 = vld [vmem:[%s4 + $0x16c] sm:$0xf]
      %v7886 = vld [vmem:[%s4 + $0x170] sm:$0xf]
      %v7887 = vld [vmem:[%s4 + $0x174] sm:$0xf]
      %v7888 = vld [vmem:[%s4 + $0x178] sm:$0xf]
      %v7889 = vld [vmem:[%s4 + $0x17c] sm:$0xf]
      %v7890 = vld [vmem:[%s4 + $0x180] sm:$0xf]
      %v7891 = vld [vmem:[%s4 + $0x184] sm:$0xf]
      %v7892 = vld [vmem:[%s4 + $0x188] sm:$0xf]
      %v7893 = vld [vmem:[%s4 + $0x18c] sm:$0xf]
      %v7894 = vld [vmem:[%s4 + $0x190] sm:$0xf]
      %v7895 = vld [vmem:[%s4 + $0x194] sm:$0xf]
      %v7896 = vld [vmem:[%s4 + $0x198] sm:$0xf]
      %v7897 = vld [vmem:[%s4 + $0x19c] sm:$0xf]
      %v7898 = vld [vmem:[%s4 + $0x1a0] sm:$0xf]
      %v7899 = vld [vmem:[%s4 + $0x1a4] sm:$0xf]
      %v7900 = vld [vmem:[%s4 + $0x1a8] sm:$0xf]
      %v7901 = vld [vmem:[%s4 + $0x1ac] sm:$0xf]
      %v7902 = vld [vmem:[%s4 + $0x1b0] sm:$0xf]
      %v7903 = vld [vmem:[%s4 + $0x1b4] sm:$0xf]
      %v7904 = vld [vmem:[%s4 + $0x1b8] sm:$0xf]
      %v7905 = vld [vmem:[%s4 + $0x1bc] sm:$0xf]
      %v7906 = vld [vmem:[%s4 + $0x1c0] sm:$0xf]
      %v7907 = vld [vmem:[%s4 + $0x1c4] sm:$0xf]
      %v7908 = vld [vmem:[%s4 + $0x1c8] sm:$0xf]
      %v7909 = vld [vmem:[%s4 + $0x1cc] sm:$0xf]
      %v7910 = vld [vmem:[%s4 + $0x1d0] sm:$0xf]
      %v7911 = vld [vmem:[%s4 + $0x1d4] sm:$0xf]
      %v7912 = vld [vmem:[%s4 + $0x1d8] sm:$0xf]
      %v7913 = vld [vmem:[%s4 + $0x1dc] sm:$0xf]
      %v7914 = vld [vmem:[%s4 + $0x1e0] sm:$0xf]
      %v7915 = vld [vmem:[%s4 + $0x1e4] sm:$0xf]
      %v7916 = vld [vmem:[%s4 + $0x1e8] sm:$0xf]
      %v7917 = vld [vmem:[%s4 + $0x1ec] sm:$0xf]
      %v7918 = vld [vmem:[%s4 + $0x1f0] sm:$0xf]
      %v7919 = vld [vmem:[%s4 + $0x1f4] sm:$0xf]
      %v7920 = vld [vmem:[%s4 + $0x1f8] sm:$0xf]
      %v7921 = vld [vmem:[%s4 + $0x1fc] sm:$0xf]
      %v7922 = vld [vmem:[%s4 + $0x200] sm:$0xf]
      %v7923 = vld [vmem:[%s4 + $0x204] sm:$0xf]
      %v7924 = vld [vmem:[%s4 + $0x208] sm:$0xf]
      %v7925 = vld [vmem:[%s4 + $0x20c] sm:$0xf]
      %v7926 = vld [vmem:[%s4 + $0x210] sm:$0xf]
      %v7927 = vld [vmem:[%s4 + $0x214] sm:$0xf]
      %v7928 = vld [vmem:[%s4 + $0x218] sm:$0xf]
      %v7929 = vld [vmem:[%s4 + $0x21c] sm:$0xf]
      %v7930 = vld [vmem:[%s4 + $0x220] sm:$0xf]
      %v7931 = vld [vmem:[%s4 + $0x224] sm:$0xf]
      %v7932 = vld [vmem:[%s4 + $0x228] sm:$0xf]
      %v7933 = vld [vmem:[%s4 + $0x22c] sm:$0xf]
      %v7934 = vld [vmem:[%s4 + $0x230] sm:$0xf]
      %v7935 = vld [vmem:[%s4 + $0x234] sm:$0xf]
      %v7936 = vld [vmem:[%s4 + $0x238] sm:$0xf]
      %v7937 = vld [vmem:[%s4 + $0x23c] sm:$0xf]
      %v7938 = vld [vmem:[%s4 + $0x240] sm:$0xf]
      %v7939 = vld [vmem:[%s4 + $0x244] sm:$0xf]
      %v7940 = vld [vmem:[%s4 + $0x248] sm:$0xf]
      %v7941 = vld [vmem:[%s4 + $0x24c] sm:$0xf]
      %v7942 = vld [vmem:[%s4 + $0x250] sm:$0xf]
      %v7943 = vld [vmem:[%s4 + $0x254] sm:$0xf]
      %v7944 = vld [vmem:[%s4 + $0x258] sm:$0xf]
      %v7945 = vld [vmem:[%s4 + $0x25c] sm:$0xf]
      %v7946 = vld [vmem:[%s4 + $0x260] sm:$0xf]
      %v7947 = vld [vmem:[%s4 + $0x264] sm:$0xf]
      %v7948 = vld [vmem:[%s4 + $0x268] sm:$0xf]
      %v7949 = vld [vmem:[%s4 + $0x26c] sm:$0xf]
      %v7950 = vld [vmem:[%s4 + $0x270] sm:$0xf]
      %v7951 = vld [vmem:[%s4 + $0x274] sm:$0xf]
      %v7952 = vld [vmem:[%s4 + $0x278] sm:$0xf]
      %v7953 = vld [vmem:[%s4 + $0x27c] sm:$0xf]
      %v7954 = vld [vmem:[%s5] sm:$0x1]
      %v7956 = vlaneseq
      %v7957 = vshrl.u32 %v7956, 7
      %v7958 = vsub.s32 0, %v7957
      %v7959 = vrot.slane %v7954, %v7958
      %v8121 = vunpack.c.l.b16 %v7794
      %v8122 = vunpack.c.l.b16 %v7795
      %v8123 = vunpack.c.l.b16 %v7796
      %v8124 = vunpack.c.l.b16 %v7797
      %v8125 = vunpack.c.l.b16 %v7798
      %v8126 = vunpack.c.l.b16 %v7799
      %v8127 = vunpack.c.l.b16 %v7800
      %v8128 = vunpack.c.l.b16 %v7801
      %v8129 = vunpack.c.l.b16 %v7802
      %v8130 = vunpack.c.l.b16 %v7803
      %v8131 = vunpack.c.l.b16 %v7804
      %v8132 = vunpack.c.l.b16 %v7805
      %v8133 = vunpack.c.l.b16 %v7806
      %v8134 = vunpack.c.l.b16 %v7807
      %v8135 = vunpack.c.l.b16 %v7808
      %v8136 = vunpack.c.l.b16 %v7809
      %v8137 = vunpack.c.l.b16 %v7810
      %v8138 = vunpack.c.l.b16 %v7811
      %v8139 = vunpack.c.l.b16 %v7812
      %v8140 = vunpack.c.l.b16 %v7813
      %v8141 = vunpack.c.l.b16 %v7814
      %v8142 = vunpack.c.l.b16 %v7815
      %v8143 = vunpack.c.l.b16 %v7816
      %v8144 = vunpack.c.l.b16 %v7817
      %v8145 = vunpack.c.l.b16 %v7818
      %v8146 = vunpack.c.l.b16 %v7819
      %v8147 = vunpack.c.l.b16 %v7820
      %v8148 = vunpack.c.l.b16 %v7821
      %v8149 = vunpack.c.l.b16 %v7822
      %v8150 = vunpack.c.l.b16 %v7823
      %v8151 = vunpack.c.l.b16 %v7824
      %v8152 = vunpack.c.l.b16 %v7825
      %v8153 = vunpack.c.l.b16 %v7826
      %v8154 = vunpack.c.l.b16 %v7827
      %v8155 = vunpack.c.l.b16 %v7828
      %v8156 = vunpack.c.l.b16 %v7829
      %v8157 = vunpack.c.l.b16 %v7830
      %v8158 = vunpack.c.l.b16 %v7831
      %v8159 = vunpack.c.l.b16 %v7832
      %v8160 = vunpack.c.l.b16 %v7833
      %v8161 = vunpack.c.l.b16 %v7834
      %v8162 = vunpack.c.l.b16 %v7835
      %v8163 = vunpack.c.l.b16 %v7836
      %v8164 = vunpack.c.l.b16 %v7837
      %v8165 = vunpack.c.l.b16 %v7838
      %v8166 = vunpack.c.l.b16 %v7839
      %v8167 = vunpack.c.l.b16 %v7840
      %v8168 = vunpack.c.l.b16 %v7841
      %v8169 = vunpack.c.l.b16 %v7842
      %v8170 = vunpack.c.l.b16 %v7843
      %v8171 = vunpack.c.l.b16 %v7844
      %v8172 = vunpack.c.l.b16 %v7845
      %v8173 = vunpack.c.l.b16 %v7846
      %v8174 = vunpack.c.l.b16 %v7847
      %v8175 = vunpack.c.l.b16 %v7848
      %v8176 = vunpack.c.l.b16 %v7849
      %v8177 = vunpack.c.l.b16 %v7850
      %v8178 = vunpack.c.l.b16 %v7851
      %v8179 = vunpack.c.l.b16 %v7852
      %v8180 = vunpack.c.l.b16 %v7853
      %v8181 = vunpack.c.l.b16 %v7854
      %v8182 = vunpack.c.l.b16 %v7855
      %v8183 = vunpack.c.l.b16 %v7856
      %v8184 = vunpack.c.l.b16 %v7857
      %v8185 = vunpack.c.l.b16 %v7858
      %v8186 = vunpack.c.l.b16 %v7859
      %v8187 = vunpack.c.l.b16 %v7860
      %v8188 = vunpack.c.l.b16 %v7861
      %v8189 = vunpack.c.l.b16 %v7862
      %v8190 = vunpack.c.l.b16 %v7863
      %v8191 = vunpack.c.l.b16 %v7864
      %v8192 = vunpack.c.l.b16 %v7865
      %v8193 = vunpack.c.l.b16 %v7866
      %v8194 = vunpack.c.l.b16 %v7867
      %v8195 = vunpack.c.l.b16 %v7868
      %v8196 = vunpack.c.l.b16 %v7869
      %v8197 = vunpack.c.l.b16 %v7870
      %v8198 = vunpack.c.l.b16 %v7871
      %v8199 = vunpack.c.l.b16 %v7872
      %v8200 = vunpack.c.l.b16 %v7873
      %v8201 = vunpack.c.l.b16 %v7874
      %v8202 = vunpack.c.l.b16 %v7875
      %v8203 = vunpack.c.l.b16 %v7876
      %v8204 = vunpack.c.l.b16 %v7877
      %v8205 = vunpack.c.l.b16 %v7878
      %v8206 = vunpack.c.l.b16 %v7879
      %v8207 = vunpack.c.l.b16 %v7880
      %v8208 = vunpack.c.l.b16 %v7881
      %v8209 = vunpack.c.l.b16 %v7882
      %v8210 = vunpack.c.l.b16 %v7883
      %v8211 = vunpack.c.l.b16 %v7884
      %v8212 = vunpack.c.l.b16 %v7885
      %v8213 = vunpack.c.l.b16 %v7886
      %v8214 = vunpack.c.l.b16 %v7887
      %v8215 = vunpack.c.l.b16 %v7888
      %v8216 = vunpack.c.l.b16 %v7889
      %v8217 = vunpack.c.l.b16 %v7890
      %v8218 = vunpack.c.l.b16 %v7891
      %v8219 = vunpack.c.l.b16 %v7892
      %v8220 = vunpack.c.l.b16 %v7893
      %v8221 = vunpack.c.l.b16 %v7894
      %v8222 = vunpack.c.l.b16 %v7895
      %v8223 = vunpack.c.l.b16 %v7896
      %v8224 = vunpack.c.l.b16 %v7897
      %v8225 = vunpack.c.l.b16 %v7898
      %v8226 = vunpack.c.l.b16 %v7899
      %v8227 = vunpack.c.l.b16 %v7900
      %v8228 = vunpack.c.l.b16 %v7901
      %v8229 = vunpack.c.l.b16 %v7902
      %v8230 = vunpack.c.l.b16 %v7903
      %v8231 = vunpack.c.l.b16 %v7904
      %v8232 = vunpack.c.l.b16 %v7905
      %v8233 = vunpack.c.l.b16 %v7906
      %v8234 = vunpack.c.l.b16 %v7907
      %v8235 = vunpack.c.l.b16 %v7908
      %v8236 = vunpack.c.l.b16 %v7909
      %v8237 = vunpack.c.l.b16 %v7910
      %v8238 = vunpack.c.l.b16 %v7911
      %v8239 = vunpack.c.l.b16 %v7912
      %v8240 = vunpack.c.l.b16 %v7913
      %v8241 = vunpack.c.l.b16 %v7914
      %v8242 = vunpack.c.l.b16 %v7915
      %v8243 = vunpack.c.l.b16 %v7916
      %v8244 = vunpack.c.l.b16 %v7917
      %v8245 = vunpack.c.l.b16 %v7918
      %v8246 = vunpack.c.l.b16 %v7919
      %v8247 = vunpack.c.l.b16 %v7920
      %v8248 = vunpack.c.l.b16 %v7921
      %v8249 = vunpack.c.l.b16 %v7922
      %v8250 = vunpack.c.l.b16 %v7923
      %v8251 = vunpack.c.l.b16 %v7924
      %v8252 = vunpack.c.l.b16 %v7925
      %v8253 = vunpack.c.l.b16 %v7926
      %v8254 = vunpack.c.l.b16 %v7927
      %v8255 = vunpack.c.l.b16 %v7928
      %v8256 = vunpack.c.l.b16 %v7929
      %v8257 = vunpack.c.l.b16 %v7930
      %v8258 = vunpack.c.l.b16 %v7931
      %v8259 = vunpack.c.l.b16 %v7932
      %v8260 = vunpack.c.l.b16 %v7933
      %v8261 = vunpack.c.l.b16 %v7934
      %v8262 = vunpack.c.l.b16 %v7935
      %v8263 = vunpack.c.l.b16 %v7936
      %v8264 = vunpack.c.l.b16 %v7937
      %v8265 = vunpack.c.l.b16 %v7938
      %v8266 = vunpack.c.l.b16 %v7939
      %v8267 = vunpack.c.l.b16 %v7940
      %v8268 = vunpack.c.l.b16 %v7941
      %v8269 = vunpack.c.l.b16 %v7942
      %v8270 = vunpack.c.l.b16 %v7943
      %v8271 = vunpack.c.l.b16 %v7944
      %v8272 = vunpack.c.l.b16 %v7945
      %v8273 = vunpack.c.l.b16 %v7946
      %v8274 = vunpack.c.l.b16 %v7947
      %v8275 = vunpack.c.l.b16 %v7948
      %v8276 = vunpack.c.l.b16 %v7949
      %v8277 = vunpack.c.l.b16 %v7950
      %v8278 = vunpack.c.l.b16 %v7951
      %v8279 = vunpack.c.l.b16 %v7952
      %v8280 = vunpack.c.l.b16 %v7953
      %v8281 = vpack.c.b16 %v8122, %v8121
      %v8282 = vpack.c.b16 %v8124, %v8123
      %v8283 = vpack.c.b16 %v8126, %v8125
      %v8284 = vpack.c.b16 %v8128, %v8127
      %v8285 = vpack.c.b16 %v8130, %v8129
      %v8286 = vpack.c.b16 %v8132, %v8131
      %v8287 = vpack.c.b16 %v8134, %v8133
      %v8288 = vpack.c.b16 %v8136, %v8135
      %v8289 = vpack.c.b16 %v8138, %v8137
      %v8290 = vpack.c.b16 %v8140, %v8139
      %v8291 = vpack.c.b16 %v8142, %v8141
      %v8292 = vpack.c.b16 %v8144, %v8143
      %v8293 = vpack.c.b16 %v8146, %v8145
      %v8294 = vpack.c.b16 %v8148, %v8147
      %v8295 = vpack.c.b16 %v8150, %v8149
      %v8296 = vpack.c.b16 %v8152, %v8151
      %v8297 = vpack.c.b16 %v8154, %v8153
      %v8298 = vpack.c.b16 %v8156, %v8155
      %v8299 = vpack.c.b16 %v8158, %v8157
      %v8300 = vpack.c.b16 %v8160, %v8159
      %v8301 = vpack.c.b16 %v8162, %v8161
      %v8302 = vpack.c.b16 %v8164, %v8163
      %v8303 = vpack.c.b16 %v8166, %v8165
      %v8304 = vpack.c.b16 %v8168, %v8167
      %v8305 = vpack.c.b16 %v8170, %v8169
      %v8306 = vpack.c.b16 %v8172, %v8171
      %v8307 = vpack.c.b16 %v8174, %v8173
      %v8308 = vpack.c.b16 %v8176, %v8175
      %v8309 = vpack.c.b16 %v8178, %v8177
      %v8310 = vpack.c.b16 %v8180, %v8179
      %v8311 = vpack.c.b16 %v8182, %v8181
      %v8312 = vpack.c.b16 %v8184, %v8183
      %v8313 = vpack.c.b16 %v8186, %v8185
      %v8314 = vpack.c.b16 %v8188, %v8187
      %v8315 = vpack.c.b16 %v8190, %v8189
      %v8316 = vpack.c.b16 %v8192, %v8191
      %v8317 = vpack.c.b16 %v8194, %v8193
      %v8318 = vpack.c.b16 %v8196, %v8195
      %v8319 = vpack.c.b16 %v8198, %v8197
      %v8320 = vpack.c.b16 %v8200, %v8199
      %v8321 = vpack.c.b16 %v8202, %v8201
      %v8322 = vpack.c.b16 %v8204, %v8203
      %v8323 = vpack.c.b16 %v8206, %v8205
      %v8324 = vpack.c.b16 %v8208, %v8207
      %v8325 = vpack.c.b16 %v8210, %v8209
      %v8326 = vpack.c.b16 %v8212, %v8211
      %v8327 = vpack.c.b16 %v8214, %v8213
      %v8328 = vpack.c.b16 %v8216, %v8215
      %v8329 = vpack.c.b16 %v8218, %v8217
      %v8330 = vpack.c.b16 %v8220, %v8219
      %v8331 = vpack.c.b16 %v8222, %v8221
      %v8332 = vpack.c.b16 %v8224, %v8223
      %v8333 = vpack.c.b16 %v8226, %v8225
      %v8334 = vpack.c.b16 %v8228, %v8227
      %v8335 = vpack.c.b16 %v8230, %v8229
      %v8336 = vpack.c.b16 %v8232, %v8231
      %v8337 = vpack.c.b16 %v8234, %v8233
      %v8338 = vpack.c.b16 %v8236, %v8235
      %v8339 = vpack.c.b16 %v8238, %v8237
      %v8340 = vpack.c.b16 %v8240, %v8239
      %v8341 = vpack.c.b16 %v8242, %v8241
      %v8342 = vpack.c.b16 %v8244, %v8243
      %v8343 = vpack.c.b16 %v8246, %v8245
      %v8344 = vpack.c.b16 %v8248, %v8247
      %v8345 = vpack.c.b16 %v8250, %v8249
      %v8346 = vpack.c.b16 %v8252, %v8251
      %v8347 = vpack.c.b16 %v8254, %v8253
      %v8348 = vpack.c.b16 %v8256, %v8255
      %v8349 = vpack.c.b16 %v8258, %v8257
      %v8350 = vpack.c.b16 %v8260, %v8259
      %v8351 = vpack.c.b16 %v8262, %v8261
      %v8352 = vpack.c.b16 %v8264, %v8263
      %v8353 = vpack.c.b16 %v8266, %v8265
      %v8354 = vpack.c.b16 %v8268, %v8267
      %v8355 = vpack.c.b16 %v8270, %v8269
      %v8356 = vpack.c.b16 %v8272, %v8271
      %v8357 = vpack.c.b16 %v8274, %v8273
      %v8358 = vpack.c.b16 %v8276, %v8275
      %v8359 = vpack.c.b16 %v8278, %v8277
      %v8360 = vpack.c.b16 %v8280, %v8279
      %8441 = vmatprep.subr.bf16.mxu0 0
      %8442 = vmatpush1.bf16.msra.mxu0 %v8288
      %8443 = vmatprep.subr.bf16.mxu0 0
      %8444 = vmatpush1.bf16.msra.mxu0 %v8287
      %8445 = vmatprep.subr.bf16.mxu0 0
      %8446 = vmatpush1.bf16.msra.mxu0 %v8286
      %8447 = vmatprep.subr.bf16.mxu0 0
      %8448 = vmatpush1.bf16.msra.mxu0 %v8285
      %8449 = vmatprep.subr.bf16.mxu0 0
      %8450 = vmatpush1.bf16.msra.mxu0 %v8284
      %8451 = vmatprep.subr.bf16.mxu0 0
      %8452 = vmatpush1.bf16.msra.mxu0 %v8283
      %8453 = vmatprep.subr.bf16.mxu0 0
      %8454 = vmatpush1.bf16.msra.mxu0 %v8282
      %8455 = vmatprep.subr.bf16.mxu0 0
      %8456 = vmatpush1.bf16.msra.mxu0 %v8281
      %8457 = vmatprep.subr.bf16.mxu0 0
      %8458 = vmatpush2.bf16.msra.mxu0 %v8296
      %8459 = vmatprep.subr.bf16.mxu0 0
      %8460 = vmatpush2.bf16.msra.mxu0 %v8295
      %8461 = vmatprep.subr.bf16.mxu0 0
      %8462 = vmatpush2.bf16.msra.mxu0 %v8294
      %8463 = vmatprep.subr.bf16.mxu0 0
      %8464 = vmatpush2.bf16.msra.mxu0 %v8293
      %8465 = vmatprep.subr.bf16.mxu0 0
      %8466 = vmatpush2.bf16.msra.mxu0 %v8292
      %8467 = vmatprep.subr.bf16.mxu0 0
      %8468 = vmatpush2.bf16.msra.mxu0 %v8291
      %8469 = vmatprep.subr.bf16.mxu0 0
      %8470 = vmatpush2.bf16.msra.mxu0 %v8290
      %8471 = vmatprep.subr.bf16.mxu0 0
      %8472 = vmatpush2.bf16.msra.mxu0 %v8289
      %8473 = vmatprep.mubr.bf16.mxu0 %v7785
      %8474 = vmatmul.mubr.bf16.gmra.mxu0 %v7784
      %v8475 = vpop.f32.mrf.mxu0
      %v8476 = vadd.f32 %v7959, %v8475
      %v8477 = vpop.f32.mrf.mxu0
      %v8478 = vpop.f32.mrf.mxu0
      %v8479 = vadd.f32 %v7959, %v8478
      %v8480 = vpop.f32.mrf.mxu0
      %8481 = vdwg.mxu0
      %8482 = vmatprep.subr.bf16.mxu0 0
      %8483 = vmatpush1.bf16.msra.mxu0 %v8304
      %8484 = vmatprep.subr.bf16.mxu0 0
      %8485 = vmatpush1.bf16.msra.mxu0 %v8303
      %8486 = vmatprep.subr.bf16.mxu0 0
      %8487 = vmatpush1.bf16.msra.mxu0 %v8302
      %8488 = vmatprep.subr.bf16.mxu0 0
      %8489 = vmatpush1.bf16.msra.mxu0 %v8301
      %8490 = vmatprep.subr.bf16.mxu0 0
      %8491 = vmatpush1.bf16.msra.mxu0 %v8300
      %8492 = vmatprep.subr.bf16.mxu0 0
      %8493 = vmatpush1.bf16.msra.mxu0 %v8299
      %8494 = vmatprep.subr.bf16.mxu0 0
      %8495 = vmatpush1.bf16.msra.mxu0 %v8298
      %8496 = vmatprep.subr.bf16.mxu0 0
      %8497 = vmatpush1.bf16.msra.mxu0 %v8297
      %8498 = vmatprep.subr.bf16.mxu0 0
      %8499 = vmatpush2.bf16.msra.mxu0 %v8312
      %8500 = vmatprep.subr.bf16.mxu0 0
      %8501 = vmatpush2.bf16.msra.mxu0 %v8311
      %8502 = vmatprep.subr.bf16.mxu0 0
      %8503 = vmatpush2.bf16.msra.mxu0 %v8310
      %8504 = vmatprep.subr.bf16.mxu0 0
      %8505 = vmatpush2.bf16.msra.mxu0 %v8309
      %8506 = vmatprep.subr.bf16.mxu0 0
      %8507 = vmatpush2.bf16.msra.mxu0 %v8308
      %8508 = vmatprep.subr.bf16.mxu0 0
      %8509 = vmatpush2.bf16.msra.mxu0 %v8307
      %8510 = vmatprep.subr.bf16.mxu0 0
      %8511 = vmatpush2.bf16.msra.mxu0 %v8306
      %8512 = vmatprep.subr.bf16.mxu0 0
      %8513 = vmatpush2.bf16.msra.mxu0 %v8305
      %8514 = vmatprep.mubr.bf16.mxu0 %v7787
      %8515 = vmatmul.mubr.bf16.gmra.mxu0 %v7786
      %v8516 = vpop.f32.mrf.mxu0
      %v8517 = vadd.f32 %v8476, %v8516
      %v8518 = vpop.f32.mrf.mxu0
      %v8519 = vpop.f32.mrf.mxu0
      %v8520 = vadd.f32 %v8479, %v8519
      %v8521 = vpop.f32.mrf.mxu0
      %8522 = vdwg.mxu0
      %8523 = vmatprep.subr.bf16.mxu0 0
      %8524 = vmatpush1.bf16.msra.mxu0 %v8320
      %8525 = vmatprep.subr.bf16.mxu0 0
      %8526 = vmatpush1.bf16.msra.mxu0 %v8319
      %8527 = vmatprep.subr.bf16.mxu0 0
      %8528 = vmatpush1.bf16.msra.mxu0 %v8318
      %8529 = vmatprep.subr.bf16.mxu0 0
      %8530 = vmatpush1.bf16.msra.mxu0 %v8317
      %8531 = vmatprep.subr.bf16.mxu0 0
      %8532 = vmatpush1.bf16.msra.mxu0 %v8316
      %8533 = vmatprep.subr.bf16.mxu0 0
      %8534 = vmatpush1.bf16.msra.mxu0 %v8315
      %8535 = vmatprep.subr.bf16.mxu0 0
      %8536 = vmatpush1.bf16.msra.mxu0 %v8314
      %8537 = vmatprep.subr.bf16.mxu0 0
      %8538 = vmatpush1.bf16.msra.mxu0 %v8313
      %8539 = vmatprep.subr.bf16.mxu0 0
      %8540 = vmatpush2.bf16.msra.mxu0 %v8328
      %8541 = vmatprep.subr.bf16.mxu0 0
      %8542 = vmatpush2.bf16.msra.mxu0 %v8327
      %8543 = vmatprep.subr.bf16.mxu0 0
      %8544 = vmatpush2.bf16.msra.mxu0 %v8326
      %8545 = vmatprep.subr.bf16.mxu0 0
      %8546 = vmatpush2.bf16.msra.mxu0 %v8325
      %8547 = vmatprep.subr.bf16.mxu0 0
      %8548 = vmatpush2.bf16.msra.mxu0 %v8324
      %8549 = vmatprep.subr.bf16.mxu0 0
      %8550 = vmatpush2.bf16.msra.mxu0 %v8323
      %8551 = vmatprep.subr.bf16.mxu0 0
      %8552 = vmatpush2.bf16.msra.mxu0 %v8322
      %8553 = vmatprep.subr.bf16.mxu0 0
      %8554 = vmatpush2.bf16.msra.mxu0 %v8321
      %8555 = vmatprep.mubr.bf16.mxu0 %v7789
      %8556 = vmatmul.mubr.bf16.gmra.mxu0 %v7788
      %v8557 = vpop.f32.mrf.mxu0
      %v8558 = vadd.f32 %v8517, %v8557
      %v8559 = vpop.f32.mrf.mxu0
      %v8560 = vpop.f32.mrf.mxu0
      %v8561 = vadd.f32 %v8520, %v8560
      %v8562 = vpop.f32.mrf.mxu0
      %8563 = vdwg.mxu0
      %8564 = vmatprep.subr.bf16.mxu0 0
      %8565 = vmatpush1.bf16.msra.mxu0 %v8336
      %8566 = vmatprep.subr.bf16.mxu0 0
      %8567 = vmatpush1.bf16.msra.mxu0 %v8335
      %8568 = vmatprep.subr.bf16.mxu0 0
      %8569 = vmatpush1.bf16.msra.mxu0 %v8334
      %8570 = vmatprep.subr.bf16.mxu0 0
      %8571 = vmatpush1.bf16.msra.mxu0 %v8333
      %8572 = vmatprep.subr.bf16.mxu0 0
      %8573 = vmatpush1.bf16.msra.mxu0 %v8332
      %8574 = vmatprep.subr.bf16.mxu0 0
      %8575 = vmatpush1.bf16.msra.mxu0 %v8331
      %8576 = vmatprep.subr.bf16.mxu0 0
      %8577 = vmatpush1.bf16.msra.mxu0 %v8330
      %8578 = vmatprep.subr.bf16.mxu0 0
      %8579 = vmatpush1.bf16.msra.mxu0 %v8329
      %8580 = vmatprep.subr.bf16.mxu0 0
      %8581 = vmatpush2.bf16.msra.mxu0 %v8344
      %8582 = vmatprep.subr.bf16.mxu0 0
      %8583 = vmatpush2.bf16.msra.mxu0 %v8343
      %8584 = vmatprep.subr.bf16.mxu0 0
      %8585 = vmatpush2.bf16.msra.mxu0 %v8342
      %8586 = vmatprep.subr.bf16.mxu0 0
      %8587 = vmatpush2.bf16.msra.mxu0 %v8341
      %8588 = vmatprep.subr.bf16.mxu0 0
      %8589 = vmatpush2.bf16.msra.mxu0 %v8340
      %8590 = vmatprep.subr.bf16.mxu0 0
      %8591 = vmatpush2.bf16.msra.mxu0 %v8339
      %8592 = vmatprep.subr.bf16.mxu0 0
      %8593 = vmatpush2.bf16.msra.mxu0 %v8338
      %8594 = vmatprep.subr.bf16.mxu0 0
      %8595 = vmatpush2.bf16.msra.mxu0 %v8337
      %8596 = vmatprep.mubr.bf16.mxu0 %v7791
      %8597 = vmatmul.mubr.bf16.gmra.mxu0 %v7790
      %v8598 = vpop.f32.mrf.mxu0
      %v8599 = vadd.f32 %v8558, %v8598
      %v8600 = vpop.f32.mrf.mxu0
      %v8601 = vpop.f32.mrf.mxu0
      %v8602 = vadd.f32 %v8561, %v8601
      %v8603 = vpop.f32.mrf.mxu0
      %8604 = vdwg.mxu0
      %8605 = vmatprep.subr.bf16.mxu0 0
      %8606 = vmatpush1.bf16.msra.mxu0 %v8352
      %8607 = vmatprep.subr.bf16.mxu0 0
      %8608 = vmatpush1.bf16.msra.mxu0 %v8351
      %8609 = vmatprep.subr.bf16.mxu0 0
      %8610 = vmatpush1.bf16.msra.mxu0 %v8350
      %8611 = vmatprep.subr.bf16.mxu0 0
      %8612 = vmatpush1.bf16.msra.mxu0 %v8349
      %8613 = vmatprep.subr.bf16.mxu0 0
      %8614 = vmatpush1.bf16.msra.mxu0 %v8348
      %8615 = vmatprep.subr.bf16.mxu0 0
      %8616 = vmatpush1.bf16.msra.mxu0 %v8347
      %8617 = vmatprep.subr.bf16.mxu0 0
      %8618 = vmatpush1.bf16.msra.mxu0 %v8346
      %8619 = vmatprep.subr.bf16.mxu0 0
      %8620 = vmatpush1.bf16.msra.mxu0 %v8345
      %8621 = vmatprep.subr.bf16.mxu0 0
      %8622 = vmatpush2.bf16.msra.mxu0 %v8360
      %8623 = vmatprep.subr.bf16.mxu0 0
      %8624 = vmatpush2.bf16.msra.mxu0 %v8359
      %8625 = vmatprep.subr.bf16.mxu0 0
      %8626 = vmatpush2.bf16.msra.mxu0 %v8358
      %8627 = vmatprep.subr.bf16.mxu0 0
      %8628 = vmatpush2.bf16.msra.mxu0 %v8357
      %8629 = vmatprep.subr.bf16.mxu0 0
      %8630 = vmatpush2.bf16.msra.mxu0 %v8356
      %8631 = vmatprep.subr.bf16.mxu0 0
      %8632 = vmatpush2.bf16.msra.mxu0 %v8355
      %8633 = vmatprep.subr.bf16.mxu0 0
      %8634 = vmatpush2.bf16.msra.mxu0 %v8354
      %8635 = vmatprep.subr.bf16.mxu0 0
      %8636 = vmatpush2.bf16.msra.mxu0 %v8353
      %8637 = vmatprep.mubr.bf16.mxu0 %v7793
      %8638 = vmatmul.mubr.bf16.gmra.mxu0 %v7792
      %v8639 = vpop.f32.mrf.mxu0
      %v8640 = vadd.f32 %v8599, %v8639
      %v8641 = vpop.f32.mrf.mxu0
      %v8642 = vpop.f32.mrf.mxu0
      %v8643 = vadd.f32 %v8602, %v8642
      %v8644 = vpop.f32.mrf.mxu0
      %8645 = vdwg.mxu0
      %v8646 = vmax.f32 %v8640, 0.0
      %v8647 = vmax.f32 %v8643, 0.0
      %v8648 = vpack.c.bf16 %v8647, %v8646
      %v8649 = vld [vmem:[%s6] sm:$0xf]
      %v8650 = vld [vmem:[%s6 + $0x4] sm:$0xf]
      %v8651 = vld [vmem:[%s6 + $0x8] sm:$0xf]
      %v8652 = vld [vmem:[%s6 + $0xc] sm:$0xf]
      %v8653 = vld [vmem:[%s6 + $0x10] sm:$0xf]
      %v8654 = vld [vmem:[%s6 + $0x14] sm:$0xf]
      %v8655 = vld [vmem:[%s6 + $0x18] sm:$0xf]
      %v8656 = vld [vmem:[%s6 + $0x1c] sm:$0xf]
      %v8657 = vld [vmem:[%s6 + $0x20] sm:$0xf]
      %v8658 = vld [vmem:[%s6 + $0x24] sm:$0xf]
      %v8659 = vld [vmem:[%s6 + $0x28] sm:$0xf]
      %v8660 = vld [vmem:[%s6 + $0x2c] sm:$0xf]
      %v8661 = vld [vmem:[%s6 + $0x30] sm:$0xf]
      %v8662 = vld [vmem:[%s6 + $0x34] sm:$0xf]
      %v8663 = vld [vmem:[%s6 + $0x38] sm:$0xf]
      %v8664 = vld [vmem:[%s6 + $0x3c] sm:$0xf]
      %v8665 = vld [vmem:[%s7] sm:$0x1]
      %v8667 = vlaneseq
      %v8668 = vshrl.u32 %v8667, 7
      %v8669 = vsub.s32 0, %v8668
      %v8670 = vrot.slane %v8665, %v8669
      %v8688 = vunpack.c.l.b16 %v8649
      %v8689 = vunpack.c.l.b16 %v8650
      %v8690 = vunpack.c.l.b16 %v8651
      %v8691 = vunpack.c.l.b16 %v8652
      %v8692 = vunpack.c.l.b16 %v8653
      %v8693 = vunpack.c.l.b16 %v8654
      %v8694 = vunpack.c.l.b16 %v8655
      %v8695 = vunpack.c.l.b16 %v8656
      %v8696 = vunpack.c.l.b16 %v8657
      %v8697 = vunpack.c.l.b16 %v8658
      %v8698 = vunpack.c.l.b16 %v8659
      %v8699 = vunpack.c.l.b16 %v8660
      %v8700 = vunpack.c.l.b16 %v8661
      %v8701 = vunpack.c.l.b16 %v8662
      %v8702 = vunpack.c.l.b16 %v8663
      %v8703 = vunpack.c.l.b16 %v8664
      %v8704 = vpack.c.b16 %v8689, %v8688
      %v8705 = vpack.c.b16 %v8691, %v8690
      %v8706 = vpack.c.b16 %v8693, %v8692
      %v8707 = vpack.c.b16 %v8695, %v8694
      %v8708 = vpack.c.b16 %v8697, %v8696
      %v8709 = vpack.c.b16 %v8699, %v8698
      %v8710 = vpack.c.b16 %v8701, %v8700
      %v8711 = vpack.c.b16 %v8703, %v8702
      %8720 = vmatprep.subr.bf16.mxu0 0
      %8721 = vmatpush1.bf16.msra.mxu0 %v8711
      %8722 = vmatprep.subr.bf16.mxu0 0
      %8723 = vmatpush1.bf16.msra.mxu0 %v8710
      %8724 = vmatprep.subr.bf16.mxu0 0
      %8725 = vmatpush1.bf16.msra.mxu0 %v8709
      %8726 = vmatprep.subr.bf16.mxu0 0
      %8727 = vmatpush1.bf16.msra.mxu0 %v8708
      %8728 = vmatprep.subr.bf16.mxu0 0
      %8729 = vmatpush1.bf16.msra.mxu0 %v8707
      %8730 = vmatprep.subr.bf16.mxu0 0
      %8731 = vmatpush1.bf16.msra.mxu0 %v8706
      %8732 = vmatprep.subr.bf16.mxu0 0
      %8733 = vmatpush1.bf16.msra.mxu0 %v8705
      %8734 = vmatprep.subr.bf16.mxu0 0
      %8735 = vmatpush1.bf16.msra.mxu0 %v8704
      %8736 = vmatprep.subr.bf16.mxu0 0
      %8737 = vmatpush2.bf16.msra.mxu0 0
      %8738 = vmatprep.subr.bf16.mxu0 0
      %8739 = vmatpush2.bf16.msra.mxu0 0
      %8740 = vmatprep.subr.bf16.mxu0 0
      %8741 = vmatpush2.bf16.msra.mxu0 0
      %8742 = vmatprep.subr.bf16.mxu0 0
      %8743 = vmatpush2.bf16.msra.mxu0 0
      %8744 = vmatprep.subr.bf16.mxu0 0
      %8745 = vmatpush2.bf16.msra.mxu0 0
      %8746 = vmatprep.subr.bf16.mxu0 0
      %8747 = vmatpush2.bf16.msra.mxu0 0
      %8748 = vmatprep.subr.bf16.mxu0 0
      %8749 = vmatpush2.bf16.msra.mxu0 0
      %8750 = vmatprep.subr.bf16.mxu0 0
      %8751 = vmatpush2.bf16.msra.mxu0 0
      %8752 = vmatprep.mubr.bf16.mxu0 0
      %8753 = vmatmul.mubr.bf16.gmra.mxu0 %v8648
      %v8754 = vpop.f32.mrf.mxu0
      %v8755 = vadd.f32 %v8670, %v8754
      %v8756 = vpop.f32.mrf.mxu0
      %v8757 = vpop.f32.mrf.mxu0
      %v8758 = vadd.f32 %v8670, %v8757
      %v8759 = vpop.f32.mrf.mxu0
      %8760 = vdwg.mxu0
      %v8761 = vmax.f32 %v8755, 0.0
      %v8762 = vmax.f32 %v8758, 0.0
      %v8763 = vpack.c.bf16 %v8762, %v8761
      %v8764 = vld [vmem:[%s8] sm:$0xf]
      %v8765 = vld [vmem:[%s8 + $0x4] sm:$0xf]
      %v8766 = vld [vmem:[%s8 + $0x8] sm:$0xf]
      %v8767 = vld [vmem:[%s8 + $0xc] sm:$0xf]
      %v8768 = vld [vmem:[%s8 + $0x10] sm:$0xf]
      %v8769 = vld [vmem:[%s8 + $0x14] sm:$0xf]
      %v8770 = vld [vmem:[%s8 + $0x18] sm:$0xf]
      %v8771 = vld [vmem:[%s8 + $0x1c] sm:$0xf]
      %v8772 = vld [vmem:[%s8 + $0x20] sm:$0xf]
      %v8773 = vld [vmem:[%s8 + $0x24] sm:$0xf]
      %v8774 = vld [vmem:[%s8 + $0x28] sm:$0xf]
      %v8775 = vld [vmem:[%s8 + $0x2c] sm:$0xf]
      %v8776 = vld [vmem:[%s8 + $0x30] sm:$0xf]
      %v8777 = vld [vmem:[%s8 + $0x34] sm:$0xf]
      %v8778 = vld [vmem:[%s8 + $0x38] sm:$0xf]
      %v8779 = vld [vmem:[%s8 + $0x3c] sm:$0xf]
      %v8780 = vld [vmem:[%s9] sm:$0x1]
      %v8782 = vlaneseq
      %v8783 = vshrl.u32 %v8782, 7
      %v8784 = vsub.s32 0, %v8783
      %v8785 = vrot.slane %v8780, %v8784
      %v8803 = vunpack.c.l.b16 %v8764
      %v8804 = vunpack.c.l.b16 %v8765
      %v8805 = vunpack.c.l.b16 %v8766
      %v8806 = vunpack.c.l.b16 %v8767
      %v8807 = vunpack.c.l.b16 %v8768
      %v8808 = vunpack.c.l.b16 %v8769
      %v8809 = vunpack.c.l.b16 %v8770
      %v8810 = vunpack.c.l.b16 %v8771
      %v8811 = vunpack.c.l.b16 %v8772
      %v8812 = vunpack.c.l.b16 %v8773
      %v8813 = vunpack.c.l.b16 %v8774
      %v8814 = vunpack.c.l.b16 %v8775
      %v8815 = vunpack.c.l.b16 %v8776
      %v8816 = vunpack.c.l.b16 %v8777
      %v8817 = vunpack.c.l.b16 %v8778
      %v8818 = vunpack.c.l.b16 %v8779
      %v8819 = vpack.c.b16 %v8804, %v8803
      %v8820 = vpack.c.b16 %v8806, %v8805
      %v8821 = vpack.c.b16 %v8808, %v8807
      %v8822 = vpack.c.b16 %v8810, %v8809
      %v8823 = vpack.c.b16 %v8812, %v8811
      %v8824 = vpack.c.b16 %v8814, %v8813
      %v8825 = vpack.c.b16 %v8816, %v8815
      %v8826 = vpack.c.b16 %v8818, %v8817
      %8835 = vmatprep.subr.bf16.mxu0 0
      %8836 = vmatpush1.bf16.msra.mxu0 %v8826
      %8837 = vmatprep.subr.bf16.mxu0 0
      %8838 = vmatpush1.bf16.msra.mxu0 %v8825
      %8839 = vmatprep.subr.bf16.mxu0 0
      %8840 = vmatpush1.bf16.msra.mxu0 %v8824
      %8841 = vmatprep.subr.bf16.mxu0 0
      %8842 = vmatpush1.bf16.msra.mxu0 %v8823
      %8843 = vmatprep.subr.bf16.mxu0 0
      %8844 = vmatpush1.bf16.msra.mxu0 %v8822
      %8845 = vmatprep.subr.bf16.mxu0 0
      %8846 = vmatpush1.bf16.msra.mxu0 %v8821
      %8847 = vmatprep.subr.bf16.mxu0 0
      %8848 = vmatpush1.bf16.msra.mxu0 %v8820
      %8849 = vmatprep.subr.bf16.mxu0 0
      %8850 = vmatpush1.bf16.msra.mxu0 %v8819
      %8851 = vmatprep.subr.bf16.mxu0 0
      %8852 = vmatpush2.bf16.msra.mxu0 0
      %8853 = vmatprep.subr.bf16.mxu0 0
      %8854 = vmatpush2.bf16.msra.mxu0 0
      %8855 = vmatprep.subr.bf16.mxu0 0
      %8856 = vmatpush2.bf16.msra.mxu0 0
      %8857 = vmatprep.subr.bf16.mxu0 0
      %8858 = vmatpush2.bf16.msra.mxu0 0
      %8859 = vmatprep.subr.bf16.mxu0 0
      %8860 = vmatpush2.bf16.msra.mxu0 0
      %8861 = vmatprep.subr.bf16.mxu0 0
      %8862 = vmatpush2.bf16.msra.mxu0 0
      %8863 = vmatprep.subr.bf16.mxu0 0
      %8864 = vmatpush2.bf16.msra.mxu0 0
      %8865 = vmatprep.subr.bf16.mxu0 0
      %8866 = vmatpush2.bf16.msra.mxu0 0
      %8867 = vmatprep.mubr.bf16.mxu0 0
      %8868 = vmatmul.mubr.bf16.gmra.mxu0 %v8763
      %v8869 = vpop.f32.mrf.mxu0
      %v8870 = vadd.f32 %v8785, %v8869
      %v8871 = vpop.f32.mrf.mxu0
      %v8872 = vpop.f32.mrf.mxu0
      %v8873 = vadd.f32 %v8785, %v8872
      %v8874 = vpop.f32.mrf.mxu0
      %8875 = vdwg.mxu0
      %8876 = vst [vmem:[%s359] sm:$0xff] %v8870
      %8877 = vst [vmem:[%s359 + $0x8] sm:$0xff] %v8873
      %s8878 = smul.u32 2, %s21
      %p8879 = scmp.lt.s32.totalorder %s8878, 3
      %s8880 = scalar_select %p8879, %s8878, 3
      %s8881 = smul.addr %s8880, 8
      %s8882 = scalar_lea.vmem %s10, %s8881
      // Predicated region
      $region61: #{neuralnet_forward.1} parent=59 // pred_check
        %p8883 = pneg %p254
      $region62: #{neuralnet_forward.1} parent=59 // pred_check_branch
        %8885 = sbr.rel (%p8883) target = $region64
      $region63: #{neuralnet_forward.1} parent=59 // pred_region
        %s8886 = smul.u32 2, %s21
      $region64: #{neuralnet_forward.1} parent=59 // pred_fallthru
        _
    $region60: #{neuralnet_forward.1} parent=5 // pred_fallthru
      _
    %p8887 = scmp.le.s32.totalorder 2, %s16
    // Predicated region
    $region65: #{neuralnet_forward.1} parent=5 // pred_check
      %p8888 = pneg %p8887
    $region66: #{neuralnet_forward.1} parent=5 // pred_check_branch
      %8890 = sbr.rel (%p8888) target = $region68
    $region67: #{neuralnet_forward.1} parent=5 // pred_region
      %s8891 = ssub.s32 %s16, 2
      // Predicated region
      $region69: #{neuralnet_forward.1} parent=67 // pred_check
        %p8892 = pneg %p260
      $region70: #{neuralnet_forward.1} parent=67 // pred_check_branch
        %8894 = sbr.rel (%p8892) target = $region72
      $region71: #{neuralnet_forward.1} parent=67 // pred_region
        %s8895 = smul.u32 2, %s22
        %p8896 = scmp.lt.s32.totalorder %s8895, 3
        %s8897 = scalar_select %p8896, %s8895, 3
        %s8898 = smul.addr %s8897, 8
        %s8899 = scalar_lea.vmem %s10, %s8898
      $region72: #{neuralnet_forward.1} parent=67 // pred_fallthru
        _
    $region68: #{neuralnet_forward.1} parent=5 // pred_fallthru
      _
  $region6: #{neuralnet_forward.1} parent=0 // loop_footer
    %s20 = sadd.s32 1, %s16
  $region7: #{neuralnet_forward.1} parent=0 // loop_footer_branch
    %15 = sbr.rel target = $region3
  $region8: #{neuralnet_forward.1} parent=0 // loop_exit
    _

</llo_original>
